<compile_context>
chip_gen: v7x
topology: tpu7x:2x2x1
jax: 0.10.0
libtpu: 0.0.40
codegen_flags: <defaults>
</compile_context>

<pallas_src>
import jax
import jax.numpy as jnp
from jax import lax
from jax.experimental import pallas as pl
from jax.experimental.pallas import tpu as pltpu

ATTN_D = 2                      # LocalAttention "windows"
ATTN_W = 2 * ATTN_D + 1         # window length


# ----------------------------------------------------------------------------
# Fused encoder + decoder kernel (single invocation, everything VMEM-resident)
# ----------------------------------------------------------------------------
def seq2seq_kernel(tf_ref, src_ref, trg_ref,
                   e_wi, e_wh, e_bc, e_bhn,
                   d_wi, d_wh, d_bc, d_bhn,
                   w_so, b_so, wv, bv, wa, ba,
                   out_ref):
    B, L, dim = src_ref.shape
    T = trg_ref.shape[1]
    H = d_wh.shape[0]
    H2 = 2 * H

    def gru_step(x, h, wi, wh, bc, bhn):
        # fused 3-gate GRU: one x@Wi and one h@Wh of width 3H, gates sliced out
        gi = jnp.dot(x, wi, preferred_element_type=jnp.float32)      # [B, 3H]
        gh = jnp.dot(h, wh, preferred_element_type=jnp.float32)      # [B, 3H]
        rz = jax.nn.sigmoid(gi[:, :H2] + gh[:, :H2] + bc[:, :H2])    # [B, 2H]
        r = rz[:, :H]
        z = rz[:, H:]
        n = jnp.tanh(gi[:, H2:] + bc[:, H2:] + r * (gh[:, H2:] + bhn))
        return (1.0 - z) * n + z * h

    # ------------------------------ encoder ------------------------------
    e_wi_v, e_wh_v = e_wi[...], e_wh[...]
    e_bc_v, e_bhn_v = e_bc[...], e_bhn[...]
    src_all = src_ref[...]                                            # [B, L, dim]

    h = jnp.zeros((B, H), jnp.float32)
    enc_states = []
    for t in range(L):                      # static trip count -> fully unrolled
        h = gru_step(src_all[:, t, :], h, e_wi_v, e_wh_v, e_bc_v, e_bhn_v)
        enc_states.append(h[:, None, :])
    enc_out = jnp.concatenate(enc_states, axis=1)                     # [B, L, H]

    # ------------------------------ decoder ------------------------------
    d_wi_v, d_wh_v = d_wi[...], d_wh[...]
    d_bc_v, d_bhn_v = d_bc[...], d_bhn[...]
    w_so_v, b_so_v = w_so[...], b_so[...]
    wv_v, bv_v = wv[...], bv[...]
    wa_v, ba_v = wa[...], ba[...]
    trg_all = trg_ref[...]                                            # [B, T, dim]

    S_const = float(L - 2 * ATTN_D - 1)
    sigma = ATTN_D / 2.0
    neg_inv_2sig2 = -1.0 / (2.0 * sigma * sigma)
    # constants hoisted out of the unrolled loop
    offs = lax.broadcasted_iota(jnp.int32, (1, ATTN_W), 1) - ATTN_D   # [1, W]
    liota = lax.broadcasted_iota(jnp.int32, (B, ATTN_W, L), 2)        # [B, W, L]

    ctx = jnp.zeros((B, H), jnp.float32)
    din = jnp.zeros((B, dim), jnp.float32)
    outs = []
    for t in range(T):                      # static trip count -> fully unrolled
        # GRU cell on concat(dec_input, last_context)
        x = jnp.concatenate([din, ctx], axis=1)                       # [B, dim+H]
        h = gru_step(x, h, d_wi_v, d_wh_v, d_bc_v, d_bhn_v)

        # fused omega_w projection + output projection (one matmul)
        proj = jnp.dot(h, w_so_v, preferred_element_type=jnp.float32) + b_so_v
        s_w = proj[:, :H]                                             # omega_w(s)
        dec_out = proj[:, H:]                                         # out(h)

        # predicted window centre pt
        sig_in = jnp.dot(jnp.tanh(s_w), wv_v,
                         preferred_element_type=jnp.float32) + bv_v   # [B, 1]
        pt = S_const * jax.nn.sigmoid(sig_in) + float(ATTN_D)         # [B, 1]
        pt_int = jnp.floor(pt).astype(jnp.int32)
        idx = pt_int + offs                                           # [B, W]

        # local-window gather via one-hot matmul (MXU-friendly; L is small here)
        # TODO(synk): for large src_len, stage pt in SMEM and gather the window
        #             with per-batch pl.ds dynamic slices instead (O(B*W*H)).
        onehot = (idx[:, :, None] == liota).astype(jnp.float32)       # [B, W, L]
        window = jnp.einsum('bwl,blh->bwh', onehot, enc_out,
                            preferred_element_type=jnp.float32)       # [B, W, H]
        enc_w = jnp.einsum('bwh,hk->bwk', window, wa_v,
                           preferred_element_type=jnp.float32) + ba_v  # [B, W, H]

        alpha_hat = jnp.sum(enc_w * h[:, None, :], axis=-1)           # [B, W]
        gauss = jnp.exp(jnp.square(idx.astype(jnp.float32) - pt) * neg_inv_2sig2)
        energies = alpha_hat * gauss
        e = jnp.exp(energies - jnp.max(energies, axis=1, keepdims=True))
        alpha = e / jnp.sum(e, axis=1, keepdims=True)                 # softmax over W
        ctx = jnp.sum(alpha[:, :, None] * enc_w, axis=1)              # [B, H]

        outs.append(dec_out[:, None, :])                              # [B, 1, dim]
        tf = tf_ref[t]                                                # SMEM scalar
        din = jnp.where(tf > 0, trg_all[:, t, :], dec_out)            # teacher forcing

    out_ref[...] = jnp.concatenate(outs, axis=1)                      # one bulk writeback


def seq2seq_forward(src, trg, tf_mask, kparams):
    """src [B, L, dim], trg [B, T, dim], tf_mask [T] int32, kparams = pack_params(...)."""
    B, L, dim = src.shape
    T = trg.shape[1]
    assert L > 2 * ATTN_D + 1, "src_len must exceed the local-attention window"

    vmem = pl.BlockSpec(memory_space=pltpu.MemorySpace.VMEM)
    smem = pl.BlockSpec(memory_space=pltpu.MemorySpace.SMEM)

    return pl.pallas_call(
        seq2seq_kernel,
        out_shape=jax.ShapeDtypeStruct((B, T, dim), jnp.float32),
        in_specs=[smem] + [vmem] * (2 + len(kparams)),
        out_specs=vmem,
    )(tf_mask.astype(jnp.int32), src, trg, *kparams)


# ----------------------------------------------------------------------------
# Parameter construction (PyTorch layouts) + packing for the fused kernel
# ----------------------------------------------------------------------------
def _split_gru(wih, whh, bih, bhh, H):
    wir, wiz, win = (wih[0:H].T, wih[H:2 * H].T, wih[2 * H:3 * H].T)
    whr, whz, whn = (whh[0:H].T, whh[H:2 * H].T, whh[2 * H:3 * H].T)
    bir, biz, bin_ = (bih[0:H][None], bih[H:2 * H][None], bih[2 * H:3 * H][None])
    bhr, bhz, bhn = (bhh[0:H][None], bhh[H:2 * H][None], bhh[2 * H:3 * H][None])
    return (wir, wiz, win, whr, whz, whn, bir, biz, bin_, bhr, bhz, bhn)


def init_params(key, dim, H):
    keys = jax.random.split(key, 16)

    def u(k, shape, fan_in):
        b = 1.0 / jnp.sqrt(jnp.float32(fan_in))
        return jax.random.uniform(k, shape, jnp.float32, -b, b)

    # encoder GRU (torch: weight_ih [3H, dim], weight_hh [3H, H], biases [3H])
    enc_p = _split_gru(u(keys[0], (3 * H, dim), H), u(keys[1], (3 * H, H), H),
                       u(keys[2], (3 * H,), H), u(keys[3], (3 * H,), H), H)

    # decoder GRU on input [dec_input(dim); context(H)]
    dec_gru = _split_gru(u(keys[4], (3 * H, dim + H), H), u(keys[5], (3 * H, H), H),
                         u(keys[6], (3 * H,), H), u(keys[7], (3 * H,), H), H)

    ww_t = u(keys[8], (H, H), H).T;  bw = u(keys[9], (H,), H)[None]        # omega_w
    wv_t = u(keys[10], (1, H), H).T; bv = u(keys[11], (1,), H)[None]       # omega_v
    wa_t = u(keys[12], (H, H), H).T; ba = u(keys[13], (H,), H)[None]       # attn (general)
    wo_t = u(keys[14], (dim, H), H).T; bo = u(keys[15], (dim,), H)[None]   # out

    dec_p = dec_gru + (ww_t, bw, wv_t, bv, wa_t, ba, wo_t, bo)
    return enc_p, dec_p


def pack_params(enc_p, dec_p):
    """Pack split/transposed params into the fused-kernel layout (done once, outside jit)."""
    def pack_gru(p):
        wir, wiz, win, whr, whz, whn, bir, biz, bin_, bhr, bhz, bhn = p
        wi = jnp.concatenate([wir, wiz, win], axis=1)                   # [in, 3H]
        wh = jnp.concatenate([whr, whz, whn], axis=1)                   # [H, 3H]
        bc = jnp.concatenate([bir + bhr, biz + bhz, bin_], axis=1)      # [1, 3H]
        return wi, wh, bc, bhn

    e_wi, e_wh, e_bc, e_bhn = pack_gru(enc_p)
    d_wi, d_wh, d_bc, d_bhn = pack_gru(dec_p[:12])
    ww, bw, wv, bv, wa, ba, wo, bo = dec_p[12:]
    w_so = jnp.concatenate([ww, wo], axis=1)                            # [H, H+dim]
    b_so = jnp.concatenate([bw, bo], axis=1)                            # [1, H+dim]
    return (e_wi, e_wh, e_bc, e_bhn, d_wi, d_wh, d_bc, d_bhn,
            w_so, b_so, wv, bv, wa, ba)


# ----------------------------------------------------------------------------
# Plain-JAX reference (same math, used to verify the kernel)
# ----------------------------------------------------------------------------
def _gru_cell(x, h, p):
    wir, wiz, win, whr, whz, whn, bir, biz, bin_, bhr, bhz, bhn = p
    r = jax.nn.sigmoid(x @ wir + bir + h @ whr + bhr)
    z = jax.nn.sigmoid(x @ wiz + biz + h @ whz + bhz)
    n = jnp.tanh(x @ win + bin_ + r * (h @ whn + bhn))
    return (1.0 - z) * n + z * h


def reference_forward(src, trg, tf_mask, enc_p, dec_p):
    B, L, dim = src.shape
    H = enc_p[3].shape[0]
    h = jnp.zeros((B, H), jnp.float32)
    enc_list = []
    for t in range(L):
        h = _gru_cell(src[:, t, :], h, enc_p)
        enc_list.append(h)
    enc_out = jnp.stack(enc_list, axis=1)

    gru_p = dec_p[:12]
    ww, bw, wv, bv, wa, ba, wo, bo = dec_p[12:]
    s_h, ctx = h, jnp.zeros((B, H), jnp.float32)
    din = jnp.zeros((B, dim), jnp.float32)
    S, sigma = float(L - 2 * ATTN_D - 1), ATTN_D / 2.0
    outs = []
    for t in range(trg.shape[1]):
        s_h = _gru_cell(jnp.concatenate([din, ctx], axis=1), s_h, gru_p)
        sig_in = jnp.tanh(s_h @ ww + bw) @ wv + bv
        pt = S * jax.nn.sigmoid(sig_in) + ATTN_D
        idx = jnp.floor(pt).astype(jnp.int32) + jnp.arange(-ATTN_D, ATTN_D + 1)[None, :]
        window = jnp.take_along_axis(enc_out, idx[:, :, None], axis=1)
        enc_w = window @ wa + ba
        alpha_hat = jnp.sum(enc_w * s_h[:, None, :], axis=-1)
        gauss = jnp.exp(-jnp.square(idx.astype(jnp.float32) - pt) / (2 * sigma * sigma))
        alpha = jax.nn.softmax(alpha_hat * gauss, axis=1)
        ctx = jnp.sum(alpha[:, :, None] * enc_w, axis=1)
        dec_out = s_h @ wo + bo
        outs.append(dec_out)
        din = jnp.where(tf_mask[t] > 0, trg[:, t, :], dec_out)
    return jnp.stack(outs, axis=1)


# ----------------------------------------------------------------------------
if __name__ == "__main__":
    B, SRC_LEN, TRG_LEN, DIM, HIDDEN = 2, 16, 6, 8, 32   # attention s_len == SRC_LEN

    key = jax.random.PRNGKey(0)
    k_src, k_trg, k_tf, k_par = jax.random.split(key, 4)
    src = jax.random.normal(k_src, (B, SRC_LEN, DIM), jnp.float32)
    trg = jax.random.normal(k_trg, (B, TRG_LEN, DIM), jnp.float32)
    # deterministic stand-in for random.random() < teaching_force_ratio (ratio = 0.5)
    tf_mask = (jax.random.uniform(k_tf, (TRG_LEN,)) < 0.5).astype(jnp.int32)

    enc_p, dec_p = init_params(k_par, DIM, HIDDEN)
    kparams = pack_params(enc_p, dec_p)            # packed once, outside jit

    out = jax.jit(seq2seq_forward)(src, trg, tf_mask, kparams)
    out = jax.block_until_ready(out)

    ref = reference_forward(src, trg, tf_mask, enc_p, dec_p)
    assert out.shape == (B, TRG_LEN, DIM)
    assert bool(jnp.allclose(out, ref, atol=2e-3, rtol=2e-3)), "mismatch vs reference"

    print("KERNEL_OK")
</pallas_src>

<mosaic_0001>
module attributes {stable_mosaic.version = 11 : i64} {
  func.func @seq2seq_kernel(%arg0: memref<6xi32, #tpu.memory_space<smem>>, %arg1: memref<2x16x8xf32, #tpu.memory_space<vmem>>, %arg2: memref<2x6x8xf32, #tpu.memory_space<vmem>>, %arg3: memref<8x96xf32, #tpu.memory_space<vmem>>, %arg4: memref<32x96xf32, #tpu.memory_space<vmem>>, %arg5: memref<1x96xf32, #tpu.memory_space<vmem>>, %arg6: memref<1x32xf32, #tpu.memory_space<vmem>>, %arg7: memref<40x96xf32, #tpu.memory_space<vmem>>, %arg8: memref<32x96xf32, #tpu.memory_space<vmem>>, %arg9: memref<1x96xf32, #tpu.memory_space<vmem>>, %arg10: memref<1x32xf32, #tpu.memory_space<vmem>>, %arg11: memref<32x40xf32, #tpu.memory_space<vmem>>, %arg12: memref<1x40xf32, #tpu.memory_space<vmem>>, %arg13: memref<32x1xf32, #tpu.memory_space<vmem>>, %arg14: memref<1x1xf32, #tpu.memory_space<vmem>>, %arg15: memref<32x32xf32, #tpu.memory_space<vmem>>, %arg16: memref<1x32xf32, #tpu.memory_space<vmem>>, %arg17: memref<2x6x8xf32, #tpu.memory_space<vmem>>) attributes {dimension_semantics = [], scalar_prefetch = 0 : i64, scratch_operands = 0 : i64, tpu.core_type = #tpu.core_type<tc>} {
    %c0 = arith.constant 0 : index
    %c0_0 = arith.constant 0 : index
    %0 = vector.load %arg3[%c0, %c0_0] : memref<8x96xf32, #tpu.memory_space<vmem>>, vector<8x96xf32>
    %c0_1 = arith.constant 0 : index
    %c0_2 = arith.constant 0 : index
    %1 = vector.load %arg4[%c0_1, %c0_2] : memref<32x96xf32, #tpu.memory_space<vmem>>, vector<32x96xf32>
    %c0_3 = arith.constant 0 : index
    %c0_4 = arith.constant 0 : index
    %2 = vector.load %arg5[%c0_3, %c0_4] : memref<1x96xf32, #tpu.memory_space<vmem>>, vector<1x96xf32>
    %c0_5 = arith.constant 0 : index
    %c0_6 = arith.constant 0 : index
    %3 = vector.load %arg6[%c0_5, %c0_6] : memref<1x32xf32, #tpu.memory_space<vmem>>, vector<1x32xf32>
    %c0_7 = arith.constant 0 : index
    %c0_8 = arith.constant 0 : index
    %c0_9 = arith.constant 0 : index
    %4 = vector.load %arg1[%c0_7, %c0_8, %c0_9] : memref<2x16x8xf32, #tpu.memory_space<vmem>>, vector<2x16x8xf32>
    %cst = arith.constant 0.000000e+00 : f32
    %5 = vector.broadcast %cst : f32 to vector<2x32xf32>
    %6 = vector.extract_strided_slice %4 {offsets = [0, 0, 0], sizes = [2, 1, 8], strides = [1, 1, 1]} : vector<2x16x8xf32> to vector<2x1x8xf32>
    %7 = vector.shape_cast %6 : vector<2x1x8xf32> to vector<2x8xf32>
    %cst_10 = arith.constant dense<0.000000e+00> : vector<2x96xf32>
    %8 = tpu.matmul %7, %0, %cst_10 {dimension_numbers = #tpu.dot_dimension_numbers<[1], [0], [0], [1], [0, 0, 1, 1], [], []>} : vector<2x8xf32>, vector<8x96xf32>, vector<2x96xf32> -> vector<2x96xf32>
    %cst_11 = arith.constant dense<0.000000e+00> : vector<2x96xf32>
    %9 = tpu.matmul %5, %1, %cst_11 {dimension_numbers = #tpu.dot_dimension_numbers<[1], [0], [0], [1], [0, 0, 1, 1], [], []>} : vector<2x32xf32>, vector<32x96xf32>, vector<2x96xf32> -> vector<2x96xf32>
    %10 = vector.extract_strided_slice %8 {offsets = [0, 0], sizes = [2, 64], strides = [1, 1]} : vector<2x96xf32> to vector<2x64xf32>
    %11 = vector.extract_strided_slice %9 {offsets = [0, 0], sizes = [2, 64], strides = [1, 1]} : vector<2x96xf32> to vector<2x64xf32>
    %12 = arith.addf %10, %11 : vector<2x64xf32>
    %13 = vector.extract_strided_slice %2 {offsets = [0, 0], sizes = [1, 64], strides = [1, 1]} : vector<1x96xf32> to vector<1x64xf32>
    %14 = vector.broadcast %13 : vector<1x64xf32> to vector<2x64xf32>
    %15 = arith.addf %12, %14 : vector<2x64xf32>
    %16 = arith.negf %15 : vector<2x64xf32>
    %17 = math.exp %16 : vector<2x64xf32>
    %cst_12 = arith.constant 1.000000e+00 : f32
    %18 = vector.broadcast %cst_12 : f32 to vector<2x64xf32>
    %19 = arith.addf %18, %17 : vector<2x64xf32>
    %20 = arith.divf %18, %19 : vector<2x64xf32>
    %21 = vector.extract_strided_slice %20 {offsets = [0, 0], sizes = [2, 32], strides = [1, 1]} : vector<2x64xf32> to vector<2x32xf32>
    %22 = vector.extract_strided_slice %20 {offsets = [0, 32], sizes = [2, 32], strides = [1, 1]} : vector<2x64xf32> to vector<2x32xf32>
    %23 = vector.extract_strided_slice %8 {offsets = [0, 64], sizes = [2, 32], strides = [1, 1]} : vector<2x96xf32> to vector<2x32xf32>
    %24 = vector.extract_strided_slice %2 {offsets = [0, 64], sizes = [1, 32], strides = [1, 1]} : vector<1x96xf32> to vector<1x32xf32>
    %25 = vector.broadcast %24 : vector<1x32xf32> to vector<2x32xf32>
    %26 = arith.addf %23, %25 : vector<2x32xf32>
    %27 = vector.extract_strided_slice %9 {offsets = [0, 64], sizes = [2, 32], strides = [1, 1]} : vector<2x96xf32> to vector<2x32xf32>
    %28 = vector.broadcast %3 : vector<1x32xf32> to vector<2x32xf32>
    %29 = arith.addf %27, %28 : vector<2x32xf32>
    %30 = arith.mulf %21, %29 : vector<2x32xf32>
    %31 = arith.addf %26, %30 : vector<2x32xf32>
    %32 = math.tanh %31 : vector<2x32xf32>
    %cst_13 = arith.constant 1.000000e+00 : f32
    %33 = vector.broadcast %cst_13 : f32 to vector<2x32xf32>
    %34 = arith.subf %33, %22 : vector<2x32xf32>
    %35 = arith.mulf %34, %32 : vector<2x32xf32>
    %36 = arith.mulf %22, %5 : vector<2x32xf32>
    %37 = arith.addf %35, %36 : vector<2x32xf32>
    %38 = vector.shape_cast %37 : vector<2x32xf32> to vector<2x1x32xf32>
    %39 = vector.extract_strided_slice %4 {offsets = [0, 1, 0], sizes = [2, 1, 8], strides = [1, 1, 1]} : vector<2x16x8xf32> to vector<2x1x8xf32>
    %40 = vector.shape_cast %39 : vector<2x1x8xf32> to vector<2x8xf32>
    %cst_14 = arith.constant dense<0.000000e+00> : vector<2x96xf32>
    %41 = tpu.matmul %40, %0, %cst_14 {dimension_numbers = #tpu.dot_dimension_numbers<[1], [0], [0], [1], [0, 0, 1, 1], [], []>} : vector<2x8xf32>, vector<8x96xf32>, vector<2x96xf32> -> vector<2x96xf32>
    %cst_15 = arith.constant dense<0.000000e+00> : vector<2x96xf32>
    %42 = tpu.matmul %37, %1, %cst_15 {dimension_numbers = #tpu.dot_dimension_numbers<[1], [0], [0], [1], [0, 0, 1, 1], [], []>} : vector<2x32xf32>, vector<32x96xf32>, vector<2x96xf32> -> vector<2x96xf32>
    %43 = vector.extract_strided_slice %41 {offsets = [0, 0], sizes = [2, 64], strides = [1, 1]} : vector<2x96xf32> to vector<2x64xf32>
    %44 = vector.extract_strided_slice %42 {offsets = [0, 0], sizes = [2, 64], strides = [1, 1]} : vector<2x96xf32> to vector<2x64xf32>
    %45 = arith.addf %43, %44 : vector<2x64xf32>
    %46 = vector.extract_strided_slice %2 {offsets = [0, 0], sizes = [1, 64], strides = [1, 1]} : vector<1x96xf32> to vector<1x64xf32>
    %47 = vector.broadcast %46 : vector<1x64xf32> to vector<2x64xf32>
    %48 = arith.addf %45, %47 : vector<2x64xf32>
    %49 = arith.negf %48 : vector<2x64xf32>
    %50 = math.exp %49 : vector<2x64xf32>
    %cst_16 = arith.constant 1.000000e+00 : f32
    %51 = vector.broadcast %cst_16 : f32 to vector<2x64xf32>
    %52 = arith.addf %51, %50 : vector<2x64xf32>
    %53 = arith.divf %51, %52 : vector<2x64xf32>
    %54 = vector.extract_strided_slice %53 {offsets = [0, 0], sizes = [2, 32], strides = [1, 1]} : vector<2x64xf32> to vector<2x32xf32>
    %55 = vector.extract_strided_slice %53 {offsets = [0, 32], sizes = [2, 32], strides = [1, 1]} : vector<2x64xf32> to vector<2x32xf32>
    %56 = vector.extract_strided_slice %41 {offsets = [0, 64], sizes = [2, 32], strides = [1, 1]} : vector<2x96xf32> to vector<2x32xf32>
    %57 = vector.extract_strided_slice %2 {offsets = [0, 64], sizes = [1, 32], strides = [1, 1]} : vector<1x96xf32> to vector<1x32xf32>
    %58 = vector.broadcast %57 : vector<1x32xf32> to vector<2x32xf32>
    %59 = arith.addf %56, %58 : vector<2x32xf32>
    %60 = vector.extract_strided_slice %42 {offsets = [0, 64], sizes = [2, 32], strides = [1, 1]} : vector<2x96xf32> to vector<2x32xf32>
    %61 = vector.broadcast %3 : vector<1x32xf32> to vector<2x32xf32>
    %62 = arith.addf %60, %61 : vector<2x32xf32>
    %63 = arith.mulf %54, %62 : vector<2x32xf32>
    %64 = arith.addf %59, %63 : vector<2x32xf32>
    %65 = math.tanh %64 : vector<2x32xf32>
    %cst_17 = arith.constant 1.000000e+00 : f32
    %66 = vector.broadcast %cst_17 : f32 to vector<2x32xf32>
    %67 = arith.subf %66, %55 : vector<2x32xf32>
    %68 = arith.mulf %67, %65 : vector<2x32xf32>
    %69 = arith.mulf %55, %37 : vector<2x32xf32>
    %70 = arith.addf %68, %69 : vector<2x32xf32>
    %71 = vector.shape_cast %70 : vector<2x32xf32> to vector<2x1x32xf32>
    %72 = vector.extract_strided_slice %4 {offsets = [0, 2, 0], sizes = [2, 1, 8], strides = [1, 1, 1]} : vector<2x16x8xf32> to vector<2x1x8xf32>
    %73 = vector.shape_cast %72 : vector<2x1x8xf32> to vector<2x8xf32>
    %cst_18 = arith.constant dense<0.000000e+00> : vector<2x96xf32>
    %74 = tpu.matmul %73, %0, %cst_18 {dimension_numbers = #tpu.dot_dimension_numbers<[1], [0], [0], [1], [0, 0, 1, 1], [], []>} : vector<2x8xf32>, vector<8x96xf32>, vector<2x96xf32> -> vector<2x96xf32>
    %cst_19 = arith.constant dense<0.000000e+00> : vector<2x96xf32>
    %75 = tpu.matmul %70, %1, %cst_19 {dimension_numbers = #tpu.dot_dimension_numbers<[1], [0], [0], [1], [0, 0, 1, 1], [], []>} : vector<2x32xf32>, vector<32x96xf32>, vector<2x96xf32> -> vector<2x96xf32>
    %76 = vector.extract_strided_slice %74 {offsets = [0, 0], sizes = [2, 64], strides = [1, 1]} : vector<2x96xf32> to vector<2x64xf32>
    %77 = vector.extract_strided_slice %75 {offsets = [0, 0], sizes = [2, 64], strides = [1, 1]} : vector<2x96xf32> to vector<2x64xf32>
    %78 = arith.addf %76, %77 : vector<2x64xf32>
    %79 = vector.extract_strided_slice %2 {offsets = [0, 0], sizes = [1, 64], strides = [1, 1]} : vector<1x96xf32> to vector<1x64xf32>
    %80 = vector.broadcast %79 : vector<1x64xf32> to vector<2x64xf32>
    %81 = arith.addf %78, %80 : vector<2x64xf32>
    %82 = arith.negf %81 : vector<2x64xf32>
    %83 = math.exp %82 : vector<2x64xf32>
    %cst_20 = arith.constant 1.000000e+00 : f32
    %84 = vector.broadcast %cst_20 : f32 to vector<2x64xf32>
    %85 = arith.addf %84, %83 : vector<2x64xf32>
    %86 = arith.divf %84, %85 : vector<2x64xf32>
    %87 = vector.extract_strided_slice %86 {offsets = [0, 0], sizes = [2, 32], strides = [1, 1]} : vector<2x64xf32> to vector<2x32xf32>
    %88 = vector.extract_strided_slice %86 {offsets = [0, 32], sizes = [2, 32], strides = [1, 1]} : vector<2x64xf32> to vector<2x32xf32>
    %89 = vector.extract_strided_slice %74 {offsets = [0, 64], sizes = [2, 32], strides = [1, 1]} : vector<2x96xf32> to vector<2x32xf32>
    %90 = vector.extract_strided_slice %2 {offsets = [0, 64], sizes = [1, 32], strides = [1, 1]} : vector<1x96xf32> to vector<1x32xf32>
    %91 = vector.broadcast %90 : vector<1x32xf32> to vector<2x32xf32>
    %92 = arith.addf %89, %91 : vector<2x32xf32>
    %93 = vector.extract_strided_slice %75 {offsets = [0, 64], sizes = [2, 32], strides = [1, 1]} : vector<2x96xf32> to vector<2x32xf32>
    %94 = vector.broadcast %3 : vector<1x32xf32> to vector<2x32xf32>
    %95 = arith.addf %93, %94 : vector<2x32xf32>
    %96 = arith.mulf %87, %95 : vector<2x32xf32>
    %97 = arith.addf %92, %96 : vector<2x32xf32>
    %98 = math.tanh %97 : vector<2x32xf32>
    %cst_21 = arith.constant 1.000000e+00 : f32
    %99 = vector.broadcast %cst_21 : f32 to vector<2x32xf32>
    %100 = arith.subf %99, %88 : vector<2x32xf32>
    %101 = arith.mulf %100, %98 : vector<2x32xf32>
    %102 = arith.mulf %88, %70 : vector<2x32xf32>
    %103 = arith.addf %101, %102 : vector<2x32xf32>
    %104 = vector.shape_cast %103 : vector<2x32xf32> to vector<2x1x32xf32>
    %105 = vector.extract_strided_slice %4 {offsets = [0, 3, 0], sizes = [2, 1, 8], strides = [1, 1, 1]} : vector<2x16x8xf32> to vector<2x1x8xf32>
    %106 = vector.shape_cast %105 : vector<2x1x8xf32> to vector<2x8xf32>
    %cst_22 = arith.constant dense<0.000000e+00> : vector<2x96xf32>
    %107 = tpu.matmul %106, %0, %cst_22 {dimension_numbers = #tpu.dot_dimension_numbers<[1], [0], [0], [1], [0, 0, 1, 1], [], []>} : vector<2x8xf32>, vector<8x96xf32>, vector<2x96xf32> -> vector<2x96xf32>
    %cst_23 = arith.constant dense<0.000000e+00> : vector<2x96xf32>
    %108 = tpu.matmul %103, %1, %cst_23 {dimension_numbers = #tpu.dot_dimension_numbers<[1], [0], [0], [1], [0, 0, 1, 1], [], []>} : vector<2x32xf32>, vector<32x96xf32>, vector<2x96xf32> -> vector<2x96xf32>
    %109 = vector.extract_strided_slice %107 {offsets = [0, 0], sizes = [2, 64], strides = [1, 1]} : vector<2x96xf32> to vector<2x64xf32>
    %110 = vector.extract_strided_slice %108 {offsets = [0, 0], sizes = [2, 64], strides = [1, 1]} : vector<2x96xf32> to vector<2x64xf32>
    %111 = arith.addf %109, %110 : vector<2x64xf32>
    %112 = vector.extract_strided_slice %2 {offsets = [0, 0], sizes = [1, 64], strides = [1, 1]} : vector<1x96xf32> to vector<1x64xf32>
    %113 = vector.broadcast %112 : vector<1x64xf32> to vector<2x64xf32>
    %114 = arith.addf %111, %113 : vector<2x64xf32>
    %115 = arith.negf %114 : vector<2x64xf32>
    %116 = math.exp %115 : vector<2x64xf32>
    %cst_24 = arith.constant 1.000000e+00 : f32
    %117 = vector.broadcast %cst_24 : f32 to vector<2x64xf32>
    %118 = arith.addf %117, %116 : vector<2x64xf32>
    %119 = arith.divf %117, %118 : vector<2x64xf32>
    %120 = vector.extract_strided_slice %119 {offsets = [0, 0], sizes = [2, 32], strides = [1, 1]} : vector<2x64xf32> to vector<2x32xf32>
    %121 = vector.extract_strided_slice %119 {offsets = [0, 32], sizes = [2, 32], strides = [1, 1]} : vector<2x64xf32> to vector<2x32xf32>
    %122 = vector.extract_strided_slice %107 {offsets = [0, 64], sizes = [2, 32], strides = [1, 1]} : vector<2x96xf32> to vector<2x32xf32>
    %123 = vector.extract_strided_slice %2 {offsets = [0, 64], sizes = [1, 32], strides = [1, 1]} : vector<1x96xf32> to vector<1x32xf32>
    %124 = vector.broadcast %123 : vector<1x32xf32> to vector<2x32xf32>
    %125 = arith.addf %122, %124 : vector<2x32xf32>
    %126 = vector.extract_strided_slice %108 {offsets = [0, 64], sizes = [2, 32], strides = [1, 1]} : vector<2x96xf32> to vector<2x32xf32>
    %127 = vector.broadcast %3 : vector<1x32xf32> to vector<2x32xf32>
    %128 = arith.addf %126, %127 : vector<2x32xf32>
    %129 = arith.mulf %120, %128 : vector<2x32xf32>
    %130 = arith.addf %125, %129 : vector<2x32xf32>
    %131 = math.tanh %130 : vector<2x32xf32>
    %cst_25 = arith.constant 1.000000e+00 : f32
    %132 = vector.broadcast %cst_25 : f32 to vector<2x32xf32>
    %133 = arith.subf %132, %121 : vector<2x32xf32>
    %134 = arith.mulf %133, %131 : vector<2x32xf32>
    %135 = arith.mulf %121, %103 : vector<2x32xf32>
    %136 = arith.addf %134, %135 : vector<2x32xf32>
    %137 = vector.shape_cast %136 : vector<2x32xf32> to vector<2x1x32xf32>
    %138 = vector.extract_strided_slice %4 {offsets = [0, 4, 0], sizes = [2, 1, 8], strides = [1, 1, 1]} : vector<2x16x8xf32> to vector<2x1x8xf32>
    %139 = vector.shape_cast %138 : vector<2x1x8xf32> to vector<2x8xf32>
    %cst_26 = arith.constant dense<0.000000e+00> : vector<2x96xf32>
    %140 = tpu.matmul %139, %0, %cst_26 {dimension_numbers = #tpu.dot_dimension_numbers<[1], [0], [0], [1], [0, 0, 1, 1], [], []>} : vector<2x8xf32>, vector<8x96xf32>, vector<2x96xf32> -> vector<2x96xf32>
    %cst_27 = arith.constant dense<0.000000e+00> : vector<2x96xf32>
    %141 = tpu.matmul %136, %1, %cst_27 {dimension_numbers = #tpu.dot_dimension_numbers<[1], [0], [0], [1], [0, 0, 1, 1], [], []>} : vector<2x32xf32>, vector<32x96xf32>, vector<2x96xf32> -> vector<2x96xf32>
    %142 = vector.extract_strided_slice %140 {offsets = [0, 0], sizes = [2, 64], strides = [1, 1]} : vector<2x96xf32> to vector<2x64xf32>
    %143 = vector.extract_strided_slice %141 {offsets = [0, 0], sizes = [2, 64], strides = [1, 1]} : vector<2x96xf32> to vector<2x64xf32>
    %144 = arith.addf %142, %143 : vector<2x64xf32>
    %145 = vector.extract_strided_slice %2 {offsets = [0, 0], sizes = [1, 64], strides = [1, 1]} : vector<1x96xf32> to vector<1x64xf32>
    %146 = vector.broadcast %145 : vector<1x64xf32> to vector<2x64xf32>
    %147 = arith.addf %144, %146 : vector<2x64xf32>
    %148 = arith.negf %147 : vector<2x64xf32>
    %149 = math.exp %148 : vector<2x64xf32>
    %cst_28 = arith.constant 1.000000e+00 : f32
    %150 = vector.broadcast %cst_28 : f32 to vector<2x64xf32>
    %151 = arith.addf %150, %149 : vector<2x64xf32>
    %152 = arith.divf %150, %151 : vector<2x64xf32>
    %153 = vector.extract_strided_slice %152 {offsets = [0, 0], sizes = [2, 32], strides = [1, 1]} : vector<2x64xf32> to vector<2x32xf32>
    %154 = vector.extract_strided_slice %152 {offsets = [0, 32], sizes = [2, 32], strides = [1, 1]} : vector<2x64xf32> to vector<2x32xf32>
    %155 = vector.extract_strided_slice %140 {offsets = [0, 64], sizes = [2, 32], strides = [1, 1]} : vector<2x96xf32> to vector<2x32xf32>
    %156 = vector.extract_strided_slice %2 {offsets = [0, 64], sizes = [1, 32], strides = [1, 1]} : vector<1x96xf32> to vector<1x32xf32>
    %157 = vector.broadcast %156 : vector<1x32xf32> to vector<2x32xf32>
    %158 = arith.addf %155, %157 : vector<2x32xf32>
    %159 = vector.extract_strided_slice %141 {offsets = [0, 64], sizes = [2, 32], strides = [1, 1]} : vector<2x96xf32> to vector<2x32xf32>
    %160 = vector.broadcast %3 : vector<1x32xf32> to vector<2x32xf32>
    %161 = arith.addf %159, %160 : vector<2x32xf32>
    %162 = arith.mulf %153, %161 : vector<2x32xf32>
    %163 = arith.addf %158, %162 : vector<2x32xf32>
    %164 = math.tanh %163 : vector<2x32xf32>
    %cst_29 = arith.constant 1.000000e+00 : f32
    %165 = vector.broadcast %cst_29 : f32 to vector<2x32xf32>
    %166 = arith.subf %165, %154 : vector<2x32xf32>
    %167 = arith.mulf %166, %164 : vector<2x32xf32>
    %168 = arith.mulf %154, %136 : vector<2x32xf32>
    %169 = arith.addf %167, %168 : vector<2x32xf32>
    %170 = vector.shape_cast %169 : vector<2x32xf32> to vector<2x1x32xf32>
    %171 = vector.extract_strided_slice %4 {offsets = [0, 5, 0], sizes = [2, 1, 8], strides = [1, 1, 1]} : vector<2x16x8xf32> to vector<2x1x8xf32>
    %172 = vector.shape_cast %171 : vector<2x1x8xf32> to vector<2x8xf32>
    %cst_30 = arith.constant dense<0.000000e+00> : vector<2x96xf32>
    %173 = tpu.matmul %172, %0, %cst_30 {dimension_numbers = #tpu.dot_dimension_numbers<[1], [0], [0], [1], [0, 0, 1, 1], [], []>} : vector<2x8xf32>, vector<8x96xf32>, vector<2x96xf32> -> vector<2x96xf32>
    %cst_31 = arith.constant dense<0.000000e+00> : vector<2x96xf32>
    %174 = tpu.matmul %169, %1, %cst_31 {dimension_numbers = #tpu.dot_dimension_numbers<[1], [0], [0], [1], [0, 0, 1, 1], [], []>} : vector<2x32xf32>, vector<32x96xf32>, vector<2x96xf32> -> vector<2x96xf32>
    %175 = vector.extract_strided_slice %173 {offsets = [0, 0], sizes = [2, 64], strides = [1, 1]} : vector<2x96xf32> to vector<2x64xf32>
    %176 = vector.extract_strided_slice %174 {offsets = [0, 0], sizes = [2, 64], strides = [1, 1]} : vector<2x96xf32> to vector<2x64xf32>
    %177 = arith.addf %175, %176 : vector<2x64xf32>
    %178 = vector.extract_strided_slice %2 {offsets = [0, 0], sizes = [1, 64], strides = [1, 1]} : vector<1x96xf32> to vector<1x64xf32>
    %179 = vector.broadcast %178 : vector<1x64xf32> to vector<2x64xf32>
    %180 = arith.addf %177, %179 : vector<2x64xf32>
    %181 = arith.negf %180 : vector<2x64xf32>
    %182 = math.exp %181 : vector<2x64xf32>
    %cst_32 = arith.constant 1.000000e+00 : f32
    %183 = vector.broadcast %cst_32 : f32 to vector<2x64xf32>
    %184 = arith.addf %183, %182 : vector<2x64xf32>
    %185 = arith.divf %183, %184 : vector<2x64xf32>
    %186 = vector.extract_strided_slice %185 {offsets = [0, 0], sizes = [2, 32], strides = [1, 1]} : vector<2x64xf32> to vector<2x32xf32>
    %187 = vector.extract_strided_slice %185 {offsets = [0, 32], sizes = [2, 32], strides = [1, 1]} : vector<2x64xf32> to vector<2x32xf32>
    %188 = vector.extract_strided_slice %173 {offsets = [0, 64], sizes = [2, 32], strides = [1, 1]} : vector<2x96xf32> to vector<2x32xf32>
    %189 = vector.extract_strided_slice %2 {offsets = [0, 64], sizes = [1, 32], strides = [1, 1]} : vector<1x96xf32> to vector<1x32xf32>
    %190 = vector.broadcast %189 : vector<1x32xf32> to vector<2x32xf32>
    %191 = arith.addf %188, %190 : vector<2x32xf32>
    %192 = vector.extract_strided_slice %174 {offsets = [0, 64], sizes = [2, 32], strides = [1, 1]} : vector<2x96xf32> to vector<2x32xf32>
    %193 = vector.broadcast %3 : vector<1x32xf32> to vector<2x32xf32>
    %194 = arith.addf %192, %193 : vector<2x32xf32>
    %195 = arith.mulf %186, %194 : vector<2x32xf32>
    %196 = arith.addf %191, %195 : vector<2x32xf32>
    %197 = math.tanh %196 : vector<2x32xf32>
    %cst_33 = arith.constant 1.000000e+00 : f32
    %198 = vector.broadcast %cst_33 : f32 to vector<2x32xf32>
    %199 = arith.subf %198, %187 : vector<2x32xf32>
    %200 = arith.mulf %199, %197 : vector<2x32xf32>
    %201 = arith.mulf %187, %169 : vector<2x32xf32>
    %202 = arith.addf %200, %201 : vector<2x32xf32>
    %203 = vector.shape_cast %202 : vector<2x32xf32> to vector<2x1x32xf32>
    %204 = vector.extract_strided_slice %4 {offsets = [0, 6, 0], sizes = [2, 1, 8], strides = [1, 1, 1]} : vector<2x16x8xf32> to vector<2x1x8xf32>
    %205 = vector.shape_cast %204 : vector<2x1x8xf32> to vector<2x8xf32>
    %cst_34 = arith.constant dense<0.000000e+00> : vector<2x96xf32>
    %206 = tpu.matmul %205, %0, %cst_34 {dimension_numbers = #tpu.dot_dimension_numbers<[1], [0], [0], [1], [0, 0, 1, 1], [], []>} : vector<2x8xf32>, vector<8x96xf32>, vector<2x96xf32> -> vector<2x96xf32>
    %cst_35 = arith.constant dense<0.000000e+00> : vector<2x96xf32>
    %207 = tpu.matmul %202, %1, %cst_35 {dimension_numbers = #tpu.dot_dimension_numbers<[1], [0], [0], [1], [0, 0, 1, 1], [], []>} : vector<2x32xf32>, vector<32x96xf32>, vector<2x96xf32> -> vector<2x96xf32>
    %208 = vector.extract_strided_slice %206 {offsets = [0, 0], sizes = [2, 64], strides = [1, 1]} : vector<2x96xf32> to vector<2x64xf32>
    %209 = vector.extract_strided_slice %207 {offsets = [0, 0], sizes = [2, 64], strides = [1, 1]} : vector<2x96xf32> to vector<2x64xf32>
    %210 = arith.addf %208, %209 : vector<2x64xf32>
    %211 = vector.extract_strided_slice %2 {offsets = [0, 0], sizes = [1, 64], strides = [1, 1]} : vector<1x96xf32> to vector<1x64xf32>
    %212 = vector.broadcast %211 : vector<1x64xf32> to vector<2x64xf32>
    %213 = arith.addf %210, %212 : vector<2x64xf32>
    %214 = arith.negf %213 : vector<2x64xf32>
    %215 = math.exp %214 : vector<2x64xf32>
    %cst_36 = arith.constant 1.000000e+00 : f32
    %216 = vector.broadcast %cst_36 : f32 to vector<2x64xf32>
    %217 = arith.addf %216, %215 : vector<2x64xf32>
    %218 = arith.divf %216, %217 : vector<2x64xf32>
    %219 = vector.extract_strided_slice %218 {offsets = [0, 0], sizes = [2, 32], strides = [1, 1]} : vector<2x64xf32> to vector<2x32xf32>
    %220 = vector.extract_strided_slice %218 {offsets = [0, 32], sizes = [2, 32], strides = [1, 1]} : vector<2x64xf32> to vector<2x32xf32>
    %221 = vector.extract_strided_slice %206 {offsets = [0, 64], sizes = [2, 32], strides = [1, 1]} : vector<2x96xf32> to vector<2x32xf32>
    %222 = vector.extract_strided_slice %2 {offsets = [0, 64], sizes = [1, 32], strides = [1, 1]} : vector<1x96xf32> to vector<1x32xf32>
    %223 = vector.broadcast %222 : vector<1x32xf32> to vector<2x32xf32>
    %224 = arith.addf %221, %223 : vector<2x32xf32>
    %225 = vector.extract_strided_slice %207 {offsets = [0, 64], sizes = [2, 32], strides = [1, 1]} : vector<2x96xf32> to vector<2x32xf32>
    %226 = vector.broadcast %3 : vector<1x32xf32> to vector<2x32xf32>
    %227 = arith.addf %225, %226 : vector<2x32xf32>
    %228 = arith.mulf %219, %227 : vector<2x32xf32>
    %229 = arith.addf %224, %228 : vector<2x32xf32>
    %230 = math.tanh %229 : vector<2x32xf32>
    %cst_37 = arith.constant 1.000000e+00 : f32
    %231 = vector.broadcast %cst_37 : f32 to vector<2x32xf32>
    %232 = arith.subf %231, %220 : vector<2x32xf32>
    %233 = arith.mulf %232, %230 : vector<2x32xf32>
    %234 = arith.mulf %220, %202 : vector<2x32xf32>
    %235 = arith.addf %233, %234 : vector<2x32xf32>
    %236 = vector.shape_cast %235 : vector<2x32xf32> to vector<2x1x32xf32>
    %237 = vector.extract_strided_slice %4 {offsets = [0, 7, 0], sizes = [2, 1, 8], strides = [1, 1, 1]} : vector<2x16x8xf32> to vector<2x1x8xf32>
    %238 = vector.shape_cast %237 : vector<2x1x8xf32> to vector<2x8xf32>
    %cst_38 = arith.constant dense<0.000000e+00> : vector<2x96xf32>
    %239 = tpu.matmul %238, %0, %cst_38 {dimension_numbers = #tpu.dot_dimension_numbers<[1], [0], [0], [1], [0, 0, 1, 1], [], []>} : vector<2x8xf32>, vector<8x96xf32>, vector<2x96xf32> -> vector<2x96xf32>
    %cst_39 = arith.constant dense<0.000000e+00> : vector<2x96xf32>
    %240 = tpu.matmul %235, %1, %cst_39 {dimension_numbers = #tpu.dot_dimension_numbers<[1], [0], [0], [1], [0, 0, 1, 1], [], []>} : vector<2x32xf32>, vector<32x96xf32>, vector<2x96xf32> -> vector<2x96xf32>
    %241 = vector.extract_strided_slice %239 {offsets = [0, 0], sizes = [2, 64], strides = [1, 1]} : vector<2x96xf32> to vector<2x64xf32>
    %242 = vector.extract_strided_slice %240 {offsets = [0, 0], sizes = [2, 64], strides = [1, 1]} : vector<2x96xf32> to vector<2x64xf32>
    %243 = arith.addf %241, %242 : vector<2x64xf32>
    %244 = vector.extract_strided_slice %2 {offsets = [0, 0], sizes = [1, 64], strides = [1, 1]} : vector<1x96xf32> to vector<1x64xf32>
    %245 = vector.broadcast %244 : vector<1x64xf32> to vector<2x64xf32>
    %246 = arith.addf %243, %245 : vector<2x64xf32>
    %247 = arith.negf %246 : vector<2x64xf32>
    %248 = math.exp %247 : vector<2x64xf32>
    %cst_40 = arith.constant 1.000000e+00 : f32
    %249 = vector.broadcast %cst_40 : f32 to vector<2x64xf32>
    %250 = arith.addf %249, %248 : vector<2x64xf32>
    %251 = arith.divf %249, %250 : vector<2x64xf32>
    %252 = vector.extract_strided_slice %251 {offsets = [0, 0], sizes = [2, 32], strides = [1, 1]} : vector<2x64xf32> to vector<2x32xf32>
    %253 = vector.extract_strided_slice %251 {offsets = [0, 32], sizes = [2, 32], strides = [1, 1]} : vector<2x64xf32> to vector<2x32xf32>
    %254 = vector.extract_strided_slice %239 {offsets = [0, 64], sizes = [2, 32], strides = [1, 1]} : vector<2x96xf32> to vector<2x32xf32>
    %255 = vector.extract_strided_slice %2 {offsets = [0, 64], sizes = [1, 32], strides = [1, 1]} : vector<1x96xf32> to vector<1x32xf32>
    %256 = vector.broadcast %255 : vector<1x32xf32> to vector<2x32xf32>
    %257 = arith.addf %254, %256 : vector<2x32xf32>
    %258 = vector.extract_strided_slice %240 {offsets = [0, 64], sizes = [2, 32], strides = [1, 1]} : vector<2x96xf32> to vector<2x32xf32>
    %259 = vector.broadcast %3 : vector<1x32xf32> to vector<2x32xf32>
    %260 = arith.addf %258, %259 : vector<2x32xf32>
    %261 = arith.mulf %252, %260 : vector<2x32xf32>
    %262 = arith.addf %257, %261 : vector<2x32xf32>
    %263 = math.tanh %262 : vector<2x32xf32>
    %cst_41 = arith.constant 1.000000e+00 : f32
    %264 = vector.broadcast %cst_41 : f32 to vector<2x32xf32>
    %265 = arith.subf %264, %253 : vector<2x32xf32>
    %266 = arith.mulf %265, %263 : vector<2x32xf32>
    %267 = arith.mulf %253, %235 : vector<2x32xf32>
    %268 = arith.addf %266, %267 : vector<2x32xf32>
    %269 = vector.shape_cast %268 : vector<2x32xf32> to vector<2x1x32xf32>
    %270 = vector.extract_strided_slice %4 {offsets = [0, 8, 0], sizes = [2, 1, 8], strides = [1, 1, 1]} : vector<2x16x8xf32> to vector<2x1x8xf32>
    %271 = vector.shape_cast %270 : vector<2x1x8xf32> to vector<2x8xf32>
    %cst_42 = arith.constant dense<0.000000e+00> : vector<2x96xf32>
    %272 = tpu.matmul %271, %0, %cst_42 {dimension_numbers = #tpu.dot_dimension_numbers<[1], [0], [0], [1], [0, 0, 1, 1], [], []>} : vector<2x8xf32>, vector<8x96xf32>, vector<2x96xf32> -> vector<2x96xf32>
    %cst_43 = arith.constant dense<0.000000e+00> : vector<2x96xf32>
    %273 = tpu.matmul %268, %1, %cst_43 {dimension_numbers = #tpu.dot_dimension_numbers<[1], [0], [0], [1], [0, 0, 1, 1], [], []>} : vector<2x32xf32>, vector<32x96xf32>, vector<2x96xf32> -> vector<2x96xf32>
    %274 = vector.extract_strided_slice %272 {offsets = [0, 0], sizes = [2, 64], strides = [1, 1]} : vector<2x96xf32> to vector<2x64xf32>
    %275 = vector.extract_strided_slice %273 {offsets = [0, 0], sizes = [2, 64], strides = [1, 1]} : vector<2x96xf32> to vector<2x64xf32>
    %276 = arith.addf %274, %275 : vector<2x64xf32>
    %277 = vector.extract_strided_slice %2 {offsets = [0, 0], sizes = [1, 64], strides = [1, 1]} : vector<1x96xf32> to vector<1x64xf32>
    %278 = vector.broadcast %277 : vector<1x64xf32> to vector<2x64xf32>
    %279 = arith.addf %276, %278 : vector<2x64xf32>
    %280 = arith.negf %279 : vector<2x64xf32>
    %281 = math.exp %280 : vector<2x64xf32>
    %cst_44 = arith.constant 1.000000e+00 : f32
    %282 = vector.broadcast %cst_44 : f32 to vector<2x64xf32>
    %283 = arith.addf %282, %281 : vector<2x64xf32>
    %284 = arith.divf %282, %283 : vector<2x64xf32>
    %285 = vector.extract_strided_slice %284 {offsets = [0, 0], sizes = [2, 32], strides = [1, 1]} : vector<2x64xf32> to vector<2x32xf32>
    %286 = vector.extract_strided_slice %284 {offsets = [0, 32], sizes = [2, 32], strides = [1, 1]} : vector<2x64xf32> to vector<2x32xf32>
    %287 = vector.extract_strided_slice %272 {offsets = [0, 64], sizes = [2, 32], strides = [1, 1]} : vector<2x96xf32> to vector<2x32xf32>
    %288 = vector.extract_strided_slice %2 {offsets = [0, 64], sizes = [1, 32], strides = [1, 1]} : vector<1x96xf32> to vector<1x32xf32>
    %289 = vector.broadcast %288 : vector<1x32xf32> to vector<2x32xf32>
    %290 = arith.addf %287, %289 : vector<2x32xf32>
    %291 = vector.extract_strided_slice %273 {offsets = [0, 64], sizes = [2, 32], strides = [1, 1]} : vector<2x96xf32> to vector<2x32xf32>
    %292 = vector.broadcast %3 : vector<1x32xf32> to vector<2x32xf32>
    %293 = arith.addf %291, %292 : vector<2x32xf32>
    %294 = arith.mulf %285, %293 : vector<2x32xf32>
    %295 = arith.addf %290, %294 : vector<2x32xf32>
    %296 = math.tanh %295 : vector<2x32xf32>
    %cst_45 = arith.constant 1.000000e+00 : f32
    %297 = vector.broadcast %cst_45 : f32 to vector<2x32xf32>
    %298 = arith.subf %297, %286 : vector<2x32xf32>
    %299 = arith.mulf %298, %296 : vector<2x32xf32>
    %300 = arith.mulf %286, %268 : vector<2x32xf32>
    %301 = arith.addf %299, %300 : vector<2x32xf32>
    %302 = vector.shape_cast %301 : vector<2x32xf32> to vector<2x1x32xf32>
    %303 = vector.extract_strided_slice %4 {offsets = [0, 9, 0], sizes = [2, 1, 8], strides = [1, 1, 1]} : vector<2x16x8xf32> to vector<2x1x8xf32>
    %304 = vector.shape_cast %303 : vector<2x1x8xf32> to vector<2x8xf32>
    %cst_46 = arith.constant dense<0.000000e+00> : vector<2x96xf32>
    %305 = tpu.matmul %304, %0, %cst_46 {dimension_numbers = #tpu.dot_dimension_numbers<[1], [0], [0], [1], [0, 0, 1, 1], [], []>} : vector<2x8xf32>, vector<8x96xf32>, vector<2x96xf32> -> vector<2x96xf32>
    %cst_47 = arith.constant dense<0.000000e+00> : vector<2x96xf32>
    %306 = tpu.matmul %301, %1, %cst_47 {dimension_numbers = #tpu.dot_dimension_numbers<[1], [0], [0], [1], [0, 0, 1, 1], [], []>} : vector<2x32xf32>, vector<32x96xf32>, vector<2x96xf32> -> vector<2x96xf32>
    %307 = vector.extract_strided_slice %305 {offsets = [0, 0], sizes = [2, 64], strides = [1, 1]} : vector<2x96xf32> to vector<2x64xf32>
    %308 = vector.extract_strided_slice %306 {offsets = [0, 0], sizes = [2, 64], strides = [1, 1]} : vector<2x96xf32> to vector<2x64xf32>
    %309 = arith.addf %307, %308 : vector<2x64xf32>
    %310 = vector.extract_strided_slice %2 {offsets = [0, 0], sizes = [1, 64], strides = [1, 1]} : vector<1x96xf32> to vector<1x64xf32>
    %311 = vector.broadcast %310 : vector<1x64xf32> to vector<2x64xf32>
    %312 = arith.addf %309, %311 : vector<2x64xf32>
    %313 = arith.negf %312 : vector<2x64xf32>
    %314 = math.exp %313 : vector<2x64xf32>
    %cst_48 = arith.constant 1.000000e+00 : f32
    %315 = vector.broadcast %cst_48 : f32 to vector<2x64xf32>
    %316 = arith.addf %315, %314 : vector<2x64xf32>
    %317 = arith.divf %315, %316 : vector<2x64xf32>
    %318 = vector.extract_strided_slice %317 {offsets = [0, 0], sizes = [2, 32], strides = [1, 1]} : vector<2x64xf32> to vector<2x32xf32>
    %319 = vector.extract_strided_slice %317 {offsets = [0, 32], sizes = [2, 32], strides = [1, 1]} : vector<2x64xf32> to vector<2x32xf32>
    %320 = vector.extract_strided_slice %305 {offsets = [0, 64], sizes = [2, 32], strides = [1, 1]} : vector<2x96xf32> to vector<2x32xf32>
    %321 = vector.extract_strided_slice %2 {offsets = [0, 64], sizes = [1, 32], strides = [1, 1]} : vector<1x96xf32> to vector<1x32xf32>
    %322 = vector.broadcast %321 : vector<1x32xf32> to vector<2x32xf32>
    %323 = arith.addf %320, %322 : vector<2x32xf32>
    %324 = vector.extract_strided_slice %306 {offsets = [0, 64], sizes = [2, 32], strides = [1, 1]} : vector<2x96xf32> to vector<2x32xf32>
    %325 = vector.broadcast %3 : vector<1x32xf32> to vector<2x32xf32>
    %326 = arith.addf %324, %325 : vector<2x32xf32>
    %327 = arith.mulf %318, %326 : vector<2x32xf32>
    %328 = arith.addf %323, %327 : vector<2x32xf32>
    %329 = math.tanh %328 : vector<2x32xf32>
    %cst_49 = arith.constant 1.000000e+00 : f32
    %330 = vector.broadcast %cst_49 : f32 to vector<2x32xf32>
    %331 = arith.subf %330, %319 : vector<2x32xf32>
    %332 = arith.mulf %331, %329 : vector<2x32xf32>
    %333 = arith.mulf %319, %301 : vector<2x32xf32>
    %334 = arith.addf %332, %333 : vector<2x32xf32>
    %335 = vector.shape_cast %334 : vector<2x32xf32> to vector<2x1x32xf32>
    %336 = vector.extract_strided_slice %4 {offsets = [0, 10, 0], sizes = [2, 1, 8], strides = [1, 1, 1]} : vector<2x16x8xf32> to vector<2x1x8xf32>
    %337 = vector.shape_cast %336 : vector<2x1x8xf32> to vector<2x8xf32>
    %cst_50 = arith.constant dense<0.000000e+00> : vector<2x96xf32>
    %338 = tpu.matmul %337, %0, %cst_50 {dimension_numbers = #tpu.dot_dimension_numbers<[1], [0], [0], [1], [0, 0, 1, 1], [], []>} : vector<2x8xf32>, vector<8x96xf32>, vector<2x96xf32> -> vector<2x96xf32>
    %cst_51 = arith.constant dense<0.000000e+00> : vector<2x96xf32>
    %339 = tpu.matmul %334, %1, %cst_51 {dimension_numbers = #tpu.dot_dimension_numbers<[1], [0], [0], [1], [0, 0, 1, 1], [], []>} : vector<2x32xf32>, vector<32x96xf32>, vector<2x96xf32> -> vector<2x96xf32>
    %340 = vector.extract_strided_slice %338 {offsets = [0, 0], sizes = [2, 64], strides = [1, 1]} : vector<2x96xf32> to vector<2x64xf32>
    %341 = vector.extract_strided_slice %339 {offsets = [0, 0], sizes = [2, 64], strides = [1, 1]} : vector<2x96xf32> to vector<2x64xf32>
    %342 = arith.addf %340, %341 : vector<2x64xf32>
    %343 = vector.extract_strided_slice %2 {offsets = [0, 0], sizes = [1, 64], strides = [1, 1]} : vector<1x96xf32> to vector<1x64xf32>
    %344 = vector.broadcast %343 : vector<1x64xf32> to vector<2x64xf32>
    %345 = arith.addf %342, %344 : vector<2x64xf32>
    %346 = arith.negf %345 : vector<2x64xf32>
    %347 = math.exp %346 : vector<2x64xf32>
    %cst_52 = arith.constant 1.000000e+00 : f32
    %348 = vector.broadcast %cst_52 : f32 to vector<2x64xf32>
    %349 = arith.addf %348, %347 : vector<2x64xf32>
    %350 = arith.divf %348, %349 : vector<2x64xf32>
    %351 = vector.extract_strided_slice %350 {offsets = [0, 0], sizes = [2, 32], strides = [1, 1]} : vector<2x64xf32> to vector<2x32xf32>
    %352 = vector.extract_strided_slice %350 {offsets = [0, 32], sizes = [2, 32], strides = [1, 1]} : vector<2x64xf32> to vector<2x32xf32>
    %353 = vector.extract_strided_slice %338 {offsets = [0, 64], sizes = [2, 32], strides = [1, 1]} : vector<2x96xf32> to vector<2x32xf32>
    %354 = vector.extract_strided_slice %2 {offsets = [0, 64], sizes = [1, 32], strides = [1, 1]} : vector<1x96xf32> to vector<1x32xf32>
    %355 = vector.broadcast %354 : vector<1x32xf32> to vector<2x32xf32>
    %356 = arith.addf %353, %355 : vector<2x32xf32>
    %357 = vector.extract_strided_slice %339 {offsets = [0, 64], sizes = [2, 32], strides = [1, 1]} : vector<2x96xf32> to vector<2x32xf32>
    %358 = vector.broadcast %3 : vector<1x32xf32> to vector<2x32xf32>
    %359 = arith.addf %357, %358 : vector<2x32xf32>
    %360 = arith.mulf %351, %359 : vector<2x32xf32>
    %361 = arith.addf %356, %360 : vector<2x32xf32>
    %362 = math.tanh %361 : vector<2x32xf32>
    %cst_53 = arith.constant 1.000000e+00 : f32
    %363 = vector.broadcast %cst_53 : f32 to vector<2x32xf32>
    %364 = arith.subf %363, %352 : vector<2x32xf32>
    %365 = arith.mulf %364, %362 : vector<2x32xf32>
    %366 = arith.mulf %352, %334 : vector<2x32xf32>
    %367 = arith.addf %365, %366 : vector<2x32xf32>
    %368 = vector.shape_cast %367 : vector<2x32xf32> to vector<2x1x32xf32>
    %369 = vector.extract_strided_slice %4 {offsets = [0, 11, 0], sizes = [2, 1, 8], strides = [1, 1, 1]} : vector<2x16x8xf32> to vector<2x1x8xf32>
    %370 = vector.shape_cast %369 : vector<2x1x8xf32> to vector<2x8xf32>
    %cst_54 = arith.constant dense<0.000000e+00> : vector<2x96xf32>
    %371 = tpu.matmul %370, %0, %cst_54 {dimension_numbers = #tpu.dot_dimension_numbers<[1], [0], [0], [1], [0, 0, 1, 1], [], []>} : vector<2x8xf32>, vector<8x96xf32>, vector<2x96xf32> -> vector<2x96xf32>
    %cst_55 = arith.constant dense<0.000000e+00> : vector<2x96xf32>
    %372 = tpu.matmul %367, %1, %cst_55 {dimension_numbers = #tpu.dot_dimension_numbers<[1], [0], [0], [1], [0, 0, 1, 1], [], []>} : vector<2x32xf32>, vector<32x96xf32>, vector<2x96xf32> -> vector<2x96xf32>
    %373 = vector.extract_strided_slice %371 {offsets = [0, 0], sizes = [2, 64], strides = [1, 1]} : vector<2x96xf32> to vector<2x64xf32>
    %374 = vector.extract_strided_slice %372 {offsets = [0, 0], sizes = [2, 64], strides = [1, 1]} : vector<2x96xf32> to vector<2x64xf32>
    %375 = arith.addf %373, %374 : vector<2x64xf32>
    %376 = vector.extract_strided_slice %2 {offsets = [0, 0], sizes = [1, 64], strides = [1, 1]} : vector<1x96xf32> to vector<1x64xf32>
    %377 = vector.broadcast %376 : vector<1x64xf32> to vector<2x64xf32>
    %378 = arith.addf %375, %377 : vector<2x64xf32>
    %379 = arith.negf %378 : vector<2x64xf32>
    %380 = math.exp %379 : vector<2x64xf32>
    %cst_56 = arith.constant 1.000000e+00 : f32
    %381 = vector.broadcast %cst_56 : f32 to vector<2x64xf32>
    %382 = arith.addf %381, %380 : vector<2x64xf32>
    %383 = arith.divf %381, %382 : vector<2x64xf32>
    %384 = vector.extract_strided_slice %383 {offsets = [0, 0], sizes = [2, 32], strides = [1, 1]} : vector<2x64xf32> to vector<2x32xf32>
    %385 = vector.extract_strided_slice %383 {offsets = [0, 32], sizes = [2, 32], strides = [1, 1]} : vector<2x64xf32> to vector<2x32xf32>
    %386 = vector.extract_strided_slice %371 {offsets = [0, 64], sizes = [2, 32], strides = [1, 1]} : vector<2x96xf32> to vector<2x32xf32>
    %387 = vector.extract_strided_slice %2 {offsets = [0, 64], sizes = [1, 32], strides = [1, 1]} : vector<1x96xf32> to vector<1x32xf32>
    %388 = vector.broadcast %387 : vector<1x32xf32> to vector<2x32xf32>
    %389 = arith.addf %386, %388 : vector<2x32xf32>
    %390 = vector.extract_strided_slice %372 {offsets = [0, 64], sizes = [2, 32], strides = [1, 1]} : vector<2x96xf32> to vector<2x32xf32>
    %391 = vector.broadcast %3 : vector<1x32xf32> to vector<2x32xf32>
    %392 = arith.addf %390, %391 : vector<2x32xf32>
    %393 = arith.mulf %384, %392 : vector<2x32xf32>
    %394 = arith.addf %389, %393 : vector<2x32xf32>
    %395 = math.tanh %394 : vector<2x32xf32>
    %cst_57 = arith.constant 1.000000e+00 : f32
    %396 = vector.broadcast %cst_57 : f32 to vector<2x32xf32>
    %397 = arith.subf %396, %385 : vector<2x32xf32>
    %398 = arith.mulf %397, %395 : vector<2x32xf32>
    %399 = arith.mulf %385, %367 : vector<2x32xf32>
    %400 = arith.addf %398, %399 : vector<2x32xf32>
    %401 = vector.shape_cast %400 : vector<2x32xf32> to vector<2x1x32xf32>
    %402 = vector.extract_strided_slice %4 {offsets = [0, 12, 0], sizes = [2, 1, 8], strides = [1, 1, 1]} : vector<2x16x8xf32> to vector<2x1x8xf32>
    %403 = vector.shape_cast %402 : vector<2x1x8xf32> to vector<2x8xf32>
    %cst_58 = arith.constant dense<0.000000e+00> : vector<2x96xf32>
    %404 = tpu.matmul %403, %0, %cst_58 {dimension_numbers = #tpu.dot_dimension_numbers<[1], [0], [0], [1], [0, 0, 1, 1], [], []>} : vector<2x8xf32>, vector<8x96xf32>, vector<2x96xf32> -> vector<2x96xf32>
    %cst_59 = arith.constant dense<0.000000e+00> : vector<2x96xf32>
    %405 = tpu.matmul %400, %1, %cst_59 {dimension_numbers = #tpu.dot_dimension_numbers<[1], [0], [0], [1], [0, 0, 1, 1], [], []>} : vector<2x32xf32>, vector<32x96xf32>, vector<2x96xf32> -> vector<2x96xf32>
    %406 = vector.extract_strided_slice %404 {offsets = [0, 0], sizes = [2, 64], strides = [1, 1]} : vector<2x96xf32> to vector<2x64xf32>
    %407 = vector.extract_strided_slice %405 {offsets = [0, 0], sizes = [2, 64], strides = [1, 1]} : vector<2x96xf32> to vector<2x64xf32>
    %408 = arith.addf %406, %407 : vector<2x64xf32>
    %409 = vector.extract_strided_slice %2 {offsets = [0, 0], sizes = [1, 64], strides = [1, 1]} : vector<1x96xf32> to vector<1x64xf32>
    %410 = vector.broadcast %409 : vector<1x64xf32> to vector<2x64xf32>
    %411 = arith.addf %408, %410 : vector<2x64xf32>
    %412 = arith.negf %411 : vector<2x64xf32>
    %413 = math.exp %412 : vector<2x64xf32>
    %cst_60 = arith.constant 1.000000e+00 : f32
    %414 = vector.broadcast %cst_60 : f32 to vector<2x64xf32>
    %415 = arith.addf %414, %413 : vector<2x64xf32>
    %416 = arith.divf %414, %415 : vector<2x64xf32>
    %417 = vector.extract_strided_slice %416 {offsets = [0, 0], sizes = [2, 32], strides = [1, 1]} : vector<2x64xf32> to vector<2x32xf32>
    %418 = vector.extract_strided_slice %416 {offsets = [0, 32], sizes = [2, 32], strides = [1, 1]} : vector<2x64xf32> to vector<2x32xf32>
    %419 = vector.extract_strided_slice %404 {offsets = [0, 64], sizes = [2, 32], strides = [1, 1]} : vector<2x96xf32> to vector<2x32xf32>
    %420 = vector.extract_strided_slice %2 {offsets = [0, 64], sizes = [1, 32], strides = [1, 1]} : vector<1x96xf32> to vector<1x32xf32>
    %421 = vector.broadcast %420 : vector<1x32xf32> to vector<2x32xf32>
    %422 = arith.addf %419, %421 : vector<2x32xf32>
    %423 = vector.extract_strided_slice %405 {offsets = [0, 64], sizes = [2, 32], strides = [1, 1]} : vector<2x96xf32> to vector<2x32xf32>
    %424 = vector.broadcast %3 : vector<1x32xf32> to vector<2x32xf32>
    %425 = arith.addf %423, %424 : vector<2x32xf32>
    %426 = arith.mulf %417, %425 : vector<2x32xf32>
    %427 = arith.addf %422, %426 : vector<2x32xf32>
    %428 = math.tanh %427 : vector<2x32xf32>
    %cst_61 = arith.constant 1.000000e+00 : f32
    %429 = vector.broadcast %cst_61 : f32 to vector<2x32xf32>
    %430 = arith.subf %429, %418 : vector<2x32xf32>
    %431 = arith.mulf %430, %428 : vector<2x32xf32>
    %432 = arith.mulf %418, %400 : vector<2x32xf32>
    %433 = arith.addf %431, %432 : vector<2x32xf32>
    %434 = vector.shape_cast %433 : vector<2x32xf32> to vector<2x1x32xf32>
    %435 = vector.extract_strided_slice %4 {offsets = [0, 13, 0], sizes = [2, 1, 8], strides = [1, 1, 1]} : vector<2x16x8xf32> to vector<2x1x8xf32>
    %436 = vector.shape_cast %435 : vector<2x1x8xf32> to vector<2x8xf32>
    %cst_62 = arith.constant dense<0.000000e+00> : vector<2x96xf32>
    %437 = tpu.matmul %436, %0, %cst_62 {dimension_numbers = #tpu.dot_dimension_numbers<[1], [0], [0], [1], [0, 0, 1, 1], [], []>} : vector<2x8xf32>, vector<8x96xf32>, vector<2x96xf32> -> vector<2x96xf32>
    %cst_63 = arith.constant dense<0.000000e+00> : vector<2x96xf32>
    %438 = tpu.matmul %433, %1, %cst_63 {dimension_numbers = #tpu.dot_dimension_numbers<[1], [0], [0], [1], [0, 0, 1, 1], [], []>} : vector<2x32xf32>, vector<32x96xf32>, vector<2x96xf32> -> vector<2x96xf32>
    %439 = vector.extract_strided_slice %437 {offsets = [0, 0], sizes = [2, 64], strides = [1, 1]} : vector<2x96xf32> to vector<2x64xf32>
    %440 = vector.extract_strided_slice %438 {offsets = [0, 0], sizes = [2, 64], strides = [1, 1]} : vector<2x96xf32> to vector<2x64xf32>
    %441 = arith.addf %439, %440 : vector<2x64xf32>
    %442 = vector.extract_strided_slice %2 {offsets = [0, 0], sizes = [1, 64], strides = [1, 1]} : vector<1x96xf32> to vector<1x64xf32>
    %443 = vector.broadcast %442 : vector<1x64xf32> to vector<2x64xf32>
    %444 = arith.addf %441, %443 : vector<2x64xf32>
    %445 = arith.negf %444 : vector<2x64xf32>
    %446 = math.exp %445 : vector<2x64xf32>
    %cst_64 = arith.constant 1.000000e+00 : f32
    %447 = vector.broadcast %cst_64 : f32 to vector<2x64xf32>
    %448 = arith.addf %447, %446 : vector<2x64xf32>
    %449 = arith.divf %447, %448 : vector<2x64xf32>
    %450 = vector.extract_strided_slice %449 {offsets = [0, 0], sizes = [2, 32], strides = [1, 1]} : vector<2x64xf32> to vector<2x32xf32>
    %451 = vector.extract_strided_slice %449 {offsets = [0, 32], sizes = [2, 32], strides = [1, 1]} : vector<2x64xf32> to vector<2x32xf32>
    %452 = vector.extract_strided_slice %437 {offsets = [0, 64], sizes = [2, 32], strides = [1, 1]} : vector<2x96xf32> to vector<2x32xf32>
    %453 = vector.extract_strided_slice %2 {offsets = [0, 64], sizes = [1, 32], strides = [1, 1]} : vector<1x96xf32> to vector<1x32xf32>
    %454 = vector.broadcast %453 : vector<1x32xf32> to vector<2x32xf32>
    %455 = arith.addf %452, %454 : vector<2x32xf32>
    %456 = vector.extract_strided_slice %438 {offsets = [0, 64], sizes = [2, 32], strides = [1, 1]} : vector<2x96xf32> to vector<2x32xf32>
    %457 = vector.broadcast %3 : vector<1x32xf32> to vector<2x32xf32>
    %458 = arith.addf %456, %457 : vector<2x32xf32>
    %459 = arith.mulf %450, %458 : vector<2x32xf32>
    %460 = arith.addf %455, %459 : vector<2x32xf32>
    %461 = math.tanh %460 : vector<2x32xf32>
    %cst_65 = arith.constant 1.000000e+00 : f32
    %462 = vector.broadcast %cst_65 : f32 to vector<2x32xf32>
    %463 = arith.subf %462, %451 : vector<2x32xf32>
    %464 = arith.mulf %463, %461 : vector<2x32xf32>
    %465 = arith.mulf %451, %433 : vector<2x32xf32>
    %466 = arith.addf %464, %465 : vector<2x32xf32>
    %467 = vector.shape_cast %466 : vector<2x32xf32> to vector<2x1x32xf32>
    %468 = vector.extract_strided_slice %4 {offsets = [0, 14, 0], sizes = [2, 1, 8], strides = [1, 1, 1]} : vector<2x16x8xf32> to vector<2x1x8xf32>
    %469 = vector.shape_cast %468 : vector<2x1x8xf32> to vector<2x8xf32>
    %cst_66 = arith.constant dense<0.000000e+00> : vector<2x96xf32>
    %470 = tpu.matmul %469, %0, %cst_66 {dimension_numbers = #tpu.dot_dimension_numbers<[1], [0], [0], [1], [0, 0, 1, 1], [], []>} : vector<2x8xf32>, vector<8x96xf32>, vector<2x96xf32> -> vector<2x96xf32>
    %cst_67 = arith.constant dense<0.000000e+00> : vector<2x96xf32>
    %471 = tpu.matmul %466, %1, %cst_67 {dimension_numbers = #tpu.dot_dimension_numbers<[1], [0], [0], [1], [0, 0, 1, 1], [], []>} : vector<2x32xf32>, vector<32x96xf32>, vector<2x96xf32> -> vector<2x96xf32>
    %472 = vector.extract_strided_slice %470 {offsets = [0, 0], sizes = [2, 64], strides = [1, 1]} : vector<2x96xf32> to vector<2x64xf32>
    %473 = vector.extract_strided_slice %471 {offsets = [0, 0], sizes = [2, 64], strides = [1, 1]} : vector<2x96xf32> to vector<2x64xf32>
    %474 = arith.addf %472, %473 : vector<2x64xf32>
    %475 = vector.extract_strided_slice %2 {offsets = [0, 0], sizes = [1, 64], strides = [1, 1]} : vector<1x96xf32> to vector<1x64xf32>
    %476 = vector.broadcast %475 : vector<1x64xf32> to vector<2x64xf32>
    %477 = arith.addf %474, %476 : vector<2x64xf32>
    %478 = arith.negf %477 : vector<2x64xf32>
    %479 = math.exp %478 : vector<2x64xf32>
    %cst_68 = arith.constant 1.000000e+00 : f32
    %480 = vector.broadcast %cst_68 : f32 to vector<2x64xf32>
    %481 = arith.addf %480, %479 : vector<2x64xf32>
    %482 = arith.divf %480, %481 : vector<2x64xf32>
    %483 = vector.extract_strided_slice %482 {offsets = [0, 0], sizes = [2, 32], strides = [1, 1]} : vector<2x64xf32> to vector<2x32xf32>
    %484 = vector.extract_strided_slice %482 {offsets = [0, 32], sizes = [2, 32], strides = [1, 1]} : vector<2x64xf32> to vector<2x32xf32>
    %485 = vector.extract_strided_slice %470 {offsets = [0, 64], sizes = [2, 32], strides = [1, 1]} : vector<2x96xf32> to vector<2x32xf32>
    %486 = vector.extract_strided_slice %2 {offsets = [0, 64], sizes = [1, 32], strides = [1, 1]} : vector<1x96xf32> to vector<1x32xf32>
    %487 = vector.broadcast %486 : vector<1x32xf32> to vector<2x32xf32>
    %488 = arith.addf %485, %487 : vector<2x32xf32>
    %489 = vector.extract_strided_slice %471 {offsets = [0, 64], sizes = [2, 32], strides = [1, 1]} : vector<2x96xf32> to vector<2x32xf32>
    %490 = vector.broadcast %3 : vector<1x32xf32> to vector<2x32xf32>
    %491 = arith.addf %489, %490 : vector<2x32xf32>
    %492 = arith.mulf %483, %491 : vector<2x32xf32>
    %493 = arith.addf %488, %492 : vector<2x32xf32>
    %494 = math.tanh %493 : vector<2x32xf32>
    %cst_69 = arith.constant 1.000000e+00 : f32
    %495 = vector.broadcast %cst_69 : f32 to vector<2x32xf32>
    %496 = arith.subf %495, %484 : vector<2x32xf32>
    %497 = arith.mulf %496, %494 : vector<2x32xf32>
    %498 = arith.mulf %484, %466 : vector<2x32xf32>
    %499 = arith.addf %497, %498 : vector<2x32xf32>
    %500 = vector.shape_cast %499 : vector<2x32xf32> to vector<2x1x32xf32>
    %501 = vector.extract_strided_slice %4 {offsets = [0, 15, 0], sizes = [2, 1, 8], strides = [1, 1, 1]} : vector<2x16x8xf32> to vector<2x1x8xf32>
    %502 = vector.shape_cast %501 : vector<2x1x8xf32> to vector<2x8xf32>
    %cst_70 = arith.constant dense<0.000000e+00> : vector<2x96xf32>
    %503 = tpu.matmul %502, %0, %cst_70 {dimension_numbers = #tpu.dot_dimension_numbers<[1], [0], [0], [1], [0, 0, 1, 1], [], []>} : vector<2x8xf32>, vector<8x96xf32>, vector<2x96xf32> -> vector<2x96xf32>
    %cst_71 = arith.constant dense<0.000000e+00> : vector<2x96xf32>
    %504 = tpu.matmul %499, %1, %cst_71 {dimension_numbers = #tpu.dot_dimension_numbers<[1], [0], [0], [1], [0, 0, 1, 1], [], []>} : vector<2x32xf32>, vector<32x96xf32>, vector<2x96xf32> -> vector<2x96xf32>
    %505 = vector.extract_strided_slice %503 {offsets = [0, 0], sizes = [2, 64], strides = [1, 1]} : vector<2x96xf32> to vector<2x64xf32>
    %506 = vector.extract_strided_slice %504 {offsets = [0, 0], sizes = [2, 64], strides = [1, 1]} : vector<2x96xf32> to vector<2x64xf32>
    %507 = arith.addf %505, %506 : vector<2x64xf32>
    %508 = vector.extract_strided_slice %2 {offsets = [0, 0], sizes = [1, 64], strides = [1, 1]} : vector<1x96xf32> to vector<1x64xf32>
    %509 = vector.broadcast %508 : vector<1x64xf32> to vector<2x64xf32>
    %510 = arith.addf %507, %509 : vector<2x64xf32>
    %511 = arith.negf %510 : vector<2x64xf32>
    %512 = math.exp %511 : vector<2x64xf32>
    %cst_72 = arith.constant 1.000000e+00 : f32
    %513 = vector.broadcast %cst_72 : f32 to vector<2x64xf32>
    %514 = arith.addf %513, %512 : vector<2x64xf32>
    %515 = arith.divf %513, %514 : vector<2x64xf32>
    %516 = vector.extract_strided_slice %515 {offsets = [0, 0], sizes = [2, 32], strides = [1, 1]} : vector<2x64xf32> to vector<2x32xf32>
    %517 = vector.extract_strided_slice %515 {offsets = [0, 32], sizes = [2, 32], strides = [1, 1]} : vector<2x64xf32> to vector<2x32xf32>
    %518 = vector.extract_strided_slice %503 {offsets = [0, 64], sizes = [2, 32], strides = [1, 1]} : vector<2x96xf32> to vector<2x32xf32>
    %519 = vector.extract_strided_slice %2 {offsets = [0, 64], sizes = [1, 32], strides = [1, 1]} : vector<1x96xf32> to vector<1x32xf32>
    %520 = vector.broadcast %519 : vector<1x32xf32> to vector<2x32xf32>
    %521 = arith.addf %518, %520 : vector<2x32xf32>
    %522 = vector.extract_strided_slice %504 {offsets = [0, 64], sizes = [2, 32], strides = [1, 1]} : vector<2x96xf32> to vector<2x32xf32>
    %523 = vector.broadcast %3 : vector<1x32xf32> to vector<2x32xf32>
    %524 = arith.addf %522, %523 : vector<2x32xf32>
    %525 = arith.mulf %516, %524 : vector<2x32xf32>
    %526 = arith.addf %521, %525 : vector<2x32xf32>
    %527 = math.tanh %526 : vector<2x32xf32>
    %cst_73 = arith.constant 1.000000e+00 : f32
    %528 = vector.broadcast %cst_73 : f32 to vector<2x32xf32>
    %529 = arith.subf %528, %517 : vector<2x32xf32>
    %530 = arith.mulf %529, %527 : vector<2x32xf32>
    %531 = arith.mulf %517, %499 : vector<2x32xf32>
    %532 = arith.addf %530, %531 : vector<2x32xf32>
    %533 = vector.shape_cast %532 : vector<2x32xf32> to vector<2x1x32xf32>
    %534 = tpu.concatenate %38, %71, %104, %137, %170, %203, %236, %269, %302, %335, %368, %401, %434, %467, %500, %533 in 1 : vector<2x1x32xf32>, vector<2x1x32xf32>, vector<2x1x32xf32>, vector<2x1x32xf32>, vector<2x1x32xf32>, vector<2x1x32xf32>, vector<2x1x32xf32>, vector<2x1x32xf32>, vector<2x1x32xf32>, vector<2x1x32xf32>, vector<2x1x32xf32>, vector<2x1x32xf32>, vector<2x1x32xf32>, vector<2x1x32xf32>, vector<2x1x32xf32>, vector<2x1x32xf32> -> vector<2x16x32xf32>
    %c0_74 = arith.constant 0 : index
    %c0_75 = arith.constant 0 : index
    %535 = vector.load %arg7[%c0_74, %c0_75] : memref<40x96xf32, #tpu.memory_space<vmem>>, vector<40x96xf32>
    %c0_76 = arith.constant 0 : index
    %c0_77 = arith.constant 0 : index
    %536 = vector.load %arg8[%c0_76, %c0_77] : memref<32x96xf32, #tpu.memory_space<vmem>>, vector<32x96xf32>
    %c0_78 = arith.constant 0 : index
    %c0_79 = arith.constant 0 : index
    %537 = vector.load %arg9[%c0_78, %c0_79] : memref<1x96xf32, #tpu.memory_space<vmem>>, vector<1x96xf32>
    %c0_80 = arith.constant 0 : index
    %c0_81 = arith.constant 0 : index
    %538 = vector.load %arg10[%c0_80, %c0_81] : memref<1x32xf32, #tpu.memory_space<vmem>>, vector<1x32xf32>
    %c0_82 = arith.constant 0 : index
    %c0_83 = arith.constant 0 : index
    %539 = vector.load %arg11[%c0_82, %c0_83] : memref<32x40xf32, #tpu.memory_space<vmem>>, vector<32x40xf32>
    %c0_84 = arith.constant 0 : index
    %c0_85 = arith.constant 0 : index
    %540 = vector.load %arg12[%c0_84, %c0_85] : memref<1x40xf32, #tpu.memory_space<vmem>>, vector<1x40xf32>
    %c0_86 = arith.constant 0 : index
    %c0_87 = arith.constant 0 : index
    %541 = vector.load %arg13[%c0_86, %c0_87] : memref<32x1xf32, #tpu.memory_space<vmem>>, vector<32x1xf32>
    %c0_88 = arith.constant 0 : index
    %c0_89 = arith.constant 0 : index
    %542 = vector.load %arg14[%c0_88, %c0_89] : memref<1x1xf32, #tpu.memory_space<vmem>>, vector<1x1xf32>
    %c0_90 = arith.constant 0 : index
    %c0_91 = arith.constant 0 : index
    %543 = vector.load %arg15[%c0_90, %c0_91] : memref<32x32xf32, #tpu.memory_space<vmem>>, vector<32x32xf32>
    %c0_92 = arith.constant 0 : index
    %c0_93 = arith.constant 0 : index
    %544 = vector.load %arg16[%c0_92, %c0_93] : memref<1x32xf32, #tpu.memory_space<vmem>>, vector<1x32xf32>
    %c0_94 = arith.constant 0 : index
    %c0_95 = arith.constant 0 : index
    %c0_96 = arith.constant 0 : index
    %545 = vector.load %arg2[%c0_94, %c0_95, %c0_96] : memref<2x6x8xf32, #tpu.memory_space<vmem>>, vector<2x6x8xf32>
    %546 = tpu.iota {dimensions = array<i32: 1>} : vector<1x5xi32>
    %c2_i32 = arith.constant 2 : i32
    %547 = vector.broadcast %c2_i32 : i32 to vector<1x5xi32>
    %548 = arith.subi %546, %547 : vector<1x5xi32>
    %549 = tpu.iota {dimensions = array<i32: 2>} : vector<2x5x16xi32>
    %cst_97 = arith.constant 0.000000e+00 : f32
    %550 = vector.broadcast %cst_97 : f32 to vector<2x32xf32>
    %cst_98 = arith.constant 0.000000e+00 : f32
    %551 = vector.broadcast %cst_98 : f32 to vector<2x8xf32>
    %552 = tpu.concatenate %551, %550 in 1 : vector<2x8xf32>, vector<2x32xf32> -> vector<2x40xf32>
    %cst_99 = arith.constant dense<0.000000e+00> : vector<2x96xf32>
    %553 = tpu.matmul %552, %535, %cst_99 {dimension_numbers = #tpu.dot_dimension_numbers<[1], [0], [0], [1], [0, 0, 1, 1], [], []>} : vector<2x40xf32>, vector<40x96xf32>, vector<2x96xf32> -> vector<2x96xf32>
    %cst_100 = arith.constant dense<0.000000e+00> : vector<2x96xf32>
    %554 = tpu.matmul %532, %536, %cst_100 {dimension_numbers = #tpu.dot_dimension_numbers<[1], [0], [0], [1], [0, 0, 1, 1], [], []>} : vector<2x32xf32>, vector<32x96xf32>, vector<2x96xf32> -> vector<2x96xf32>
    %555 = vector.extract_strided_slice %553 {offsets = [0, 0], sizes = [2, 64], strides = [1, 1]} : vector<2x96xf32> to vector<2x64xf32>
    %556 = vector.extract_strided_slice %554 {offsets = [0, 0], sizes = [2, 64], strides = [1, 1]} : vector<2x96xf32> to vector<2x64xf32>
    %557 = arith.addf %555, %556 : vector<2x64xf32>
    %558 = vector.extract_strided_slice %537 {offsets = [0, 0], sizes = [1, 64], strides = [1, 1]} : vector<1x96xf32> to vector<1x64xf32>
    %559 = vector.broadcast %558 : vector<1x64xf32> to vector<2x64xf32>
    %560 = arith.addf %557, %559 : vector<2x64xf32>
    %561 = arith.negf %560 : vector<2x64xf32>
    %562 = math.exp %561 : vector<2x64xf32>
    %cst_101 = arith.constant 1.000000e+00 : f32
    %563 = vector.broadcast %cst_101 : f32 to vector<2x64xf32>
    %564 = arith.addf %563, %562 : vector<2x64xf32>
    %565 = arith.divf %563, %564 : vector<2x64xf32>
    %566 = vector.extract_strided_slice %565 {offsets = [0, 0], sizes = [2, 32], strides = [1, 1]} : vector<2x64xf32> to vector<2x32xf32>
    %567 = vector.extract_strided_slice %565 {offsets = [0, 32], sizes = [2, 32], strides = [1, 1]} : vector<2x64xf32> to vector<2x32xf32>
    %568 = vector.extract_strided_slice %553 {offsets = [0, 64], sizes = [2, 32], strides = [1, 1]} : vector<2x96xf32> to vector<2x32xf32>
    %569 = vector.extract_strided_slice %537 {offsets = [0, 64], sizes = [1, 32], strides = [1, 1]} : vector<1x96xf32> to vector<1x32xf32>
    %570 = vector.broadcast %569 : vector<1x32xf32> to vector<2x32xf32>
    %571 = arith.addf %568, %570 : vector<2x32xf32>
    %572 = vector.extract_strided_slice %554 {offsets = [0, 64], sizes = [2, 32], strides = [1, 1]} : vector<2x96xf32> to vector<2x32xf32>
    %573 = vector.broadcast %538 : vector<1x32xf32> to vector<2x32xf32>
    %574 = arith.addf %572, %573 : vector<2x32xf32>
    %575 = arith.mulf %566, %574 : vector<2x32xf32>
    %576 = arith.addf %571, %575 : vector<2x32xf32>
    %577 = math.tanh %576 : vector<2x32xf32>
    %cst_102 = arith.constant 1.000000e+00 : f32
    %578 = vector.broadcast %cst_102 : f32 to vector<2x32xf32>
    %579 = arith.subf %578, %567 : vector<2x32xf32>
    %580 = arith.mulf %579, %577 : vector<2x32xf32>
    %581 = arith.mulf %567, %532 : vector<2x32xf32>
    %582 = arith.addf %580, %581 : vector<2x32xf32>
    %cst_103 = arith.constant dense<0.000000e+00> : vector<2x40xf32>
    %583 = tpu.matmul %582, %539, %cst_103 {dimension_numbers = #tpu.dot_dimension_numbers<[1], [0], [0], [1], [0, 0, 1, 1], [], []>} : vector<2x32xf32>, vector<32x40xf32>, vector<2x40xf32> -> vector<2x40xf32>
    %584 = vector.broadcast %540 : vector<1x40xf32> to vector<2x40xf32>
    %585 = arith.addf %583, %584 : vector<2x40xf32>
    %586 = vector.extract_strided_slice %585 {offsets = [0, 0], sizes = [2, 32], strides = [1, 1]} : vector<2x40xf32> to vector<2x32xf32>
    %587 = vector.extract_strided_slice %585 {offsets = [0, 32], sizes = [2, 8], strides = [1, 1]} : vector<2x40xf32> to vector<2x8xf32>
    %588 = math.tanh %586 : vector<2x32xf32>
    %cst_104 = arith.constant dense<0.000000e+00> : vector<2x1xf32>
    %589 = tpu.matmul %588, %541, %cst_104 {dimension_numbers = #tpu.dot_dimension_numbers<[1], [0], [0], [1], [0, 0, 1, 1], [], []>} : vector<2x32xf32>, vector<32x1xf32>, vector<2x1xf32> -> vector<2x1xf32>
    %590 = vector.broadcast %542 : vector<1x1xf32> to vector<2x1xf32>
    %591 = arith.addf %589, %590 : vector<2x1xf32>
    %592 = arith.negf %591 : vector<2x1xf32>
    %593 = math.exp %592 : vector<2x1xf32>
    %cst_105 = arith.constant 1.000000e+00 : f32
    %594 = vector.broadcast %cst_105 : f32 to vector<2x1xf32>
    %595 = arith.addf %594, %593 : vector<2x1xf32>
    %596 = arith.divf %594, %595 : vector<2x1xf32>
    %cst_106 = arith.constant 1.100000e+01 : f32
    %597 = vector.broadcast %cst_106 : f32 to vector<2x1xf32>
    %598 = arith.mulf %597, %596 : vector<2x1xf32>
    %cst_107 = arith.constant 2.000000e+00 : f32
    %599 = vector.broadcast %cst_107 : f32 to vector<2x1xf32>
    %600 = arith.addf %598, %599 : vector<2x1xf32>
    %601 = math.floor %600 : vector<2x1xf32>
    %602 = arith.fptosi %601 : vector<2x1xf32> to vector<2x1xi32>
    %603 = vector.broadcast %602 : vector<2x1xi32> to vector<2x5xi32>
    %604 = vector.broadcast %548 : vector<1x5xi32> to vector<2x5xi32>
    %605 = arith.addi %603, %604 : vector<2x5xi32>
    %606 = vector.shape_cast %605 : vector<2x5xi32> to vector<2x5x1xi32>
    %607 = vector.broadcast %606 : vector<2x5x1xi32> to vector<2x5x16xi32>
    %608 = arith.cmpi eq, %607, %549 : vector<2x5x16xi32>
    %609 = arith.extui %608 : vector<2x5x16xi1> to vector<2x5x16xi32>
    %610 = arith.sitofp %609 : vector<2x5x16xi32> to vector<2x5x16xf32>
    "tpu.trace_start"() <{level = 10 : i32, message = "bwl,blh->bwh"}> : () -> ()
    %cst_108 = arith.constant dense<0.000000e+00> : vector<2x5x32xf32>
    %611 = tpu.matmul %610, %534, %cst_108 {dimension_numbers = #tpu.dot_dimension_numbers<[2], [1], [1], [2], [0, 0, 0, 1, 1, 2], [0], [0]>} : vector<2x5x16xf32>, vector<2x16x32xf32>, vector<2x5x32xf32> -> vector<2x5x32xf32>
    "tpu.trace_stop"() : () -> ()
    "tpu.trace_start"() <{level = 10 : i32, message = "bwh,hk->bwk"}> : () -> ()
    %cst_109 = arith.constant dense<0.000000e+00> : vector<2x5x32xf32>
    %612 = tpu.matmul %611, %543, %cst_109 {dimension_numbers = #tpu.dot_dimension_numbers<[2], [0], [0, 1], [1], [0, 0, 0, 1, 1, 1], [], []>} : vector<2x5x32xf32>, vector<32x32xf32>, vector<2x5x32xf32> -> vector<2x5x32xf32>
    "tpu.trace_stop"() : () -> ()
    %613 = vector.shape_cast %544 : vector<1x32xf32> to vector<1x1x32xf32>
    %614 = vector.broadcast %613 : vector<1x1x32xf32> to vector<2x5x32xf32>
    %615 = arith.addf %612, %614 : vector<2x5x32xf32>
    %616 = vector.shape_cast %582 : vector<2x32xf32> to vector<2x1x32xf32>
    %617 = vector.broadcast %616 : vector<2x1x32xf32> to vector<2x5x32xf32>
    %618 = arith.mulf %615, %617 : vector<2x5x32xf32>
    %cst_110 = arith.constant dense<0.000000e+00> : vector<2x5xf32>
    %619 = vector.multi_reduction <add>, %618, %cst_110 [2] : vector<2x5x32xf32> to vector<2x5xf32>
    %620 = arith.sitofp %605 : vector<2x5xi32> to vector<2x5xf32>
    %621 = vector.broadcast %600 : vector<2x1xf32> to vector<2x5xf32>
    %622 = arith.subf %620, %621 : vector<2x5xf32>
    %623 = arith.mulf %622, %622 : vector<2x5xf32>
    %cst_111 = arith.constant -5.000000e-01 : f32
    %624 = vector.broadcast %cst_111 : f32 to vector<2x5xf32>
    %625 = arith.mulf %623, %624 : vector<2x5xf32>
    %626 = math.exp %625 : vector<2x5xf32>
    %627 = arith.mulf %619, %626 : vector<2x5xf32>
    %cst_112 = arith.constant dense<0xFF800000> : vector<2xf32>
    %628 = vector.multi_reduction <maximumf>, %627, %cst_112 [1] : vector<2x5xf32> to vector<2xf32>
    %629 = vector.shape_cast %628 : vector<2xf32> to vector<2x1xf32>
    %630 = vector.broadcast %629 : vector<2x1xf32> to vector<2x5xf32>
    %631 = arith.subf %627, %630 : vector<2x5xf32>
    %632 = math.exp %631 : vector<2x5xf32>
    %cst_113 = arith.constant dense<0.000000e+00> : vector<2xf32>
    %633 = vector.multi_reduction <add>, %632, %cst_113 [1] : vector<2x5xf32> to vector<2xf32>
    %634 = vector.shape_cast %633 : vector<2xf32> to vector<2x1xf32>
    %635 = vector.broadcast %634 : vector<2x1xf32> to vector<2x5xf32>
    %636 = arith.divf %632, %635 : vector<2x5xf32>
    %637 = vector.shape_cast %636 : vector<2x5xf32> to vector<2x5x1xf32>
    %638 = vector.broadcast %637 : vector<2x5x1xf32> to vector<2x5x32xf32>
    %639 = arith.mulf %638, %615 : vector<2x5x32xf32>
    %cst_114 = arith.constant dense<0.000000e+00> : vector<2x32xf32>
    %640 = vector.multi_reduction <add>, %639, %cst_114 [1] : vector<2x5x32xf32> to vector<2x32xf32>
    %641 = vector.shape_cast %587 : vector<2x8xf32> to vector<2x1x8xf32>
    %c0_115 = arith.constant 0 : index
    %642 = memref.load %arg0[%c0_115] : memref<6xi32, #tpu.memory_space<smem>>
    %c0_i32 = arith.constant 0 : i32
    %643 = arith.cmpi sgt, %642, %c0_i32 : i32
    %644 = vector.extract_strided_slice %545 {offsets = [0, 0, 0], sizes = [2, 1, 8], strides = [1, 1, 1]} : vector<2x6x8xf32> to vector<2x1x8xf32>
    %645 = vector.shape_cast %644 : vector<2x1x8xf32> to vector<2x8xf32>
    %646 = arith.select %643, %645, %587 : vector<2x8xf32>
    %647 = tpu.concatenate %646, %640 in 1 : vector<2x8xf32>, vector<2x32xf32> -> vector<2x40xf32>
    %cst_116 = arith.constant dense<0.000000e+00> : vector<2x96xf32>
    %648 = tpu.matmul %647, %535, %cst_116 {dimension_numbers = #tpu.dot_dimension_numbers<[1], [0], [0], [1], [0, 0, 1, 1], [], []>} : vector<2x40xf32>, vector<40x96xf32>, vector<2x96xf32> -> vector<2x96xf32>
    %cst_117 = arith.constant dense<0.000000e+00> : vector<2x96xf32>
    %649 = tpu.matmul %582, %536, %cst_117 {dimension_numbers = #tpu.dot_dimension_numbers<[1], [0], [0], [1], [0, 0, 1, 1], [], []>} : vector<2x32xf32>, vector<32x96xf32>, vector<2x96xf32> -> vector<2x96xf32>
    %650 = vector.extract_strided_slice %648 {offsets = [0, 0], sizes = [2, 64], strides = [1, 1]} : vector<2x96xf32> to vector<2x64xf32>
    %651 = vector.extract_strided_slice %649 {offsets = [0, 0], sizes = [2, 64], strides = [1, 1]} : vector<2x96xf32> to vector<2x64xf32>
    %652 = arith.addf %650, %651 : vector<2x64xf32>
    %653 = vector.extract_strided_slice %537 {offsets = [0, 0], sizes = [1, 64], strides = [1, 1]} : vector<1x96xf32> to vector<1x64xf32>
    %654 = vector.broadcast %653 : vector<1x64xf32> to vector<2x64xf32>
    %655 = arith.addf %652, %654 : vector<2x64xf32>
    %656 = arith.negf %655 : vector<2x64xf32>
    %657 = math.exp %656 : vector<2x64xf32>
    %cst_118 = arith.constant 1.000000e+00 : f32
    %658 = vector.broadcast %cst_118 : f32 to vector<2x64xf32>
    %659 = arith.addf %658, %657 : vector<2x64xf32>
    %660 = arith.divf %658, %659 : vector<2x64xf32>
    %661 = vector.extract_strided_slice %660 {offsets = [0, 0], sizes = [2, 32], strides = [1, 1]} : vector<2x64xf32> to vector<2x32xf32>
    %662 = vector.extract_strided_slice %660 {offsets = [0, 32], sizes = [2, 32], strides = [1, 1]} : vector<2x64xf32> to vector<2x32xf32>
    %663 = vector.extract_strided_slice %648 {offsets = [0, 64], sizes = [2, 32], strides = [1, 1]} : vector<2x96xf32> to vector<2x32xf32>
    %664 = vector.extract_strided_slice %537 {offsets = [0, 64], sizes = [1, 32], strides = [1, 1]} : vector<1x96xf32> to vector<1x32xf32>
    %665 = vector.broadcast %664 : vector<1x32xf32> to vector<2x32xf32>
    %666 = arith.addf %663, %665 : vector<2x32xf32>
    %667 = vector.extract_strided_slice %649 {offsets = [0, 64], sizes = [2, 32], strides = [1, 1]} : vector<2x96xf32> to vector<2x32xf32>
    %668 = vector.broadcast %538 : vector<1x32xf32> to vector<2x32xf32>
    %669 = arith.addf %667, %668 : vector<2x32xf32>
    %670 = arith.mulf %661, %669 : vector<2x32xf32>
    %671 = arith.addf %666, %670 : vector<2x32xf32>
    %672 = math.tanh %671 : vector<2x32xf32>
    %cst_119 = arith.constant 1.000000e+00 : f32
    %673 = vector.broadcast %cst_119 : f32 to vector<2x32xf32>
    %674 = arith.subf %673, %662 : vector<2x32xf32>
    %675 = arith.mulf %674, %672 : vector<2x32xf32>
    %676 = arith.mulf %662, %582 : vector<2x32xf32>
    %677 = arith.addf %675, %676 : vector<2x32xf32>
    %cst_120 = arith.constant dense<0.000000e+00> : vector<2x40xf32>
    %678 = tpu.matmul %677, %539, %cst_120 {dimension_numbers = #tpu.dot_dimension_numbers<[1], [0], [0], [1], [0, 0, 1, 1], [], []>} : vector<2x32xf32>, vector<32x40xf32>, vector<2x40xf32> -> vector<2x40xf32>
    %679 = vector.broadcast %540 : vector<1x40xf32> to vector<2x40xf32>
    %680 = arith.addf %678, %679 : vector<2x40xf32>
    %681 = vector.extract_strided_slice %680 {offsets = [0, 0], sizes = [2, 32], strides = [1, 1]} : vector<2x40xf32> to vector<2x32xf32>
    %682 = vector.extract_strided_slice %680 {offsets = [0, 32], sizes = [2, 8], strides = [1, 1]} : vector<2x40xf32> to vector<2x8xf32>
    %683 = math.tanh %681 : vector<2x32xf32>
    %cst_121 = arith.constant dense<0.000000e+00> : vector<2x1xf32>
    %684 = tpu.matmul %683, %541, %cst_121 {dimension_numbers = #tpu.dot_dimension_numbers<[1], [0], [0], [1], [0, 0, 1, 1], [], []>} : vector<2x32xf32>, vector<32x1xf32>, vector<2x1xf32> -> vector<2x1xf32>
    %685 = vector.broadcast %542 : vector<1x1xf32> to vector<2x1xf32>
    %686 = arith.addf %684, %685 : vector<2x1xf32>
    %687 = arith.negf %686 : vector<2x1xf32>
    %688 = math.exp %687 : vector<2x1xf32>
    %cst_122 = arith.constant 1.000000e+00 : f32
    %689 = vector.broadcast %cst_122 : f32 to vector<2x1xf32>
    %690 = arith.addf %689, %688 : vector<2x1xf32>
    %691 = arith.divf %689, %690 : vector<2x1xf32>
    %cst_123 = arith.constant 1.100000e+01 : f32
    %692 = vector.broadcast %cst_123 : f32 to vector<2x1xf32>
    %693 = arith.mulf %692, %691 : vector<2x1xf32>
    %cst_124 = arith.constant 2.000000e+00 : f32
    %694 = vector.broadcast %cst_124 : f32 to vector<2x1xf32>
    %695 = arith.addf %693, %694 : vector<2x1xf32>
    %696 = math.floor %695 : vector<2x1xf32>
    %697 = arith.fptosi %696 : vector<2x1xf32> to vector<2x1xi32>
    %698 = vector.broadcast %697 : vector<2x1xi32> to vector<2x5xi32>
    %699 = vector.broadcast %548 : vector<1x5xi32> to vector<2x5xi32>
    %700 = arith.addi %698, %699 : vector<2x5xi32>
    %701 = vector.shape_cast %700 : vector<2x5xi32> to vector<2x5x1xi32>
    %702 = vector.broadcast %701 : vector<2x5x1xi32> to vector<2x5x16xi32>
    %703 = arith.cmpi eq, %702, %549 : vector<2x5x16xi32>
    %704 = arith.extui %703 : vector<2x5x16xi1> to vector<2x5x16xi32>
    %705 = arith.sitofp %704 : vector<2x5x16xi32> to vector<2x5x16xf32>
    "tpu.trace_start"() <{level = 10 : i32, message = "bwl,blh->bwh"}> : () -> ()
    %cst_125 = arith.constant dense<0.000000e+00> : vector<2x5x32xf32>
    %706 = tpu.matmul %705, %534, %cst_125 {dimension_numbers = #tpu.dot_dimension_numbers<[2], [1], [1], [2], [0, 0, 0, 1, 1, 2], [0], [0]>} : vector<2x5x16xf32>, vector<2x16x32xf32>, vector<2x5x32xf32> -> vector<2x5x32xf32>
    "tpu.trace_stop"() : () -> ()
    "tpu.trace_start"() <{level = 10 : i32, message = "bwh,hk->bwk"}> : () -> ()
    %cst_126 = arith.constant dense<0.000000e+00> : vector<2x5x32xf32>
    %707 = tpu.matmul %706, %543, %cst_126 {dimension_numbers = #tpu.dot_dimension_numbers<[2], [0], [0, 1], [1], [0, 0, 0, 1, 1, 1], [], []>} : vector<2x5x32xf32>, vector<32x32xf32>, vector<2x5x32xf32> -> vector<2x5x32xf32>
    "tpu.trace_stop"() : () -> ()
    %708 = vector.shape_cast %544 : vector<1x32xf32> to vector<1x1x32xf32>
    %709 = vector.broadcast %708 : vector<1x1x32xf32> to vector<2x5x32xf32>
    %710 = arith.addf %707, %709 : vector<2x5x32xf32>
    %711 = vector.shape_cast %677 : vector<2x32xf32> to vector<2x1x32xf32>
    %712 = vector.broadcast %711 : vector<2x1x32xf32> to vector<2x5x32xf32>
    %713 = arith.mulf %710, %712 : vector<2x5x32xf32>
    %cst_127 = arith.constant dense<0.000000e+00> : vector<2x5xf32>
    %714 = vector.multi_reduction <add>, %713, %cst_127 [2] : vector<2x5x32xf32> to vector<2x5xf32>
    %715 = arith.sitofp %700 : vector<2x5xi32> to vector<2x5xf32>
    %716 = vector.broadcast %695 : vector<2x1xf32> to vector<2x5xf32>
    %717 = arith.subf %715, %716 : vector<2x5xf32>
    %718 = arith.mulf %717, %717 : vector<2x5xf32>
    %cst_128 = arith.constant -5.000000e-01 : f32
    %719 = vector.broadcast %cst_128 : f32 to vector<2x5xf32>
    %720 = arith.mulf %718, %719 : vector<2x5xf32>
    %721 = math.exp %720 : vector<2x5xf32>
    %722 = arith.mulf %714, %721 : vector<2x5xf32>
    %cst_129 = arith.constant dense<0xFF800000> : vector<2xf32>
    %723 = vector.multi_reduction <maximumf>, %722, %cst_129 [1] : vector<2x5xf32> to vector<2xf32>
    %724 = vector.shape_cast %723 : vector<2xf32> to vector<2x1xf32>
    %725 = vector.broadcast %724 : vector<2x1xf32> to vector<2x5xf32>
    %726 = arith.subf %722, %725 : vector<2x5xf32>
    %727 = math.exp %726 : vector<2x5xf32>
    %cst_130 = arith.constant dense<0.000000e+00> : vector<2xf32>
    %728 = vector.multi_reduction <add>, %727, %cst_130 [1] : vector<2x5xf32> to vector<2xf32>
    %729 = vector.shape_cast %728 : vector<2xf32> to vector<2x1xf32>
    %730 = vector.broadcast %729 : vector<2x1xf32> to vector<2x5xf32>
    %731 = arith.divf %727, %730 : vector<2x5xf32>
    %732 = vector.shape_cast %731 : vector<2x5xf32> to vector<2x5x1xf32>
    %733 = vector.broadcast %732 : vector<2x5x1xf32> to vector<2x5x32xf32>
    %734 = arith.mulf %733, %710 : vector<2x5x32xf32>
    %cst_131 = arith.constant dense<0.000000e+00> : vector<2x32xf32>
    %735 = vector.multi_reduction <add>, %734, %cst_131 [1] : vector<2x5x32xf32> to vector<2x32xf32>
    %736 = vector.shape_cast %682 : vector<2x8xf32> to vector<2x1x8xf32>
    %c1 = arith.constant 1 : index
    %737 = memref.load %arg0[%c1] : memref<6xi32, #tpu.memory_space<smem>>
    %c0_i32_132 = arith.constant 0 : i32
    %738 = arith.cmpi sgt, %737, %c0_i32_132 : i32
    %739 = vector.extract_strided_slice %545 {offsets = [0, 1, 0], sizes = [2, 1, 8], strides = [1, 1, 1]} : vector<2x6x8xf32> to vector<2x1x8xf32>
    %740 = vector.shape_cast %739 : vector<2x1x8xf32> to vector<2x8xf32>
    %741 = arith.select %738, %740, %682 : vector<2x8xf32>
    %742 = tpu.concatenate %741, %735 in 1 : vector<2x8xf32>, vector<2x32xf32> -> vector<2x40xf32>
    %cst_133 = arith.constant dense<0.000000e+00> : vector<2x96xf32>
    %743 = tpu.matmul %742, %535, %cst_133 {dimension_numbers = #tpu.dot_dimension_numbers<[1], [0], [0], [1], [0, 0, 1, 1], [], []>} : vector<2x40xf32>, vector<40x96xf32>, vector<2x96xf32> -> vector<2x96xf32>
    %cst_134 = arith.constant dense<0.000000e+00> : vector<2x96xf32>
    %744 = tpu.matmul %677, %536, %cst_134 {dimension_numbers = #tpu.dot_dimension_numbers<[1], [0], [0], [1], [0, 0, 1, 1], [], []>} : vector<2x32xf32>, vector<32x96xf32>, vector<2x96xf32> -> vector<2x96xf32>
    %745 = vector.extract_strided_slice %743 {offsets = [0, 0], sizes = [2, 64], strides = [1, 1]} : vector<2x96xf32> to vector<2x64xf32>
    %746 = vector.extract_strided_slice %744 {offsets = [0, 0], sizes = [2, 64], strides = [1, 1]} : vector<2x96xf32> to vector<2x64xf32>
    %747 = arith.addf %745, %746 : vector<2x64xf32>
    %748 = vector.extract_strided_slice %537 {offsets = [0, 0], sizes = [1, 64], strides = [1, 1]} : vector<1x96xf32> to vector<1x64xf32>
    %749 = vector.broadcast %748 : vector<1x64xf32> to vector<2x64xf32>
    %750 = arith.addf %747, %749 : vector<2x64xf32>
    %751 = arith.negf %750 : vector<2x64xf32>
    %752 = math.exp %751 : vector<2x64xf32>
    %cst_135 = arith.constant 1.000000e+00 : f32
    %753 = vector.broadcast %cst_135 : f32 to vector<2x64xf32>
    %754 = arith.addf %753, %752 : vector<2x64xf32>
    %755 = arith.divf %753, %754 : vector<2x64xf32>
    %756 = vector.extract_strided_slice %755 {offsets = [0, 0], sizes = [2, 32], strides = [1, 1]} : vector<2x64xf32> to vector<2x32xf32>
    %757 = vector.extract_strided_slice %755 {offsets = [0, 32], sizes = [2, 32], strides = [1, 1]} : vector<2x64xf32> to vector<2x32xf32>
    %758 = vector.extract_strided_slice %743 {offsets = [0, 64], sizes = [2, 32], strides = [1, 1]} : vector<2x96xf32> to vector<2x32xf32>
    %759 = vector.extract_strided_slice %537 {offsets = [0, 64], sizes = [1, 32], strides = [1, 1]} : vector<1x96xf32> to vector<1x32xf32>
    %760 = vector.broadcast %759 : vector<1x32xf32> to vector<2x32xf32>
    %761 = arith.addf %758, %760 : vector<2x32xf32>
    %762 = vector.extract_strided_slice %744 {offsets = [0, 64], sizes = [2, 32], strides = [1, 1]} : vector<2x96xf32> to vector<2x32xf32>
    %763 = vector.broadcast %538 : vector<1x32xf32> to vector<2x32xf32>
    %764 = arith.addf %762, %763 : vector<2x32xf32>
    %765 = arith.mulf %756, %764 : vector<2x32xf32>
    %766 = arith.addf %761, %765 : vector<2x32xf32>
    %767 = math.tanh %766 : vector<2x32xf32>
    %cst_136 = arith.constant 1.000000e+00 : f32
    %768 = vector.broadcast %cst_136 : f32 to vector<2x32xf32>
    %769 = arith.subf %768, %757 : vector<2x32xf32>
    %770 = arith.mulf %769, %767 : vector<2x32xf32>
    %771 = arith.mulf %757, %677 : vector<2x32xf32>
    %772 = arith.addf %770, %771 : vector<2x32xf32>
    %cst_137 = arith.constant dense<0.000000e+00> : vector<2x40xf32>
    %773 = tpu.matmul %772, %539, %cst_137 {dimension_numbers = #tpu.dot_dimension_numbers<[1], [0], [0], [1], [0, 0, 1, 1], [], []>} : vector<2x32xf32>, vector<32x40xf32>, vector<2x40xf32> -> vector<2x40xf32>
    %774 = vector.broadcast %540 : vector<1x40xf32> to vector<2x40xf32>
    %775 = arith.addf %773, %774 : vector<2x40xf32>
    %776 = vector.extract_strided_slice %775 {offsets = [0, 0], sizes = [2, 32], strides = [1, 1]} : vector<2x40xf32> to vector<2x32xf32>
    %777 = vector.extract_strided_slice %775 {offsets = [0, 32], sizes = [2, 8], strides = [1, 1]} : vector<2x40xf32> to vector<2x8xf32>
    %778 = math.tanh %776 : vector<2x32xf32>
    %cst_138 = arith.constant dense<0.000000e+00> : vector<2x1xf32>
    %779 = tpu.matmul %778, %541, %cst_138 {dimension_numbers = #tpu.dot_dimension_numbers<[1], [0], [0], [1], [0, 0, 1, 1], [], []>} : vector<2x32xf32>, vector<32x1xf32>, vector<2x1xf32> -> vector<2x1xf32>
    %780 = vector.broadcast %542 : vector<1x1xf32> to vector<2x1xf32>
    %781 = arith.addf %779, %780 : vector<2x1xf32>
    %782 = arith.negf %781 : vector<2x1xf32>
    %783 = math.exp %782 : vector<2x1xf32>
    %cst_139 = arith.constant 1.000000e+00 : f32
    %784 = vector.broadcast %cst_139 : f32 to vector<2x1xf32>
    %785 = arith.addf %784, %783 : vector<2x1xf32>
    %786 = arith.divf %784, %785 : vector<2x1xf32>
    %cst_140 = arith.constant 1.100000e+01 : f32
    %787 = vector.broadcast %cst_140 : f32 to vector<2x1xf32>
    %788 = arith.mulf %787, %786 : vector<2x1xf32>
    %cst_141 = arith.constant 2.000000e+00 : f32
    %789 = vector.broadcast %cst_141 : f32 to vector<2x1xf32>
    %790 = arith.addf %788, %789 : vector<2x1xf32>
    %791 = math.floor %790 : vector<2x1xf32>
    %792 = arith.fptosi %791 : vector<2x1xf32> to vector<2x1xi32>
    %793 = vector.broadcast %792 : vector<2x1xi32> to vector<2x5xi32>
    %794 = vector.broadcast %548 : vector<1x5xi32> to vector<2x5xi32>
    %795 = arith.addi %793, %794 : vector<2x5xi32>
    %796 = vector.shape_cast %795 : vector<2x5xi32> to vector<2x5x1xi32>
    %797 = vector.broadcast %796 : vector<2x5x1xi32> to vector<2x5x16xi32>
    %798 = arith.cmpi eq, %797, %549 : vector<2x5x16xi32>
    %799 = arith.extui %798 : vector<2x5x16xi1> to vector<2x5x16xi32>
    %800 = arith.sitofp %799 : vector<2x5x16xi32> to vector<2x5x16xf32>
    "tpu.trace_start"() <{level = 10 : i32, message = "bwl,blh->bwh"}> : () -> ()
    %cst_142 = arith.constant dense<0.000000e+00> : vector<2x5x32xf32>
    %801 = tpu.matmul %800, %534, %cst_142 {dimension_numbers = #tpu.dot_dimension_numbers<[2], [1], [1], [2], [0, 0, 0, 1, 1, 2], [0], [0]>} : vector<2x5x16xf32>, vector<2x16x32xf32>, vector<2x5x32xf32> -> vector<2x5x32xf32>
    "tpu.trace_stop"() : () -> ()
    "tpu.trace_start"() <{level = 10 : i32, message = "bwh,hk->bwk"}> : () -> ()
    %cst_143 = arith.constant dense<0.000000e+00> : vector<2x5x32xf32>
    %802 = tpu.matmul %801, %543, %cst_143 {dimension_numbers = #tpu.dot_dimension_numbers<[2], [0], [0, 1], [1], [0, 0, 0, 1, 1, 1], [], []>} : vector<2x5x32xf32>, vector<32x32xf32>, vector<2x5x32xf32> -> vector<2x5x32xf32>
    "tpu.trace_stop"() : () -> ()
    %803 = vector.shape_cast %544 : vector<1x32xf32> to vector<1x1x32xf32>
    %804 = vector.broadcast %803 : vector<1x1x32xf32> to vector<2x5x32xf32>
    %805 = arith.addf %802, %804 : vector<2x5x32xf32>
    %806 = vector.shape_cast %772 : vector<2x32xf32> to vector<2x1x32xf32>
    %807 = vector.broadcast %806 : vector<2x1x32xf32> to vector<2x5x32xf32>
    %808 = arith.mulf %805, %807 : vector<2x5x32xf32>
    %cst_144 = arith.constant dense<0.000000e+00> : vector<2x5xf32>
    %809 = vector.multi_reduction <add>, %808, %cst_144 [2] : vector<2x5x32xf32> to vector<2x5xf32>
    %810 = arith.sitofp %795 : vector<2x5xi32> to vector<2x5xf32>
    %811 = vector.broadcast %790 : vector<2x1xf32> to vector<2x5xf32>
    %812 = arith.subf %810, %811 : vector<2x5xf32>
    %813 = arith.mulf %812, %812 : vector<2x5xf32>
    %cst_145 = arith.constant -5.000000e-01 : f32
    %814 = vector.broadcast %cst_145 : f32 to vector<2x5xf32>
    %815 = arith.mulf %813, %814 : vector<2x5xf32>
    %816 = math.exp %815 : vector<2x5xf32>
    %817 = arith.mulf %809, %816 : vector<2x5xf32>
    %cst_146 = arith.constant dense<0xFF800000> : vector<2xf32>
    %818 = vector.multi_reduction <maximumf>, %817, %cst_146 [1] : vector<2x5xf32> to vector<2xf32>
    %819 = vector.shape_cast %818 : vector<2xf32> to vector<2x1xf32>
    %820 = vector.broadcast %819 : vector<2x1xf32> to vector<2x5xf32>
    %821 = arith.subf %817, %820 : vector<2x5xf32>
    %822 = math.exp %821 : vector<2x5xf32>
    %cst_147 = arith.constant dense<0.000000e+00> : vector<2xf32>
    %823 = vector.multi_reduction <add>, %822, %cst_147 [1] : vector<2x5xf32> to vector<2xf32>
    %824 = vector.shape_cast %823 : vector<2xf32> to vector<2x1xf32>
    %825 = vector.broadcast %824 : vector<2x1xf32> to vector<2x5xf32>
    %826 = arith.divf %822, %825 : vector<2x5xf32>
    %827 = vector.shape_cast %826 : vector<2x5xf32> to vector<2x5x1xf32>
    %828 = vector.broadcast %827 : vector<2x5x1xf32> to vector<2x5x32xf32>
    %829 = arith.mulf %828, %805 : vector<2x5x32xf32>
    %cst_148 = arith.constant dense<0.000000e+00> : vector<2x32xf32>
    %830 = vector.multi_reduction <add>, %829, %cst_148 [1] : vector<2x5x32xf32> to vector<2x32xf32>
    %831 = vector.shape_cast %777 : vector<2x8xf32> to vector<2x1x8xf32>
    %c2 = arith.constant 2 : index
    %832 = memref.load %arg0[%c2] : memref<6xi32, #tpu.memory_space<smem>>
    %c0_i32_149 = arith.constant 0 : i32
    %833 = arith.cmpi sgt, %832, %c0_i32_149 : i32
    %834 = vector.extract_strided_slice %545 {offsets = [0, 2, 0], sizes = [2, 1, 8], strides = [1, 1, 1]} : vector<2x6x8xf32> to vector<2x1x8xf32>
    %835 = vector.shape_cast %834 : vector<2x1x8xf32> to vector<2x8xf32>
    %836 = arith.select %833, %835, %777 : vector<2x8xf32>
    %837 = tpu.concatenate %836, %830 in 1 : vector<2x8xf32>, vector<2x32xf32> -> vector<2x40xf32>
    %cst_150 = arith.constant dense<0.000000e+00> : vector<2x96xf32>
    %838 = tpu.matmul %837, %535, %cst_150 {dimension_numbers = #tpu.dot_dimension_numbers<[1], [0], [0], [1], [0, 0, 1, 1], [], []>} : vector<2x40xf32>, vector<40x96xf32>, vector<2x96xf32> -> vector<2x96xf32>
    %cst_151 = arith.constant dense<0.000000e+00> : vector<2x96xf32>
    %839 = tpu.matmul %772, %536, %cst_151 {dimension_numbers = #tpu.dot_dimension_numbers<[1], [0], [0], [1], [0, 0, 1, 1], [], []>} : vector<2x32xf32>, vector<32x96xf32>, vector<2x96xf32> -> vector<2x96xf32>
    %840 = vector.extract_strided_slice %838 {offsets = [0, 0], sizes = [2, 64], strides = [1, 1]} : vector<2x96xf32> to vector<2x64xf32>
    %841 = vector.extract_strided_slice %839 {offsets = [0, 0], sizes = [2, 64], strides = [1, 1]} : vector<2x96xf32> to vector<2x64xf32>
    %842 = arith.addf %840, %841 : vector<2x64xf32>
    %843 = vector.extract_strided_slice %537 {offsets = [0, 0], sizes = [1, 64], strides = [1, 1]} : vector<1x96xf32> to vector<1x64xf32>
    %844 = vector.broadcast %843 : vector<1x64xf32> to vector<2x64xf32>
    %845 = arith.addf %842, %844 : vector<2x64xf32>
    %846 = arith.negf %845 : vector<2x64xf32>
    %847 = math.exp %846 : vector<2x64xf32>
    %cst_152 = arith.constant 1.000000e+00 : f32
    %848 = vector.broadcast %cst_152 : f32 to vector<2x64xf32>
    %849 = arith.addf %848, %847 : vector<2x64xf32>
    %850 = arith.divf %848, %849 : vector<2x64xf32>
    %851 = vector.extract_strided_slice %850 {offsets = [0, 0], sizes = [2, 32], strides = [1, 1]} : vector<2x64xf32> to vector<2x32xf32>
    %852 = vector.extract_strided_slice %850 {offsets = [0, 32], sizes = [2, 32], strides = [1, 1]} : vector<2x64xf32> to vector<2x32xf32>
    %853 = vector.extract_strided_slice %838 {offsets = [0, 64], sizes = [2, 32], strides = [1, 1]} : vector<2x96xf32> to vector<2x32xf32>
    %854 = vector.extract_strided_slice %537 {offsets = [0, 64], sizes = [1, 32], strides = [1, 1]} : vector<1x96xf32> to vector<1x32xf32>
    %855 = vector.broadcast %854 : vector<1x32xf32> to vector<2x32xf32>
    %856 = arith.addf %853, %855 : vector<2x32xf32>
    %857 = vector.extract_strided_slice %839 {offsets = [0, 64], sizes = [2, 32], strides = [1, 1]} : vector<2x96xf32> to vector<2x32xf32>
    %858 = vector.broadcast %538 : vector<1x32xf32> to vector<2x32xf32>
    %859 = arith.addf %857, %858 : vector<2x32xf32>
    %860 = arith.mulf %851, %859 : vector<2x32xf32>
    %861 = arith.addf %856, %860 : vector<2x32xf32>
    %862 = math.tanh %861 : vector<2x32xf32>
    %cst_153 = arith.constant 1.000000e+00 : f32
    %863 = vector.broadcast %cst_153 : f32 to vector<2x32xf32>
    %864 = arith.subf %863, %852 : vector<2x32xf32>
    %865 = arith.mulf %864, %862 : vector<2x32xf32>
    %866 = arith.mulf %852, %772 : vector<2x32xf32>
    %867 = arith.addf %865, %866 : vector<2x32xf32>
    %cst_154 = arith.constant dense<0.000000e+00> : vector<2x40xf32>
    %868 = tpu.matmul %867, %539, %cst_154 {dimension_numbers = #tpu.dot_dimension_numbers<[1], [0], [0], [1], [0, 0, 1, 1], [], []>} : vector<2x32xf32>, vector<32x40xf32>, vector<2x40xf32> -> vector<2x40xf32>
    %869 = vector.broadcast %540 : vector<1x40xf32> to vector<2x40xf32>
    %870 = arith.addf %868, %869 : vector<2x40xf32>
    %871 = vector.extract_strided_slice %870 {offsets = [0, 0], sizes = [2, 32], strides = [1, 1]} : vector<2x40xf32> to vector<2x32xf32>
    %872 = vector.extract_strided_slice %870 {offsets = [0, 32], sizes = [2, 8], strides = [1, 1]} : vector<2x40xf32> to vector<2x8xf32>
    %873 = math.tanh %871 : vector<2x32xf32>
    %cst_155 = arith.constant dense<0.000000e+00> : vector<2x1xf32>
    %874 = tpu.matmul %873, %541, %cst_155 {dimension_numbers = #tpu.dot_dimension_numbers<[1], [0], [0], [1], [0, 0, 1, 1], [], []>} : vector<2x32xf32>, vector<32x1xf32>, vector<2x1xf32> -> vector<2x1xf32>
    %875 = vector.broadcast %542 : vector<1x1xf32> to vector<2x1xf32>
    %876 = arith.addf %874, %875 : vector<2x1xf32>
    %877 = arith.negf %876 : vector<2x1xf32>
    %878 = math.exp %877 : vector<2x1xf32>
    %cst_156 = arith.constant 1.000000e+00 : f32
    %879 = vector.broadcast %cst_156 : f32 to vector<2x1xf32>
    %880 = arith.addf %879, %878 : vector<2x1xf32>
    %881 = arith.divf %879, %880 : vector<2x1xf32>
    %cst_157 = arith.constant 1.100000e+01 : f32
    %882 = vector.broadcast %cst_157 : f32 to vector<2x1xf32>
    %883 = arith.mulf %882, %881 : vector<2x1xf32>
    %cst_158 = arith.constant 2.000000e+00 : f32
    %884 = vector.broadcast %cst_158 : f32 to vector<2x1xf32>
    %885 = arith.addf %883, %884 : vector<2x1xf32>
    %886 = math.floor %885 : vector<2x1xf32>
    %887 = arith.fptosi %886 : vector<2x1xf32> to vector<2x1xi32>
    %888 = vector.broadcast %887 : vector<2x1xi32> to vector<2x5xi32>
    %889 = vector.broadcast %548 : vector<1x5xi32> to vector<2x5xi32>
    %890 = arith.addi %888, %889 : vector<2x5xi32>
    %891 = vector.shape_cast %890 : vector<2x5xi32> to vector<2x5x1xi32>
    %892 = vector.broadcast %891 : vector<2x5x1xi32> to vector<2x5x16xi32>
    %893 = arith.cmpi eq, %892, %549 : vector<2x5x16xi32>
    %894 = arith.extui %893 : vector<2x5x16xi1> to vector<2x5x16xi32>
    %895 = arith.sitofp %894 : vector<2x5x16xi32> to vector<2x5x16xf32>
    "tpu.trace_start"() <{level = 10 : i32, message = "bwl,blh->bwh"}> : () -> ()
    %cst_159 = arith.constant dense<0.000000e+00> : vector<2x5x32xf32>
    %896 = tpu.matmul %895, %534, %cst_159 {dimension_numbers = #tpu.dot_dimension_numbers<[2], [1], [1], [2], [0, 0, 0, 1, 1, 2], [0], [0]>} : vector<2x5x16xf32>, vector<2x16x32xf32>, vector<2x5x32xf32> -> vector<2x5x32xf32>
    "tpu.trace_stop"() : () -> ()
    "tpu.trace_start"() <{level = 10 : i32, message = "bwh,hk->bwk"}> : () -> ()
    %cst_160 = arith.constant dense<0.000000e+00> : vector<2x5x32xf32>
    %897 = tpu.matmul %896, %543, %cst_160 {dimension_numbers = #tpu.dot_dimension_numbers<[2], [0], [0, 1], [1], [0, 0, 0, 1, 1, 1], [], []>} : vector<2x5x32xf32>, vector<32x32xf32>, vector<2x5x32xf32> -> vector<2x5x32xf32>
    "tpu.trace_stop"() : () -> ()
    %898 = vector.shape_cast %544 : vector<1x32xf32> to vector<1x1x32xf32>
    %899 = vector.broadcast %898 : vector<1x1x32xf32> to vector<2x5x32xf32>
    %900 = arith.addf %897, %899 : vector<2x5x32xf32>
    %901 = vector.shape_cast %867 : vector<2x32xf32> to vector<2x1x32xf32>
    %902 = vector.broadcast %901 : vector<2x1x32xf32> to vector<2x5x32xf32>
    %903 = arith.mulf %900, %902 : vector<2x5x32xf32>
    %cst_161 = arith.constant dense<0.000000e+00> : vector<2x5xf32>
    %904 = vector.multi_reduction <add>, %903, %cst_161 [2] : vector<2x5x32xf32> to vector<2x5xf32>
    %905 = arith.sitofp %890 : vector<2x5xi32> to vector<2x5xf32>
    %906 = vector.broadcast %885 : vector<2x1xf32> to vector<2x5xf32>
    %907 = arith.subf %905, %906 : vector<2x5xf32>
    %908 = arith.mulf %907, %907 : vector<2x5xf32>
    %cst_162 = arith.constant -5.000000e-01 : f32
    %909 = vector.broadcast %cst_162 : f32 to vector<2x5xf32>
    %910 = arith.mulf %908, %909 : vector<2x5xf32>
    %911 = math.exp %910 : vector<2x5xf32>
    %912 = arith.mulf %904, %911 : vector<2x5xf32>
    %cst_163 = arith.constant dense<0xFF800000> : vector<2xf32>
    %913 = vector.multi_reduction <maximumf>, %912, %cst_163 [1] : vector<2x5xf32> to vector<2xf32>
    %914 = vector.shape_cast %913 : vector<2xf32> to vector<2x1xf32>
    %915 = vector.broadcast %914 : vector<2x1xf32> to vector<2x5xf32>
    %916 = arith.subf %912, %915 : vector<2x5xf32>
    %917 = math.exp %916 : vector<2x5xf32>
    %cst_164 = arith.constant dense<0.000000e+00> : vector<2xf32>
    %918 = vector.multi_reduction <add>, %917, %cst_164 [1] : vector<2x5xf32> to vector<2xf32>
    %919 = vector.shape_cast %918 : vector<2xf32> to vector<2x1xf32>
    %920 = vector.broadcast %919 : vector<2x1xf32> to vector<2x5xf32>
    %921 = arith.divf %917, %920 : vector<2x5xf32>
    %922 = vector.shape_cast %921 : vector<2x5xf32> to vector<2x5x1xf32>
    %923 = vector.broadcast %922 : vector<2x5x1xf32> to vector<2x5x32xf32>
    %924 = arith.mulf %923, %900 : vector<2x5x32xf32>
    %cst_165 = arith.constant dense<0.000000e+00> : vector<2x32xf32>
    %925 = vector.multi_reduction <add>, %924, %cst_165 [1] : vector<2x5x32xf32> to vector<2x32xf32>
    %926 = vector.shape_cast %872 : vector<2x8xf32> to vector<2x1x8xf32>
    %c3 = arith.constant 3 : index
    %927 = memref.load %arg0[%c3] : memref<6xi32, #tpu.memory_space<smem>>
    %c0_i32_166 = arith.constant 0 : i32
    %928 = arith.cmpi sgt, %927, %c0_i32_166 : i32
    %929 = vector.extract_strided_slice %545 {offsets = [0, 3, 0], sizes = [2, 1, 8], strides = [1, 1, 1]} : vector<2x6x8xf32> to vector<2x1x8xf32>
    %930 = vector.shape_cast %929 : vector<2x1x8xf32> to vector<2x8xf32>
    %931 = arith.select %928, %930, %872 : vector<2x8xf32>
    %932 = tpu.concatenate %931, %925 in 1 : vector<2x8xf32>, vector<2x32xf32> -> vector<2x40xf32>
    %cst_167 = arith.constant dense<0.000000e+00> : vector<2x96xf32>
    %933 = tpu.matmul %932, %535, %cst_167 {dimension_numbers = #tpu.dot_dimension_numbers<[1], [0], [0], [1], [0, 0, 1, 1], [], []>} : vector<2x40xf32>, vector<40x96xf32>, vector<2x96xf32> -> vector<2x96xf32>
    %cst_168 = arith.constant dense<0.000000e+00> : vector<2x96xf32>
    %934 = tpu.matmul %867, %536, %cst_168 {dimension_numbers = #tpu.dot_dimension_numbers<[1], [0], [0], [1], [0, 0, 1, 1], [], []>} : vector<2x32xf32>, vector<32x96xf32>, vector<2x96xf32> -> vector<2x96xf32>
    %935 = vector.extract_strided_slice %933 {offsets = [0, 0], sizes = [2, 64], strides = [1, 1]} : vector<2x96xf32> to vector<2x64xf32>
    %936 = vector.extract_strided_slice %934 {offsets = [0, 0], sizes = [2, 64], strides = [1, 1]} : vector<2x96xf32> to vector<2x64xf32>
    %937 = arith.addf %935, %936 : vector<2x64xf32>
    %938 = vector.extract_strided_slice %537 {offsets = [0, 0], sizes = [1, 64], strides = [1, 1]} : vector<1x96xf32> to vector<1x64xf32>
    %939 = vector.broadcast %938 : vector<1x64xf32> to vector<2x64xf32>
    %940 = arith.addf %937, %939 : vector<2x64xf32>
    %941 = arith.negf %940 : vector<2x64xf32>
    %942 = math.exp %941 : vector<2x64xf32>
    %cst_169 = arith.constant 1.000000e+00 : f32
    %943 = vector.broadcast %cst_169 : f32 to vector<2x64xf32>
    %944 = arith.addf %943, %942 : vector<2x64xf32>
    %945 = arith.divf %943, %944 : vector<2x64xf32>
    %946 = vector.extract_strided_slice %945 {offsets = [0, 0], sizes = [2, 32], strides = [1, 1]} : vector<2x64xf32> to vector<2x32xf32>
    %947 = vector.extract_strided_slice %945 {offsets = [0, 32], sizes = [2, 32], strides = [1, 1]} : vector<2x64xf32> to vector<2x32xf32>
    %948 = vector.extract_strided_slice %933 {offsets = [0, 64], sizes = [2, 32], strides = [1, 1]} : vector<2x96xf32> to vector<2x32xf32>
    %949 = vector.extract_strided_slice %537 {offsets = [0, 64], sizes = [1, 32], strides = [1, 1]} : vector<1x96xf32> to vector<1x32xf32>
    %950 = vector.broadcast %949 : vector<1x32xf32> to vector<2x32xf32>
    %951 = arith.addf %948, %950 : vector<2x32xf32>
    %952 = vector.extract_strided_slice %934 {offsets = [0, 64], sizes = [2, 32], strides = [1, 1]} : vector<2x96xf32> to vector<2x32xf32>
    %953 = vector.broadcast %538 : vector<1x32xf32> to vector<2x32xf32>
    %954 = arith.addf %952, %953 : vector<2x32xf32>
    %955 = arith.mulf %946, %954 : vector<2x32xf32>
    %956 = arith.addf %951, %955 : vector<2x32xf32>
    %957 = math.tanh %956 : vector<2x32xf32>
    %cst_170 = arith.constant 1.000000e+00 : f32
    %958 = vector.broadcast %cst_170 : f32 to vector<2x32xf32>
    %959 = arith.subf %958, %947 : vector<2x32xf32>
    %960 = arith.mulf %959, %957 : vector<2x32xf32>
    %961 = arith.mulf %947, %867 : vector<2x32xf32>
    %962 = arith.addf %960, %961 : vector<2x32xf32>
    %cst_171 = arith.constant dense<0.000000e+00> : vector<2x40xf32>
    %963 = tpu.matmul %962, %539, %cst_171 {dimension_numbers = #tpu.dot_dimension_numbers<[1], [0], [0], [1], [0, 0, 1, 1], [], []>} : vector<2x32xf32>, vector<32x40xf32>, vector<2x40xf32> -> vector<2x40xf32>
    %964 = vector.broadcast %540 : vector<1x40xf32> to vector<2x40xf32>
    %965 = arith.addf %963, %964 : vector<2x40xf32>
    %966 = vector.extract_strided_slice %965 {offsets = [0, 0], sizes = [2, 32], strides = [1, 1]} : vector<2x40xf32> to vector<2x32xf32>
    %967 = vector.extract_strided_slice %965 {offsets = [0, 32], sizes = [2, 8], strides = [1, 1]} : vector<2x40xf32> to vector<2x8xf32>
    %968 = math.tanh %966 : vector<2x32xf32>
    %cst_172 = arith.constant dense<0.000000e+00> : vector<2x1xf32>
    %969 = tpu.matmul %968, %541, %cst_172 {dimension_numbers = #tpu.dot_dimension_numbers<[1], [0], [0], [1], [0, 0, 1, 1], [], []>} : vector<2x32xf32>, vector<32x1xf32>, vector<2x1xf32> -> vector<2x1xf32>
    %970 = vector.broadcast %542 : vector<1x1xf32> to vector<2x1xf32>
    %971 = arith.addf %969, %970 : vector<2x1xf32>
    %972 = arith.negf %971 : vector<2x1xf32>
    %973 = math.exp %972 : vector<2x1xf32>
    %cst_173 = arith.constant 1.000000e+00 : f32
    %974 = vector.broadcast %cst_173 : f32 to vector<2x1xf32>
    %975 = arith.addf %974, %973 : vector<2x1xf32>
    %976 = arith.divf %974, %975 : vector<2x1xf32>
    %cst_174 = arith.constant 1.100000e+01 : f32
    %977 = vector.broadcast %cst_174 : f32 to vector<2x1xf32>
    %978 = arith.mulf %977, %976 : vector<2x1xf32>
    %cst_175 = arith.constant 2.000000e+00 : f32
    %979 = vector.broadcast %cst_175 : f32 to vector<2x1xf32>
    %980 = arith.addf %978, %979 : vector<2x1xf32>
    %981 = math.floor %980 : vector<2x1xf32>
    %982 = arith.fptosi %981 : vector<2x1xf32> to vector<2x1xi32>
    %983 = vector.broadcast %982 : vector<2x1xi32> to vector<2x5xi32>
    %984 = vector.broadcast %548 : vector<1x5xi32> to vector<2x5xi32>
    %985 = arith.addi %983, %984 : vector<2x5xi32>
    %986 = vector.shape_cast %985 : vector<2x5xi32> to vector<2x5x1xi32>
    %987 = vector.broadcast %986 : vector<2x5x1xi32> to vector<2x5x16xi32>
    %988 = arith.cmpi eq, %987, %549 : vector<2x5x16xi32>
    %989 = arith.extui %988 : vector<2x5x16xi1> to vector<2x5x16xi32>
    %990 = arith.sitofp %989 : vector<2x5x16xi32> to vector<2x5x16xf32>
    "tpu.trace_start"() <{level = 10 : i32, message = "bwl,blh->bwh"}> : () -> ()
    %cst_176 = arith.constant dense<0.000000e+00> : vector<2x5x32xf32>
    %991 = tpu.matmul %990, %534, %cst_176 {dimension_numbers = #tpu.dot_dimension_numbers<[2], [1], [1], [2], [0, 0, 0, 1, 1, 2], [0], [0]>} : vector<2x5x16xf32>, vector<2x16x32xf32>, vector<2x5x32xf32> -> vector<2x5x32xf32>
    "tpu.trace_stop"() : () -> ()
    "tpu.trace_start"() <{level = 10 : i32, message = "bwh,hk->bwk"}> : () -> ()
    %cst_177 = arith.constant dense<0.000000e+00> : vector<2x5x32xf32>
    %992 = tpu.matmul %991, %543, %cst_177 {dimension_numbers = #tpu.dot_dimension_numbers<[2], [0], [0, 1], [1], [0, 0, 0, 1, 1, 1], [], []>} : vector<2x5x32xf32>, vector<32x32xf32>, vector<2x5x32xf32> -> vector<2x5x32xf32>
    "tpu.trace_stop"() : () -> ()
    %993 = vector.shape_cast %544 : vector<1x32xf32> to vector<1x1x32xf32>
    %994 = vector.broadcast %993 : vector<1x1x32xf32> to vector<2x5x32xf32>
    %995 = arith.addf %992, %994 : vector<2x5x32xf32>
    %996 = vector.shape_cast %962 : vector<2x32xf32> to vector<2x1x32xf32>
    %997 = vector.broadcast %996 : vector<2x1x32xf32> to vector<2x5x32xf32>
    %998 = arith.mulf %995, %997 : vector<2x5x32xf32>
    %cst_178 = arith.constant dense<0.000000e+00> : vector<2x5xf32>
    %999 = vector.multi_reduction <add>, %998, %cst_178 [2] : vector<2x5x32xf32> to vector<2x5xf32>
    %1000 = arith.sitofp %985 : vector<2x5xi32> to vector<2x5xf32>
    %1001 = vector.broadcast %980 : vector<2x1xf32> to vector<2x5xf32>
    %1002 = arith.subf %1000, %1001 : vector<2x5xf32>
    %1003 = arith.mulf %1002, %1002 : vector<2x5xf32>
    %cst_179 = arith.constant -5.000000e-01 : f32
    %1004 = vector.broadcast %cst_179 : f32 to vector<2x5xf32>
    %1005 = arith.mulf %1003, %1004 : vector<2x5xf32>
    %1006 = math.exp %1005 : vector<2x5xf32>
    %1007 = arith.mulf %999, %1006 : vector<2x5xf32>
    %cst_180 = arith.constant dense<0xFF800000> : vector<2xf32>
    %1008 = vector.multi_reduction <maximumf>, %1007, %cst_180 [1] : vector<2x5xf32> to vector<2xf32>
    %1009 = vector.shape_cast %1008 : vector<2xf32> to vector<2x1xf32>
    %1010 = vector.broadcast %1009 : vector<2x1xf32> to vector<2x5xf32>
    %1011 = arith.subf %1007, %1010 : vector<2x5xf32>
    %1012 = math.exp %1011 : vector<2x5xf32>
    %cst_181 = arith.constant dense<0.000000e+00> : vector<2xf32>
    %1013 = vector.multi_reduction <add>, %1012, %cst_181 [1] : vector<2x5xf32> to vector<2xf32>
    %1014 = vector.shape_cast %1013 : vector<2xf32> to vector<2x1xf32>
    %1015 = vector.broadcast %1014 : vector<2x1xf32> to vector<2x5xf32>
    %1016 = arith.divf %1012, %1015 : vector<2x5xf32>
    %1017 = vector.shape_cast %1016 : vector<2x5xf32> to vector<2x5x1xf32>
    %1018 = vector.broadcast %1017 : vector<2x5x1xf32> to vector<2x5x32xf32>
    %1019 = arith.mulf %1018, %995 : vector<2x5x32xf32>
    %cst_182 = arith.constant dense<0.000000e+00> : vector<2x32xf32>
    %1020 = vector.multi_reduction <add>, %1019, %cst_182 [1] : vector<2x5x32xf32> to vector<2x32xf32>
    %1021 = vector.shape_cast %967 : vector<2x8xf32> to vector<2x1x8xf32>
    %c4 = arith.constant 4 : index
    %1022 = memref.load %arg0[%c4] : memref<6xi32, #tpu.memory_space<smem>>
    %c0_i32_183 = arith.constant 0 : i32
    %1023 = arith.cmpi sgt, %1022, %c0_i32_183 : i32
    %1024 = vector.extract_strided_slice %545 {offsets = [0, 4, 0], sizes = [2, 1, 8], strides = [1, 1, 1]} : vector<2x6x8xf32> to vector<2x1x8xf32>
    %1025 = vector.shape_cast %1024 : vector<2x1x8xf32> to vector<2x8xf32>
    %1026 = arith.select %1023, %1025, %967 : vector<2x8xf32>
    %1027 = tpu.concatenate %1026, %1020 in 1 : vector<2x8xf32>, vector<2x32xf32> -> vector<2x40xf32>
    %cst_184 = arith.constant dense<0.000000e+00> : vector<2x96xf32>
    %1028 = tpu.matmul %1027, %535, %cst_184 {dimension_numbers = #tpu.dot_dimension_numbers<[1], [0], [0], [1], [0, 0, 1, 1], [], []>} : vector<2x40xf32>, vector<40x96xf32>, vector<2x96xf32> -> vector<2x96xf32>
    %cst_185 = arith.constant dense<0.000000e+00> : vector<2x96xf32>
    %1029 = tpu.matmul %962, %536, %cst_185 {dimension_numbers = #tpu.dot_dimension_numbers<[1], [0], [0], [1], [0, 0, 1, 1], [], []>} : vector<2x32xf32>, vector<32x96xf32>, vector<2x96xf32> -> vector<2x96xf32>
    %1030 = vector.extract_strided_slice %1028 {offsets = [0, 0], sizes = [2, 64], strides = [1, 1]} : vector<2x96xf32> to vector<2x64xf32>
    %1031 = vector.extract_strided_slice %1029 {offsets = [0, 0], sizes = [2, 64], strides = [1, 1]} : vector<2x96xf32> to vector<2x64xf32>
    %1032 = arith.addf %1030, %1031 : vector<2x64xf32>
    %1033 = vector.extract_strided_slice %537 {offsets = [0, 0], sizes = [1, 64], strides = [1, 1]} : vector<1x96xf32> to vector<1x64xf32>
    %1034 = vector.broadcast %1033 : vector<1x64xf32> to vector<2x64xf32>
    %1035 = arith.addf %1032, %1034 : vector<2x64xf32>
    %1036 = arith.negf %1035 : vector<2x64xf32>
    %1037 = math.exp %1036 : vector<2x64xf32>
    %cst_186 = arith.constant 1.000000e+00 : f32
    %1038 = vector.broadcast %cst_186 : f32 to vector<2x64xf32>
    %1039 = arith.addf %1038, %1037 : vector<2x64xf32>
    %1040 = arith.divf %1038, %1039 : vector<2x64xf32>
    %1041 = vector.extract_strided_slice %1040 {offsets = [0, 0], sizes = [2, 32], strides = [1, 1]} : vector<2x64xf32> to vector<2x32xf32>
    %1042 = vector.extract_strided_slice %1040 {offsets = [0, 32], sizes = [2, 32], strides = [1, 1]} : vector<2x64xf32> to vector<2x32xf32>
    %1043 = vector.extract_strided_slice %1028 {offsets = [0, 64], sizes = [2, 32], strides = [1, 1]} : vector<2x96xf32> to vector<2x32xf32>
    %1044 = vector.extract_strided_slice %537 {offsets = [0, 64], sizes = [1, 32], strides = [1, 1]} : vector<1x96xf32> to vector<1x32xf32>
    %1045 = vector.broadcast %1044 : vector<1x32xf32> to vector<2x32xf32>
    %1046 = arith.addf %1043, %1045 : vector<2x32xf32>
    %1047 = vector.extract_strided_slice %1029 {offsets = [0, 64], sizes = [2, 32], strides = [1, 1]} : vector<2x96xf32> to vector<2x32xf32>
    %1048 = vector.broadcast %538 : vector<1x32xf32> to vector<2x32xf32>
    %1049 = arith.addf %1047, %1048 : vector<2x32xf32>
    %1050 = arith.mulf %1041, %1049 : vector<2x32xf32>
    %1051 = arith.addf %1046, %1050 : vector<2x32xf32>
    %1052 = math.tanh %1051 : vector<2x32xf32>
    %cst_187 = arith.constant 1.000000e+00 : f32
    %1053 = vector.broadcast %cst_187 : f32 to vector<2x32xf32>
    %1054 = arith.subf %1053, %1042 : vector<2x32xf32>
    %1055 = arith.mulf %1054, %1052 : vector<2x32xf32>
    %1056 = arith.mulf %1042, %962 : vector<2x32xf32>
    %1057 = arith.addf %1055, %1056 : vector<2x32xf32>
    %cst_188 = arith.constant dense<0.000000e+00> : vector<2x40xf32>
    %1058 = tpu.matmul %1057, %539, %cst_188 {dimension_numbers = #tpu.dot_dimension_numbers<[1], [0], [0], [1], [0, 0, 1, 1], [], []>} : vector<2x32xf32>, vector<32x40xf32>, vector<2x40xf32> -> vector<2x40xf32>
    %1059 = vector.broadcast %540 : vector<1x40xf32> to vector<2x40xf32>
    %1060 = arith.addf %1058, %1059 : vector<2x40xf32>
    %1061 = vector.extract_strided_slice %1060 {offsets = [0, 32], sizes = [2, 8], strides = [1, 1]} : vector<2x40xf32> to vector<2x8xf32>
    %1062 = vector.shape_cast %1061 : vector<2x8xf32> to vector<2x1x8xf32>
    %1063 = tpu.concatenate %641, %736, %831, %926, %1021, %1062 in 1 : vector<2x1x8xf32>, vector<2x1x8xf32>, vector<2x1x8xf32>, vector<2x1x8xf32>, vector<2x1x8xf32>, vector<2x1x8xf32> -> vector<2x6x8xf32>
    %c0_189 = arith.constant 0 : index
    %c0_190 = arith.constant 0 : index
    %c0_191 = arith.constant 0 : index
    %1064 = vector.load %arg17[%c0_189, %c0_190, %c0_191] : memref<2x6x8xf32, #tpu.memory_space<vmem>>, vector<2x6x8xf32>
    tpu.vector_store %arg17[%c0_189, %c0_190, %c0_191], %1063 {strides = array<i32>} : memref<2x6x8xf32, #tpu.memory_space<vmem>>, vector<2x6x8xf32>,
    return
  }
}

</mosaic_0001>

<llo_original>
// kernel: seq2seq_forward.1
$region0: #{seq2seq_forward.1}
  #allocation0 [shape = 'u32[]', space=smem, size = 0x4, offset = 0x4, fixed_abs, tag = 'smem constant byte address 0x4 - core index']
  #allocation1 [shape = 'u32[144,128]{1,0:T(1,128)}', space=vmem, size = 0x12000, scoped, tag = 'internal scratch']
  #allocation2 [shape = 'f32[1,1]{1,0:T(1,128)S(1)}', space=vmem, size = 0x200, scoped, tag = 'scoped memory for seq2seq_forward.1']
  %s0 = inlined_call_operand.vmem [shape: s32[6], index: 0, kind: input, shape index: {}]
  %s1 = inlined_call_operand.vmem [shape: f32[2,16,8], index: 1, kind: input, shape index: {}]
  %s2 = inlined_call_operand.vmem [shape: f32[2,6,8], index: 2, kind: input, shape index: {}]
  %s3 = inlined_call_operand.hbm [shape: f32[8,96], index: 3, kind: input, shape index: {}]
  %s4 = inlined_call_operand.vmem [shape: f32[32,96], index: 4, kind: input, shape index: {}]
  %s5 = inlined_call_operand.vmem [shape: f32[1,96], index: 5, kind: input, shape index: {}]
  %s6 = inlined_call_operand.vmem [shape: f32[1,32], index: 6, kind: input, shape index: {}]
  %s7 = inlined_call_operand.vmem [shape: f32[40,96], index: 7, kind: input, shape index: {}]
  %s8 = inlined_call_operand.vmem [shape: f32[32,96], index: 8, kind: input, shape index: {}]
  %s9 = inlined_call_operand.vmem [shape: f32[1,96], index: 9, kind: input, shape index: {}]
  %s10 = inlined_call_operand.vmem [shape: f32[1,32], index: 10, kind: input, shape index: {}]
  %s11 = inlined_call_operand.vmem [shape: f32[32,40], index: 11, kind: input, shape index: {}]
  %s12 = inlined_call_operand.vmem [shape: f32[1,40], index: 12, kind: input, shape index: {}]
  %s13 = inlined_call_operand.vmem [shape: f32[32,1], index: 13, kind: input, shape index: {}]
  %s14 = inlined_call_operand.<no memory space> [shape: f32[1,1], index: 14, kind: input, shape index: {}]
  %s15 = inlined_call_operand.hbm [shape: f32[32,32], index: 15, kind: input, shape index: {}]
  %s16 = inlined_call_operand.vmem [shape: f32[1,32], index: 16, kind: input, shape index: {}]
  %s17 = inlined_call_operand.vmem [shape: f32[2,6,8], index: 17, kind: output, shape index: {}]
  %s18 = sld [smem:[#allocation0]]
  $region90: #{seq2seq_forward.1} parent=0
    _
  %s20 = ssub.s32 1, %s18
  %s21 = scalar_select 0, %s20, %s18
  %v22 = vstv %s14
  %23 = vst [vmem:[#allocation2] sm:$0x1] %v22
  $region1: #{seq2seq_forward.1} parent=0
    #allocation3 [shape = 'u8[512]{0}', space=smem, size = 0x200, scoped, tag = 'input window, operand 0, single buffered']
    #allocation4 [shape = 's32[1]{0}', space=sflag, size = 0x4, scoped, tag = 'scoped memory for seq2seq_forward.1']
    #allocation5 [shape = 's32[1]{0}', space=sflag, size = 0x4, scoped, tag = 'scoped memory for seq2seq_forward.1']
    #allocation6 [shape = 'u8[4096]{0}', space=vmem, size = 0x1000, scoped, tag = 'input window, operand 3, single buffered']
    #allocation7 [shape = 'u8[16384]{0}', space=vmem, size = 0x4000, scoped, tag = 'input window, operand 15, single buffered']
    #allocation8 [shape = 's32[1]{0}', space=sflag, size = 0x4, scoped, tag = 'scoped memory for seq2seq_forward.1']
    %24 = vsyncpa [#allocation5], 0
    %25 = vsyncpa [#allocation4], 0
    %26 = vsyncpa [#allocation8], 0
    // Predicated region
    $region2: #{seq2seq_forward.1} parent=1 // pred_check
      _
    $region3: #{seq2seq_forward.1} parent=1 // pred_check_branch
      %28 = sbr.rel (0) target = $region5
    $region4: #{seq2seq_forward.1} parent=1 // pred_region
      %s30 = ssub.s32 16, 16
      %31 = vsyncadd [#allocation5], %s30
      %s33 = sshll.u32 %s0, 4
      %s34 = int_to_ptr.vmem [resolvable:$true] %s33
      %36 = dma.vmem_to_smem %s34, 16, [#allocation3], [#allocation5]
    $region5: #{seq2seq_forward.1} parent=1 // pred_fallthru
      _
    // Predicated region
    $region6: #{seq2seq_forward.1} parent=1 // pred_check
      _
    $region7: #{seq2seq_forward.1} parent=1 // pred_check_branch
      %38 = sbr.rel (0) target = $region9
    $region8: #{seq2seq_forward.1} parent=1 // pred_region
      _
    $region9: #{seq2seq_forward.1} parent=1 // pred_fallthru
      _
    // Predicated region
    $region10: #{seq2seq_forward.1} parent=1 // pred_check
      _
    $region11: #{seq2seq_forward.1} parent=1 // pred_check_branch
      %40 = sbr.rel (0) target = $region13
    $region12: #{seq2seq_forward.1} parent=1 // pred_region
      _
    $region13: #{seq2seq_forward.1} parent=1 // pred_fallthru
      _
    // Predicated region
    $region14: #{seq2seq_forward.1} parent=1 // pred_check
      _
    $region15: #{seq2seq_forward.1} parent=1 // pred_check_branch
      %42 = sbr.rel (0) target = $region17
    $region16: #{seq2seq_forward.1} parent=1 // pred_region
      %s44 = ssub.s32 128, 128
      %45 = vsyncadd [#allocation4], %s44
      %s47 = sshll.u32 [#allocation6], 4
      %s48 = int_to_ptr.vmem [resolvable:$true] %s47
      %50 = dma.hbm_to_vmem [thread:$0]  %s3, 128, %s48, [#allocation4]
    $region17: #{seq2seq_forward.1} parent=1 // pred_fallthru
      _
    // Predicated region
    $region18: #{seq2seq_forward.1} parent=1 // pred_check
      _
    $region19: #{seq2seq_forward.1} parent=1 // pred_check_branch
      %52 = sbr.rel (0) target = $region21
    $region20: #{seq2seq_forward.1} parent=1 // pred_region
      _
    $region21: #{seq2seq_forward.1} parent=1 // pred_fallthru
      _
    // Predicated region
    $region22: #{seq2seq_forward.1} parent=1 // pred_check
      _
    $region23: #{seq2seq_forward.1} parent=1 // pred_check_branch
      %54 = sbr.rel (0) target = $region25
    $region24: #{seq2seq_forward.1} parent=1 // pred_region
      _
    $region25: #{seq2seq_forward.1} parent=1 // pred_fallthru
      _
    // Predicated region
    $region26: #{seq2seq_forward.1} parent=1 // pred_check
      _
    $region27: #{seq2seq_forward.1} parent=1 // pred_check_branch
      %56 = sbr.rel (0) target = $region29
    $region28: #{seq2seq_forward.1} parent=1 // pred_region
      _
    $region29: #{seq2seq_forward.1} parent=1 // pred_fallthru
      _
    // Predicated region
    $region30: #{seq2seq_forward.1} parent=1 // pred_check
      _
    $region31: #{seq2seq_forward.1} parent=1 // pred_check_branch
      %58 = sbr.rel (0) target = $region33
    $region32: #{seq2seq_forward.1} parent=1 // pred_region
      _
    $region33: #{seq2seq_forward.1} parent=1 // pred_fallthru
      _
    // Predicated region
    $region34: #{seq2seq_forward.1} parent=1 // pred_check
      _
    $region35: #{seq2seq_forward.1} parent=1 // pred_check_branch
      %60 = sbr.rel (0) target = $region37
    $region36: #{seq2seq_forward.1} parent=1 // pred_region
      _
    $region37: #{seq2seq_forward.1} parent=1 // pred_fallthru
      _
    // Predicated region
    $region38: #{seq2seq_forward.1} parent=1 // pred_check
      _
    $region39: #{seq2seq_forward.1} parent=1 // pred_check_branch
      %62 = sbr.rel (0) target = $region41
    $region40: #{seq2seq_forward.1} parent=1 // pred_region
      _
    $region41: #{seq2seq_forward.1} parent=1 // pred_fallthru
      _
    // Predicated region
    $region42: #{seq2seq_forward.1} parent=1 // pred_check
      _
    $region43: #{seq2seq_forward.1} parent=1 // pred_check_branch
      %64 = sbr.rel (0) target = $region45
    $region44: #{seq2seq_forward.1} parent=1 // pred_region
      _
    $region45: #{seq2seq_forward.1} parent=1 // pred_fallthru
      _
    // Predicated region
    $region46: #{seq2seq_forward.1} parent=1 // pred_check
      _
    $region47: #{seq2seq_forward.1} parent=1 // pred_check_branch
      %66 = sbr.rel (0) target = $region49
    $region48: #{seq2seq_forward.1} parent=1 // pred_region
      _
    $region49: #{seq2seq_forward.1} parent=1 // pred_fallthru
      _
    // Predicated region
    $region50: #{seq2seq_forward.1} parent=1 // pred_check
      _
    $region51: #{seq2seq_forward.1} parent=1 // pred_check_branch
      %68 = sbr.rel (0) target = $region53
    $region52: #{seq2seq_forward.1} parent=1 // pred_region
      _
    $region53: #{seq2seq_forward.1} parent=1 // pred_fallthru
      _
    // Predicated region
    $region54: #{seq2seq_forward.1} parent=1 // pred_check
      _
    $region55: #{seq2seq_forward.1} parent=1 // pred_check_branch
      %70 = sbr.rel (0) target = $region57
    $region56: #{seq2seq_forward.1} parent=1 // pred_region
      _
    $region57: #{seq2seq_forward.1} parent=1 // pred_fallthru
      _
    // Predicated region
    $region58: #{seq2seq_forward.1} parent=1 // pred_check
      _
    $region59: #{seq2seq_forward.1} parent=1 // pred_check_branch
      %72 = sbr.rel (0) target = $region61
    $region60: #{seq2seq_forward.1} parent=1 // pred_region
      _
    $region61: #{seq2seq_forward.1} parent=1 // pred_fallthru
      _
    // Predicated region
    $region62: #{seq2seq_forward.1} parent=1 // pred_check
      _
    $region63: #{seq2seq_forward.1} parent=1 // pred_check_branch
      %74 = sbr.rel (0) target = $region65
    $region64: #{seq2seq_forward.1} parent=1 // pred_region
      %s76 = ssub.s32 512, 512
      %77 = vsyncadd [#allocation8], %s76
      %s78 = sshll.u32 [#allocation7], 4
      %s79 = int_to_ptr.vmem [resolvable:$true] %s78
      %84 = dma.hbm_to_vmem [thread:$0]  %s15, 512, %s79, [#allocation8], 128, 128, 8
    $region65: #{seq2seq_forward.1} parent=1 // pred_fallthru
      _
    // Predicated region
    $region66: #{seq2seq_forward.1} parent=1 // pred_check
      _
    $region67: #{seq2seq_forward.1} parent=1 // pred_check_branch
      %86 = sbr.rel (0) target = $region69
    $region68: #{seq2seq_forward.1} parent=1 // pred_region
      _
    $region69: #{seq2seq_forward.1} parent=1 // pred_fallthru
      _
    // Predicated region
    $region70: #{seq2seq_forward.1} parent=1 // pred_check
      _
    $region71: #{seq2seq_forward.1} parent=1 // pred_check_branch
      %88 = sbr.rel (0) target = $region73
    $region72: #{seq2seq_forward.1} parent=1 // pred_region
      %89 = dma.done [#allocation5], 16
    $region73: #{seq2seq_forward.1} parent=1 // pred_fallthru
      _
    // Predicated region
    $region74: #{seq2seq_forward.1} parent=1 // pred_check
      _
    $region75: #{seq2seq_forward.1} parent=1 // pred_check_branch
      %91 = sbr.rel (0) target = $region77
    $region76: #{seq2seq_forward.1} parent=1 // pred_region
      %92 = dma.done [#allocation4], 128
    $region77: #{seq2seq_forward.1} parent=1 // pred_fallthru
      _
    // Predicated region
    $region78: #{seq2seq_forward.1} parent=1 // pred_check
      _
    $region79: #{seq2seq_forward.1} parent=1 // pred_check_branch
      %94 = sbr.rel (0) target = $region81
    $region80: #{seq2seq_forward.1} parent=1 // pred_region
      %95 = dma.done [#allocation8], 512
    $region81: #{seq2seq_forward.1} parent=1 // pred_fallthru
      _
    %96 = sfence
    %v97 = vld [vmem:[#allocation6] sm:$0xff]
    %v98 = vld [vmem:[%s4] sm:$0xff]
    %v99 = vld [vmem:[%s4 + $0x8] sm:$0xff]
    %v100 = vld [vmem:[%s4 + $0x10] sm:$0xff]
    %v101 = vld [vmem:[%s4 + $0x18] sm:$0xff]
    %v102 = vld [vmem:[%s5] sm:$0x1]
    %v103 = vld [vmem:[%s6] sm:$0x1]
    %v104 = vld [vmem:[%s1] sm:$0xff]
    %v105 = vld [vmem:[%s1 + $0x8] sm:$0xff]
    %v106 = vld [vmem:[%s1 + $0x10] sm:$0xff]
    %v107 = vld [vmem:[%s1 + $0x18] sm:$0xff]
    %v110 = vrot.slane %v106, 7
    %vm111 = vcmask 1041409
    %v112 = vsel %vm111, %v110, %v104
    %vm113 = vcmask 64512
    %v114 = vsel %vm113, %v112, 0
    %116 = vmatprep.subr.mxu0 0.0
    %117 = vmatpush1.msra.mxu0 %v97
    %118 = vmatprep.subr.mxu0 0.0
    %119 = vmatpush1.msra.mxu0 0.0
    %120 = vmatprep.subr.mxu0 0.0
    %121 = vmatpush1.msra.mxu0 0.0
    %122 = vmatprep.subr.mxu0 0.0
    %123 = vmatpush1.msra.mxu0 0.0
    %124 = vmatprep.subr.mxu0 0.0
    %125 = vmatpush1.msra.mxu0 0.0
    %126 = vmatprep.subr.mxu0 0.0
    %127 = vmatpush1.msra.mxu0 0.0
    %128 = vmatprep.subr.mxu0 0.0
    %129 = vmatpush1.msra.mxu0 0.0
    %130 = vmatprep.subr.mxu0 0.0
    %131 = vmatpush1.msra.mxu0 0.0
    %132 = vmatprep.subr.mxu0 0.0
    %133 = vmatpush1.msra.mxu0 0.0
    %134 = vmatprep.subr.mxu0 0.0
    %135 = vmatpush1.msra.mxu0 0.0
    %136 = vmatprep.subr.mxu0 0.0
    %137 = vmatpush1.msra.mxu0 0.0
    %138 = vmatprep.subr.mxu0 0.0
    %139 = vmatpush1.msra.mxu0 0.0
    %140 = vmatprep.subr.mxu0 0.0
    %141 = vmatpush1.msra.mxu0 0.0
    %142 = vmatprep.subr.mxu0 0.0
    %143 = vmatpush1.msra.mxu0 0.0
    %144 = vmatprep.subr.mxu0 0.0
    %145 = vmatpush1.msra.mxu0 0.0
    %146 = vmatprep.subr.mxu0 0.0
    %147 = vmatpush1.msra.mxu0 0.0
    %148 = vmatprep.subr.mxu0 0.0
    %149 = vmatpush1.msra.mxu0 0.0
    %150 = vmatprep.subr.mxu0 0.0
    %151 = vmatpush1.msra.mxu0 0.0
    %152 = vmatprep.subr.mxu0 0.0
    %153 = vmatpush1.msra.mxu0 0.0
    %154 = vmatprep.subr.mxu0 0.0
    %155 = vmatpush1.msra.mxu0 0.0
    %156 = vmatprep.subr.mxu0 0.0
    %157 = vmatpush1.msra.mxu0 0.0
    %158 = vmatprep.subr.mxu0 0.0
    %159 = vmatpush1.msra.mxu0 0.0
    %160 = vmatprep.subr.mxu0 0.0
    %161 = vmatpush1.msra.mxu0 0.0
    %162 = vmatprep.subr.mxu0 0.0
    %163 = vmatpush1.msra.mxu0 0.0
    %164 = vmatprep.subr.mxu0 0.0
    %165 = vmatpush1.msra.mxu0 0.0
    %166 = vmatprep.subr.mxu0 0.0
    %167 = vmatpush1.msra.mxu0 0.0
    %168 = vmatprep.subr.mxu0 0.0
    %169 = vmatpush1.msra.mxu0 0.0
    %170 = vmatprep.subr.mxu0 0.0
    %171 = vmatpush1.msra.mxu0 0.0
    %172 = vmatprep.subr.mxu0 0.0
    %173 = vmatpush1.msra.mxu0 0.0
    %174 = vmatprep.subr.mxu0 0.0
    %175 = vmatpush1.msra.mxu0 0.0
    %176 = vmatprep.subr.mxu0 0.0
    %177 = vmatpush1.msra.mxu0 0.0
    %178 = vmatprep.subr.mxu0 0.0
    %179 = vmatpush1.msra.mxu0 0.0
    %180 = vmatprep.mubr.f32.mxu0 0.0
    %181 = vmatmul.mubr.f32.gmra.mrb[0].mxu0 %v114
    %v182 = vpop.f32.mrb[0].mxu0
    %v183 = vadd.f32 0.0, %v182
    %v184 = vpop.f32.mrb[0].mxu0
    %185 = vdwg.mxu0
    %vm186 = vcmask 261120
    %v188 = vsel %vm186, 0.0, 0
    %190 = vmatprep.subr.mxu0 0.0
    %191 = vmatpush1.msra.mxu0 %v98
    %192 = vmatprep.subr.mxu0 0.0
    %193 = vmatpush1.msra.mxu0 %v99
    %194 = vmatprep.subr.mxu0 0.0
    %195 = vmatpush1.msra.mxu0 %v100
    %196 = vmatprep.subr.mxu0 0.0
    %197 = vmatpush1.msra.mxu0 %v101
    %198 = vmatprep.subr.mxu0 0.0
    %199 = vmatpush1.msra.mxu0 0.0
    %200 = vmatprep.subr.mxu0 0.0
    %201 = vmatpush1.msra.mxu0 0.0
    %202 = vmatprep.subr.mxu0 0.0
    %203 = vmatpush1.msra.mxu0 0.0
    %204 = vmatprep.subr.mxu0 0.0
    %205 = vmatpush1.msra.mxu0 0.0
    %206 = vmatprep.subr.mxu0 0.0
    %207 = vmatpush1.msra.mxu0 0.0
    %208 = vmatprep.subr.mxu0 0.0
    %209 = vmatpush1.msra.mxu0 0.0
    %210 = vmatprep.subr.mxu0 0.0
    %211 = vmatpush1.msra.mxu0 0.0
    %212 = vmatprep.subr.mxu0 0.0
    %213 = vmatpush1.msra.mxu0 0.0
    %214 = vmatprep.subr.mxu0 0.0
    %215 = vmatpush1.msra.mxu0 0.0
    %216 = vmatprep.subr.mxu0 0.0
    %217 = vmatpush1.msra.mxu0 0.0
    %218 = vmatprep.subr.mxu0 0.0
    %219 = vmatpush1.msra.mxu0 0.0
    %220 = vmatprep.subr.mxu0 0.0
    %221 = vmatpush1.msra.mxu0 0.0
    %222 = vmatprep.subr.mxu0 0.0
    %223 = vmatpush1.msra.mxu0 0.0
    %224 = vmatprep.subr.mxu0 0.0
    %225 = vmatpush1.msra.mxu0 0.0
    %226 = vmatprep.subr.mxu0 0.0
    %227 = vmatpush1.msra.mxu0 0.0
    %228 = vmatprep.subr.mxu0 0.0
    %229 = vmatpush1.msra.mxu0 0.0
    %230 = vmatprep.subr.mxu0 0.0
    %231 = vmatpush1.msra.mxu0 0.0
    %232 = vmatprep.subr.mxu0 0.0
    %233 = vmatpush1.msra.mxu0 0.0
    %234 = vmatprep.subr.mxu0 0.0
    %235 = vmatpush1.msra.mxu0 0.0
    %236 = vmatprep.subr.mxu0 0.0
    %237 = vmatpush1.msra.mxu0 0.0
    %238 = vmatprep.subr.mxu0 0.0
    %239 = vmatpush1.msra.mxu0 0.0
    %240 = vmatprep.subr.mxu0 0.0
    %241 = vmatpush1.msra.mxu0 0.0
    %242 = vmatprep.subr.mxu0 0.0
    %243 = vmatpush1.msra.mxu0 0.0
    %244 = vmatprep.subr.mxu0 0.0
    %245 = vmatpush1.msra.mxu0 0.0
    %246 = vmatprep.subr.mxu0 0.0
    %247 = vmatpush1.msra.mxu0 0.0
    %248 = vmatprep.subr.mxu0 0.0
    %249 = vmatpush1.msra.mxu0 0.0
    %250 = vmatprep.subr.mxu0 0.0
    %251 = vmatpush1.msra.mxu0 0.0
    %252 = vmatprep.subr.mxu0 0.0
    %253 = vmatpush1.msra.mxu0 0.0
    %254 = vmatprep.mubr.f32.mxu0 0.0
    %255 = vmatmul.mubr.f32.gmra.mrb[0].mxu0 %v188
    %v256 = vpop.f32.mrb[0].mxu0
    %v257 = vadd.f32 0.0, %v256
    %v258 = vpop.f32.mrb[0].mxu0
    %259 = vdwg.mxu0
    %v260 = vadd.f32 %v183, %v257
    %v262 = vlaneseq
    %v263 = vshrl.u32 %v262, 7
    %v264 = vsub.s32 0, %v263
    %v265 = vrot.slane %v102, %v264
    %v267 = vadd.f32 %v260, %v265
    %v268 = vxor.u32 %v267, 2147483648
    %v269 = vmul.f32 %v268, 1.442695
    %v270 = vpow.pop %v269
    %v271 = vadd.f32 %v270, 1.0
    %v272 = vrcp.pop %v271
    %v273 = vmul.f32 1.0, %v272
    %v274 = vadd.f32 %v183, %v265
    %v276 = vlaneseq
    %v277 = vshrl.u32 %v276, 7
    %v278 = vsub.s32 0, %v277
    %v279 = vrot.slane %v103, %v278
    %280 = vrot.lane.b32.xlu0 %v279, 64
    %v281 = vpop.permute.xlu0 %280
    %v283 = vadd.f32 %v257, %v281
    %285 = vrot.lane.b32.xlu0 %v283, 64
    %v286 = vpop.permute.xlu0 %285
    %v288 = vmul.f32 %v273, %v286
    %290 = vrot.lane.b32.xlu0 %v288, 64
    %v291 = vpop.permute.xlu0 %290
    %v293 = vadd.f32 %v274, %v291
    %v294 = vtanh.pop %v293
    %v295 = vsub.f32 1.0, %v273
    %297 = vrot.lane.b32.xlu0 %v294, 96
    %v298 = vpop.permute.xlu0 %297
    %v300 = vmul.f32 %v295, %v298
    %v301 = vmul.f32 %v273, 0.0
    %v302 = vadd.f32 %v300, %v301
    %v305 = vunpack.c.l.s4 1966171168
    %v306 = vunpack.c.0.s8 %v305
    %v307 = vlaneseq
    %v308 = vshrl.u32 %v307, 7
    %v309 = vsub.s32 %v306, %v308
    %v310 = vrot.slane %v302, %v309
    %v311 = vcombine.high %v310, %v310
    %v313 = vunpack.c.l.s4 1966171168
    %v314 = vunpack.c.0.s8 %v313
    %v315 = vlaneseq
    %v316 = vshrl.u32 %v315, 7
    %v317 = vsub.s32 %v314, %v316
    %v318 = vrot.slane %v310, %v317
    %v320 = vunpack.c.l.s4 1966171168
    %v321 = vunpack.c.0.s8 %v320
    %v322 = vlaneseq
    %v323 = vshrl.u32 %v322, 7
    %v324 = vsub.s32 %v321, %v323
    %v325 = vrot.slane %v311, %v324
    %v328 = vrot.slane %v104, 1
    %v329 = vsel %vm111, %v106, %v328
    %v330 = vsel %vm113, %v329, 0
    %332 = vmatprep.subr.mxu0 0.0
    %333 = vmatpush1.msra.mxu0 %v97
    %334 = vmatprep.subr.mxu0 0.0
    %335 = vmatpush1.msra.mxu0 0.0
    %336 = vmatprep.subr.mxu0 0.0
    %337 = vmatpush1.msra.mxu0 0.0
    %338 = vmatprep.subr.mxu0 0.0
    %339 = vmatpush1.msra.mxu0 0.0
    %340 = vmatprep.subr.mxu0 0.0
    %341 = vmatpush1.msra.mxu0 0.0
    %342 = vmatprep.subr.mxu0 0.0
    %343 = vmatpush1.msra.mxu0 0.0
    %344 = vmatprep.subr.mxu0 0.0
    %345 = vmatpush1.msra.mxu0 0.0
    %346 = vmatprep.subr.mxu0 0.0
    %347 = vmatpush1.msra.mxu0 0.0
    %348 = vmatprep.subr.mxu0 0.0
    %349 = vmatpush1.msra.mxu0 0.0
    %350 = vmatprep.subr.mxu0 0.0
    %351 = vmatpush1.msra.mxu0 0.0
    %352 = vmatprep.subr.mxu0 0.0
    %353 = vmatpush1.msra.mxu0 0.0
    %354 = vmatprep.subr.mxu0 0.0
    %355 = vmatpush1.msra.mxu0 0.0
    %356 = vmatprep.subr.mxu0 0.0
    %357 = vmatpush1.msra.mxu0 0.0
    %358 = vmatprep.subr.mxu0 0.0
    %359 = vmatpush1.msra.mxu0 0.0
    %360 = vmatprep.subr.mxu0 0.0
    %361 = vmatpush1.msra.mxu0 0.0
    %362 = vmatprep.subr.mxu0 0.0
    %363 = vmatpush1.msra.mxu0 0.0
    %364 = vmatprep.subr.mxu0 0.0
    %365 = vmatpush1.msra.mxu0 0.0
    %366 = vmatprep.subr.mxu0 0.0
    %367 = vmatpush1.msra.mxu0 0.0
    %368 = vmatprep.subr.mxu0 0.0
    %369 = vmatpush1.msra.mxu0 0.0
    %370 = vmatprep.subr.mxu0 0.0
    %371 = vmatpush1.msra.mxu0 0.0
    %372 = vmatprep.subr.mxu0 0.0
    %373 = vmatpush1.msra.mxu0 0.0
    %374 = vmatprep.subr.mxu0 0.0
    %375 = vmatpush1.msra.mxu0 0.0
    %376 = vmatprep.subr.mxu0 0.0
    %377 = vmatpush1.msra.mxu0 0.0
    %378 = vmatprep.subr.mxu0 0.0
    %379 = vmatpush1.msra.mxu0 0.0
    %380 = vmatprep.subr.mxu0 0.0
    %381 = vmatpush1.msra.mxu0 0.0
    %382 = vmatprep.subr.mxu0 0.0
    %383 = vmatpush1.msra.mxu0 0.0
    %384 = vmatprep.subr.mxu0 0.0
    %385 = vmatpush1.msra.mxu0 0.0
    %386 = vmatprep.subr.mxu0 0.0
    %387 = vmatpush1.msra.mxu0 0.0
    %388 = vmatprep.subr.mxu0 0.0
    %389 = vmatpush1.msra.mxu0 0.0
    %390 = vmatprep.subr.mxu0 0.0
    %391 = vmatpush1.msra.mxu0 0.0
    %392 = vmatprep.subr.mxu0 0.0
    %393 = vmatpush1.msra.mxu0 0.0
    %394 = vmatprep.subr.mxu0 0.0
    %395 = vmatpush1.msra.mxu0 0.0
    %396 = vmatprep.mubr.f32.mxu0 0.0
    %397 = vmatmul.mubr.f32.gmra.mrb[0].mxu0 %v330
    %v398 = vpop.f32.mrb[0].mxu0
    %v399 = vadd.f32 0.0, %v398
    %v400 = vpop.f32.mrb[0].mxu0
    %401 = vdwg.mxu0
    %402 = vrot.lane.b32.xlu0 %v302, 96
    %v403 = vpop.permute.xlu0 %402
    %v404 = vsel %vm186, %v403, 0
    %406 = vmatprep.subr.mxu0 0.0
    %407 = vmatpush1.msra.mxu0 %v98
    %408 = vmatprep.subr.mxu0 0.0
    %409 = vmatpush1.msra.mxu0 %v99
    %410 = vmatprep.subr.mxu0 0.0
    %411 = vmatpush1.msra.mxu0 %v100
    %412 = vmatprep.subr.mxu0 0.0
    %413 = vmatpush1.msra.mxu0 %v101
    %414 = vmatprep.subr.mxu0 0.0
    %415 = vmatpush1.msra.mxu0 0.0
    %416 = vmatprep.subr.mxu0 0.0
    %417 = vmatpush1.msra.mxu0 0.0
    %418 = vmatprep.subr.mxu0 0.0
    %419 = vmatpush1.msra.mxu0 0.0
    %420 = vmatprep.subr.mxu0 0.0
    %421 = vmatpush1.msra.mxu0 0.0
    %422 = vmatprep.subr.mxu0 0.0
    %423 = vmatpush1.msra.mxu0 0.0
    %424 = vmatprep.subr.mxu0 0.0
    %425 = vmatpush1.msra.mxu0 0.0
    %426 = vmatprep.subr.mxu0 0.0
    %427 = vmatpush1.msra.mxu0 0.0
    %428 = vmatprep.subr.mxu0 0.0
    %429 = vmatpush1.msra.mxu0 0.0
    %430 = vmatprep.subr.mxu0 0.0
    %431 = vmatpush1.msra.mxu0 0.0
    %432 = vmatprep.subr.mxu0 0.0
    %433 = vmatpush1.msra.mxu0 0.0
    %434 = vmatprep.subr.mxu0 0.0
    %435 = vmatpush1.msra.mxu0 0.0
    %436 = vmatprep.subr.mxu0 0.0
    %437 = vmatpush1.msra.mxu0 0.0
    %438 = vmatprep.subr.mxu0 0.0
    %439 = vmatpush1.msra.mxu0 0.0
    %440 = vmatprep.subr.mxu0 0.0
    %441 = vmatpush1.msra.mxu0 0.0
    %442 = vmatprep.subr.mxu0 0.0
    %443 = vmatpush1.msra.mxu0 0.0
    %444 = vmatprep.subr.mxu0 0.0
    %445 = vmatpush1.msra.mxu0 0.0
    %446 = vmatprep.subr.mxu0 0.0
    %447 = vmatpush1.msra.mxu0 0.0
    %448 = vmatprep.subr.mxu0 0.0
    %449 = vmatpush1.msra.mxu0 0.0
    %450 = vmatprep.subr.mxu0 0.0
    %451 = vmatpush1.msra.mxu0 0.0
    %452 = vmatprep.subr.mxu0 0.0
    %453 = vmatpush1.msra.mxu0 0.0
    %454 = vmatprep.subr.mxu0 0.0
    %455 = vmatpush1.msra.mxu0 0.0
    %456 = vmatprep.subr.mxu0 0.0
    %457 = vmatpush1.msra.mxu0 0.0
    %458 = vmatprep.subr.mxu0 0.0
    %459 = vmatpush1.msra.mxu0 0.0
    %460 = vmatprep.subr.mxu0 0.0
    %461 = vmatpush1.msra.mxu0 0.0
    %462 = vmatprep.subr.mxu0 0.0
    %463 = vmatpush1.msra.mxu0 0.0
    %464 = vmatprep.subr.mxu0 0.0
    %465 = vmatpush1.msra.mxu0 0.0
    %466 = vmatprep.subr.mxu0 0.0
    %467 = vmatpush1.msra.mxu0 0.0
    %468 = vmatprep.subr.mxu0 0.0
    %469 = vmatpush1.msra.mxu0 0.0
    %470 = vmatprep.mubr.f32.mxu0 0.0
    %471 = vmatmul.mubr.f32.gmra.mrb[0].mxu0 %v404
    %v472 = vpop.f32.mrb[0].mxu0
    %v473 = vadd.f32 0.0, %v472
    %v474 = vpop.f32.mrb[0].mxu0
    %475 = vdwg.mxu0
    %v476 = vadd.f32 %v399, %v473
    %v477 = vadd.f32 %v476, %v265
    %v478 = vxor.u32 %v477, 2147483648
    %v479 = vmul.f32 %v478, 1.442695
    %v480 = vpow.pop %v479
    %v481 = vadd.f32 %v480, 1.0
    %v482 = vrcp.pop %v481
    %v483 = vmul.f32 1.0, %v482
    %v484 = vadd.f32 %v399, %v265
    %v485 = vadd.f32 %v473, %v281
    %487 = vrot.lane.b32.xlu0 %v485, 64
    %v488 = vpop.permute.xlu0 %487
    %v490 = vmul.f32 %v483, %v488
    %492 = vrot.lane.b32.xlu0 %v490, 64
    %v493 = vpop.permute.xlu0 %492
    %v495 = vadd.f32 %v484, %v493
    %v496 = vtanh.pop %v495
    %v497 = vsub.f32 1.0, %v483
    %499 = vrot.lane.b32.xlu0 %v496, 96
    %v500 = vpop.permute.xlu0 %499
    %v502 = vmul.f32 %v497, %v500
    %v503 = vmul.f32 %v483, %v302
    %v504 = vadd.f32 %v502, %v503
    %v507 = vunpack.c.l.s4 1966171168
    %v508 = vunpack.c.0.s8 %v507
    %v509 = vlaneseq
    %v510 = vshrl.u32 %v509, 7
    %v511 = vsub.s32 %v508, %v510
    %v512 = vrot.slane %v504, %v511
    %v513 = vcombine.high %v512, %v512
    %v515 = vunpack.c.l.s4 1966171168
    %v516 = vunpack.c.0.s8 %v515
    %v517 = vlaneseq
    %v518 = vshrl.u32 %v517, 7
    %v519 = vsub.s32 %v516, %v518
    %v520 = vrot.slane %v512, %v519
    %v522 = vunpack.c.l.s4 1966171168
    %v523 = vunpack.c.0.s8 %v522
    %v524 = vlaneseq
    %v525 = vshrl.u32 %v524, 7
    %v526 = vsub.s32 %v523, %v525
    %v527 = vrot.slane %v513, %v526
    %v528 = vrot.slane %v104, 2
    %v529 = vrot.slane %v106, 1
    %v530 = vsel %vm111, %v529, %v528
    %v531 = vsel %vm113, %v530, 0
    %533 = vmatprep.subr.mxu0 0.0
    %534 = vmatpush1.msra.mxu0 %v97
    %535 = vmatprep.subr.mxu0 0.0
    %536 = vmatpush1.msra.mxu0 0.0
    %537 = vmatprep.subr.mxu0 0.0
    %538 = vmatpush1.msra.mxu0 0.0
    %539 = vmatprep.subr.mxu0 0.0
    %540 = vmatpush1.msra.mxu0 0.0
    %541 = vmatprep.subr.mxu0 0.0
    %542 = vmatpush1.msra.mxu0 0.0
    %543 = vmatprep.subr.mxu0 0.0
    %544 = vmatpush1.msra.mxu0 0.0
    %545 = vmatprep.subr.mxu0 0.0
    %546 = vmatpush1.msra.mxu0 0.0
    %547 = vmatprep.subr.mxu0 0.0
    %548 = vmatpush1.msra.mxu0 0.0
    %549 = vmatprep.subr.mxu0 0.0
    %550 = vmatpush1.msra.mxu0 0.0
    %551 = vmatprep.subr.mxu0 0.0
    %552 = vmatpush1.msra.mxu0 0.0
    %553 = vmatprep.subr.mxu0 0.0
    %554 = vmatpush1.msra.mxu0 0.0
    %555 = vmatprep.subr.mxu0 0.0
    %556 = vmatpush1.msra.mxu0 0.0
    %557 = vmatprep.subr.mxu0 0.0
    %558 = vmatpush1.msra.mxu0 0.0
    %559 = vmatprep.subr.mxu0 0.0
    %560 = vmatpush1.msra.mxu0 0.0
    %561 = vmatprep.subr.mxu0 0.0
    %562 = vmatpush1.msra.mxu0 0.0
    %563 = vmatprep.subr.mxu0 0.0
    %564 = vmatpush1.msra.mxu0 0.0
    %565 = vmatprep.subr.mxu0 0.0
    %566 = vmatpush1.msra.mxu0 0.0
    %567 = vmatprep.subr.mxu0 0.0
    %568 = vmatpush1.msra.mxu0 0.0
    %569 = vmatprep.subr.mxu0 0.0
    %570 = vmatpush1.msra.mxu0 0.0
    %571 = vmatprep.subr.mxu0 0.0
    %572 = vmatpush1.msra.mxu0 0.0
    %573 = vmatprep.subr.mxu0 0.0
    %574 = vmatpush1.msra.mxu0 0.0
    %575 = vmatprep.subr.mxu0 0.0
    %576 = vmatpush1.msra.mxu0 0.0
    %577 = vmatprep.subr.mxu0 0.0
    %578 = vmatpush1.msra.mxu0 0.0
    %579 = vmatprep.subr.mxu0 0.0
    %580 = vmatpush1.msra.mxu0 0.0
    %581 = vmatprep.subr.mxu0 0.0
    %582 = vmatpush1.msra.mxu0 0.0
    %583 = vmatprep.subr.mxu0 0.0
    %584 = vmatpush1.msra.mxu0 0.0
    %585 = vmatprep.subr.mxu0 0.0
    %586 = vmatpush1.msra.mxu0 0.0
    %587 = vmatprep.subr.mxu0 0.0
    %588 = vmatpush1.msra.mxu0 0.0
    %589 = vmatprep.subr.mxu0 0.0
    %590 = vmatpush1.msra.mxu0 0.0
    %591 = vmatprep.subr.mxu0 0.0
    %592 = vmatpush1.msra.mxu0 0.0
    %593 = vmatprep.subr.mxu0 0.0
    %594 = vmatpush1.msra.mxu0 0.0
    %595 = vmatprep.subr.mxu0 0.0
    %596 = vmatpush1.msra.mxu0 0.0
    %597 = vmatprep.mubr.f32.mxu0 0.0
    %598 = vmatmul.mubr.f32.gmra.mrb[0].mxu0 %v531
    %v599 = vpop.f32.mrb[0].mxu0
    %v600 = vadd.f32 0.0, %v599
    %v601 = vpop.f32.mrb[0].mxu0
    %602 = vdwg.mxu0
    %603 = vrot.lane.b32.xlu0 %v504, 96
    %v604 = vpop.permute.xlu0 %603
    %v605 = vsel %vm186, %v604, 0
    %607 = vmatprep.subr.mxu0 0.0
    %608 = vmatpush1.msra.mxu0 %v98
    %609 = vmatprep.subr.mxu0 0.0
    %610 = vmatpush1.msra.mxu0 %v99
    %611 = vmatprep.subr.mxu0 0.0
    %612 = vmatpush1.msra.mxu0 %v100
    %613 = vmatprep.subr.mxu0 0.0
    %614 = vmatpush1.msra.mxu0 %v101
    %615 = vmatprep.subr.mxu0 0.0
    %616 = vmatpush1.msra.mxu0 0.0
    %617 = vmatprep.subr.mxu0 0.0
    %618 = vmatpush1.msra.mxu0 0.0
    %619 = vmatprep.subr.mxu0 0.0
    %620 = vmatpush1.msra.mxu0 0.0
    %621 = vmatprep.subr.mxu0 0.0
    %622 = vmatpush1.msra.mxu0 0.0
    %623 = vmatprep.subr.mxu0 0.0
    %624 = vmatpush1.msra.mxu0 0.0
    %625 = vmatprep.subr.mxu0 0.0
    %626 = vmatpush1.msra.mxu0 0.0
    %627 = vmatprep.subr.mxu0 0.0
    %628 = vmatpush1.msra.mxu0 0.0
    %629 = vmatprep.subr.mxu0 0.0
    %630 = vmatpush1.msra.mxu0 0.0
    %631 = vmatprep.subr.mxu0 0.0
    %632 = vmatpush1.msra.mxu0 0.0
    %633 = vmatprep.subr.mxu0 0.0
    %634 = vmatpush1.msra.mxu0 0.0
    %635 = vmatprep.subr.mxu0 0.0
    %636 = vmatpush1.msra.mxu0 0.0
    %637 = vmatprep.subr.mxu0 0.0
    %638 = vmatpush1.msra.mxu0 0.0
    %639 = vmatprep.subr.mxu0 0.0
    %640 = vmatpush1.msra.mxu0 0.0
    %641 = vmatprep.subr.mxu0 0.0
    %642 = vmatpush1.msra.mxu0 0.0
    %643 = vmatprep.subr.mxu0 0.0
    %644 = vmatpush1.msra.mxu0 0.0
    %645 = vmatprep.subr.mxu0 0.0
    %646 = vmatpush1.msra.mxu0 0.0
    %647 = vmatprep.subr.mxu0 0.0
    %648 = vmatpush1.msra.mxu0 0.0
    %649 = vmatprep.subr.mxu0 0.0
    %650 = vmatpush1.msra.mxu0 0.0
    %651 = vmatprep.subr.mxu0 0.0
    %652 = vmatpush1.msra.mxu0 0.0
    %653 = vmatprep.subr.mxu0 0.0
    %654 = vmatpush1.msra.mxu0 0.0
    %655 = vmatprep.subr.mxu0 0.0
    %656 = vmatpush1.msra.mxu0 0.0
    %657 = vmatprep.subr.mxu0 0.0
    %658 = vmatpush1.msra.mxu0 0.0
    %659 = vmatprep.subr.mxu0 0.0
    %660 = vmatpush1.msra.mxu0 0.0
    %661 = vmatprep.subr.mxu0 0.0
    %662 = vmatpush1.msra.mxu0 0.0
    %663 = vmatprep.subr.mxu0 0.0
    %664 = vmatpush1.msra.mxu0 0.0
    %665 = vmatprep.subr.mxu0 0.0
    %666 = vmatpush1.msra.mxu0 0.0
    %667 = vmatprep.subr.mxu0 0.0
    %668 = vmatpush1.msra.mxu0 0.0
    %669 = vmatprep.subr.mxu0 0.0
    %670 = vmatpush1.msra.mxu0 0.0
    %671 = vmatprep.mubr.f32.mxu0 0.0
    %672 = vmatmul.mubr.f32.gmra.mrb[0].mxu0 %v605
    %v673 = vpop.f32.mrb[0].mxu0
    %v674 = vadd.f32 0.0, %v673
    %v675 = vpop.f32.mrb[0].mxu0
    %676 = vdwg.mxu0
    %v677 = vadd.f32 %v600, %v674
    %v678 = vadd.f32 %v677, %v265
    %v679 = vxor.u32 %v678, 2147483648
    %v680 = vmul.f32 %v679, 1.442695
    %v681 = vpow.pop %v680
    %v682 = vadd.f32 %v681, 1.0
    %v683 = vrcp.pop %v682
    %v684 = vmul.f32 1.0, %v683
    %v685 = vadd.f32 %v600, %v265
    %v686 = vadd.f32 %v674, %v281
    %688 = vrot.lane.b32.xlu0 %v686, 64
    %v689 = vpop.permute.xlu0 %688
    %v691 = vmul.f32 %v684, %v689
    %693 = vrot.lane.b32.xlu0 %v691, 64
    %v694 = vpop.permute.xlu0 %693
    %v696 = vadd.f32 %v685, %v694
    %v697 = vtanh.pop %v696
    %v698 = vsub.f32 1.0, %v684
    %700 = vrot.lane.b32.xlu0 %v697, 96
    %v701 = vpop.permute.xlu0 %700
    %v703 = vmul.f32 %v698, %v701
    %v704 = vmul.f32 %v684, %v504
    %v705 = vadd.f32 %v703, %v704
    %v708 = vunpack.c.l.s4 1966171168
    %v709 = vunpack.c.0.s8 %v708
    %v710 = vlaneseq
    %v711 = vshrl.u32 %v710, 7
    %v712 = vsub.s32 %v709, %v711
    %v713 = vrot.slane %v705, %v712
    %v714 = vcombine.high %v713, %v713
    %v716 = vunpack.c.l.s4 1966171168
    %v717 = vunpack.c.0.s8 %v716
    %v718 = vlaneseq
    %v719 = vshrl.u32 %v718, 7
    %v720 = vsub.s32 %v717, %v719
    %v721 = vrot.slane %v713, %v720
    %v723 = vunpack.c.l.s4 1966171168
    %v724 = vunpack.c.0.s8 %v723
    %v725 = vlaneseq
    %v726 = vshrl.u32 %v725, 7
    %v727 = vsub.s32 %v724, %v726
    %v728 = vrot.slane %v714, %v727
    %v729 = vrot.slane %v104, 3
    %v730 = vrot.slane %v106, 2
    %v731 = vsel %vm111, %v730, %v729
    %v732 = vsel %vm113, %v731, 0
    %734 = vmatprep.subr.mxu0 0.0
    %735 = vmatpush1.msra.mxu0 %v97
    %736 = vmatprep.subr.mxu0 0.0
    %737 = vmatpush1.msra.mxu0 0.0
    %738 = vmatprep.subr.mxu0 0.0
    %739 = vmatpush1.msra.mxu0 0.0
    %740 = vmatprep.subr.mxu0 0.0
    %741 = vmatpush1.msra.mxu0 0.0
    %742 = vmatprep.subr.mxu0 0.0
    %743 = vmatpush1.msra.mxu0 0.0
    %744 = vmatprep.subr.mxu0 0.0
    %745 = vmatpush1.msra.mxu0 0.0
    %746 = vmatprep.subr.mxu0 0.0
    %747 = vmatpush1.msra.mxu0 0.0
    %748 = vmatprep.subr.mxu0 0.0
    %749 = vmatpush1.msra.mxu0 0.0
    %750 = vmatprep.subr.mxu0 0.0
    %751 = vmatpush1.msra.mxu0 0.0
    %752 = vmatprep.subr.mxu0 0.0
    %753 = vmatpush1.msra.mxu0 0.0
    %754 = vmatprep.subr.mxu0 0.0
    %755 = vmatpush1.msra.mxu0 0.0
    %756 = vmatprep.subr.mxu0 0.0
    %757 = vmatpush1.msra.mxu0 0.0
    %758 = vmatprep.subr.mxu0 0.0
    %759 = vmatpush1.msra.mxu0 0.0
    %760 = vmatprep.subr.mxu0 0.0
    %761 = vmatpush1.msra.mxu0 0.0
    %762 = vmatprep.subr.mxu0 0.0
    %763 = vmatpush1.msra.mxu0 0.0
    %764 = vmatprep.subr.mxu0 0.0
    %765 = vmatpush1.msra.mxu0 0.0
    %766 = vmatprep.subr.mxu0 0.0
    %767 = vmatpush1.msra.mxu0 0.0
    %768 = vmatprep.subr.mxu0 0.0
    %769 = vmatpush1.msra.mxu0 0.0
    %770 = vmatprep.subr.mxu0 0.0
    %771 = vmatpush1.msra.mxu0 0.0
    %772 = vmatprep.subr.mxu0 0.0
    %773 = vmatpush1.msra.mxu0 0.0
    %774 = vmatprep.subr.mxu0 0.0
    %775 = vmatpush1.msra.mxu0 0.0
    %776 = vmatprep.subr.mxu0 0.0
    %777 = vmatpush1.msra.mxu0 0.0
    %778 = vmatprep.subr.mxu0 0.0
    %779 = vmatpush1.msra.mxu0 0.0
    %780 = vmatprep.subr.mxu0 0.0
    %781 = vmatpush1.msra.mxu0 0.0
    %782 = vmatprep.subr.mxu0 0.0
    %783 = vmatpush1.msra.mxu0 0.0
    %784 = vmatprep.subr.mxu0 0.0
    %785 = vmatpush1.msra.mxu0 0.0
    %786 = vmatprep.subr.mxu0 0.0
    %787 = vmatpush1.msra.mxu0 0.0
    %788 = vmatprep.subr.mxu0 0.0
    %789 = vmatpush1.msra.mxu0 0.0
    %790 = vmatprep.subr.mxu0 0.0
    %791 = vmatpush1.msra.mxu0 0.0
    %792 = vmatprep.subr.mxu0 0.0
    %793 = vmatpush1.msra.mxu0 0.0
    %794 = vmatprep.subr.mxu0 0.0
    %795 = vmatpush1.msra.mxu0 0.0
    %796 = vmatprep.subr.mxu0 0.0
    %797 = vmatpush1.msra.mxu0 0.0
    %798 = vmatprep.mubr.f32.mxu0 0.0
    %799 = vmatmul.mubr.f32.gmra.mrb[0].mxu0 %v732
    %v800 = vpop.f32.mrb[0].mxu0
    %v801 = vadd.f32 0.0, %v800
    %v802 = vpop.f32.mrb[0].mxu0
    %803 = vdwg.mxu0
    %804 = vrot.lane.b32.xlu0 %v705, 96
    %v805 = vpop.permute.xlu0 %804
    %v806 = vsel %vm186, %v805, 0
    %808 = vmatprep.subr.mxu0 0.0
    %809 = vmatpush1.msra.mxu0 %v98
    %810 = vmatprep.subr.mxu0 0.0
    %811 = vmatpush1.msra.mxu0 %v99
    %812 = vmatprep.subr.mxu0 0.0
    %813 = vmatpush1.msra.mxu0 %v100
    %814 = vmatprep.subr.mxu0 0.0
    %815 = vmatpush1.msra.mxu0 %v101
    %816 = vmatprep.subr.mxu0 0.0
    %817 = vmatpush1.msra.mxu0 0.0
    %818 = vmatprep.subr.mxu0 0.0
    %819 = vmatpush1.msra.mxu0 0.0
    %820 = vmatprep.subr.mxu0 0.0
    %821 = vmatpush1.msra.mxu0 0.0
    %822 = vmatprep.subr.mxu0 0.0
    %823 = vmatpush1.msra.mxu0 0.0
    %824 = vmatprep.subr.mxu0 0.0
    %825 = vmatpush1.msra.mxu0 0.0
    %826 = vmatprep.subr.mxu0 0.0
    %827 = vmatpush1.msra.mxu0 0.0
    %828 = vmatprep.subr.mxu0 0.0
    %829 = vmatpush1.msra.mxu0 0.0
    %830 = vmatprep.subr.mxu0 0.0
    %831 = vmatpush1.msra.mxu0 0.0
    %832 = vmatprep.subr.mxu0 0.0
    %833 = vmatpush1.msra.mxu0 0.0
    %834 = vmatprep.subr.mxu0 0.0
    %835 = vmatpush1.msra.mxu0 0.0
    %836 = vmatprep.subr.mxu0 0.0
    %837 = vmatpush1.msra.mxu0 0.0
    %838 = vmatprep.subr.mxu0 0.0
    %839 = vmatpush1.msra.mxu0 0.0
    %840 = vmatprep.subr.mxu0 0.0
    %841 = vmatpush1.msra.mxu0 0.0
    %842 = vmatprep.subr.mxu0 0.0
    %843 = vmatpush1.msra.mxu0 0.0
    %844 = vmatprep.subr.mxu0 0.0
    %845 = vmatpush1.msra.mxu0 0.0
    %846 = vmatprep.subr.mxu0 0.0
    %847 = vmatpush1.msra.mxu0 0.0
    %848 = vmatprep.subr.mxu0 0.0
    %849 = vmatpush1.msra.mxu0 0.0
    %850 = vmatprep.subr.mxu0 0.0
    %851 = vmatpush1.msra.mxu0 0.0
    %852 = vmatprep.subr.mxu0 0.0
    %853 = vmatpush1.msra.mxu0 0.0
    %854 = vmatprep.subr.mxu0 0.0
    %855 = vmatpush1.msra.mxu0 0.0
    %856 = vmatprep.subr.mxu0 0.0
    %857 = vmatpush1.msra.mxu0 0.0
    %858 = vmatprep.subr.mxu0 0.0
    %859 = vmatpush1.msra.mxu0 0.0
    %860 = vmatprep.subr.mxu0 0.0
    %861 = vmatpush1.msra.mxu0 0.0
    %862 = vmatprep.subr.mxu0 0.0
    %863 = vmatpush1.msra.mxu0 0.0
    %864 = vmatprep.subr.mxu0 0.0
    %865 = vmatpush1.msra.mxu0 0.0
    %866 = vmatprep.subr.mxu0 0.0
    %867 = vmatpush1.msra.mxu0 0.0
    %868 = vmatprep.subr.mxu0 0.0
    %869 = vmatpush1.msra.mxu0 0.0
    %870 = vmatprep.subr.mxu0 0.0
    %871 = vmatpush1.msra.mxu0 0.0
    %872 = vmatprep.mubr.f32.mxu0 0.0
    %873 = vmatmul.mubr.f32.gmra.mrb[0].mxu0 %v806
    %v874 = vpop.f32.mrb[0].mxu0
    %v875 = vadd.f32 0.0, %v874
    %v876 = vpop.f32.mrb[0].mxu0
    %877 = vdwg.mxu0
    %v878 = vadd.f32 %v801, %v875
    %v879 = vadd.f32 %v878, %v265
    %v880 = vxor.u32 %v879, 2147483648
    %v881 = vmul.f32 %v880, 1.442695
    %v882 = vpow.pop %v881
    %v883 = vadd.f32 %v882, 1.0
    %v884 = vrcp.pop %v883
    %v885 = vmul.f32 1.0, %v884
    %v886 = vadd.f32 %v801, %v265
    %v887 = vadd.f32 %v875, %v281
    %889 = vrot.lane.b32.xlu0 %v887, 64
    %v890 = vpop.permute.xlu0 %889
    %v892 = vmul.f32 %v885, %v890
    %894 = vrot.lane.b32.xlu0 %v892, 64
    %v895 = vpop.permute.xlu0 %894
    %v897 = vadd.f32 %v886, %v895
    %v898 = vtanh.pop %v897
    %v899 = vsub.f32 1.0, %v885
    %901 = vrot.lane.b32.xlu0 %v898, 96
    %v902 = vpop.permute.xlu0 %901
    %v904 = vmul.f32 %v899, %v902
    %v905 = vmul.f32 %v885, %v705
    %v906 = vadd.f32 %v904, %v905
    %v909 = vunpack.c.l.s4 1966171168
    %v910 = vunpack.c.0.s8 %v909
    %v911 = vlaneseq
    %v912 = vshrl.u32 %v911, 7
    %v913 = vsub.s32 %v910, %v912
    %v914 = vrot.slane %v906, %v913
    %v915 = vcombine.high %v914, %v914
    %v917 = vunpack.c.l.s4 1966171168
    %v918 = vunpack.c.0.s8 %v917
    %v919 = vlaneseq
    %v920 = vshrl.u32 %v919, 7
    %v921 = vsub.s32 %v918, %v920
    %v922 = vrot.slane %v914, %v921
    %v924 = vunpack.c.l.s4 1966171168
    %v925 = vunpack.c.0.s8 %v924
    %v926 = vlaneseq
    %v927 = vshrl.u32 %v926, 7
    %v928 = vsub.s32 %v925, %v927
    %v929 = vrot.slane %v915, %v928
    %v930 = vrot.slane %v104, 4
    %v931 = vrot.slane %v106, 3
    %v932 = vsel %vm111, %v931, %v930
    %v933 = vsel %vm113, %v932, 0
    %935 = vmatprep.subr.mxu0 0.0
    %936 = vmatpush1.msra.mxu0 %v97
    %937 = vmatprep.subr.mxu0 0.0
    %938 = vmatpush1.msra.mxu0 0.0
    %939 = vmatprep.subr.mxu0 0.0
    %940 = vmatpush1.msra.mxu0 0.0
    %941 = vmatprep.subr.mxu0 0.0
    %942 = vmatpush1.msra.mxu0 0.0
    %943 = vmatprep.subr.mxu0 0.0
    %944 = vmatpush1.msra.mxu0 0.0
    %945 = vmatprep.subr.mxu0 0.0
    %946 = vmatpush1.msra.mxu0 0.0
    %947 = vmatprep.subr.mxu0 0.0
    %948 = vmatpush1.msra.mxu0 0.0
    %949 = vmatprep.subr.mxu0 0.0
    %950 = vmatpush1.msra.mxu0 0.0
    %951 = vmatprep.subr.mxu0 0.0
    %952 = vmatpush1.msra.mxu0 0.0
    %953 = vmatprep.subr.mxu0 0.0
    %954 = vmatpush1.msra.mxu0 0.0
    %955 = vmatprep.subr.mxu0 0.0
    %956 = vmatpush1.msra.mxu0 0.0
    %957 = vmatprep.subr.mxu0 0.0
    %958 = vmatpush1.msra.mxu0 0.0
    %959 = vmatprep.subr.mxu0 0.0
    %960 = vmatpush1.msra.mxu0 0.0
    %961 = vmatprep.subr.mxu0 0.0
    %962 = vmatpush1.msra.mxu0 0.0
    %963 = vmatprep.subr.mxu0 0.0
    %964 = vmatpush1.msra.mxu0 0.0
    %965 = vmatprep.subr.mxu0 0.0
    %966 = vmatpush1.msra.mxu0 0.0
    %967 = vmatprep.subr.mxu0 0.0
    %968 = vmatpush1.msra.mxu0 0.0
    %969 = vmatprep.subr.mxu0 0.0
    %970 = vmatpush1.msra.mxu0 0.0
    %971 = vmatprep.subr.mxu0 0.0
    %972 = vmatpush1.msra.mxu0 0.0
    %973 = vmatprep.subr.mxu0 0.0
    %974 = vmatpush1.msra.mxu0 0.0
    %975 = vmatprep.subr.mxu0 0.0
    %976 = vmatpush1.msra.mxu0 0.0
    %977 = vmatprep.subr.mxu0 0.0
    %978 = vmatpush1.msra.mxu0 0.0
    %979 = vmatprep.subr.mxu0 0.0
    %980 = vmatpush1.msra.mxu0 0.0
    %981 = vmatprep.subr.mxu0 0.0
    %982 = vmatpush1.msra.mxu0 0.0
    %983 = vmatprep.subr.mxu0 0.0
    %984 = vmatpush1.msra.mxu0 0.0
    %985 = vmatprep.subr.mxu0 0.0
    %986 = vmatpush1.msra.mxu0 0.0
    %987 = vmatprep.subr.mxu0 0.0
    %988 = vmatpush1.msra.mxu0 0.0
    %989 = vmatprep.subr.mxu0 0.0
    %990 = vmatpush1.msra.mxu0 0.0
    %991 = vmatprep.subr.mxu0 0.0
    %992 = vmatpush1.msra.mxu0 0.0
    %993 = vmatprep.subr.mxu0 0.0
    %994 = vmatpush1.msra.mxu0 0.0
    %995 = vmatprep.subr.mxu0 0.0
    %996 = vmatpush1.msra.mxu0 0.0
    %997 = vmatprep.subr.mxu0 0.0
    %998 = vmatpush1.msra.mxu0 0.0
    %999 = vmatprep.mubr.f32.mxu0 0.0
    %1000 = vmatmul.mubr.f32.gmra.mrb[0].mxu0 %v933
    %v1001 = vpop.f32.mrb[0].mxu0
    %v1002 = vadd.f32 0.0, %v1001
    %v1003 = vpop.f32.mrb[0].mxu0
    %1004 = vdwg.mxu0
    %1005 = vrot.lane.b32.xlu0 %v906, 96
    %v1006 = vpop.permute.xlu0 %1005
    %v1007 = vsel %vm186, %v1006, 0
    %1009 = vmatprep.subr.mxu0 0.0
    %1010 = vmatpush1.msra.mxu0 %v98
    %1011 = vmatprep.subr.mxu0 0.0
    %1012 = vmatpush1.msra.mxu0 %v99
    %1013 = vmatprep.subr.mxu0 0.0
    %1014 = vmatpush1.msra.mxu0 %v100
    %1015 = vmatprep.subr.mxu0 0.0
    %1016 = vmatpush1.msra.mxu0 %v101
    %1017 = vmatprep.subr.mxu0 0.0
    %1018 = vmatpush1.msra.mxu0 0.0
    %1019 = vmatprep.subr.mxu0 0.0
    %1020 = vmatpush1.msra.mxu0 0.0
    %1021 = vmatprep.subr.mxu0 0.0
    %1022 = vmatpush1.msra.mxu0 0.0
    %1023 = vmatprep.subr.mxu0 0.0
    %1024 = vmatpush1.msra.mxu0 0.0
    %1025 = vmatprep.subr.mxu0 0.0
    %1026 = vmatpush1.msra.mxu0 0.0
    %1027 = vmatprep.subr.mxu0 0.0
    %1028 = vmatpush1.msra.mxu0 0.0
    %1029 = vmatprep.subr.mxu0 0.0
    %1030 = vmatpush1.msra.mxu0 0.0
    %1031 = vmatprep.subr.mxu0 0.0
    %1032 = vmatpush1.msra.mxu0 0.0
    %1033 = vmatprep.subr.mxu0 0.0
    %1034 = vmatpush1.msra.mxu0 0.0
    %1035 = vmatprep.subr.mxu0 0.0
    %1036 = vmatpush1.msra.mxu0 0.0
    %1037 = vmatprep.subr.mxu0 0.0
    %1038 = vmatpush1.msra.mxu0 0.0
    %1039 = vmatprep.subr.mxu0 0.0
    %1040 = vmatpush1.msra.mxu0 0.0
    %1041 = vmatprep.subr.mxu0 0.0
    %1042 = vmatpush1.msra.mxu0 0.0
    %1043 = vmatprep.subr.mxu0 0.0
    %1044 = vmatpush1.msra.mxu0 0.0
    %1045 = vmatprep.subr.mxu0 0.0
    %1046 = vmatpush1.msra.mxu0 0.0
    %1047 = vmatprep.subr.mxu0 0.0
    %1048 = vmatpush1.msra.mxu0 0.0
    %1049 = vmatprep.subr.mxu0 0.0
    %1050 = vmatpush1.msra.mxu0 0.0
    %1051 = vmatprep.subr.mxu0 0.0
    %1052 = vmatpush1.msra.mxu0 0.0
    %1053 = vmatprep.subr.mxu0 0.0
    %1054 = vmatpush1.msra.mxu0 0.0
    %1055 = vmatprep.subr.mxu0 0.0
    %1056 = vmatpush1.msra.mxu0 0.0
    %1057 = vmatprep.subr.mxu0 0.0
    %1058 = vmatpush1.msra.mxu0 0.0
    %1059 = vmatprep.subr.mxu0 0.0
    %1060 = vmatpush1.msra.mxu0 0.0
    %1061 = vmatprep.subr.mxu0 0.0
    %1062 = vmatpush1.msra.mxu0 0.0
    %1063 = vmatprep.subr.mxu0 0.0
    %1064 = vmatpush1.msra.mxu0 0.0
    %1065 = vmatprep.subr.mxu0 0.0
    %1066 = vmatpush1.msra.mxu0 0.0
    %1067 = vmatprep.subr.mxu0 0.0
    %1068 = vmatpush1.msra.mxu0 0.0
    %1069 = vmatprep.subr.mxu0 0.0
    %1070 = vmatpush1.msra.mxu0 0.0
    %1071 = vmatprep.subr.mxu0 0.0
    %1072 = vmatpush1.msra.mxu0 0.0
    %1073 = vmatprep.mubr.f32.mxu0 0.0
    %1074 = vmatmul.mubr.f32.gmra.mrb[0].mxu0 %v1007
    %v1075 = vpop.f32.mrb[0].mxu0
    %v1076 = vadd.f32 0.0, %v1075
    %v1077 = vpop.f32.mrb[0].mxu0
    %1078 = vdwg.mxu0
    %v1079 = vadd.f32 %v1002, %v1076
    %v1080 = vadd.f32 %v1079, %v265
    %v1081 = vxor.u32 %v1080, 2147483648
    %v1082 = vmul.f32 %v1081, 1.442695
    %v1083 = vpow.pop %v1082
    %v1084 = vadd.f32 %v1083, 1.0
    %v1085 = vrcp.pop %v1084
    %v1086 = vmul.f32 1.0, %v1085
    %v1087 = vadd.f32 %v1002, %v265
    %v1088 = vadd.f32 %v1076, %v281
    %1090 = vrot.lane.b32.xlu0 %v1088, 64
    %v1091 = vpop.permute.xlu0 %1090
    %v1093 = vmul.f32 %v1086, %v1091
    %1095 = vrot.lane.b32.xlu0 %v1093, 64
    %v1096 = vpop.permute.xlu0 %1095
    %v1098 = vadd.f32 %v1087, %v1096
    %v1099 = vtanh.pop %v1098
    %v1100 = vsub.f32 1.0, %v1086
    %1102 = vrot.lane.b32.xlu0 %v1099, 96
    %v1103 = vpop.permute.xlu0 %1102
    %v1105 = vmul.f32 %v1100, %v1103
    %v1106 = vmul.f32 %v1086, %v906
    %v1107 = vadd.f32 %v1105, %v1106
    %v1110 = vunpack.c.l.s4 1966171168
    %v1111 = vunpack.c.0.s8 %v1110
    %v1112 = vlaneseq
    %v1113 = vshrl.u32 %v1112, 7
    %v1114 = vsub.s32 %v1111, %v1113
    %v1115 = vrot.slane %v1107, %v1114
    %v1116 = vcombine.high %v1115, %v1115
    %v1118 = vunpack.c.l.s4 1966171168
    %v1119 = vunpack.c.0.s8 %v1118
    %v1120 = vlaneseq
    %v1121 = vshrl.u32 %v1120, 7
    %v1122 = vsub.s32 %v1119, %v1121
    %v1123 = vrot.slane %v1115, %v1122
    %v1125 = vunpack.c.l.s4 1966171168
    %v1126 = vunpack.c.0.s8 %v1125
    %v1127 = vlaneseq
    %v1128 = vshrl.u32 %v1127, 7
    %v1129 = vsub.s32 %v1126, %v1128
    %v1130 = vrot.slane %v1116, %v1129
    %v1131 = vrot.slane %v104, 5
    %v1132 = vrot.slane %v106, 4
    %v1133 = vsel %vm111, %v1132, %v1131
    %v1134 = vsel %vm113, %v1133, 0
    %1136 = vmatprep.subr.mxu0 0.0
    %1137 = vmatpush1.msra.mxu0 %v97
    %1138 = vmatprep.subr.mxu0 0.0
    %1139 = vmatpush1.msra.mxu0 0.0
    %1140 = vmatprep.subr.mxu0 0.0
    %1141 = vmatpush1.msra.mxu0 0.0
    %1142 = vmatprep.subr.mxu0 0.0
    %1143 = vmatpush1.msra.mxu0 0.0
    %1144 = vmatprep.subr.mxu0 0.0
    %1145 = vmatpush1.msra.mxu0 0.0
    %1146 = vmatprep.subr.mxu0 0.0
    %1147 = vmatpush1.msra.mxu0 0.0
    %1148 = vmatprep.subr.mxu0 0.0
    %1149 = vmatpush1.msra.mxu0 0.0
    %1150 = vmatprep.subr.mxu0 0.0
    %1151 = vmatpush1.msra.mxu0 0.0
    %1152 = vmatprep.subr.mxu0 0.0
    %1153 = vmatpush1.msra.mxu0 0.0
    %1154 = vmatprep.subr.mxu0 0.0
    %1155 = vmatpush1.msra.mxu0 0.0
    %1156 = vmatprep.subr.mxu0 0.0
    %1157 = vmatpush1.msra.mxu0 0.0
    %1158 = vmatprep.subr.mxu0 0.0
    %1159 = vmatpush1.msra.mxu0 0.0
    %1160 = vmatprep.subr.mxu0 0.0
    %1161 = vmatpush1.msra.mxu0 0.0
    %1162 = vmatprep.subr.mxu0 0.0
    %1163 = vmatpush1.msra.mxu0 0.0
    %1164 = vmatprep.subr.mxu0 0.0
    %1165 = vmatpush1.msra.mxu0 0.0
    %1166 = vmatprep.subr.mxu0 0.0
    %1167 = vmatpush1.msra.mxu0 0.0
    %1168 = vmatprep.subr.mxu0 0.0
    %1169 = vmatpush1.msra.mxu0 0.0
    %1170 = vmatprep.subr.mxu0 0.0
    %1171 = vmatpush1.msra.mxu0 0.0
    %1172 = vmatprep.subr.mxu0 0.0
    %1173 = vmatpush1.msra.mxu0 0.0
    %1174 = vmatprep.subr.mxu0 0.0
    %1175 = vmatpush1.msra.mxu0 0.0
    %1176 = vmatprep.subr.mxu0 0.0
    %1177 = vmatpush1.msra.mxu0 0.0
    %1178 = vmatprep.subr.mxu0 0.0
    %1179 = vmatpush1.msra.mxu0 0.0
    %1180 = vmatprep.subr.mxu0 0.0
    %1181 = vmatpush1.msra.mxu0 0.0
    %1182 = vmatprep.subr.mxu0 0.0
    %1183 = vmatpush1.msra.mxu0 0.0
    %1184 = vmatprep.subr.mxu0 0.0
    %1185 = vmatpush1.msra.mxu0 0.0
    %1186 = vmatprep.subr.mxu0 0.0
    %1187 = vmatpush1.msra.mxu0 0.0
    %1188 = vmatprep.subr.mxu0 0.0
    %1189 = vmatpush1.msra.mxu0 0.0
    %1190 = vmatprep.subr.mxu0 0.0
    %1191 = vmatpush1.msra.mxu0 0.0
    %1192 = vmatprep.subr.mxu0 0.0
    %1193 = vmatpush1.msra.mxu0 0.0
    %1194 = vmatprep.subr.mxu0 0.0
    %1195 = vmatpush1.msra.mxu0 0.0
    %1196 = vmatprep.subr.mxu0 0.0
    %1197 = vmatpush1.msra.mxu0 0.0
    %1198 = vmatprep.subr.mxu0 0.0
    %1199 = vmatpush1.msra.mxu0 0.0
    %1200 = vmatprep.mubr.f32.mxu0 0.0
    %1201 = vmatmul.mubr.f32.gmra.mrb[0].mxu0 %v1134
    %v1202 = vpop.f32.mrb[0].mxu0
    %v1203 = vadd.f32 0.0, %v1202
    %v1204 = vpop.f32.mrb[0].mxu0
    %1205 = vdwg.mxu0
    %1206 = vrot.lane.b32.xlu0 %v1107, 96
    %v1207 = vpop.permute.xlu0 %1206
    %v1208 = vsel %vm186, %v1207, 0
    %1210 = vmatprep.subr.mxu0 0.0
    %1211 = vmatpush1.msra.mxu0 %v98
    %1212 = vmatprep.subr.mxu0 0.0
    %1213 = vmatpush1.msra.mxu0 %v99
    %1214 = vmatprep.subr.mxu0 0.0
    %1215 = vmatpush1.msra.mxu0 %v100
    %1216 = vmatprep.subr.mxu0 0.0
    %1217 = vmatpush1.msra.mxu0 %v101
    %1218 = vmatprep.subr.mxu0 0.0
    %1219 = vmatpush1.msra.mxu0 0.0
    %1220 = vmatprep.subr.mxu0 0.0
    %1221 = vmatpush1.msra.mxu0 0.0
    %1222 = vmatprep.subr.mxu0 0.0
    %1223 = vmatpush1.msra.mxu0 0.0
    %1224 = vmatprep.subr.mxu0 0.0
    %1225 = vmatpush1.msra.mxu0 0.0
    %1226 = vmatprep.subr.mxu0 0.0
    %1227 = vmatpush1.msra.mxu0 0.0
    %1228 = vmatprep.subr.mxu0 0.0
    %1229 = vmatpush1.msra.mxu0 0.0
    %1230 = vmatprep.subr.mxu0 0.0
    %1231 = vmatpush1.msra.mxu0 0.0
    %1232 = vmatprep.subr.mxu0 0.0
    %1233 = vmatpush1.msra.mxu0 0.0
    %1234 = vmatprep.subr.mxu0 0.0
    %1235 = vmatpush1.msra.mxu0 0.0
    %1236 = vmatprep.subr.mxu0 0.0
    %1237 = vmatpush1.msra.mxu0 0.0
    %1238 = vmatprep.subr.mxu0 0.0
    %1239 = vmatpush1.msra.mxu0 0.0
    %1240 = vmatprep.subr.mxu0 0.0
    %1241 = vmatpush1.msra.mxu0 0.0
    %1242 = vmatprep.subr.mxu0 0.0
    %1243 = vmatpush1.msra.mxu0 0.0
    %1244 = vmatprep.subr.mxu0 0.0
    %1245 = vmatpush1.msra.mxu0 0.0
    %1246 = vmatprep.subr.mxu0 0.0
    %1247 = vmatpush1.msra.mxu0 0.0
    %1248 = vmatprep.subr.mxu0 0.0
    %1249 = vmatpush1.msra.mxu0 0.0
    %1250 = vmatprep.subr.mxu0 0.0
    %1251 = vmatpush1.msra.mxu0 0.0
    %1252 = vmatprep.subr.mxu0 0.0
    %1253 = vmatpush1.msra.mxu0 0.0
    %1254 = vmatprep.subr.mxu0 0.0
    %1255 = vmatpush1.msra.mxu0 0.0
    %1256 = vmatprep.subr.mxu0 0.0
    %1257 = vmatpush1.msra.mxu0 0.0
    %1258 = vmatprep.subr.mxu0 0.0
    %1259 = vmatpush1.msra.mxu0 0.0
    %1260 = vmatprep.subr.mxu0 0.0
    %1261 = vmatpush1.msra.mxu0 0.0
    %1262 = vmatprep.subr.mxu0 0.0
    %1263 = vmatpush1.msra.mxu0 0.0
    %1264 = vmatprep.subr.mxu0 0.0
    %1265 = vmatpush1.msra.mxu0 0.0
    %1266 = vmatprep.subr.mxu0 0.0
    %1267 = vmatpush1.msra.mxu0 0.0
    %1268 = vmatprep.subr.mxu0 0.0
    %1269 = vmatpush1.msra.mxu0 0.0
    %1270 = vmatprep.subr.mxu0 0.0
    %1271 = vmatpush1.msra.mxu0 0.0
    %1272 = vmatprep.subr.mxu0 0.0
    %1273 = vmatpush1.msra.mxu0 0.0
    %1274 = vmatprep.mubr.f32.mxu0 0.0
    %1275 = vmatmul.mubr.f32.gmra.mrb[0].mxu0 %v1208
    %v1276 = vpop.f32.mrb[0].mxu0
    %v1277 = vadd.f32 0.0, %v1276
    %v1278 = vpop.f32.mrb[0].mxu0
    %1279 = vdwg.mxu0
    %v1280 = vadd.f32 %v1203, %v1277
    %v1281 = vadd.f32 %v1280, %v265
    %v1282 = vxor.u32 %v1281, 2147483648
    %v1283 = vmul.f32 %v1282, 1.442695
    %v1284 = vpow.pop %v1283
    %v1285 = vadd.f32 %v1284, 1.0
    %v1286 = vrcp.pop %v1285
    %v1287 = vmul.f32 1.0, %v1286
    %v1288 = vadd.f32 %v1203, %v265
    %v1289 = vadd.f32 %v1277, %v281
    %1291 = vrot.lane.b32.xlu0 %v1289, 64
    %v1292 = vpop.permute.xlu0 %1291
    %v1294 = vmul.f32 %v1287, %v1292
    %1296 = vrot.lane.b32.xlu0 %v1294, 64
    %v1297 = vpop.permute.xlu0 %1296
    %v1299 = vadd.f32 %v1288, %v1297
    %v1300 = vtanh.pop %v1299
    %v1301 = vsub.f32 1.0, %v1287
    %1303 = vrot.lane.b32.xlu0 %v1300, 96
    %v1304 = vpop.permute.xlu0 %1303
    %v1306 = vmul.f32 %v1301, %v1304
    %v1307 = vmul.f32 %v1287, %v1107
    %v1308 = vadd.f32 %v1306, %v1307
    %v1311 = vunpack.c.l.s4 1966171168
    %v1312 = vunpack.c.0.s8 %v1311
    %v1313 = vlaneseq
    %v1314 = vshrl.u32 %v1313, 7
    %v1315 = vsub.s32 %v1312, %v1314
    %v1316 = vrot.slane %v1308, %v1315
    %v1317 = vcombine.high %v1316, %v1316
    %v1319 = vunpack.c.l.s4 1966171168
    %v1320 = vunpack.c.0.s8 %v1319
    %v1321 = vlaneseq
    %v1322 = vshrl.u32 %v1321, 7
    %v1323 = vsub.s32 %v1320, %v1322
    %v1324 = vrot.slane %v1316, %v1323
    %v1326 = vunpack.c.l.s4 1966171168
    %v1327 = vunpack.c.0.s8 %v1326
    %v1328 = vlaneseq
    %v1329 = vshrl.u32 %v1328, 7
    %v1330 = vsub.s32 %v1327, %v1329
    %v1331 = vrot.slane %v1317, %v1330
    %v1332 = vrot.slane %v104, 6
    %v1333 = vrot.slane %v106, 5
    %v1334 = vsel %vm111, %v1333, %v1332
    %v1335 = vsel %vm113, %v1334, 0
    %1337 = vmatprep.subr.mxu0 0.0
    %1338 = vmatpush1.msra.mxu0 %v97
    %1339 = vmatprep.subr.mxu0 0.0
    %1340 = vmatpush1.msra.mxu0 0.0
    %1341 = vmatprep.subr.mxu0 0.0
    %1342 = vmatpush1.msra.mxu0 0.0
    %1343 = vmatprep.subr.mxu0 0.0
    %1344 = vmatpush1.msra.mxu0 0.0
    %1345 = vmatprep.subr.mxu0 0.0
    %1346 = vmatpush1.msra.mxu0 0.0
    %1347 = vmatprep.subr.mxu0 0.0
    %1348 = vmatpush1.msra.mxu0 0.0
    %1349 = vmatprep.subr.mxu0 0.0
    %1350 = vmatpush1.msra.mxu0 0.0
    %1351 = vmatprep.subr.mxu0 0.0
    %1352 = vmatpush1.msra.mxu0 0.0
    %1353 = vmatprep.subr.mxu0 0.0
    %1354 = vmatpush1.msra.mxu0 0.0
    %1355 = vmatprep.subr.mxu0 0.0
    %1356 = vmatpush1.msra.mxu0 0.0
    %1357 = vmatprep.subr.mxu0 0.0
    %1358 = vmatpush1.msra.mxu0 0.0
    %1359 = vmatprep.subr.mxu0 0.0
    %1360 = vmatpush1.msra.mxu0 0.0
    %1361 = vmatprep.subr.mxu0 0.0
    %1362 = vmatpush1.msra.mxu0 0.0
    %1363 = vmatprep.subr.mxu0 0.0
    %1364 = vmatpush1.msra.mxu0 0.0
    %1365 = vmatprep.subr.mxu0 0.0
    %1366 = vmatpush1.msra.mxu0 0.0
    %1367 = vmatprep.subr.mxu0 0.0
    %1368 = vmatpush1.msra.mxu0 0.0
    %1369 = vmatprep.subr.mxu0 0.0
    %1370 = vmatpush1.msra.mxu0 0.0
    %1371 = vmatprep.subr.mxu0 0.0
    %1372 = vmatpush1.msra.mxu0 0.0
    %1373 = vmatprep.subr.mxu0 0.0
    %1374 = vmatpush1.msra.mxu0 0.0
    %1375 = vmatprep.subr.mxu0 0.0
    %1376 = vmatpush1.msra.mxu0 0.0
    %1377 = vmatprep.subr.mxu0 0.0
    %1378 = vmatpush1.msra.mxu0 0.0
    %1379 = vmatprep.subr.mxu0 0.0
    %1380 = vmatpush1.msra.mxu0 0.0
    %1381 = vmatprep.subr.mxu0 0.0
    %1382 = vmatpush1.msra.mxu0 0.0
    %1383 = vmatprep.subr.mxu0 0.0
    %1384 = vmatpush1.msra.mxu0 0.0
    %1385 = vmatprep.subr.mxu0 0.0
    %1386 = vmatpush1.msra.mxu0 0.0
    %1387 = vmatprep.subr.mxu0 0.0
    %1388 = vmatpush1.msra.mxu0 0.0
    %1389 = vmatprep.subr.mxu0 0.0
    %1390 = vmatpush1.msra.mxu0 0.0
    %1391 = vmatprep.subr.mxu0 0.0
    %1392 = vmatpush1.msra.mxu0 0.0
    %1393 = vmatprep.subr.mxu0 0.0
    %1394 = vmatpush1.msra.mxu0 0.0
    %1395 = vmatprep.subr.mxu0 0.0
    %1396 = vmatpush1.msra.mxu0 0.0
    %1397 = vmatprep.subr.mxu0 0.0
    %1398 = vmatpush1.msra.mxu0 0.0
    %1399 = vmatprep.subr.mxu0 0.0
    %1400 = vmatpush1.msra.mxu0 0.0
    %1401 = vmatprep.mubr.f32.mxu0 0.0
    %1402 = vmatmul.mubr.f32.gmra.mrb[0].mxu0 %v1335
    %v1403 = vpop.f32.mrb[0].mxu0
    %v1404 = vadd.f32 0.0, %v1403
    %v1405 = vpop.f32.mrb[0].mxu0
    %1406 = vdwg.mxu0
    %1407 = vrot.lane.b32.xlu0 %v1308, 96
    %v1408 = vpop.permute.xlu0 %1407
    %v1409 = vsel %vm186, %v1408, 0
    %1411 = vmatprep.subr.mxu0 0.0
    %1412 = vmatpush1.msra.mxu0 %v98
    %1413 = vmatprep.subr.mxu0 0.0
    %1414 = vmatpush1.msra.mxu0 %v99
    %1415 = vmatprep.subr.mxu0 0.0
    %1416 = vmatpush1.msra.mxu0 %v100
    %1417 = vmatprep.subr.mxu0 0.0
    %1418 = vmatpush1.msra.mxu0 %v101
    %1419 = vmatprep.subr.mxu0 0.0
    %1420 = vmatpush1.msra.mxu0 0.0
    %1421 = vmatprep.subr.mxu0 0.0
    %1422 = vmatpush1.msra.mxu0 0.0
    %1423 = vmatprep.subr.mxu0 0.0
    %1424 = vmatpush1.msra.mxu0 0.0
    %1425 = vmatprep.subr.mxu0 0.0
    %1426 = vmatpush1.msra.mxu0 0.0
    %1427 = vmatprep.subr.mxu0 0.0
    %1428 = vmatpush1.msra.mxu0 0.0
    %1429 = vmatprep.subr.mxu0 0.0
    %1430 = vmatpush1.msra.mxu0 0.0
    %1431 = vmatprep.subr.mxu0 0.0
    %1432 = vmatpush1.msra.mxu0 0.0
    %1433 = vmatprep.subr.mxu0 0.0
    %1434 = vmatpush1.msra.mxu0 0.0
    %1435 = vmatprep.subr.mxu0 0.0
    %1436 = vmatpush1.msra.mxu0 0.0
    %1437 = vmatprep.subr.mxu0 0.0
    %1438 = vmatpush1.msra.mxu0 0.0
    %1439 = vmatprep.subr.mxu0 0.0
    %1440 = vmatpush1.msra.mxu0 0.0
    %1441 = vmatprep.subr.mxu0 0.0
    %1442 = vmatpush1.msra.mxu0 0.0
    %1443 = vmatprep.subr.mxu0 0.0
    %1444 = vmatpush1.msra.mxu0 0.0
    %1445 = vmatprep.subr.mxu0 0.0
    %1446 = vmatpush1.msra.mxu0 0.0
    %1447 = vmatprep.subr.mxu0 0.0
    %1448 = vmatpush1.msra.mxu0 0.0
    %1449 = vmatprep.subr.mxu0 0.0
    %1450 = vmatpush1.msra.mxu0 0.0
    %1451 = vmatprep.subr.mxu0 0.0
    %1452 = vmatpush1.msra.mxu0 0.0
    %1453 = vmatprep.subr.mxu0 0.0
    %1454 = vmatpush1.msra.mxu0 0.0
    %1455 = vmatprep.subr.mxu0 0.0
    %1456 = vmatpush1.msra.mxu0 0.0
    %1457 = vmatprep.subr.mxu0 0.0
    %1458 = vmatpush1.msra.mxu0 0.0
    %1459 = vmatprep.subr.mxu0 0.0
    %1460 = vmatpush1.msra.mxu0 0.0
    %1461 = vmatprep.subr.mxu0 0.0
    %1462 = vmatpush1.msra.mxu0 0.0
    %1463 = vmatprep.subr.mxu0 0.0
    %1464 = vmatpush1.msra.mxu0 0.0
    %1465 = vmatprep.subr.mxu0 0.0
    %1466 = vmatpush1.msra.mxu0 0.0
    %1467 = vmatprep.subr.mxu0 0.0
    %1468 = vmatpush1.msra.mxu0 0.0
    %1469 = vmatprep.subr.mxu0 0.0
    %1470 = vmatpush1.msra.mxu0 0.0
    %1471 = vmatprep.subr.mxu0 0.0
    %1472 = vmatpush1.msra.mxu0 0.0
    %1473 = vmatprep.subr.mxu0 0.0
    %1474 = vmatpush1.msra.mxu0 0.0
    %1475 = vmatprep.mubr.f32.mxu0 0.0
    %1476 = vmatmul.mubr.f32.gmra.mrb[0].mxu0 %v1409
    %v1477 = vpop.f32.mrb[0].mxu0
    %v1478 = vadd.f32 0.0, %v1477
    %v1479 = vpop.f32.mrb[0].mxu0
    %1480 = vdwg.mxu0
    %v1481 = vadd.f32 %v1404, %v1478
    %v1482 = vadd.f32 %v1481, %v265
    %v1483 = vxor.u32 %v1482, 2147483648
    %v1484 = vmul.f32 %v1483, 1.442695
    %v1485 = vpow.pop %v1484
    %v1486 = vadd.f32 %v1485, 1.0
    %v1487 = vrcp.pop %v1486
    %v1488 = vmul.f32 1.0, %v1487
    %v1489 = vadd.f32 %v1404, %v265
    %v1490 = vadd.f32 %v1478, %v281
    %1492 = vrot.lane.b32.xlu0 %v1490, 64
    %v1493 = vpop.permute.xlu0 %1492
    %v1495 = vmul.f32 %v1488, %v1493
    %1497 = vrot.lane.b32.xlu0 %v1495, 64
    %v1498 = vpop.permute.xlu0 %1497
    %v1500 = vadd.f32 %v1489, %v1498
    %v1501 = vtanh.pop %v1500
    %v1502 = vsub.f32 1.0, %v1488
    %1504 = vrot.lane.b32.xlu0 %v1501, 96
    %v1505 = vpop.permute.xlu0 %1504
    %v1507 = vmul.f32 %v1502, %v1505
    %v1508 = vmul.f32 %v1488, %v1308
    %v1509 = vadd.f32 %v1507, %v1508
    %v1512 = vunpack.c.l.s4 1966171168
    %v1513 = vunpack.c.0.s8 %v1512
    %v1514 = vlaneseq
    %v1515 = vshrl.u32 %v1514, 7
    %v1516 = vsub.s32 %v1513, %v1515
    %v1517 = vrot.slane %v1509, %v1516
    %v1518 = vcombine.high %v1517, %v1517
    %v1520 = vunpack.c.l.s4 1966171168
    %v1521 = vunpack.c.0.s8 %v1520
    %v1522 = vlaneseq
    %v1523 = vshrl.u32 %v1522, 7
    %v1524 = vsub.s32 %v1521, %v1523
    %v1525 = vrot.slane %v1517, %v1524
    %v1527 = vunpack.c.l.s4 1966171168
    %v1528 = vunpack.c.0.s8 %v1527
    %v1529 = vlaneseq
    %v1530 = vshrl.u32 %v1529, 7
    %v1531 = vsub.s32 %v1528, %v1530
    %v1532 = vrot.slane %v1518, %v1531
    %v1533 = vrot.slane %v104, 7
    %v1534 = vrot.slane %v106, 6
    %v1535 = vsel %vm111, %v1534, %v1533
    %v1536 = vsel %vm113, %v1535, 0
    %1538 = vmatprep.subr.mxu0 0.0
    %1539 = vmatpush1.msra.mxu0 %v97
    %1540 = vmatprep.subr.mxu0 0.0
    %1541 = vmatpush1.msra.mxu0 0.0
    %1542 = vmatprep.subr.mxu0 0.0
    %1543 = vmatpush1.msra.mxu0 0.0
    %1544 = vmatprep.subr.mxu0 0.0
    %1545 = vmatpush1.msra.mxu0 0.0
    %1546 = vmatprep.subr.mxu0 0.0
    %1547 = vmatpush1.msra.mxu0 0.0
    %1548 = vmatprep.subr.mxu0 0.0
    %1549 = vmatpush1.msra.mxu0 0.0
    %1550 = vmatprep.subr.mxu0 0.0
    %1551 = vmatpush1.msra.mxu0 0.0
    %1552 = vmatprep.subr.mxu0 0.0
    %1553 = vmatpush1.msra.mxu0 0.0
    %1554 = vmatprep.subr.mxu0 0.0
    %1555 = vmatpush1.msra.mxu0 0.0
    %1556 = vmatprep.subr.mxu0 0.0
    %1557 = vmatpush1.msra.mxu0 0.0
    %1558 = vmatprep.subr.mxu0 0.0
    %1559 = vmatpush1.msra.mxu0 0.0
    %1560 = vmatprep.subr.mxu0 0.0
    %1561 = vmatpush1.msra.mxu0 0.0
    %1562 = vmatprep.subr.mxu0 0.0
    %1563 = vmatpush1.msra.mxu0 0.0
    %1564 = vmatprep.subr.mxu0 0.0
    %1565 = vmatpush1.msra.mxu0 0.0
    %1566 = vmatprep.subr.mxu0 0.0
    %1567 = vmatpush1.msra.mxu0 0.0
    %1568 = vmatprep.subr.mxu0 0.0
    %1569 = vmatpush1.msra.mxu0 0.0
    %1570 = vmatprep.subr.mxu0 0.0
    %1571 = vmatpush1.msra.mxu0 0.0
    %1572 = vmatprep.subr.mxu0 0.0
    %1573 = vmatpush1.msra.mxu0 0.0
    %1574 = vmatprep.subr.mxu0 0.0
    %1575 = vmatpush1.msra.mxu0 0.0
    %1576 = vmatprep.subr.mxu0 0.0
    %1577 = vmatpush1.msra.mxu0 0.0
    %1578 = vmatprep.subr.mxu0 0.0
    %1579 = vmatpush1.msra.mxu0 0.0
    %1580 = vmatprep.subr.mxu0 0.0
    %1581 = vmatpush1.msra.mxu0 0.0
    %1582 = vmatprep.subr.mxu0 0.0
    %1583 = vmatpush1.msra.mxu0 0.0
    %1584 = vmatprep.subr.mxu0 0.0
    %1585 = vmatpush1.msra.mxu0 0.0
    %1586 = vmatprep.subr.mxu0 0.0
    %1587 = vmatpush1.msra.mxu0 0.0
    %1588 = vmatprep.subr.mxu0 0.0
    %1589 = vmatpush1.msra.mxu0 0.0
    %1590 = vmatprep.subr.mxu0 0.0
    %1591 = vmatpush1.msra.mxu0 0.0
    %1592 = vmatprep.subr.mxu0 0.0
    %1593 = vmatpush1.msra.mxu0 0.0
    %1594 = vmatprep.subr.mxu0 0.0
    %1595 = vmatpush1.msra.mxu0 0.0
    %1596 = vmatprep.subr.mxu0 0.0
    %1597 = vmatpush1.msra.mxu0 0.0
    %1598 = vmatprep.subr.mxu0 0.0
    %1599 = vmatpush1.msra.mxu0 0.0
    %1600 = vmatprep.subr.mxu0 0.0
    %1601 = vmatpush1.msra.mxu0 0.0
    %1602 = vmatprep.mubr.f32.mxu0 0.0
    %1603 = vmatmul.mubr.f32.gmra.mrb[0].mxu0 %v1536
    %v1604 = vpop.f32.mrb[0].mxu0
    %v1605 = vadd.f32 0.0, %v1604
    %v1606 = vpop.f32.mrb[0].mxu0
    %1607 = vdwg.mxu0
    %1608 = vrot.lane.b32.xlu0 %v1509, 96
    %v1609 = vpop.permute.xlu0 %1608
    %v1610 = vsel %vm186, %v1609, 0
    %1612 = vmatprep.subr.mxu0 0.0
    %1613 = vmatpush1.msra.mxu0 %v98
    %1614 = vmatprep.subr.mxu0 0.0
    %1615 = vmatpush1.msra.mxu0 %v99
    %1616 = vmatprep.subr.mxu0 0.0
    %1617 = vmatpush1.msra.mxu0 %v100
    %1618 = vmatprep.subr.mxu0 0.0
    %1619 = vmatpush1.msra.mxu0 %v101
    %1620 = vmatprep.subr.mxu0 0.0
    %1621 = vmatpush1.msra.mxu0 0.0
    %1622 = vmatprep.subr.mxu0 0.0
    %1623 = vmatpush1.msra.mxu0 0.0
    %1624 = vmatprep.subr.mxu0 0.0
    %1625 = vmatpush1.msra.mxu0 0.0
    %1626 = vmatprep.subr.mxu0 0.0
    %1627 = vmatpush1.msra.mxu0 0.0
    %1628 = vmatprep.subr.mxu0 0.0
    %1629 = vmatpush1.msra.mxu0 0.0
    %1630 = vmatprep.subr.mxu0 0.0
    %1631 = vmatpush1.msra.mxu0 0.0
    %1632 = vmatprep.subr.mxu0 0.0
    %1633 = vmatpush1.msra.mxu0 0.0
    %1634 = vmatprep.subr.mxu0 0.0
    %1635 = vmatpush1.msra.mxu0 0.0
    %1636 = vmatprep.subr.mxu0 0.0
    %1637 = vmatpush1.msra.mxu0 0.0
    %1638 = vmatprep.subr.mxu0 0.0
    %1639 = vmatpush1.msra.mxu0 0.0
    %1640 = vmatprep.subr.mxu0 0.0
    %1641 = vmatpush1.msra.mxu0 0.0
    %1642 = vmatprep.subr.mxu0 0.0
    %1643 = vmatpush1.msra.mxu0 0.0
    %1644 = vmatprep.subr.mxu0 0.0
    %1645 = vmatpush1.msra.mxu0 0.0
    %1646 = vmatprep.subr.mxu0 0.0
    %1647 = vmatpush1.msra.mxu0 0.0
    %1648 = vmatprep.subr.mxu0 0.0
    %1649 = vmatpush1.msra.mxu0 0.0
    %1650 = vmatprep.subr.mxu0 0.0
    %1651 = vmatpush1.msra.mxu0 0.0
    %1652 = vmatprep.subr.mxu0 0.0
    %1653 = vmatpush1.msra.mxu0 0.0
    %1654 = vmatprep.subr.mxu0 0.0
    %1655 = vmatpush1.msra.mxu0 0.0
    %1656 = vmatprep.subr.mxu0 0.0
    %1657 = vmatpush1.msra.mxu0 0.0
    %1658 = vmatprep.subr.mxu0 0.0
    %1659 = vmatpush1.msra.mxu0 0.0
    %1660 = vmatprep.subr.mxu0 0.0
    %1661 = vmatpush1.msra.mxu0 0.0
    %1662 = vmatprep.subr.mxu0 0.0
    %1663 = vmatpush1.msra.mxu0 0.0
    %1664 = vmatprep.subr.mxu0 0.0
    %1665 = vmatpush1.msra.mxu0 0.0
    %1666 = vmatprep.subr.mxu0 0.0
    %1667 = vmatpush1.msra.mxu0 0.0
    %1668 = vmatprep.subr.mxu0 0.0
    %1669 = vmatpush1.msra.mxu0 0.0
    %1670 = vmatprep.subr.mxu0 0.0
    %1671 = vmatpush1.msra.mxu0 0.0
    %1672 = vmatprep.subr.mxu0 0.0
    %1673 = vmatpush1.msra.mxu0 0.0
    %1674 = vmatprep.subr.mxu0 0.0
    %1675 = vmatpush1.msra.mxu0 0.0
    %1676 = vmatprep.mubr.f32.mxu0 0.0
    %1677 = vmatmul.mubr.f32.gmra.mrb[0].mxu0 %v1610
    %v1678 = vpop.f32.mrb[0].mxu0
    %v1679 = vadd.f32 0.0, %v1678
    %v1680 = vpop.f32.mrb[0].mxu0
    %1681 = vdwg.mxu0
    %v1682 = vadd.f32 %v1605, %v1679
    %v1683 = vadd.f32 %v1682, %v265
    %v1684 = vxor.u32 %v1683, 2147483648
    %v1685 = vmul.f32 %v1684, 1.442695
    %v1686 = vpow.pop %v1685
    %v1687 = vadd.f32 %v1686, 1.0
    %v1688 = vrcp.pop %v1687
    %v1689 = vmul.f32 1.0, %v1688
    %v1690 = vadd.f32 %v1605, %v265
    %v1691 = vadd.f32 %v1679, %v281
    %1693 = vrot.lane.b32.xlu0 %v1691, 64
    %v1694 = vpop.permute.xlu0 %1693
    %v1696 = vmul.f32 %v1689, %v1694
    %1698 = vrot.lane.b32.xlu0 %v1696, 64
    %v1699 = vpop.permute.xlu0 %1698
    %v1701 = vadd.f32 %v1690, %v1699
    %v1702 = vtanh.pop %v1701
    %v1703 = vsub.f32 1.0, %v1689
    %1705 = vrot.lane.b32.xlu0 %v1702, 96
    %v1706 = vpop.permute.xlu0 %1705
    %v1708 = vmul.f32 %v1703, %v1706
    %v1709 = vmul.f32 %v1689, %v1509
    %v1710 = vadd.f32 %v1708, %v1709
    %v1713 = vunpack.c.l.s4 1966171168
    %v1714 = vunpack.c.0.s8 %v1713
    %v1715 = vlaneseq
    %v1716 = vshrl.u32 %v1715, 7
    %v1717 = vsub.s32 %v1714, %v1716
    %v1718 = vrot.slane %v1710, %v1717
    %v1719 = vcombine.high %v1718, %v1718
    %v1721 = vunpack.c.l.s4 1966171168
    %v1722 = vunpack.c.0.s8 %v1721
    %v1723 = vlaneseq
    %v1724 = vshrl.u32 %v1723, 7
    %v1725 = vsub.s32 %v1722, %v1724
    %v1726 = vrot.slane %v1718, %v1725
    %v1728 = vunpack.c.l.s4 1966171168
    %v1729 = vunpack.c.0.s8 %v1728
    %v1730 = vlaneseq
    %v1731 = vshrl.u32 %v1730, 7
    %v1732 = vsub.s32 %v1729, %v1731
    %v1733 = vrot.slane %v1719, %v1732
    %v1736 = vrot.slane %v107, 7
    %v1737 = vsel %vm111, %v1736, %v105
    %v1738 = vsel %vm113, %v1737, 0
    %1740 = vmatprep.subr.mxu0 0.0
    %1741 = vmatpush1.msra.mxu0 %v97
    %1742 = vmatprep.subr.mxu0 0.0
    %1743 = vmatpush1.msra.mxu0 0.0
    %1744 = vmatprep.subr.mxu0 0.0
    %1745 = vmatpush1.msra.mxu0 0.0
    %1746 = vmatprep.subr.mxu0 0.0
    %1747 = vmatpush1.msra.mxu0 0.0
    %1748 = vmatprep.subr.mxu0 0.0
    %1749 = vmatpush1.msra.mxu0 0.0
    %1750 = vmatprep.subr.mxu0 0.0
    %1751 = vmatpush1.msra.mxu0 0.0
    %1752 = vmatprep.subr.mxu0 0.0
    %1753 = vmatpush1.msra.mxu0 0.0
    %1754 = vmatprep.subr.mxu0 0.0
    %1755 = vmatpush1.msra.mxu0 0.0
    %1756 = vmatprep.subr.mxu0 0.0
    %1757 = vmatpush1.msra.mxu0 0.0
    %1758 = vmatprep.subr.mxu0 0.0
    %1759 = vmatpush1.msra.mxu0 0.0
    %1760 = vmatprep.subr.mxu0 0.0
    %1761 = vmatpush1.msra.mxu0 0.0
    %1762 = vmatprep.subr.mxu0 0.0
    %1763 = vmatpush1.msra.mxu0 0.0
    %1764 = vmatprep.subr.mxu0 0.0
    %1765 = vmatpush1.msra.mxu0 0.0
    %1766 = vmatprep.subr.mxu0 0.0
    %1767 = vmatpush1.msra.mxu0 0.0
    %1768 = vmatprep.subr.mxu0 0.0
    %1769 = vmatpush1.msra.mxu0 0.0
    %1770 = vmatprep.subr.mxu0 0.0
    %1771 = vmatpush1.msra.mxu0 0.0
    %1772 = vmatprep.subr.mxu0 0.0
    %1773 = vmatpush1.msra.mxu0 0.0
    %1774 = vmatprep.subr.mxu0 0.0
    %1775 = vmatpush1.msra.mxu0 0.0
    %1776 = vmatprep.subr.mxu0 0.0
    %1777 = vmatpush1.msra.mxu0 0.0
    %1778 = vmatprep.subr.mxu0 0.0
    %1779 = vmatpush1.msra.mxu0 0.0
    %1780 = vmatprep.subr.mxu0 0.0
    %1781 = vmatpush1.msra.mxu0 0.0
    %1782 = vmatprep.subr.mxu0 0.0
    %1783 = vmatpush1.msra.mxu0 0.0
    %1784 = vmatprep.subr.mxu0 0.0
    %1785 = vmatpush1.msra.mxu0 0.0
    %1786 = vmatprep.subr.mxu0 0.0
    %1787 = vmatpush1.msra.mxu0 0.0
    %1788 = vmatprep.subr.mxu0 0.0
    %1789 = vmatpush1.msra.mxu0 0.0
    %1790 = vmatprep.subr.mxu0 0.0
    %1791 = vmatpush1.msra.mxu0 0.0
    %1792 = vmatprep.subr.mxu0 0.0
    %1793 = vmatpush1.msra.mxu0 0.0
    %1794 = vmatprep.subr.mxu0 0.0
    %1795 = vmatpush1.msra.mxu0 0.0
    %1796 = vmatprep.subr.mxu0 0.0
    %1797 = vmatpush1.msra.mxu0 0.0
    %1798 = vmatprep.subr.mxu0 0.0
    %1799 = vmatpush1.msra.mxu0 0.0
    %1800 = vmatprep.subr.mxu0 0.0
    %1801 = vmatpush1.msra.mxu0 0.0
    %1802 = vmatprep.subr.mxu0 0.0
    %1803 = vmatpush1.msra.mxu0 0.0
    %1804 = vmatprep.mubr.f32.mxu0 0.0
    %1805 = vmatmul.mubr.f32.gmra.mrb[0].mxu0 %v1738
    %v1806 = vpop.f32.mrb[0].mxu0
    %v1807 = vadd.f32 0.0, %v1806
    %v1808 = vpop.f32.mrb[0].mxu0
    %1809 = vdwg.mxu0
    %1810 = vrot.lane.b32.xlu0 %v1710, 96
    %v1811 = vpop.permute.xlu0 %1810
    %v1812 = vsel %vm186, %v1811, 0
    %1814 = vmatprep.subr.mxu0 0.0
    %1815 = vmatpush1.msra.mxu0 %v98
    %1816 = vmatprep.subr.mxu0 0.0
    %1817 = vmatpush1.msra.mxu0 %v99
    %1818 = vmatprep.subr.mxu0 0.0
    %1819 = vmatpush1.msra.mxu0 %v100
    %1820 = vmatprep.subr.mxu0 0.0
    %1821 = vmatpush1.msra.mxu0 %v101
    %1822 = vmatprep.subr.mxu0 0.0
    %1823 = vmatpush1.msra.mxu0 0.0
    %1824 = vmatprep.subr.mxu0 0.0
    %1825 = vmatpush1.msra.mxu0 0.0
    %1826 = vmatprep.subr.mxu0 0.0
    %1827 = vmatpush1.msra.mxu0 0.0
    %1828 = vmatprep.subr.mxu0 0.0
    %1829 = vmatpush1.msra.mxu0 0.0
    %1830 = vmatprep.subr.mxu0 0.0
    %1831 = vmatpush1.msra.mxu0 0.0
    %1832 = vmatprep.subr.mxu0 0.0
    %1833 = vmatpush1.msra.mxu0 0.0
    %1834 = vmatprep.subr.mxu0 0.0
    %1835 = vmatpush1.msra.mxu0 0.0
    %1836 = vmatprep.subr.mxu0 0.0
    %1837 = vmatpush1.msra.mxu0 0.0
    %1838 = vmatprep.subr.mxu0 0.0
    %1839 = vmatpush1.msra.mxu0 0.0
    %1840 = vmatprep.subr.mxu0 0.0
    %1841 = vmatpush1.msra.mxu0 0.0
    %1842 = vmatprep.subr.mxu0 0.0
    %1843 = vmatpush1.msra.mxu0 0.0
    %1844 = vmatprep.subr.mxu0 0.0
    %1845 = vmatpush1.msra.mxu0 0.0
    %1846 = vmatprep.subr.mxu0 0.0
    %1847 = vmatpush1.msra.mxu0 0.0
    %1848 = vmatprep.subr.mxu0 0.0
    %1849 = vmatpush1.msra.mxu0 0.0
    %1850 = vmatprep.subr.mxu0 0.0
    %1851 = vmatpush1.msra.mxu0 0.0
    %1852 = vmatprep.subr.mxu0 0.0
    %1853 = vmatpush1.msra.mxu0 0.0
    %1854 = vmatprep.subr.mxu0 0.0
    %1855 = vmatpush1.msra.mxu0 0.0
    %1856 = vmatprep.subr.mxu0 0.0
    %1857 = vmatpush1.msra.mxu0 0.0
    %1858 = vmatprep.subr.mxu0 0.0
    %1859 = vmatpush1.msra.mxu0 0.0
    %1860 = vmatprep.subr.mxu0 0.0
    %1861 = vmatpush1.msra.mxu0 0.0
    %1862 = vmatprep.subr.mxu0 0.0
    %1863 = vmatpush1.msra.mxu0 0.0
    %1864 = vmatprep.subr.mxu0 0.0
    %1865 = vmatpush1.msra.mxu0 0.0
    %1866 = vmatprep.subr.mxu0 0.0
    %1867 = vmatpush1.msra.mxu0 0.0
    %1868 = vmatprep.subr.mxu0 0.0
    %1869 = vmatpush1.msra.mxu0 0.0
    %1870 = vmatprep.subr.mxu0 0.0
    %1871 = vmatpush1.msra.mxu0 0.0
    %1872 = vmatprep.subr.mxu0 0.0
    %1873 = vmatpush1.msra.mxu0 0.0
    %1874 = vmatprep.subr.mxu0 0.0
    %1875 = vmatpush1.msra.mxu0 0.0
    %1876 = vmatprep.subr.mxu0 0.0
    %1877 = vmatpush1.msra.mxu0 0.0
    %1878 = vmatprep.mubr.f32.mxu0 0.0
    %1879 = vmatmul.mubr.f32.gmra.mrb[0].mxu0 %v1812
    %v1880 = vpop.f32.mrb[0].mxu0
    %v1881 = vadd.f32 0.0, %v1880
    %v1882 = vpop.f32.mrb[0].mxu0
    %1883 = vdwg.mxu0
    %v1884 = vadd.f32 %v1807, %v1881
    %v1885 = vadd.f32 %v1884, %v265
    %v1886 = vxor.u32 %v1885, 2147483648
    %v1887 = vmul.f32 %v1886, 1.442695
    %v1888 = vpow.pop %v1887
    %v1889 = vadd.f32 %v1888, 1.0
    %v1890 = vrcp.pop %v1889
    %v1891 = vmul.f32 1.0, %v1890
    %v1892 = vadd.f32 %v1807, %v265
    %v1893 = vadd.f32 %v1881, %v281
    %1895 = vrot.lane.b32.xlu0 %v1893, 64
    %v1896 = vpop.permute.xlu0 %1895
    %v1898 = vmul.f32 %v1891, %v1896
    %1900 = vrot.lane.b32.xlu0 %v1898, 64
    %v1901 = vpop.permute.xlu0 %1900
    %v1903 = vadd.f32 %v1892, %v1901
    %v1904 = vtanh.pop %v1903
    %v1905 = vsub.f32 1.0, %v1891
    %1907 = vrot.lane.b32.xlu0 %v1904, 96
    %v1908 = vpop.permute.xlu0 %1907
    %v1910 = vmul.f32 %v1905, %v1908
    %v1911 = vmul.f32 %v1891, %v1710
    %v1912 = vadd.f32 %v1910, %v1911
    %v1915 = vunpack.c.l.s4 1966171168
    %v1916 = vunpack.c.0.s8 %v1915
    %v1917 = vlaneseq
    %v1918 = vshrl.u32 %v1917, 7
    %v1919 = vsub.s32 %v1916, %v1918
    %v1920 = vrot.slane %v1912, %v1919
    %v1921 = vcombine.high %v1920, %v1920
    %v1923 = vunpack.c.l.s4 1966171168
    %v1924 = vunpack.c.0.s8 %v1923
    %v1925 = vlaneseq
    %v1926 = vshrl.u32 %v1925, 7
    %v1927 = vsub.s32 %v1924, %v1926
    %v1928 = vrot.slane %v1920, %v1927
    %v1930 = vunpack.c.l.s4 1966171168
    %v1931 = vunpack.c.0.s8 %v1930
    %v1932 = vlaneseq
    %v1933 = vshrl.u32 %v1932, 7
    %v1934 = vsub.s32 %v1931, %v1933
    %v1935 = vrot.slane %v1921, %v1934
    %v1938 = vrot.slane %v105, 1
    %v1939 = vsel %vm111, %v107, %v1938
    %v1940 = vsel %vm113, %v1939, 0
    %1942 = vmatprep.subr.mxu0 0.0
    %1943 = vmatpush1.msra.mxu0 %v97
    %1944 = vmatprep.subr.mxu0 0.0
    %1945 = vmatpush1.msra.mxu0 0.0
    %1946 = vmatprep.subr.mxu0 0.0
    %1947 = vmatpush1.msra.mxu0 0.0
    %1948 = vmatprep.subr.mxu0 0.0
    %1949 = vmatpush1.msra.mxu0 0.0
    %1950 = vmatprep.subr.mxu0 0.0
    %1951 = vmatpush1.msra.mxu0 0.0
    %1952 = vmatprep.subr.mxu0 0.0
    %1953 = vmatpush1.msra.mxu0 0.0
    %1954 = vmatprep.subr.mxu0 0.0
    %1955 = vmatpush1.msra.mxu0 0.0
    %1956 = vmatprep.subr.mxu0 0.0
    %1957 = vmatpush1.msra.mxu0 0.0
    %1958 = vmatprep.subr.mxu0 0.0
    %1959 = vmatpush1.msra.mxu0 0.0
    %1960 = vmatprep.subr.mxu0 0.0
    %1961 = vmatpush1.msra.mxu0 0.0
    %1962 = vmatprep.subr.mxu0 0.0
    %1963 = vmatpush1.msra.mxu0 0.0
    %1964 = vmatprep.subr.mxu0 0.0
    %1965 = vmatpush1.msra.mxu0 0.0
    %1966 = vmatprep.subr.mxu0 0.0
    %1967 = vmatpush1.msra.mxu0 0.0
    %1968 = vmatprep.subr.mxu0 0.0
    %1969 = vmatpush1.msra.mxu0 0.0
    %1970 = vmatprep.subr.mxu0 0.0
    %1971 = vmatpush1.msra.mxu0 0.0
    %1972 = vmatprep.subr.mxu0 0.0
    %1973 = vmatpush1.msra.mxu0 0.0
    %1974 = vmatprep.subr.mxu0 0.0
    %1975 = vmatpush1.msra.mxu0 0.0
    %1976 = vmatprep.subr.mxu0 0.0
    %1977 = vmatpush1.msra.mxu0 0.0
    %1978 = vmatprep.subr.mxu0 0.0
    %1979 = vmatpush1.msra.mxu0 0.0
    %1980 = vmatprep.subr.mxu0 0.0
    %1981 = vmatpush1.msra.mxu0 0.0
    %1982 = vmatprep.subr.mxu0 0.0
    %1983 = vmatpush1.msra.mxu0 0.0
    %1984 = vmatprep.subr.mxu0 0.0
    %1985 = vmatpush1.msra.mxu0 0.0
    %1986 = vmatprep.subr.mxu0 0.0
    %1987 = vmatpush1.msra.mxu0 0.0
    %1988 = vmatprep.subr.mxu0 0.0
    %1989 = vmatpush1.msra.mxu0 0.0
    %1990 = vmatprep.subr.mxu0 0.0
    %1991 = vmatpush1.msra.mxu0 0.0
    %1992 = vmatprep.subr.mxu0 0.0
    %1993 = vmatpush1.msra.mxu0 0.0
    %1994 = vmatprep.subr.mxu0 0.0
    %1995 = vmatpush1.msra.mxu0 0.0
    %1996 = vmatprep.subr.mxu0 0.0
    %1997 = vmatpush1.msra.mxu0 0.0
    %1998 = vmatprep.subr.mxu0 0.0
    %1999 = vmatpush1.msra.mxu0 0.0
    %2000 = vmatprep.subr.mxu0 0.0
    %2001 = vmatpush1.msra.mxu0 0.0
    %2002 = vmatprep.subr.mxu0 0.0
    %2003 = vmatpush1.msra.mxu0 0.0
    %2004 = vmatprep.subr.mxu0 0.0
    %2005 = vmatpush1.msra.mxu0 0.0
    %2006 = vmatprep.mubr.f32.mxu0 0.0
    %2007 = vmatmul.mubr.f32.gmra.mrb[0].mxu0 %v1940
    %v2008 = vpop.f32.mrb[0].mxu0
    %v2009 = vadd.f32 0.0, %v2008
    %v2010 = vpop.f32.mrb[0].mxu0
    %2011 = vdwg.mxu0
    %2012 = vrot.lane.b32.xlu0 %v1912, 96
    %v2013 = vpop.permute.xlu0 %2012
    %v2014 = vsel %vm186, %v2013, 0
    %2016 = vmatprep.subr.mxu0 0.0
    %2017 = vmatpush1.msra.mxu0 %v98
    %2018 = vmatprep.subr.mxu0 0.0
    %2019 = vmatpush1.msra.mxu0 %v99
    %2020 = vmatprep.subr.mxu0 0.0
    %2021 = vmatpush1.msra.mxu0 %v100
    %2022 = vmatprep.subr.mxu0 0.0
    %2023 = vmatpush1.msra.mxu0 %v101
    %2024 = vmatprep.subr.mxu0 0.0
    %2025 = vmatpush1.msra.mxu0 0.0
    %2026 = vmatprep.subr.mxu0 0.0
    %2027 = vmatpush1.msra.mxu0 0.0
    %2028 = vmatprep.subr.mxu0 0.0
    %2029 = vmatpush1.msra.mxu0 0.0
    %2030 = vmatprep.subr.mxu0 0.0
    %2031 = vmatpush1.msra.mxu0 0.0
    %2032 = vmatprep.subr.mxu0 0.0
    %2033 = vmatpush1.msra.mxu0 0.0
    %2034 = vmatprep.subr.mxu0 0.0
    %2035 = vmatpush1.msra.mxu0 0.0
    %2036 = vmatprep.subr.mxu0 0.0
    %2037 = vmatpush1.msra.mxu0 0.0
    %2038 = vmatprep.subr.mxu0 0.0
    %2039 = vmatpush1.msra.mxu0 0.0
    %2040 = vmatprep.subr.mxu0 0.0
    %2041 = vmatpush1.msra.mxu0 0.0
    %2042 = vmatprep.subr.mxu0 0.0
    %2043 = vmatpush1.msra.mxu0 0.0
    %2044 = vmatprep.subr.mxu0 0.0
    %2045 = vmatpush1.msra.mxu0 0.0
    %2046 = vmatprep.subr.mxu0 0.0
    %2047 = vmatpush1.msra.mxu0 0.0
    %2048 = vmatprep.subr.mxu0 0.0
    %2049 = vmatpush1.msra.mxu0 0.0
    %2050 = vmatprep.subr.mxu0 0.0
    %2051 = vmatpush1.msra.mxu0 0.0
    %2052 = vmatprep.subr.mxu0 0.0
    %2053 = vmatpush1.msra.mxu0 0.0
    %2054 = vmatprep.subr.mxu0 0.0
    %2055 = vmatpush1.msra.mxu0 0.0
    %2056 = vmatprep.subr.mxu0 0.0
    %2057 = vmatpush1.msra.mxu0 0.0
    %2058 = vmatprep.subr.mxu0 0.0
    %2059 = vmatpush1.msra.mxu0 0.0
    %2060 = vmatprep.subr.mxu0 0.0
    %2061 = vmatpush1.msra.mxu0 0.0
    %2062 = vmatprep.subr.mxu0 0.0
    %2063 = vmatpush1.msra.mxu0 0.0
    %2064 = vmatprep.subr.mxu0 0.0
    %2065 = vmatpush1.msra.mxu0 0.0
    %2066 = vmatprep.subr.mxu0 0.0
    %2067 = vmatpush1.msra.mxu0 0.0
    %2068 = vmatprep.subr.mxu0 0.0
    %2069 = vmatpush1.msra.mxu0 0.0
    %2070 = vmatprep.subr.mxu0 0.0
    %2071 = vmatpush1.msra.mxu0 0.0
    %2072 = vmatprep.subr.mxu0 0.0
    %2073 = vmatpush1.msra.mxu0 0.0
    %2074 = vmatprep.subr.mxu0 0.0
    %2075 = vmatpush1.msra.mxu0 0.0
    %2076 = vmatprep.subr.mxu0 0.0
    %2077 = vmatpush1.msra.mxu0 0.0
    %2078 = vmatprep.subr.mxu0 0.0
    %2079 = vmatpush1.msra.mxu0 0.0
    %2080 = vmatprep.mubr.f32.mxu0 0.0
    %2081 = vmatmul.mubr.f32.gmra.mrb[0].mxu0 %v2014
    %v2082 = vpop.f32.mrb[0].mxu0
    %v2083 = vadd.f32 0.0, %v2082
    %v2084 = vpop.f32.mrb[0].mxu0
    %2085 = vdwg.mxu0
    %v2086 = vadd.f32 %v2009, %v2083
    %v2087 = vadd.f32 %v2086, %v265
    %v2088 = vxor.u32 %v2087, 2147483648
    %v2089 = vmul.f32 %v2088, 1.442695
    %v2090 = vpow.pop %v2089
    %v2091 = vadd.f32 %v2090, 1.0
    %v2092 = vrcp.pop %v2091
    %v2093 = vmul.f32 1.0, %v2092
    %v2094 = vadd.f32 %v2009, %v265
    %v2095 = vadd.f32 %v2083, %v281
    %2097 = vrot.lane.b32.xlu0 %v2095, 64
    %v2098 = vpop.permute.xlu0 %2097
    %v2100 = vmul.f32 %v2093, %v2098
    %2102 = vrot.lane.b32.xlu0 %v2100, 64
    %v2103 = vpop.permute.xlu0 %2102
    %v2105 = vadd.f32 %v2094, %v2103
    %v2106 = vtanh.pop %v2105
    %v2107 = vsub.f32 1.0, %v2093
    %2109 = vrot.lane.b32.xlu0 %v2106, 96
    %v2110 = vpop.permute.xlu0 %2109
    %v2112 = vmul.f32 %v2107, %v2110
    %v2113 = vmul.f32 %v2093, %v1912
    %v2114 = vadd.f32 %v2112, %v2113
    %v2117 = vunpack.c.l.s4 1966171168
    %v2118 = vunpack.c.0.s8 %v2117
    %v2119 = vlaneseq
    %v2120 = vshrl.u32 %v2119, 7
    %v2121 = vsub.s32 %v2118, %v2120
    %v2122 = vrot.slane %v2114, %v2121
    %v2123 = vcombine.high %v2122, %v2122
    %v2125 = vunpack.c.l.s4 1966171168
    %v2126 = vunpack.c.0.s8 %v2125
    %v2127 = vlaneseq
    %v2128 = vshrl.u32 %v2127, 7
    %v2129 = vsub.s32 %v2126, %v2128
    %v2130 = vrot.slane %v2122, %v2129
    %v2132 = vunpack.c.l.s4 1966171168
    %v2133 = vunpack.c.0.s8 %v2132
    %v2134 = vlaneseq
    %v2135 = vshrl.u32 %v2134, 7
    %v2136 = vsub.s32 %v2133, %v2135
    %v2137 = vrot.slane %v2123, %v2136
    %v2138 = vrot.slane %v105, 2
    %v2139 = vrot.slane %v107, 1
    %v2140 = vsel %vm111, %v2139, %v2138
    %v2141 = vsel %vm113, %v2140, 0
    %2143 = vmatprep.subr.mxu0 0.0
    %2144 = vmatpush1.msra.mxu0 %v97
    %2145 = vmatprep.subr.mxu0 0.0
    %2146 = vmatpush1.msra.mxu0 0.0
    %2147 = vmatprep.subr.mxu0 0.0
    %2148 = vmatpush1.msra.mxu0 0.0
    %2149 = vmatprep.subr.mxu0 0.0
    %2150 = vmatpush1.msra.mxu0 0.0
    %2151 = vmatprep.subr.mxu0 0.0
    %2152 = vmatpush1.msra.mxu0 0.0
    %2153 = vmatprep.subr.mxu0 0.0
    %2154 = vmatpush1.msra.mxu0 0.0
    %2155 = vmatprep.subr.mxu0 0.0
    %2156 = vmatpush1.msra.mxu0 0.0
    %2157 = vmatprep.subr.mxu0 0.0
    %2158 = vmatpush1.msra.mxu0 0.0
    %2159 = vmatprep.subr.mxu0 0.0
    %2160 = vmatpush1.msra.mxu0 0.0
    %2161 = vmatprep.subr.mxu0 0.0
    %2162 = vmatpush1.msra.mxu0 0.0
    %2163 = vmatprep.subr.mxu0 0.0
    %2164 = vmatpush1.msra.mxu0 0.0
    %2165 = vmatprep.subr.mxu0 0.0
    %2166 = vmatpush1.msra.mxu0 0.0
    %2167 = vmatprep.subr.mxu0 0.0
    %2168 = vmatpush1.msra.mxu0 0.0
    %2169 = vmatprep.subr.mxu0 0.0
    %2170 = vmatpush1.msra.mxu0 0.0
    %2171 = vmatprep.subr.mxu0 0.0
    %2172 = vmatpush1.msra.mxu0 0.0
    %2173 = vmatprep.subr.mxu0 0.0
    %2174 = vmatpush1.msra.mxu0 0.0
    %2175 = vmatprep.subr.mxu0 0.0
    %2176 = vmatpush1.msra.mxu0 0.0
    %2177 = vmatprep.subr.mxu0 0.0
    %2178 = vmatpush1.msra.mxu0 0.0
    %2179 = vmatprep.subr.mxu0 0.0
    %2180 = vmatpush1.msra.mxu0 0.0
    %2181 = vmatprep.subr.mxu0 0.0
    %2182 = vmatpush1.msra.mxu0 0.0
    %2183 = vmatprep.subr.mxu0 0.0
    %2184 = vmatpush1.msra.mxu0 0.0
    %2185 = vmatprep.subr.mxu0 0.0
    %2186 = vmatpush1.msra.mxu0 0.0
    %2187 = vmatprep.subr.mxu0 0.0
    %2188 = vmatpush1.msra.mxu0 0.0
    %2189 = vmatprep.subr.mxu0 0.0
    %2190 = vmatpush1.msra.mxu0 0.0
    %2191 = vmatprep.subr.mxu0 0.0
    %2192 = vmatpush1.msra.mxu0 0.0
    %2193 = vmatprep.subr.mxu0 0.0
    %2194 = vmatpush1.msra.mxu0 0.0
    %2195 = vmatprep.subr.mxu0 0.0
    %2196 = vmatpush1.msra.mxu0 0.0
    %2197 = vmatprep.subr.mxu0 0.0
    %2198 = vmatpush1.msra.mxu0 0.0
    %2199 = vmatprep.subr.mxu0 0.0
    %2200 = vmatpush1.msra.mxu0 0.0
    %2201 = vmatprep.subr.mxu0 0.0
    %2202 = vmatpush1.msra.mxu0 0.0
    %2203 = vmatprep.subr.mxu0 0.0
    %2204 = vmatpush1.msra.mxu0 0.0
    %2205 = vmatprep.subr.mxu0 0.0
    %2206 = vmatpush1.msra.mxu0 0.0
    %2207 = vmatprep.mubr.f32.mxu0 0.0
    %2208 = vmatmul.mubr.f32.gmra.mrb[0].mxu0 %v2141
    %v2209 = vpop.f32.mrb[0].mxu0
    %v2210 = vadd.f32 0.0, %v2209
    %v2211 = vpop.f32.mrb[0].mxu0
    %2212 = vdwg.mxu0
    %2213 = vrot.lane.b32.xlu0 %v2114, 96
    %v2214 = vpop.permute.xlu0 %2213
    %v2215 = vsel %vm186, %v2214, 0
    %2217 = vmatprep.subr.mxu0 0.0
    %2218 = vmatpush1.msra.mxu0 %v98
    %2219 = vmatprep.subr.mxu0 0.0
    %2220 = vmatpush1.msra.mxu0 %v99
    %2221 = vmatprep.subr.mxu0 0.0
    %2222 = vmatpush1.msra.mxu0 %v100
    %2223 = vmatprep.subr.mxu0 0.0
    %2224 = vmatpush1.msra.mxu0 %v101
    %2225 = vmatprep.subr.mxu0 0.0
    %2226 = vmatpush1.msra.mxu0 0.0
    %2227 = vmatprep.subr.mxu0 0.0
    %2228 = vmatpush1.msra.mxu0 0.0
    %2229 = vmatprep.subr.mxu0 0.0
    %2230 = vmatpush1.msra.mxu0 0.0
    %2231 = vmatprep.subr.mxu0 0.0
    %2232 = vmatpush1.msra.mxu0 0.0
    %2233 = vmatprep.subr.mxu0 0.0
    %2234 = vmatpush1.msra.mxu0 0.0
    %2235 = vmatprep.subr.mxu0 0.0
    %2236 = vmatpush1.msra.mxu0 0.0
    %2237 = vmatprep.subr.mxu0 0.0
    %2238 = vmatpush1.msra.mxu0 0.0
    %2239 = vmatprep.subr.mxu0 0.0
    %2240 = vmatpush1.msra.mxu0 0.0
    %2241 = vmatprep.subr.mxu0 0.0
    %2242 = vmatpush1.msra.mxu0 0.0
    %2243 = vmatprep.subr.mxu0 0.0
    %2244 = vmatpush1.msra.mxu0 0.0
    %2245 = vmatprep.subr.mxu0 0.0
    %2246 = vmatpush1.msra.mxu0 0.0
    %2247 = vmatprep.subr.mxu0 0.0
    %2248 = vmatpush1.msra.mxu0 0.0
    %2249 = vmatprep.subr.mxu0 0.0
    %2250 = vmatpush1.msra.mxu0 0.0
    %2251 = vmatprep.subr.mxu0 0.0
    %2252 = vmatpush1.msra.mxu0 0.0
    %2253 = vmatprep.subr.mxu0 0.0
    %2254 = vmatpush1.msra.mxu0 0.0
    %2255 = vmatprep.subr.mxu0 0.0
    %2256 = vmatpush1.msra.mxu0 0.0
    %2257 = vmatprep.subr.mxu0 0.0
    %2258 = vmatpush1.msra.mxu0 0.0
    %2259 = vmatprep.subr.mxu0 0.0
    %2260 = vmatpush1.msra.mxu0 0.0
    %2261 = vmatprep.subr.mxu0 0.0
    %2262 = vmatpush1.msra.mxu0 0.0
    %2263 = vmatprep.subr.mxu0 0.0
    %2264 = vmatpush1.msra.mxu0 0.0
    %2265 = vmatprep.subr.mxu0 0.0
    %2266 = vmatpush1.msra.mxu0 0.0
    %2267 = vmatprep.subr.mxu0 0.0
    %2268 = vmatpush1.msra.mxu0 0.0
    %2269 = vmatprep.subr.mxu0 0.0
    %2270 = vmatpush1.msra.mxu0 0.0
    %2271 = vmatprep.subr.mxu0 0.0
    %2272 = vmatpush1.msra.mxu0 0.0
    %2273 = vmatprep.subr.mxu0 0.0
    %2274 = vmatpush1.msra.mxu0 0.0
    %2275 = vmatprep.subr.mxu0 0.0
    %2276 = vmatpush1.msra.mxu0 0.0
    %2277 = vmatprep.subr.mxu0 0.0
    %2278 = vmatpush1.msra.mxu0 0.0
    %2279 = vmatprep.subr.mxu0 0.0
    %2280 = vmatpush1.msra.mxu0 0.0
    %2281 = vmatprep.mubr.f32.mxu0 0.0
    %2282 = vmatmul.mubr.f32.gmra.mrb[0].mxu0 %v2215
    %v2283 = vpop.f32.mrb[0].mxu0
    %v2284 = vadd.f32 0.0, %v2283
    %v2285 = vpop.f32.mrb[0].mxu0
    %2286 = vdwg.mxu0
    %v2287 = vadd.f32 %v2210, %v2284
    %v2288 = vadd.f32 %v2287, %v265
    %v2289 = vxor.u32 %v2288, 2147483648
    %v2290 = vmul.f32 %v2289, 1.442695
    %v2291 = vpow.pop %v2290
    %v2292 = vadd.f32 %v2291, 1.0
    %v2293 = vrcp.pop %v2292
    %v2294 = vmul.f32 1.0, %v2293
    %v2295 = vadd.f32 %v2210, %v265
    %v2296 = vadd.f32 %v2284, %v281
    %2298 = vrot.lane.b32.xlu0 %v2296, 64
    %v2299 = vpop.permute.xlu0 %2298
    %v2301 = vmul.f32 %v2294, %v2299
    %2303 = vrot.lane.b32.xlu0 %v2301, 64
    %v2304 = vpop.permute.xlu0 %2303
    %v2306 = vadd.f32 %v2295, %v2304
    %v2307 = vtanh.pop %v2306
    %v2308 = vsub.f32 1.0, %v2294
    %2310 = vrot.lane.b32.xlu0 %v2307, 96
    %v2311 = vpop.permute.xlu0 %2310
    %v2313 = vmul.f32 %v2308, %v2311
    %v2314 = vmul.f32 %v2294, %v2114
    %v2315 = vadd.f32 %v2313, %v2314
    %v2318 = vunpack.c.l.s4 1966171168
    %v2319 = vunpack.c.0.s8 %v2318
    %v2320 = vlaneseq
    %v2321 = vshrl.u32 %v2320, 7
    %v2322 = vsub.s32 %v2319, %v2321
    %v2323 = vrot.slane %v2315, %v2322
    %v2324 = vcombine.high %v2323, %v2323
    %v2326 = vunpack.c.l.s4 1966171168
    %v2327 = vunpack.c.0.s8 %v2326
    %v2328 = vlaneseq
    %v2329 = vshrl.u32 %v2328, 7
    %v2330 = vsub.s32 %v2327, %v2329
    %v2331 = vrot.slane %v2323, %v2330
    %v2333 = vunpack.c.l.s4 1966171168
    %v2334 = vunpack.c.0.s8 %v2333
    %v2335 = vlaneseq
    %v2336 = vshrl.u32 %v2335, 7
    %v2337 = vsub.s32 %v2334, %v2336
    %v2338 = vrot.slane %v2324, %v2337
    %v2339 = vrot.slane %v105, 3
    %v2340 = vrot.slane %v107, 2
    %v2341 = vsel %vm111, %v2340, %v2339
    %v2342 = vsel %vm113, %v2341, 0
    %2344 = vmatprep.subr.mxu0 0.0
    %2345 = vmatpush1.msra.mxu0 %v97
    %2346 = vmatprep.subr.mxu0 0.0
    %2347 = vmatpush1.msra.mxu0 0.0
    %2348 = vmatprep.subr.mxu0 0.0
    %2349 = vmatpush1.msra.mxu0 0.0
    %2350 = vmatprep.subr.mxu0 0.0
    %2351 = vmatpush1.msra.mxu0 0.0
    %2352 = vmatprep.subr.mxu0 0.0
    %2353 = vmatpush1.msra.mxu0 0.0
    %2354 = vmatprep.subr.mxu0 0.0
    %2355 = vmatpush1.msra.mxu0 0.0
    %2356 = vmatprep.subr.mxu0 0.0
    %2357 = vmatpush1.msra.mxu0 0.0
    %2358 = vmatprep.subr.mxu0 0.0
    %2359 = vmatpush1.msra.mxu0 0.0
    %2360 = vmatprep.subr.mxu0 0.0
    %2361 = vmatpush1.msra.mxu0 0.0
    %2362 = vmatprep.subr.mxu0 0.0
    %2363 = vmatpush1.msra.mxu0 0.0
    %2364 = vmatprep.subr.mxu0 0.0
    %2365 = vmatpush1.msra.mxu0 0.0
    %2366 = vmatprep.subr.mxu0 0.0
    %2367 = vmatpush1.msra.mxu0 0.0
    %2368 = vmatprep.subr.mxu0 0.0
    %2369 = vmatpush1.msra.mxu0 0.0
    %2370 = vmatprep.subr.mxu0 0.0
    %2371 = vmatpush1.msra.mxu0 0.0
    %2372 = vmatprep.subr.mxu0 0.0
    %2373 = vmatpush1.msra.mxu0 0.0
    %2374 = vmatprep.subr.mxu0 0.0
    %2375 = vmatpush1.msra.mxu0 0.0
    %2376 = vmatprep.subr.mxu0 0.0
    %2377 = vmatpush1.msra.mxu0 0.0
    %2378 = vmatprep.subr.mxu0 0.0
    %2379 = vmatpush1.msra.mxu0 0.0
    %2380 = vmatprep.subr.mxu0 0.0
    %2381 = vmatpush1.msra.mxu0 0.0
    %2382 = vmatprep.subr.mxu0 0.0
    %2383 = vmatpush1.msra.mxu0 0.0
    %2384 = vmatprep.subr.mxu0 0.0
    %2385 = vmatpush1.msra.mxu0 0.0
    %2386 = vmatprep.subr.mxu0 0.0
    %2387 = vmatpush1.msra.mxu0 0.0
    %2388 = vmatprep.subr.mxu0 0.0
    %2389 = vmatpush1.msra.mxu0 0.0
    %2390 = vmatprep.subr.mxu0 0.0
    %2391 = vmatpush1.msra.mxu0 0.0
    %2392 = vmatprep.subr.mxu0 0.0
    %2393 = vmatpush1.msra.mxu0 0.0
    %2394 = vmatprep.subr.mxu0 0.0
    %2395 = vmatpush1.msra.mxu0 0.0
    %2396 = vmatprep.subr.mxu0 0.0
    %2397 = vmatpush1.msra.mxu0 0.0
    %2398 = vmatprep.subr.mxu0 0.0
    %2399 = vmatpush1.msra.mxu0 0.0
    %2400 = vmatprep.subr.mxu0 0.0
    %2401 = vmatpush1.msra.mxu0 0.0
    %2402 = vmatprep.subr.mxu0 0.0
    %2403 = vmatpush1.msra.mxu0 0.0
    %2404 = vmatprep.subr.mxu0 0.0
    %2405 = vmatpush1.msra.mxu0 0.0
    %2406 = vmatprep.subr.mxu0 0.0
    %2407 = vmatpush1.msra.mxu0 0.0
    %2408 = vmatprep.mubr.f32.mxu0 0.0
    %2409 = vmatmul.mubr.f32.gmra.mrb[0].mxu0 %v2342
    %v2410 = vpop.f32.mrb[0].mxu0
    %v2411 = vadd.f32 0.0, %v2410
    %v2412 = vpop.f32.mrb[0].mxu0
    %2413 = vdwg.mxu0
    %2414 = vrot.lane.b32.xlu0 %v2315, 96
    %v2415 = vpop.permute.xlu0 %2414
    %v2416 = vsel %vm186, %v2415, 0
    %2418 = vmatprep.subr.mxu0 0.0
    %2419 = vmatpush1.msra.mxu0 %v98
    %2420 = vmatprep.subr.mxu0 0.0
    %2421 = vmatpush1.msra.mxu0 %v99
    %2422 = vmatprep.subr.mxu0 0.0
    %2423 = vmatpush1.msra.mxu0 %v100
    %2424 = vmatprep.subr.mxu0 0.0
    %2425 = vmatpush1.msra.mxu0 %v101
    %2426 = vmatprep.subr.mxu0 0.0
    %2427 = vmatpush1.msra.mxu0 0.0
    %2428 = vmatprep.subr.mxu0 0.0
    %2429 = vmatpush1.msra.mxu0 0.0
    %2430 = vmatprep.subr.mxu0 0.0
    %2431 = vmatpush1.msra.mxu0 0.0
    %2432 = vmatprep.subr.mxu0 0.0
    %2433 = vmatpush1.msra.mxu0 0.0
    %2434 = vmatprep.subr.mxu0 0.0
    %2435 = vmatpush1.msra.mxu0 0.0
    %2436 = vmatprep.subr.mxu0 0.0
    %2437 = vmatpush1.msra.mxu0 0.0
    %2438 = vmatprep.subr.mxu0 0.0
    %2439 = vmatpush1.msra.mxu0 0.0
    %2440 = vmatprep.subr.mxu0 0.0
    %2441 = vmatpush1.msra.mxu0 0.0
    %2442 = vmatprep.subr.mxu0 0.0
    %2443 = vmatpush1.msra.mxu0 0.0
    %2444 = vmatprep.subr.mxu0 0.0
    %2445 = vmatpush1.msra.mxu0 0.0
    %2446 = vmatprep.subr.mxu0 0.0
    %2447 = vmatpush1.msra.mxu0 0.0
    %2448 = vmatprep.subr.mxu0 0.0
    %2449 = vmatpush1.msra.mxu0 0.0
    %2450 = vmatprep.subr.mxu0 0.0
    %2451 = vmatpush1.msra.mxu0 0.0
    %2452 = vmatprep.subr.mxu0 0.0
    %2453 = vmatpush1.msra.mxu0 0.0
    %2454 = vmatprep.subr.mxu0 0.0
    %2455 = vmatpush1.msra.mxu0 0.0
    %2456 = vmatprep.subr.mxu0 0.0
    %2457 = vmatpush1.msra.mxu0 0.0
    %2458 = vmatprep.subr.mxu0 0.0
    %2459 = vmatpush1.msra.mxu0 0.0
    %2460 = vmatprep.subr.mxu0 0.0
    %2461 = vmatpush1.msra.mxu0 0.0
    %2462 = vmatprep.subr.mxu0 0.0
    %2463 = vmatpush1.msra.mxu0 0.0
    %2464 = vmatprep.subr.mxu0 0.0
    %2465 = vmatpush1.msra.mxu0 0.0
    %2466 = vmatprep.subr.mxu0 0.0
    %2467 = vmatpush1.msra.mxu0 0.0
    %2468 = vmatprep.subr.mxu0 0.0
    %2469 = vmatpush1.msra.mxu0 0.0
    %2470 = vmatprep.subr.mxu0 0.0
    %2471 = vmatpush1.msra.mxu0 0.0
    %2472 = vmatprep.subr.mxu0 0.0
    %2473 = vmatpush1.msra.mxu0 0.0
    %2474 = vmatprep.subr.mxu0 0.0
    %2475 = vmatpush1.msra.mxu0 0.0
    %2476 = vmatprep.subr.mxu0 0.0
    %2477 = vmatpush1.msra.mxu0 0.0
    %2478 = vmatprep.subr.mxu0 0.0
    %2479 = vmatpush1.msra.mxu0 0.0
    %2480 = vmatprep.subr.mxu0 0.0
    %2481 = vmatpush1.msra.mxu0 0.0
    %2482 = vmatprep.mubr.f32.mxu0 0.0
    %2483 = vmatmul.mubr.f32.gmra.mrb[0].mxu0 %v2416
    %v2484 = vpop.f32.mrb[0].mxu0
    %v2485 = vadd.f32 0.0, %v2484
    %v2486 = vpop.f32.mrb[0].mxu0
    %2487 = vdwg.mxu0
    %v2488 = vadd.f32 %v2411, %v2485
    %v2489 = vadd.f32 %v2488, %v265
    %v2490 = vxor.u32 %v2489, 2147483648
    %v2491 = vmul.f32 %v2490, 1.442695
    %v2492 = vpow.pop %v2491
    %v2493 = vadd.f32 %v2492, 1.0
    %v2494 = vrcp.pop %v2493
    %v2495 = vmul.f32 1.0, %v2494
    %v2496 = vadd.f32 %v2411, %v265
    %v2497 = vadd.f32 %v2485, %v281
    %2499 = vrot.lane.b32.xlu0 %v2497, 64
    %v2500 = vpop.permute.xlu0 %2499
    %v2502 = vmul.f32 %v2495, %v2500
    %2504 = vrot.lane.b32.xlu0 %v2502, 64
    %v2505 = vpop.permute.xlu0 %2504
    %v2507 = vadd.f32 %v2496, %v2505
    %v2508 = vtanh.pop %v2507
    %v2509 = vsub.f32 1.0, %v2495
    %2511 = vrot.lane.b32.xlu0 %v2508, 96
    %v2512 = vpop.permute.xlu0 %2511
    %v2514 = vmul.f32 %v2509, %v2512
    %v2515 = vmul.f32 %v2495, %v2315
    %v2516 = vadd.f32 %v2514, %v2515
    %v2519 = vunpack.c.l.s4 1966171168
    %v2520 = vunpack.c.0.s8 %v2519
    %v2521 = vlaneseq
    %v2522 = vshrl.u32 %v2521, 7
    %v2523 = vsub.s32 %v2520, %v2522
    %v2524 = vrot.slane %v2516, %v2523
    %v2525 = vcombine.high %v2524, %v2524
    %v2527 = vunpack.c.l.s4 1966171168
    %v2528 = vunpack.c.0.s8 %v2527
    %v2529 = vlaneseq
    %v2530 = vshrl.u32 %v2529, 7
    %v2531 = vsub.s32 %v2528, %v2530
    %v2532 = vrot.slane %v2524, %v2531
    %v2534 = vunpack.c.l.s4 1966171168
    %v2535 = vunpack.c.0.s8 %v2534
    %v2536 = vlaneseq
    %v2537 = vshrl.u32 %v2536, 7
    %v2538 = vsub.s32 %v2535, %v2537
    %v2539 = vrot.slane %v2525, %v2538
    %v2540 = vrot.slane %v105, 4
    %v2541 = vrot.slane %v107, 3
    %v2542 = vsel %vm111, %v2541, %v2540
    %v2543 = vsel %vm113, %v2542, 0
    %2545 = vmatprep.subr.mxu0 0.0
    %2546 = vmatpush1.msra.mxu0 %v97
    %2547 = vmatprep.subr.mxu0 0.0
    %2548 = vmatpush1.msra.mxu0 0.0
    %2549 = vmatprep.subr.mxu0 0.0
    %2550 = vmatpush1.msra.mxu0 0.0
    %2551 = vmatprep.subr.mxu0 0.0
    %2552 = vmatpush1.msra.mxu0 0.0
    %2553 = vmatprep.subr.mxu0 0.0
    %2554 = vmatpush1.msra.mxu0 0.0
    %2555 = vmatprep.subr.mxu0 0.0
    %2556 = vmatpush1.msra.mxu0 0.0
    %2557 = vmatprep.subr.mxu0 0.0
    %2558 = vmatpush1.msra.mxu0 0.0
    %2559 = vmatprep.subr.mxu0 0.0
    %2560 = vmatpush1.msra.mxu0 0.0
    %2561 = vmatprep.subr.mxu0 0.0
    %2562 = vmatpush1.msra.mxu0 0.0
    %2563 = vmatprep.subr.mxu0 0.0
    %2564 = vmatpush1.msra.mxu0 0.0
    %2565 = vmatprep.subr.mxu0 0.0
    %2566 = vmatpush1.msra.mxu0 0.0
    %2567 = vmatprep.subr.mxu0 0.0
    %2568 = vmatpush1.msra.mxu0 0.0
    %2569 = vmatprep.subr.mxu0 0.0
    %2570 = vmatpush1.msra.mxu0 0.0
    %2571 = vmatprep.subr.mxu0 0.0
    %2572 = vmatpush1.msra.mxu0 0.0
    %2573 = vmatprep.subr.mxu0 0.0
    %2574 = vmatpush1.msra.mxu0 0.0
    %2575 = vmatprep.subr.mxu0 0.0
    %2576 = vmatpush1.msra.mxu0 0.0
    %2577 = vmatprep.subr.mxu0 0.0
    %2578 = vmatpush1.msra.mxu0 0.0
    %2579 = vmatprep.subr.mxu0 0.0
    %2580 = vmatpush1.msra.mxu0 0.0
    %2581 = vmatprep.subr.mxu0 0.0
    %2582 = vmatpush1.msra.mxu0 0.0
    %2583 = vmatprep.subr.mxu0 0.0
    %2584 = vmatpush1.msra.mxu0 0.0
    %2585 = vmatprep.subr.mxu0 0.0
    %2586 = vmatpush1.msra.mxu0 0.0
    %2587 = vmatprep.subr.mxu0 0.0
    %2588 = vmatpush1.msra.mxu0 0.0
    %2589 = vmatprep.subr.mxu0 0.0
    %2590 = vmatpush1.msra.mxu0 0.0
    %2591 = vmatprep.subr.mxu0 0.0
    %2592 = vmatpush1.msra.mxu0 0.0
    %2593 = vmatprep.subr.mxu0 0.0
    %2594 = vmatpush1.msra.mxu0 0.0
    %2595 = vmatprep.subr.mxu0 0.0
    %2596 = vmatpush1.msra.mxu0 0.0
    %2597 = vmatprep.subr.mxu0 0.0
    %2598 = vmatpush1.msra.mxu0 0.0
    %2599 = vmatprep.subr.mxu0 0.0
    %2600 = vmatpush1.msra.mxu0 0.0
    %2601 = vmatprep.subr.mxu0 0.0
    %2602 = vmatpush1.msra.mxu0 0.0
    %2603 = vmatprep.subr.mxu0 0.0
    %2604 = vmatpush1.msra.mxu0 0.0
    %2605 = vmatprep.subr.mxu0 0.0
    %2606 = vmatpush1.msra.mxu0 0.0
    %2607 = vmatprep.subr.mxu0 0.0
    %2608 = vmatpush1.msra.mxu0 0.0
    %2609 = vmatprep.mubr.f32.mxu0 0.0
    %2610 = vmatmul.mubr.f32.gmra.mrb[0].mxu0 %v2543
    %v2611 = vpop.f32.mrb[0].mxu0
    %v2612 = vadd.f32 0.0, %v2611
    %v2613 = vpop.f32.mrb[0].mxu0
    %2614 = vdwg.mxu0
    %2615 = vrot.lane.b32.xlu0 %v2516, 96
    %v2616 = vpop.permute.xlu0 %2615
    %v2617 = vsel %vm186, %v2616, 0
    %2619 = vmatprep.subr.mxu0 0.0
    %2620 = vmatpush1.msra.mxu0 %v98
    %2621 = vmatprep.subr.mxu0 0.0
    %2622 = vmatpush1.msra.mxu0 %v99
    %2623 = vmatprep.subr.mxu0 0.0
    %2624 = vmatpush1.msra.mxu0 %v100
    %2625 = vmatprep.subr.mxu0 0.0
    %2626 = vmatpush1.msra.mxu0 %v101
    %2627 = vmatprep.subr.mxu0 0.0
    %2628 = vmatpush1.msra.mxu0 0.0
    %2629 = vmatprep.subr.mxu0 0.0
    %2630 = vmatpush1.msra.mxu0 0.0
    %2631 = vmatprep.subr.mxu0 0.0
    %2632 = vmatpush1.msra.mxu0 0.0
    %2633 = vmatprep.subr.mxu0 0.0
    %2634 = vmatpush1.msra.mxu0 0.0
    %2635 = vmatprep.subr.mxu0 0.0
    %2636 = vmatpush1.msra.mxu0 0.0
    %2637 = vmatprep.subr.mxu0 0.0
    %2638 = vmatpush1.msra.mxu0 0.0
    %2639 = vmatprep.subr.mxu0 0.0
    %2640 = vmatpush1.msra.mxu0 0.0
    %2641 = vmatprep.subr.mxu0 0.0
    %2642 = vmatpush1.msra.mxu0 0.0
    %2643 = vmatprep.subr.mxu0 0.0
    %2644 = vmatpush1.msra.mxu0 0.0
    %2645 = vmatprep.subr.mxu0 0.0
    %2646 = vmatpush1.msra.mxu0 0.0
    %2647 = vmatprep.subr.mxu0 0.0
    %2648 = vmatpush1.msra.mxu0 0.0
    %2649 = vmatprep.subr.mxu0 0.0
    %2650 = vmatpush1.msra.mxu0 0.0
    %2651 = vmatprep.subr.mxu0 0.0
    %2652 = vmatpush1.msra.mxu0 0.0
    %2653 = vmatprep.subr.mxu0 0.0
    %2654 = vmatpush1.msra.mxu0 0.0
    %2655 = vmatprep.subr.mxu0 0.0
    %2656 = vmatpush1.msra.mxu0 0.0
    %2657 = vmatprep.subr.mxu0 0.0
    %2658 = vmatpush1.msra.mxu0 0.0
    %2659 = vmatprep.subr.mxu0 0.0
    %2660 = vmatpush1.msra.mxu0 0.0
    %2661 = vmatprep.subr.mxu0 0.0
    %2662 = vmatpush1.msra.mxu0 0.0
    %2663 = vmatprep.subr.mxu0 0.0
    %2664 = vmatpush1.msra.mxu0 0.0
    %2665 = vmatprep.subr.mxu0 0.0
    %2666 = vmatpush1.msra.mxu0 0.0
    %2667 = vmatprep.subr.mxu0 0.0
    %2668 = vmatpush1.msra.mxu0 0.0
    %2669 = vmatprep.subr.mxu0 0.0
    %2670 = vmatpush1.msra.mxu0 0.0
    %2671 = vmatprep.subr.mxu0 0.0
    %2672 = vmatpush1.msra.mxu0 0.0
    %2673 = vmatprep.subr.mxu0 0.0
    %2674 = vmatpush1.msra.mxu0 0.0
    %2675 = vmatprep.subr.mxu0 0.0
    %2676 = vmatpush1.msra.mxu0 0.0
    %2677 = vmatprep.subr.mxu0 0.0
    %2678 = vmatpush1.msra.mxu0 0.0
    %2679 = vmatprep.subr.mxu0 0.0
    %2680 = vmatpush1.msra.mxu0 0.0
    %2681 = vmatprep.subr.mxu0 0.0
    %2682 = vmatpush1.msra.mxu0 0.0
    %2683 = vmatprep.mubr.f32.mxu0 0.0
    %2684 = vmatmul.mubr.f32.gmra.mrb[0].mxu0 %v2617
    %v2685 = vpop.f32.mrb[0].mxu0
    %v2686 = vadd.f32 0.0, %v2685
    %v2687 = vpop.f32.mrb[0].mxu0
    %2688 = vdwg.mxu0
    %v2689 = vadd.f32 %v2612, %v2686
    %v2690 = vadd.f32 %v2689, %v265
    %v2691 = vxor.u32 %v2690, 2147483648
    %v2692 = vmul.f32 %v2691, 1.442695
    %v2693 = vpow.pop %v2692
    %v2694 = vadd.f32 %v2693, 1.0
    %v2695 = vrcp.pop %v2694
    %v2696 = vmul.f32 1.0, %v2695
    %v2697 = vadd.f32 %v2612, %v265
    %v2698 = vadd.f32 %v2686, %v281
    %2700 = vrot.lane.b32.xlu0 %v2698, 64
    %v2701 = vpop.permute.xlu0 %2700
    %v2703 = vmul.f32 %v2696, %v2701
    %2705 = vrot.lane.b32.xlu0 %v2703, 64
    %v2706 = vpop.permute.xlu0 %2705
    %v2708 = vadd.f32 %v2697, %v2706
    %v2709 = vtanh.pop %v2708
    %v2710 = vsub.f32 1.0, %v2696
    %2712 = vrot.lane.b32.xlu0 %v2709, 96
    %v2713 = vpop.permute.xlu0 %2712
    %v2715 = vmul.f32 %v2710, %v2713
    %v2716 = vmul.f32 %v2696, %v2516
    %v2717 = vadd.f32 %v2715, %v2716
    %v2720 = vunpack.c.l.s4 1966171168
    %v2721 = vunpack.c.0.s8 %v2720
    %v2722 = vlaneseq
    %v2723 = vshrl.u32 %v2722, 7
    %v2724 = vsub.s32 %v2721, %v2723
    %v2725 = vrot.slane %v2717, %v2724
    %v2726 = vcombine.high %v2725, %v2725
    %v2728 = vunpack.c.l.s4 1966171168
    %v2729 = vunpack.c.0.s8 %v2728
    %v2730 = vlaneseq
    %v2731 = vshrl.u32 %v2730, 7
    %v2732 = vsub.s32 %v2729, %v2731
    %v2733 = vrot.slane %v2725, %v2732
    %v2735 = vunpack.c.l.s4 1966171168
    %v2736 = vunpack.c.0.s8 %v2735
    %v2737 = vlaneseq
    %v2738 = vshrl.u32 %v2737, 7
    %v2739 = vsub.s32 %v2736, %v2738
    %v2740 = vrot.slane %v2726, %v2739
    %v2741 = vrot.slane %v105, 5
    %v2742 = vrot.slane %v107, 4
    %v2743 = vsel %vm111, %v2742, %v2741
    %v2744 = vsel %vm113, %v2743, 0
    %2746 = vmatprep.subr.mxu0 0.0
    %2747 = vmatpush1.msra.mxu0 %v97
    %2748 = vmatprep.subr.mxu0 0.0
    %2749 = vmatpush1.msra.mxu0 0.0
    %2750 = vmatprep.subr.mxu0 0.0
    %2751 = vmatpush1.msra.mxu0 0.0
    %2752 = vmatprep.subr.mxu0 0.0
    %2753 = vmatpush1.msra.mxu0 0.0
    %2754 = vmatprep.subr.mxu0 0.0
    %2755 = vmatpush1.msra.mxu0 0.0
    %2756 = vmatprep.subr.mxu0 0.0
    %2757 = vmatpush1.msra.mxu0 0.0
    %2758 = vmatprep.subr.mxu0 0.0
    %2759 = vmatpush1.msra.mxu0 0.0
    %2760 = vmatprep.subr.mxu0 0.0
    %2761 = vmatpush1.msra.mxu0 0.0
    %2762 = vmatprep.subr.mxu0 0.0
    %2763 = vmatpush1.msra.mxu0 0.0
    %2764 = vmatprep.subr.mxu0 0.0
    %2765 = vmatpush1.msra.mxu0 0.0
    %2766 = vmatprep.subr.mxu0 0.0
    %2767 = vmatpush1.msra.mxu0 0.0
    %2768 = vmatprep.subr.mxu0 0.0
    %2769 = vmatpush1.msra.mxu0 0.0
    %2770 = vmatprep.subr.mxu0 0.0
    %2771 = vmatpush1.msra.mxu0 0.0
    %2772 = vmatprep.subr.mxu0 0.0
    %2773 = vmatpush1.msra.mxu0 0.0
    %2774 = vmatprep.subr.mxu0 0.0
    %2775 = vmatpush1.msra.mxu0 0.0
    %2776 = vmatprep.subr.mxu0 0.0
    %2777 = vmatpush1.msra.mxu0 0.0
    %2778 = vmatprep.subr.mxu0 0.0
    %2779 = vmatpush1.msra.mxu0 0.0
    %2780 = vmatprep.subr.mxu0 0.0
    %2781 = vmatpush1.msra.mxu0 0.0
    %2782 = vmatprep.subr.mxu0 0.0
    %2783 = vmatpush1.msra.mxu0 0.0
    %2784 = vmatprep.subr.mxu0 0.0
    %2785 = vmatpush1.msra.mxu0 0.0
    %2786 = vmatprep.subr.mxu0 0.0
    %2787 = vmatpush1.msra.mxu0 0.0
    %2788 = vmatprep.subr.mxu0 0.0
    %2789 = vmatpush1.msra.mxu0 0.0
    %2790 = vmatprep.subr.mxu0 0.0
    %2791 = vmatpush1.msra.mxu0 0.0
    %2792 = vmatprep.subr.mxu0 0.0
    %2793 = vmatpush1.msra.mxu0 0.0
    %2794 = vmatprep.subr.mxu0 0.0
    %2795 = vmatpush1.msra.mxu0 0.0
    %2796 = vmatprep.subr.mxu0 0.0
    %2797 = vmatpush1.msra.mxu0 0.0
    %2798 = vmatprep.subr.mxu0 0.0
    %2799 = vmatpush1.msra.mxu0 0.0
    %2800 = vmatprep.subr.mxu0 0.0
    %2801 = vmatpush1.msra.mxu0 0.0
    %2802 = vmatprep.subr.mxu0 0.0
    %2803 = vmatpush1.msra.mxu0 0.0
    %2804 = vmatprep.subr.mxu0 0.0
    %2805 = vmatpush1.msra.mxu0 0.0
    %2806 = vmatprep.subr.mxu0 0.0
    %2807 = vmatpush1.msra.mxu0 0.0
    %2808 = vmatprep.subr.mxu0 0.0
    %2809 = vmatpush1.msra.mxu0 0.0
    %2810 = vmatprep.mubr.f32.mxu0 0.0
    %2811 = vmatmul.mubr.f32.gmra.mrb[0].mxu0 %v2744
    %v2812 = vpop.f32.mrb[0].mxu0
    %v2813 = vadd.f32 0.0, %v2812
    %v2814 = vpop.f32.mrb[0].mxu0
    %2815 = vdwg.mxu0
    %2816 = vrot.lane.b32.xlu0 %v2717, 96
    %v2817 = vpop.permute.xlu0 %2816
    %v2818 = vsel %vm186, %v2817, 0
    %2820 = vmatprep.subr.mxu0 0.0
    %2821 = vmatpush1.msra.mxu0 %v98
    %2822 = vmatprep.subr.mxu0 0.0
    %2823 = vmatpush1.msra.mxu0 %v99
    %2824 = vmatprep.subr.mxu0 0.0
    %2825 = vmatpush1.msra.mxu0 %v100
    %2826 = vmatprep.subr.mxu0 0.0
    %2827 = vmatpush1.msra.mxu0 %v101
    %2828 = vmatprep.subr.mxu0 0.0
    %2829 = vmatpush1.msra.mxu0 0.0
    %2830 = vmatprep.subr.mxu0 0.0
    %2831 = vmatpush1.msra.mxu0 0.0
    %2832 = vmatprep.subr.mxu0 0.0
    %2833 = vmatpush1.msra.mxu0 0.0
    %2834 = vmatprep.subr.mxu0 0.0
    %2835 = vmatpush1.msra.mxu0 0.0
    %2836 = vmatprep.subr.mxu0 0.0
    %2837 = vmatpush1.msra.mxu0 0.0
    %2838 = vmatprep.subr.mxu0 0.0
    %2839 = vmatpush1.msra.mxu0 0.0
    %2840 = vmatprep.subr.mxu0 0.0
    %2841 = vmatpush1.msra.mxu0 0.0
    %2842 = vmatprep.subr.mxu0 0.0
    %2843 = vmatpush1.msra.mxu0 0.0
    %2844 = vmatprep.subr.mxu0 0.0
    %2845 = vmatpush1.msra.mxu0 0.0
    %2846 = vmatprep.subr.mxu0 0.0
    %2847 = vmatpush1.msra.mxu0 0.0
    %2848 = vmatprep.subr.mxu0 0.0
    %2849 = vmatpush1.msra.mxu0 0.0
    %2850 = vmatprep.subr.mxu0 0.0
    %2851 = vmatpush1.msra.mxu0 0.0
    %2852 = vmatprep.subr.mxu0 0.0
    %2853 = vmatpush1.msra.mxu0 0.0
    %2854 = vmatprep.subr.mxu0 0.0
    %2855 = vmatpush1.msra.mxu0 0.0
    %2856 = vmatprep.subr.mxu0 0.0
    %2857 = vmatpush1.msra.mxu0 0.0
    %2858 = vmatprep.subr.mxu0 0.0
    %2859 = vmatpush1.msra.mxu0 0.0
    %2860 = vmatprep.subr.mxu0 0.0
    %2861 = vmatpush1.msra.mxu0 0.0
    %2862 = vmatprep.subr.mxu0 0.0
    %2863 = vmatpush1.msra.mxu0 0.0
    %2864 = vmatprep.subr.mxu0 0.0
    %2865 = vmatpush1.msra.mxu0 0.0
    %2866 = vmatprep.subr.mxu0 0.0
    %2867 = vmatpush1.msra.mxu0 0.0
    %2868 = vmatprep.subr.mxu0 0.0
    %2869 = vmatpush1.msra.mxu0 0.0
    %2870 = vmatprep.subr.mxu0 0.0
    %2871 = vmatpush1.msra.mxu0 0.0
    %2872 = vmatprep.subr.mxu0 0.0
    %2873 = vmatpush1.msra.mxu0 0.0
    %2874 = vmatprep.subr.mxu0 0.0
    %2875 = vmatpush1.msra.mxu0 0.0
    %2876 = vmatprep.subr.mxu0 0.0
    %2877 = vmatpush1.msra.mxu0 0.0
    %2878 = vmatprep.subr.mxu0 0.0
    %2879 = vmatpush1.msra.mxu0 0.0
    %2880 = vmatprep.subr.mxu0 0.0
    %2881 = vmatpush1.msra.mxu0 0.0
    %2882 = vmatprep.subr.mxu0 0.0
    %2883 = vmatpush1.msra.mxu0 0.0
    %2884 = vmatprep.mubr.f32.mxu0 0.0
    %2885 = vmatmul.mubr.f32.gmra.mrb[0].mxu0 %v2818
    %v2886 = vpop.f32.mrb[0].mxu0
    %v2887 = vadd.f32 0.0, %v2886
    %v2888 = vpop.f32.mrb[0].mxu0
    %2889 = vdwg.mxu0
    %v2890 = vadd.f32 %v2813, %v2887
    %v2891 = vadd.f32 %v2890, %v265
    %v2892 = vxor.u32 %v2891, 2147483648
    %v2893 = vmul.f32 %v2892, 1.442695
    %v2894 = vpow.pop %v2893
    %v2895 = vadd.f32 %v2894, 1.0
    %v2896 = vrcp.pop %v2895
    %v2897 = vmul.f32 1.0, %v2896
    %v2898 = vadd.f32 %v2813, %v265
    %v2899 = vadd.f32 %v2887, %v281
    %2901 = vrot.lane.b32.xlu0 %v2899, 64
    %v2902 = vpop.permute.xlu0 %2901
    %v2904 = vmul.f32 %v2897, %v2902
    %2906 = vrot.lane.b32.xlu0 %v2904, 64
    %v2907 = vpop.permute.xlu0 %2906
    %v2909 = vadd.f32 %v2898, %v2907
    %v2910 = vtanh.pop %v2909
    %v2911 = vsub.f32 1.0, %v2897
    %2913 = vrot.lane.b32.xlu0 %v2910, 96
    %v2914 = vpop.permute.xlu0 %2913
    %v2916 = vmul.f32 %v2911, %v2914
    %v2917 = vmul.f32 %v2897, %v2717
    %v2918 = vadd.f32 %v2916, %v2917
    %v2921 = vunpack.c.l.s4 1966171168
    %v2922 = vunpack.c.0.s8 %v2921
    %v2923 = vlaneseq
    %v2924 = vshrl.u32 %v2923, 7
    %v2925 = vsub.s32 %v2922, %v2924
    %v2926 = vrot.slane %v2918, %v2925
    %v2927 = vcombine.high %v2926, %v2926
    %v2929 = vunpack.c.l.s4 1966171168
    %v2930 = vunpack.c.0.s8 %v2929
    %v2931 = vlaneseq
    %v2932 = vshrl.u32 %v2931, 7
    %v2933 = vsub.s32 %v2930, %v2932
    %v2934 = vrot.slane %v2926, %v2933
    %v2936 = vunpack.c.l.s4 1966171168
    %v2937 = vunpack.c.0.s8 %v2936
    %v2938 = vlaneseq
    %v2939 = vshrl.u32 %v2938, 7
    %v2940 = vsub.s32 %v2937, %v2939
    %v2941 = vrot.slane %v2927, %v2940
    %v2942 = vrot.slane %v105, 6
    %v2943 = vrot.slane %v107, 5
    %v2944 = vsel %vm111, %v2943, %v2942
    %v2945 = vsel %vm113, %v2944, 0
    %2947 = vmatprep.subr.mxu0 0.0
    %2948 = vmatpush1.msra.mxu0 %v97
    %2949 = vmatprep.subr.mxu0 0.0
    %2950 = vmatpush1.msra.mxu0 0.0
    %2951 = vmatprep.subr.mxu0 0.0
    %2952 = vmatpush1.msra.mxu0 0.0
    %2953 = vmatprep.subr.mxu0 0.0
    %2954 = vmatpush1.msra.mxu0 0.0
    %2955 = vmatprep.subr.mxu0 0.0
    %2956 = vmatpush1.msra.mxu0 0.0
    %2957 = vmatprep.subr.mxu0 0.0
    %2958 = vmatpush1.msra.mxu0 0.0
    %2959 = vmatprep.subr.mxu0 0.0
    %2960 = vmatpush1.msra.mxu0 0.0
    %2961 = vmatprep.subr.mxu0 0.0
    %2962 = vmatpush1.msra.mxu0 0.0
    %2963 = vmatprep.subr.mxu0 0.0
    %2964 = vmatpush1.msra.mxu0 0.0
    %2965 = vmatprep.subr.mxu0 0.0
    %2966 = vmatpush1.msra.mxu0 0.0
    %2967 = vmatprep.subr.mxu0 0.0
    %2968 = vmatpush1.msra.mxu0 0.0
    %2969 = vmatprep.subr.mxu0 0.0
    %2970 = vmatpush1.msra.mxu0 0.0
    %2971 = vmatprep.subr.mxu0 0.0
    %2972 = vmatpush1.msra.mxu0 0.0
    %2973 = vmatprep.subr.mxu0 0.0
    %2974 = vmatpush1.msra.mxu0 0.0
    %2975 = vmatprep.subr.mxu0 0.0
    %2976 = vmatpush1.msra.mxu0 0.0
    %2977 = vmatprep.subr.mxu0 0.0
    %2978 = vmatpush1.msra.mxu0 0.0
    %2979 = vmatprep.subr.mxu0 0.0
    %2980 = vmatpush1.msra.mxu0 0.0
    %2981 = vmatprep.subr.mxu0 0.0
    %2982 = vmatpush1.msra.mxu0 0.0
    %2983 = vmatprep.subr.mxu0 0.0
    %2984 = vmatpush1.msra.mxu0 0.0
    %2985 = vmatprep.subr.mxu0 0.0
    %2986 = vmatpush1.msra.mxu0 0.0
    %2987 = vmatprep.subr.mxu0 0.0
    %2988 = vmatpush1.msra.mxu0 0.0
    %2989 = vmatprep.subr.mxu0 0.0
    %2990 = vmatpush1.msra.mxu0 0.0
    %2991 = vmatprep.subr.mxu0 0.0
    %2992 = vmatpush1.msra.mxu0 0.0
    %2993 = vmatprep.subr.mxu0 0.0
    %2994 = vmatpush1.msra.mxu0 0.0
    %2995 = vmatprep.subr.mxu0 0.0
    %2996 = vmatpush1.msra.mxu0 0.0
    %2997 = vmatprep.subr.mxu0 0.0
    %2998 = vmatpush1.msra.mxu0 0.0
    %2999 = vmatprep.subr.mxu0 0.0
    %3000 = vmatpush1.msra.mxu0 0.0
    %3001 = vmatprep.subr.mxu0 0.0
    %3002 = vmatpush1.msra.mxu0 0.0
    %3003 = vmatprep.subr.mxu0 0.0
    %3004 = vmatpush1.msra.mxu0 0.0
    %3005 = vmatprep.subr.mxu0 0.0
    %3006 = vmatpush1.msra.mxu0 0.0
    %3007 = vmatprep.subr.mxu0 0.0
    %3008 = vmatpush1.msra.mxu0 0.0
    %3009 = vmatprep.subr.mxu0 0.0
    %3010 = vmatpush1.msra.mxu0 0.0
    %3011 = vmatprep.mubr.f32.mxu0 0.0
    %3012 = vmatmul.mubr.f32.gmra.mrb[0].mxu0 %v2945
    %v3013 = vpop.f32.mrb[0].mxu0
    %v3014 = vadd.f32 0.0, %v3013
    %v3015 = vpop.f32.mrb[0].mxu0
    %3016 = vdwg.mxu0
    %3017 = vrot.lane.b32.xlu0 %v2918, 96
    %v3018 = vpop.permute.xlu0 %3017
    %v3019 = vsel %vm186, %v3018, 0
    %3021 = vmatprep.subr.mxu0 0.0
    %3022 = vmatpush1.msra.mxu0 %v98
    %3023 = vmatprep.subr.mxu0 0.0
    %3024 = vmatpush1.msra.mxu0 %v99
    %3025 = vmatprep.subr.mxu0 0.0
    %3026 = vmatpush1.msra.mxu0 %v100
    %3027 = vmatprep.subr.mxu0 0.0
    %3028 = vmatpush1.msra.mxu0 %v101
    %3029 = vmatprep.subr.mxu0 0.0
    %3030 = vmatpush1.msra.mxu0 0.0
    %3031 = vmatprep.subr.mxu0 0.0
    %3032 = vmatpush1.msra.mxu0 0.0
    %3033 = vmatprep.subr.mxu0 0.0
    %3034 = vmatpush1.msra.mxu0 0.0
    %3035 = vmatprep.subr.mxu0 0.0
    %3036 = vmatpush1.msra.mxu0 0.0
    %3037 = vmatprep.subr.mxu0 0.0
    %3038 = vmatpush1.msra.mxu0 0.0
    %3039 = vmatprep.subr.mxu0 0.0
    %3040 = vmatpush1.msra.mxu0 0.0
    %3041 = vmatprep.subr.mxu0 0.0
    %3042 = vmatpush1.msra.mxu0 0.0
    %3043 = vmatprep.subr.mxu0 0.0
    %3044 = vmatpush1.msra.mxu0 0.0
    %3045 = vmatprep.subr.mxu0 0.0
    %3046 = vmatpush1.msra.mxu0 0.0
    %3047 = vmatprep.subr.mxu0 0.0
    %3048 = vmatpush1.msra.mxu0 0.0
    %3049 = vmatprep.subr.mxu0 0.0
    %3050 = vmatpush1.msra.mxu0 0.0
    %3051 = vmatprep.subr.mxu0 0.0
    %3052 = vmatpush1.msra.mxu0 0.0
    %3053 = vmatprep.subr.mxu0 0.0
    %3054 = vmatpush1.msra.mxu0 0.0
    %3055 = vmatprep.subr.mxu0 0.0
    %3056 = vmatpush1.msra.mxu0 0.0
    %3057 = vmatprep.subr.mxu0 0.0
    %3058 = vmatpush1.msra.mxu0 0.0
    %3059 = vmatprep.subr.mxu0 0.0
    %3060 = vmatpush1.msra.mxu0 0.0
    %3061 = vmatprep.subr.mxu0 0.0
    %3062 = vmatpush1.msra.mxu0 0.0
    %3063 = vmatprep.subr.mxu0 0.0
    %3064 = vmatpush1.msra.mxu0 0.0
    %3065 = vmatprep.subr.mxu0 0.0
    %3066 = vmatpush1.msra.mxu0 0.0
    %3067 = vmatprep.subr.mxu0 0.0
    %3068 = vmatpush1.msra.mxu0 0.0
    %3069 = vmatprep.subr.mxu0 0.0
    %3070 = vmatpush1.msra.mxu0 0.0
    %3071 = vmatprep.subr.mxu0 0.0
    %3072 = vmatpush1.msra.mxu0 0.0
    %3073 = vmatprep.subr.mxu0 0.0
    %3074 = vmatpush1.msra.mxu0 0.0
    %3075 = vmatprep.subr.mxu0 0.0
    %3076 = vmatpush1.msra.mxu0 0.0
    %3077 = vmatprep.subr.mxu0 0.0
    %3078 = vmatpush1.msra.mxu0 0.0
    %3079 = vmatprep.subr.mxu0 0.0
    %3080 = vmatpush1.msra.mxu0 0.0
    %3081 = vmatprep.subr.mxu0 0.0
    %3082 = vmatpush1.msra.mxu0 0.0
    %3083 = vmatprep.subr.mxu0 0.0
    %3084 = vmatpush1.msra.mxu0 0.0
    %3085 = vmatprep.mubr.f32.mxu0 0.0
    %3086 = vmatmul.mubr.f32.gmra.mrb[0].mxu0 %v3019
    %v3087 = vpop.f32.mrb[0].mxu0
    %v3088 = vadd.f32 0.0, %v3087
    %v3089 = vpop.f32.mrb[0].mxu0
    %3090 = vdwg.mxu0
    %v3091 = vadd.f32 %v3014, %v3088
    %v3092 = vadd.f32 %v3091, %v265
    %v3093 = vxor.u32 %v3092, 2147483648
    %v3094 = vmul.f32 %v3093, 1.442695
    %v3095 = vpow.pop %v3094
    %v3096 = vadd.f32 %v3095, 1.0
    %v3097 = vrcp.pop %v3096
    %v3098 = vmul.f32 1.0, %v3097
    %v3099 = vadd.f32 %v3014, %v265
    %v3100 = vadd.f32 %v3088, %v281
    %3102 = vrot.lane.b32.xlu0 %v3100, 64
    %v3103 = vpop.permute.xlu0 %3102
    %v3105 = vmul.f32 %v3098, %v3103
    %3107 = vrot.lane.b32.xlu0 %v3105, 64
    %v3108 = vpop.permute.xlu0 %3107
    %v3110 = vadd.f32 %v3099, %v3108
    %v3111 = vtanh.pop %v3110
    %v3112 = vsub.f32 1.0, %v3098
    %3114 = vrot.lane.b32.xlu0 %v3111, 96
    %v3115 = vpop.permute.xlu0 %3114
    %v3117 = vmul.f32 %v3112, %v3115
    %v3118 = vmul.f32 %v3098, %v2918
    %v3119 = vadd.f32 %v3117, %v3118
    %v3122 = vunpack.c.l.s4 1966171168
    %v3123 = vunpack.c.0.s8 %v3122
    %v3124 = vlaneseq
    %v3125 = vshrl.u32 %v3124, 7
    %v3126 = vsub.s32 %v3123, %v3125
    %v3127 = vrot.slane %v3119, %v3126
    %v3128 = vcombine.high %v3127, %v3127
    %v3130 = vunpack.c.l.s4 1966171168
    %v3131 = vunpack.c.0.s8 %v3130
    %v3132 = vlaneseq
    %v3133 = vshrl.u32 %v3132, 7
    %v3134 = vsub.s32 %v3131, %v3133
    %v3135 = vrot.slane %v3127, %v3134
    %v3137 = vunpack.c.l.s4 1966171168
    %v3138 = vunpack.c.0.s8 %v3137
    %v3139 = vlaneseq
    %v3140 = vshrl.u32 %v3139, 7
    %v3141 = vsub.s32 %v3138, %v3140
    %v3142 = vrot.slane %v3128, %v3141
    %v3143 = vrot.slane %v105, 7
    %v3144 = vrot.slane %v107, 6
    %v3145 = vsel %vm111, %v3144, %v3143
    %v3146 = vsel %vm113, %v3145, 0
    %3148 = vmatprep.subr.mxu0 0.0
    %3149 = vmatpush1.msra.mxu0 %v97
    %3150 = vmatprep.subr.mxu0 0.0
    %3151 = vmatpush1.msra.mxu0 0.0
    %3152 = vmatprep.subr.mxu0 0.0
    %3153 = vmatpush1.msra.mxu0 0.0
    %3154 = vmatprep.subr.mxu0 0.0
    %3155 = vmatpush1.msra.mxu0 0.0
    %3156 = vmatprep.subr.mxu0 0.0
    %3157 = vmatpush1.msra.mxu0 0.0
    %3158 = vmatprep.subr.mxu0 0.0
    %3159 = vmatpush1.msra.mxu0 0.0
    %3160 = vmatprep.subr.mxu0 0.0
    %3161 = vmatpush1.msra.mxu0 0.0
    %3162 = vmatprep.subr.mxu0 0.0
    %3163 = vmatpush1.msra.mxu0 0.0
    %3164 = vmatprep.subr.mxu0 0.0
    %3165 = vmatpush1.msra.mxu0 0.0
    %3166 = vmatprep.subr.mxu0 0.0
    %3167 = vmatpush1.msra.mxu0 0.0
    %3168 = vmatprep.subr.mxu0 0.0
    %3169 = vmatpush1.msra.mxu0 0.0
    %3170 = vmatprep.subr.mxu0 0.0
    %3171 = vmatpush1.msra.mxu0 0.0
    %3172 = vmatprep.subr.mxu0 0.0
    %3173 = vmatpush1.msra.mxu0 0.0
    %3174 = vmatprep.subr.mxu0 0.0
    %3175 = vmatpush1.msra.mxu0 0.0
    %3176 = vmatprep.subr.mxu0 0.0
    %3177 = vmatpush1.msra.mxu0 0.0
    %3178 = vmatprep.subr.mxu0 0.0
    %3179 = vmatpush1.msra.mxu0 0.0
    %3180 = vmatprep.subr.mxu0 0.0
    %3181 = vmatpush1.msra.mxu0 0.0
    %3182 = vmatprep.subr.mxu0 0.0
    %3183 = vmatpush1.msra.mxu0 0.0
    %3184 = vmatprep.subr.mxu0 0.0
    %3185 = vmatpush1.msra.mxu0 0.0
    %3186 = vmatprep.subr.mxu0 0.0
    %3187 = vmatpush1.msra.mxu0 0.0
    %3188 = vmatprep.subr.mxu0 0.0
    %3189 = vmatpush1.msra.mxu0 0.0
    %3190 = vmatprep.subr.mxu0 0.0
    %3191 = vmatpush1.msra.mxu0 0.0
    %3192 = vmatprep.subr.mxu0 0.0
    %3193 = vmatpush1.msra.mxu0 0.0
    %3194 = vmatprep.subr.mxu0 0.0
    %3195 = vmatpush1.msra.mxu0 0.0
    %3196 = vmatprep.subr.mxu0 0.0
    %3197 = vmatpush1.msra.mxu0 0.0
    %3198 = vmatprep.subr.mxu0 0.0
    %3199 = vmatpush1.msra.mxu0 0.0
    %3200 = vmatprep.subr.mxu0 0.0
    %3201 = vmatpush1.msra.mxu0 0.0
    %3202 = vmatprep.subr.mxu0 0.0
    %3203 = vmatpush1.msra.mxu0 0.0
    %3204 = vmatprep.subr.mxu0 0.0
    %3205 = vmatpush1.msra.mxu0 0.0
    %3206 = vmatprep.subr.mxu0 0.0
    %3207 = vmatpush1.msra.mxu0 0.0
    %3208 = vmatprep.subr.mxu0 0.0
    %3209 = vmatpush1.msra.mxu0 0.0
    %3210 = vmatprep.subr.mxu0 0.0
    %3211 = vmatpush1.msra.mxu0 0.0
    %3212 = vmatprep.mubr.f32.mxu0 0.0
    %3213 = vmatmul.mubr.f32.gmra.mrb[0].mxu0 %v3146
    %v3214 = vpop.f32.mrb[0].mxu0
    %v3215 = vadd.f32 0.0, %v3214
    %v3216 = vpop.f32.mrb[0].mxu0
    %3217 = vdwg.mxu0
    %3218 = vrot.lane.b32.xlu0 %v3119, 96
    %v3219 = vpop.permute.xlu0 %3218
    %v3220 = vsel %vm186, %v3219, 0
    %3222 = vmatprep.subr.mxu0 0.0
    %3223 = vmatpush1.msra.mxu0 %v98
    %3224 = vmatprep.subr.mxu0 0.0
    %3225 = vmatpush1.msra.mxu0 %v99
    %3226 = vmatprep.subr.mxu0 0.0
    %3227 = vmatpush1.msra.mxu0 %v100
    %3228 = vmatprep.subr.mxu0 0.0
    %3229 = vmatpush1.msra.mxu0 %v101
    %3230 = vmatprep.subr.mxu0 0.0
    %3231 = vmatpush1.msra.mxu0 0.0
    %3232 = vmatprep.subr.mxu0 0.0
    %3233 = vmatpush1.msra.mxu0 0.0
    %3234 = vmatprep.subr.mxu0 0.0
    %3235 = vmatpush1.msra.mxu0 0.0
    %3236 = vmatprep.subr.mxu0 0.0
    %3237 = vmatpush1.msra.mxu0 0.0
    %3238 = vmatprep.subr.mxu0 0.0
    %3239 = vmatpush1.msra.mxu0 0.0
    %3240 = vmatprep.subr.mxu0 0.0
    %3241 = vmatpush1.msra.mxu0 0.0
    %3242 = vmatprep.subr.mxu0 0.0
    %3243 = vmatpush1.msra.mxu0 0.0
    %3244 = vmatprep.subr.mxu0 0.0
    %3245 = vmatpush1.msra.mxu0 0.0
    %3246 = vmatprep.subr.mxu0 0.0
    %3247 = vmatpush1.msra.mxu0 0.0
    %3248 = vmatprep.subr.mxu0 0.0
    %3249 = vmatpush1.msra.mxu0 0.0
    %3250 = vmatprep.subr.mxu0 0.0
    %3251 = vmatpush1.msra.mxu0 0.0
    %3252 = vmatprep.subr.mxu0 0.0
    %3253 = vmatpush1.msra.mxu0 0.0
    %3254 = vmatprep.subr.mxu0 0.0
    %3255 = vmatpush1.msra.mxu0 0.0
    %3256 = vmatprep.subr.mxu0 0.0
    %3257 = vmatpush1.msra.mxu0 0.0
    %3258 = vmatprep.subr.mxu0 0.0
    %3259 = vmatpush1.msra.mxu0 0.0
    %3260 = vmatprep.subr.mxu0 0.0
    %3261 = vmatpush1.msra.mxu0 0.0
    %3262 = vmatprep.subr.mxu0 0.0
    %3263 = vmatpush1.msra.mxu0 0.0
    %3264 = vmatprep.subr.mxu0 0.0
    %3265 = vmatpush1.msra.mxu0 0.0
    %3266 = vmatprep.subr.mxu0 0.0
    %3267 = vmatpush1.msra.mxu0 0.0
    %3268 = vmatprep.subr.mxu0 0.0
    %3269 = vmatpush1.msra.mxu0 0.0
    %3270 = vmatprep.subr.mxu0 0.0
    %3271 = vmatpush1.msra.mxu0 0.0
    %3272 = vmatprep.subr.mxu0 0.0
    %3273 = vmatpush1.msra.mxu0 0.0
    %3274 = vmatprep.subr.mxu0 0.0
    %3275 = vmatpush1.msra.mxu0 0.0
    %3276 = vmatprep.subr.mxu0 0.0
    %3277 = vmatpush1.msra.mxu0 0.0
    %3278 = vmatprep.subr.mxu0 0.0
    %3279 = vmatpush1.msra.mxu0 0.0
    %3280 = vmatprep.subr.mxu0 0.0
    %3281 = vmatpush1.msra.mxu0 0.0
    %3282 = vmatprep.subr.mxu0 0.0
    %3283 = vmatpush1.msra.mxu0 0.0
    %3284 = vmatprep.subr.mxu0 0.0
    %3285 = vmatpush1.msra.mxu0 0.0
    %3286 = vmatprep.mubr.f32.mxu0 0.0
    %3287 = vmatmul.mubr.f32.gmra.mrb[0].mxu0 %v3220
    %v3288 = vpop.f32.mrb[0].mxu0
    %v3289 = vadd.f32 0.0, %v3288
    %v3290 = vpop.f32.mrb[0].mxu0
    %3291 = vdwg.mxu0
    %v3292 = vadd.f32 %v3215, %v3289
    %v3293 = vadd.f32 %v3292, %v265
    %v3294 = vxor.u32 %v3293, 2147483648
    %v3295 = vmul.f32 %v3294, 1.442695
    %v3296 = vpow.pop %v3295
    %v3297 = vadd.f32 %v3296, 1.0
    %v3298 = vrcp.pop %v3297
    %v3299 = vmul.f32 1.0, %v3298
    %v3300 = vadd.f32 %v3215, %v265
    %v3301 = vadd.f32 %v3289, %v281
    %3303 = vrot.lane.b32.xlu0 %v3301, 64
    %v3304 = vpop.permute.xlu0 %3303
    %v3306 = vmul.f32 %v3299, %v3304
    %3308 = vrot.lane.b32.xlu0 %v3306, 64
    %v3309 = vpop.permute.xlu0 %3308
    %v3311 = vadd.f32 %v3300, %v3309
    %v3312 = vtanh.pop %v3311
    %v3313 = vsub.f32 1.0, %v3299
    %3315 = vrot.lane.b32.xlu0 %v3312, 96
    %v3316 = vpop.permute.xlu0 %3315
    %v3318 = vmul.f32 %v3313, %v3316
    %v3319 = vmul.f32 %v3299, %v3119
    %v3320 = vadd.f32 %v3318, %v3319
    %v3323 = vunpack.c.l.s4 1966171168
    %v3324 = vunpack.c.0.s8 %v3323
    %v3325 = vlaneseq
    %v3326 = vshrl.u32 %v3325, 7
    %v3327 = vsub.s32 %v3324, %v3326
    %v3328 = vrot.slane %v3320, %v3327
    %v3329 = vcombine.high %v3328, %v3328
    %v3331 = vunpack.c.l.s4 1966171168
    %v3332 = vunpack.c.0.s8 %v3331
    %v3333 = vlaneseq
    %v3334 = vshrl.u32 %v3333, 7
    %v3335 = vsub.s32 %v3332, %v3334
    %v3336 = vrot.slane %v3328, %v3335
    %v3338 = vunpack.c.l.s4 1966171168
    %v3339 = vunpack.c.0.s8 %v3338
    %v3340 = vlaneseq
    %v3341 = vshrl.u32 %v3340, 7
    %v3342 = vsub.s32 %v3339, %v3341
    %v3343 = vrot.slane %v3329, %v3342
    %v3344 = vlaneseq
    %v3345 = vshrl.u32 %v3344, 7
    %v3346 = vsub.s32 0, %v3345
    %v3347 = vrot.slane %v520, %v3346
    %v3348 = vlaneseq
    %v3349 = vshrl.u32 %v3348, 7
    %v3350 = vsub.s32 0, %v3349
    %v3351 = vrot.slane %v527, %v3350
    %v3354 = vlaneseq
    %v3355 = vshrl.u32 %v3354, 7
    %v3356 = vsub.s32 0, %v3355
    %v3357 = vrot.slane %v721, %v3356
    %v3358 = vlaneseq
    %v3359 = vshrl.u32 %v3358, 7
    %v3360 = vsub.s32 0, %v3359
    %v3361 = vrot.slane %v728, %v3360
    %v3364 = vlaneseq
    %v3365 = vshrl.u32 %v3364, 7
    %v3366 = vsub.s32 0, %v3365
    %v3367 = vrot.slane %v922, %v3366
    %v3368 = vlaneseq
    %v3369 = vshrl.u32 %v3368, 7
    %v3370 = vsub.s32 0, %v3369
    %v3371 = vrot.slane %v929, %v3370
    %v3374 = vlaneseq
    %v3375 = vshrl.u32 %v3374, 7
    %v3376 = vsub.s32 0, %v3375
    %v3377 = vrot.slane %v1123, %v3376
    %v3378 = vlaneseq
    %v3379 = vshrl.u32 %v3378, 7
    %v3380 = vsub.s32 0, %v3379
    %v3381 = vrot.slane %v1130, %v3380
    %v3384 = vlaneseq
    %v3385 = vshrl.u32 %v3384, 7
    %v3386 = vsub.s32 0, %v3385
    %v3387 = vrot.slane %v1324, %v3386
    %v3388 = vlaneseq
    %v3389 = vshrl.u32 %v3388, 7
    %v3390 = vsub.s32 0, %v3389
    %v3391 = vrot.slane %v1331, %v3390
    %v3394 = vlaneseq
    %v3395 = vshrl.u32 %v3394, 7
    %v3396 = vsub.s32 0, %v3395
    %v3397 = vrot.slane %v1525, %v3396
    %v3398 = vlaneseq
    %v3399 = vshrl.u32 %v3398, 7
    %v3400 = vsub.s32 0, %v3399
    %v3401 = vrot.slane %v1532, %v3400
    %v3404 = vlaneseq
    %v3405 = vshrl.u32 %v3404, 7
    %v3406 = vsub.s32 0, %v3405
    %v3407 = vrot.slane %v1726, %v3406
    %v3408 = vlaneseq
    %v3409 = vshrl.u32 %v3408, 7
    %v3410 = vsub.s32 0, %v3409
    %v3411 = vrot.slane %v1733, %v3410
    %v3414 = vlaneseq
    %v3415 = vshrl.u32 %v3414, 7
    %v3416 = vsub.s32 0, %v3415
    %v3417 = vrot.slane %v2130, %v3416
    %v3418 = vlaneseq
    %v3419 = vshrl.u32 %v3418, 7
    %v3420 = vsub.s32 0, %v3419
    %v3421 = vrot.slane %v2137, %v3420
    %v3424 = vlaneseq
    %v3425 = vshrl.u32 %v3424, 7
    %v3426 = vsub.s32 0, %v3425
    %v3427 = vrot.slane %v2331, %v3426
    %v3428 = vlaneseq
    %v3429 = vshrl.u32 %v3428, 7
    %v3430 = vsub.s32 0, %v3429
    %v3431 = vrot.slane %v2338, %v3430
    %v3434 = vlaneseq
    %v3435 = vshrl.u32 %v3434, 7
    %v3436 = vsub.s32 0, %v3435
    %v3437 = vrot.slane %v2532, %v3436
    %v3438 = vlaneseq
    %v3439 = vshrl.u32 %v3438, 7
    %v3440 = vsub.s32 0, %v3439
    %v3441 = vrot.slane %v2539, %v3440
    %v3444 = vlaneseq
    %v3445 = vshrl.u32 %v3444, 7
    %v3446 = vsub.s32 0, %v3445
    %v3447 = vrot.slane %v2733, %v3446
    %v3448 = vlaneseq
    %v3449 = vshrl.u32 %v3448, 7
    %v3450 = vsub.s32 0, %v3449
    %v3451 = vrot.slane %v2740, %v3450
    %v3454 = vlaneseq
    %v3455 = vshrl.u32 %v3454, 7
    %v3456 = vsub.s32 0, %v3455
    %v3457 = vrot.slane %v2934, %v3456
    %v3458 = vlaneseq
    %v3459 = vshrl.u32 %v3458, 7
    %v3460 = vsub.s32 0, %v3459
    %v3461 = vrot.slane %v2941, %v3460
    %v3464 = vlaneseq
    %v3465 = vshrl.u32 %v3464, 7
    %v3466 = vsub.s32 0, %v3465
    %v3467 = vrot.slane %v3135, %v3466
    %v3468 = vlaneseq
    %v3469 = vshrl.u32 %v3468, 7
    %v3470 = vsub.s32 0, %v3469
    %v3471 = vrot.slane %v3142, %v3470
    %v3474 = vlaneseq
    %v3475 = vshrl.u32 %v3474, 7
    %v3476 = vsub.s32 0, %v3475
    %v3477 = vrot.slane %v3336, %v3476
    %v3478 = vlaneseq
    %v3479 = vshrl.u32 %v3478, 7
    %v3480 = vsub.s32 0, %v3479
    %v3481 = vrot.slane %v3343, %v3480
    %vm3484 = vcmask 1040384
    %v3485 = vsel %vm3484, %v318, %v3347
    %v3486 = vsel %vm3484, %v325, %v3351
    %vm3487 = vcmask 1041408
    %v3488 = vsel %vm3487, %v3485, %v3357
    %v3489 = vsel %vm3487, %v3486, %v3361
    %vm3490 = vcmask 1042432
    %v3491 = vsel %vm3490, %v3488, %v3367
    %v3492 = vsel %vm3490, %v3489, %v3371
    %vm3493 = vcmask 1043456
    %v3494 = vsel %vm3493, %v3491, %v3377
    %v3495 = vsel %vm3493, %v3492, %v3381
    %vm3496 = vcmask 1044480
    %v3497 = vsel %vm3496, %v3494, %v3387
    %v3498 = vsel %vm3496, %v3495, %v3391
    %vm3499 = vcmask 1045504
    %v3500 = vsel %vm3499, %v3497, %v3397
    %v3501 = vsel %vm3499, %v3498, %v3401
    %vm3502 = vcmask 1046528
    %v3503 = vsel %vm3502, %v3500, %v3407
    %v3504 = vsel %vm3502, %v3501, %v3411
    %v3505 = vsel %vm3484, %v1928, %v3417
    %v3506 = vsel %vm3484, %v1935, %v3421
    %v3507 = vsel %vm3487, %v3505, %v3427
    %v3508 = vsel %vm3487, %v3506, %v3431
    %v3509 = vsel %vm3490, %v3507, %v3437
    %v3510 = vsel %vm3490, %v3508, %v3441
    %v3511 = vsel %vm3493, %v3509, %v3447
    %v3512 = vsel %vm3493, %v3510, %v3451
    %v3513 = vsel %vm3496, %v3511, %v3457
    %v3514 = vsel %vm3496, %v3512, %v3461
    %v3515 = vsel %vm3499, %v3513, %v3467
    %v3516 = vsel %vm3499, %v3514, %v3471
    %v3517 = vsel %vm3502, %v3515, %v3477
    %v3518 = vsel %vm3502, %v3516, %v3481
    %v3519 = vld [vmem:[%s7] sm:$0xff]
    %v3520 = vld [vmem:[%s7 + $0x8] sm:$0xff]
    %v3521 = vld [vmem:[%s7 + $0x10] sm:$0xff]
    %v3522 = vld [vmem:[%s7 + $0x18] sm:$0xff]
    %v3523 = vld [vmem:[%s7 + $0x20] sm:$0xff]
    %v3524 = vld [vmem:[%s8] sm:$0xff]
    %v3525 = vld [vmem:[%s8 + $0x8] sm:$0xff]
    %v3526 = vld [vmem:[%s8 + $0x10] sm:$0xff]
    %v3527 = vld [vmem:[%s8 + $0x18] sm:$0xff]
    %v3528 = vld [vmem:[%s9] sm:$0x1]
    %v3529 = vld [vmem:[%s10] sm:$0x1]
    %v3530 = vld [vmem:[%s11] sm:$0xff]
    %v3531 = vld [vmem:[%s11 + $0x8] sm:$0xff]
    %v3532 = vld [vmem:[%s11 + $0x10] sm:$0xff]
    %v3533 = vld [vmem:[%s11 + $0x18] sm:$0xff]
    %v3534 = vld [vmem:[%s12] sm:$0x1]
    %v3535 = vld [vmem:[%s13] sm:$0xff]
    %v3536 = vld [vmem:[%s13 + $0x8] sm:$0xff]
    %v3537 = vld [vmem:[%s13 + $0x10] sm:$0xff]
    %v3538 = vld [vmem:[%s13 + $0x18] sm:$0xff]
    %v3539 = vld [vmem:[#allocation2] sm:$0x1]
    %v3540 = vld [vmem:[#allocation7] sm:$0xff]
    %v3541 = vld [vmem:[#allocation7 + $0x8] sm:$0xff]
    %v3542 = vld [vmem:[#allocation7 + $0x10] sm:$0xff]
    %v3543 = vld [vmem:[#allocation7 + $0x18] sm:$0xff]
    %v3544 = vld [vmem:[%s16] sm:$0x1]
    %v3545 = vld [vmem:[%s2] sm:$0x3f]
    %v3546 = vld [vmem:[%s2 + $0x8] sm:$0x3f]
    %v3547 = vlaneseq
    %v3548 = vand.u32 %v3547, 127
    %v3549 = vsub.s32 %v3548, 2
    %vm3550 = vcmask 326656
    %v3551 = vsel %vm3550, 0.0, 0
    %3553 = vmatprep.subr.mxu0 0.0
    %3554 = vmatpush1.msra.mxu0 %v3519
    %3555 = vmatprep.subr.mxu0 0.0
    %3556 = vmatpush1.msra.mxu0 %v3520
    %3557 = vmatprep.subr.mxu0 0.0
    %3558 = vmatpush1.msra.mxu0 %v3521
    %3559 = vmatprep.subr.mxu0 0.0
    %3560 = vmatpush1.msra.mxu0 %v3522
    %3561 = vmatprep.subr.mxu0 0.0
    %3562 = vmatpush1.msra.mxu0 %v3523
    %3563 = vmatprep.subr.mxu0 0.0
    %3564 = vmatpush1.msra.mxu0 0.0
    %3565 = vmatprep.subr.mxu0 0.0
    %3566 = vmatpush1.msra.mxu0 0.0
    %3567 = vmatprep.subr.mxu0 0.0
    %3568 = vmatpush1.msra.mxu0 0.0
    %3569 = vmatprep.subr.mxu0 0.0
    %3570 = vmatpush1.msra.mxu0 0.0
    %3571 = vmatprep.subr.mxu0 0.0
    %3572 = vmatpush1.msra.mxu0 0.0
    %3573 = vmatprep.subr.mxu0 0.0
    %3574 = vmatpush1.msra.mxu0 0.0
    %3575 = vmatprep.subr.mxu0 0.0
    %3576 = vmatpush1.msra.mxu0 0.0
    %3577 = vmatprep.subr.mxu0 0.0
    %3578 = vmatpush1.msra.mxu0 0.0
    %3579 = vmatprep.subr.mxu0 0.0
    %3580 = vmatpush1.msra.mxu0 0.0
    %3581 = vmatprep.subr.mxu0 0.0
    %3582 = vmatpush1.msra.mxu0 0.0
    %3583 = vmatprep.subr.mxu0 0.0
    %3584 = vmatpush1.msra.mxu0 0.0
    %3585 = vmatprep.subr.mxu0 0.0
    %3586 = vmatpush1.msra.mxu0 0.0
    %3587 = vmatprep.subr.mxu0 0.0
    %3588 = vmatpush1.msra.mxu0 0.0
    %3589 = vmatprep.subr.mxu0 0.0
    %3590 = vmatpush1.msra.mxu0 0.0
    %3591 = vmatprep.subr.mxu0 0.0
    %3592 = vmatpush1.msra.mxu0 0.0
    %3593 = vmatprep.subr.mxu0 0.0
    %3594 = vmatpush1.msra.mxu0 0.0
    %3595 = vmatprep.subr.mxu0 0.0
    %3596 = vmatpush1.msra.mxu0 0.0
    %3597 = vmatprep.subr.mxu0 0.0
    %3598 = vmatpush1.msra.mxu0 0.0
    %3599 = vmatprep.subr.mxu0 0.0
    %3600 = vmatpush1.msra.mxu0 0.0
    %3601 = vmatprep.subr.mxu0 0.0
    %3602 = vmatpush1.msra.mxu0 0.0
    %3603 = vmatprep.subr.mxu0 0.0
    %3604 = vmatpush1.msra.mxu0 0.0
    %3605 = vmatprep.subr.mxu0 0.0
    %3606 = vmatpush1.msra.mxu0 0.0
    %3607 = vmatprep.subr.mxu0 0.0
    %3608 = vmatpush1.msra.mxu0 0.0
    %3609 = vmatprep.subr.mxu0 0.0
    %3610 = vmatpush1.msra.mxu0 0.0
    %3611 = vmatprep.subr.mxu0 0.0
    %3612 = vmatpush1.msra.mxu0 0.0
    %3613 = vmatprep.subr.mxu0 0.0
    %3614 = vmatpush1.msra.mxu0 0.0
    %3615 = vmatprep.subr.mxu0 0.0
    %3616 = vmatpush1.msra.mxu0 0.0
    %3617 = vmatprep.mubr.f32.mxu0 0.0
    %3618 = vmatmul.mubr.f32.gmra.mrb[0].mxu0 %v3551
    %v3619 = vpop.f32.mrb[0].mxu0
    %v3620 = vadd.f32 0.0, %v3619
    %v3621 = vpop.f32.mrb[0].mxu0
    %3622 = vdwg.mxu0
    %3623 = vrot.lane.b32.xlu0 %v3320, 96
    %v3624 = vpop.permute.xlu0 %3623
    %v3625 = vsel %vm186, %v3624, 0
    %3627 = vmatprep.subr.mxu0 0.0
    %3628 = vmatpush1.msra.mxu0 %v3524
    %3629 = vmatprep.subr.mxu0 0.0
    %3630 = vmatpush1.msra.mxu0 %v3525
    %3631 = vmatprep.subr.mxu0 0.0
    %3632 = vmatpush1.msra.mxu0 %v3526
    %3633 = vmatprep.subr.mxu0 0.0
    %3634 = vmatpush1.msra.mxu0 %v3527
    %3635 = vmatprep.subr.mxu0 0.0
    %3636 = vmatpush1.msra.mxu0 0.0
    %3637 = vmatprep.subr.mxu0 0.0
    %3638 = vmatpush1.msra.mxu0 0.0
    %3639 = vmatprep.subr.mxu0 0.0
    %3640 = vmatpush1.msra.mxu0 0.0
    %3641 = vmatprep.subr.mxu0 0.0
    %3642 = vmatpush1.msra.mxu0 0.0
    %3643 = vmatprep.subr.mxu0 0.0
    %3644 = vmatpush1.msra.mxu0 0.0
    %3645 = vmatprep.subr.mxu0 0.0
    %3646 = vmatpush1.msra.mxu0 0.0
    %3647 = vmatprep.subr.mxu0 0.0
    %3648 = vmatpush1.msra.mxu0 0.0
    %3649 = vmatprep.subr.mxu0 0.0
    %3650 = vmatpush1.msra.mxu0 0.0
    %3651 = vmatprep.subr.mxu0 0.0
    %3652 = vmatpush1.msra.mxu0 0.0
    %3653 = vmatprep.subr.mxu0 0.0
    %3654 = vmatpush1.msra.mxu0 0.0
    %3655 = vmatprep.subr.mxu0 0.0
    %3656 = vmatpush1.msra.mxu0 0.0
    %3657 = vmatprep.subr.mxu0 0.0
    %3658 = vmatpush1.msra.mxu0 0.0
    %3659 = vmatprep.subr.mxu0 0.0
    %3660 = vmatpush1.msra.mxu0 0.0
    %3661 = vmatprep.subr.mxu0 0.0
    %3662 = vmatpush1.msra.mxu0 0.0
    %3663 = vmatprep.subr.mxu0 0.0
    %3664 = vmatpush1.msra.mxu0 0.0
    %3665 = vmatprep.subr.mxu0 0.0
    %3666 = vmatpush1.msra.mxu0 0.0
    %3667 = vmatprep.subr.mxu0 0.0
    %3668 = vmatpush1.msra.mxu0 0.0
    %3669 = vmatprep.subr.mxu0 0.0
    %3670 = vmatpush1.msra.mxu0 0.0
    %3671 = vmatprep.subr.mxu0 0.0
    %3672 = vmatpush1.msra.mxu0 0.0
    %3673 = vmatprep.subr.mxu0 0.0
    %3674 = vmatpush1.msra.mxu0 0.0
    %3675 = vmatprep.subr.mxu0 0.0
    %3676 = vmatpush1.msra.mxu0 0.0
    %3677 = vmatprep.subr.mxu0 0.0
    %3678 = vmatpush1.msra.mxu0 0.0
    %3679 = vmatprep.subr.mxu0 0.0
    %3680 = vmatpush1.msra.mxu0 0.0
    %3681 = vmatprep.subr.mxu0 0.0
    %3682 = vmatpush1.msra.mxu0 0.0
    %3683 = vmatprep.subr.mxu0 0.0
    %3684 = vmatpush1.msra.mxu0 0.0
    %3685 = vmatprep.subr.mxu0 0.0
    %3686 = vmatpush1.msra.mxu0 0.0
    %3687 = vmatprep.subr.mxu0 0.0
    %3688 = vmatpush1.msra.mxu0 0.0
    %3689 = vmatprep.subr.mxu0 0.0
    %3690 = vmatpush1.msra.mxu0 0.0
    %3691 = vmatprep.mubr.f32.mxu0 0.0
    %3692 = vmatmul.mubr.f32.gmra.mrb[0].mxu0 %v3625
    %v3693 = vpop.f32.mrb[0].mxu0
    %v3694 = vadd.f32 0.0, %v3693
    %v3695 = vpop.f32.mrb[0].mxu0
    %3696 = vdwg.mxu0
    %v3697 = vadd.f32 %v3620, %v3694
    %v3699 = vlaneseq
    %v3700 = vshrl.u32 %v3699, 7
    %v3701 = vsub.s32 0, %v3700
    %v3702 = vrot.slane %v3528, %v3701
    %v3704 = vadd.f32 %v3697, %v3702
    %v3705 = vxor.u32 %v3704, 2147483648
    %v3706 = vmul.f32 %v3705, 1.442695
    %v3707 = vpow.pop %v3706
    %v3708 = vadd.f32 %v3707, 1.0
    %v3709 = vrcp.pop %v3708
    %v3710 = vmul.f32 1.0, %v3709
    %v3711 = vadd.f32 %v3620, %v3702
    %v3713 = vlaneseq
    %v3714 = vshrl.u32 %v3713, 7
    %v3715 = vsub.s32 0, %v3714
    %v3716 = vrot.slane %v3529, %v3715
    %3717 = vrot.lane.b32.xlu0 %v3716, 64
    %v3718 = vpop.permute.xlu0 %3717
    %v3720 = vadd.f32 %v3694, %v3718
    %3722 = vrot.lane.b32.xlu0 %v3720, 64
    %v3723 = vpop.permute.xlu0 %3722
    %v3725 = vmul.f32 %v3710, %v3723
    %3727 = vrot.lane.b32.xlu0 %v3725, 64
    %v3728 = vpop.permute.xlu0 %3727
    %v3730 = vadd.f32 %v3711, %v3728
    %v3731 = vtanh.pop %v3730
    %v3732 = vsub.f32 1.0, %v3710
    %3734 = vrot.lane.b32.xlu0 %v3731, 96
    %v3735 = vpop.permute.xlu0 %3734
    %v3737 = vmul.f32 %v3732, %v3735
    %v3738 = vmul.f32 %v3710, %v3320
    %v3739 = vadd.f32 %v3737, %v3738
    %v3741 = vlaneseq
    %v3742 = vshrl.u32 %v3741, 7
    %v3743 = vsub.s32 0, %v3742
    %v3744 = vrot.slane %v3534, %v3743
    %3747 = vrot.lane.b32.xlu0 %v3739, 96
    %v3748 = vpop.permute.xlu0 %3747
    %v3749 = vsel %vm186, %v3748, 0
    %3751 = vmatprep.subr.mxu0 0.0
    %3752 = vmatpush1.msra.mxu0 %v3530
    %3753 = vmatprep.subr.mxu0 0.0
    %3754 = vmatpush1.msra.mxu0 %v3531
    %3755 = vmatprep.subr.mxu0 0.0
    %3756 = vmatpush1.msra.mxu0 %v3532
    %3757 = vmatprep.subr.mxu0 0.0
    %3758 = vmatpush1.msra.mxu0 %v3533
    %3759 = vmatprep.subr.mxu0 0.0
    %3760 = vmatpush1.msra.mxu0 0.0
    %3761 = vmatprep.subr.mxu0 0.0
    %3762 = vmatpush1.msra.mxu0 0.0
    %3763 = vmatprep.subr.mxu0 0.0
    %3764 = vmatpush1.msra.mxu0 0.0
    %3765 = vmatprep.subr.mxu0 0.0
    %3766 = vmatpush1.msra.mxu0 0.0
    %3767 = vmatprep.subr.mxu0 0.0
    %3768 = vmatpush1.msra.mxu0 0.0
    %3769 = vmatprep.subr.mxu0 0.0
    %3770 = vmatpush1.msra.mxu0 0.0
    %3771 = vmatprep.subr.mxu0 0.0
    %3772 = vmatpush1.msra.mxu0 0.0
    %3773 = vmatprep.subr.mxu0 0.0
    %3774 = vmatpush1.msra.mxu0 0.0
    %3775 = vmatprep.subr.mxu0 0.0
    %3776 = vmatpush1.msra.mxu0 0.0
    %3777 = vmatprep.subr.mxu0 0.0
    %3778 = vmatpush1.msra.mxu0 0.0
    %3779 = vmatprep.subr.mxu0 0.0
    %3780 = vmatpush1.msra.mxu0 0.0
    %3781 = vmatprep.subr.mxu0 0.0
    %3782 = vmatpush1.msra.mxu0 0.0
    %3783 = vmatprep.subr.mxu0 0.0
    %3784 = vmatpush1.msra.mxu0 0.0
    %3785 = vmatprep.subr.mxu0 0.0
    %3786 = vmatpush1.msra.mxu0 0.0
    %3787 = vmatprep.subr.mxu0 0.0
    %3788 = vmatpush1.msra.mxu0 0.0
    %3789 = vmatprep.subr.mxu0 0.0
    %3790 = vmatpush1.msra.mxu0 0.0
    %3791 = vmatprep.subr.mxu0 0.0
    %3792 = vmatpush1.msra.mxu0 0.0
    %3793 = vmatprep.subr.mxu0 0.0
    %3794 = vmatpush1.msra.mxu0 0.0
    %3795 = vmatprep.subr.mxu0 0.0
    %3796 = vmatpush1.msra.mxu0 0.0
    %3797 = vmatprep.subr.mxu0 0.0
    %3798 = vmatpush1.msra.mxu0 0.0
    %3799 = vmatprep.subr.mxu0 0.0
    %3800 = vmatpush1.msra.mxu0 0.0
    %3801 = vmatprep.subr.mxu0 0.0
    %3802 = vmatpush1.msra.mxu0 0.0
    %3803 = vmatprep.subr.mxu0 0.0
    %3804 = vmatpush1.msra.mxu0 0.0
    %3805 = vmatprep.subr.mxu0 0.0
    %3806 = vmatpush1.msra.mxu0 0.0
    %3807 = vmatprep.subr.mxu0 0.0
    %3808 = vmatpush1.msra.mxu0 0.0
    %3809 = vmatprep.subr.mxu0 0.0
    %3810 = vmatpush1.msra.mxu0 0.0
    %3811 = vmatprep.subr.mxu0 0.0
    %3812 = vmatpush1.msra.mxu0 0.0
    %3813 = vmatprep.subr.mxu0 0.0
    %3814 = vmatpush1.msra.mxu0 0.0
    %3815 = vmatprep.mubr.f32.mxu0 0.0
    %3816 = vmatmul.mubr.f32.gmra.mrb[0].mxu0 %v3749
    %v3817 = vpop.f32.mrb[0].mxu0
    %v3818 = vadd.f32 %v3744, %v3817
    %v3819 = vpop.f32.mrb[0].mxu0
    %3820 = vdwg.mxu0
    %v3821 = vtanh.pop %v3818
    %v3823 = vlaneseq
    %v3824 = vshrl.u32 %v3823, 7
    %v3825 = vsub.s32 0, %v3824
    %v3826 = vrot.slane %v3539, %v3825
    %v3829 = vsel %vm186, %v3821, 0
    %3831 = vmatprep.subr.mxu0 0.0
    %3832 = vmatpush1.msra.mxu0 %v3535
    %3833 = vmatprep.subr.mxu0 0.0
    %3834 = vmatpush1.msra.mxu0 %v3536
    %3835 = vmatprep.subr.mxu0 0.0
    %3836 = vmatpush1.msra.mxu0 %v3537
    %3837 = vmatprep.subr.mxu0 0.0
    %3838 = vmatpush1.msra.mxu0 %v3538
    %3839 = vmatprep.subr.mxu0 0.0
    %3840 = vmatpush1.msra.mxu0 0.0
    %3841 = vmatprep.subr.mxu0 0.0
    %3842 = vmatpush1.msra.mxu0 0.0
    %3843 = vmatprep.subr.mxu0 0.0
    %3844 = vmatpush1.msra.mxu0 0.0
    %3845 = vmatprep.subr.mxu0 0.0
    %3846 = vmatpush1.msra.mxu0 0.0
    %3847 = vmatprep.subr.mxu0 0.0
    %3848 = vmatpush1.msra.mxu0 0.0
    %3849 = vmatprep.subr.mxu0 0.0
    %3850 = vmatpush1.msra.mxu0 0.0
    %3851 = vmatprep.subr.mxu0 0.0
    %3852 = vmatpush1.msra.mxu0 0.0
    %3853 = vmatprep.subr.mxu0 0.0
    %3854 = vmatpush1.msra.mxu0 0.0
    %3855 = vmatprep.subr.mxu0 0.0
    %3856 = vmatpush1.msra.mxu0 0.0
    %3857 = vmatprep.subr.mxu0 0.0
    %3858 = vmatpush1.msra.mxu0 0.0
    %3859 = vmatprep.subr.mxu0 0.0
    %3860 = vmatpush1.msra.mxu0 0.0
    %3861 = vmatprep.subr.mxu0 0.0
    %3862 = vmatpush1.msra.mxu0 0.0
    %3863 = vmatprep.subr.mxu0 0.0
    %3864 = vmatpush1.msra.mxu0 0.0
    %3865 = vmatprep.subr.mxu0 0.0
    %3866 = vmatpush1.msra.mxu0 0.0
    %3867 = vmatprep.subr.mxu0 0.0
    %3868 = vmatpush1.msra.mxu0 0.0
    %3869 = vmatprep.subr.mxu0 0.0
    %3870 = vmatpush1.msra.mxu0 0.0
    %3871 = vmatprep.subr.mxu0 0.0
    %3872 = vmatpush1.msra.mxu0 0.0
    %3873 = vmatprep.subr.mxu0 0.0
    %3874 = vmatpush1.msra.mxu0 0.0
    %3875 = vmatprep.subr.mxu0 0.0
    %3876 = vmatpush1.msra.mxu0 0.0
    %3877 = vmatprep.subr.mxu0 0.0
    %3878 = vmatpush1.msra.mxu0 0.0
    %3879 = vmatprep.subr.mxu0 0.0
    %3880 = vmatpush1.msra.mxu0 0.0
    %3881 = vmatprep.subr.mxu0 0.0
    %3882 = vmatpush1.msra.mxu0 0.0
    %3883 = vmatprep.subr.mxu0 0.0
    %3884 = vmatpush1.msra.mxu0 0.0
    %3885 = vmatprep.subr.mxu0 0.0
    %3886 = vmatpush1.msra.mxu0 0.0
    %3887 = vmatprep.subr.mxu0 0.0
    %3888 = vmatpush1.msra.mxu0 0.0
    %3889 = vmatprep.subr.mxu0 0.0
    %3890 = vmatpush1.msra.mxu0 0.0
    %3891 = vmatprep.subr.mxu0 0.0
    %3892 = vmatpush1.msra.mxu0 0.0
    %3893 = vmatprep.subr.mxu0 0.0
    %3894 = vmatpush1.msra.mxu0 0.0
    %3895 = vmatprep.mubr.f32.mxu0 0.0
    %3896 = vmatmul.mubr.f32.gmra.mrb[0].mxu0 %v3829
    %v3897 = vpop.f32.mrb[0].mxu0
    %v3898 = vadd.f32 %v3826, %v3897
    %v3899 = vpop.f32.mrb[0].mxu0
    %3900 = vdwg.mxu0
    %v3901 = vxor.u32 %v3898, 2147483648
    %v3902 = vmul.f32 %v3901, 1.442695
    %v3903 = vpow.pop %v3902
    %v3904 = vadd.f32 %v3903, 1.0
    %v3905 = vrcp.pop %v3904
    %v3906 = vmul.f32 1.0, %v3905
    %v3907 = vmul.f32 %v3906, 11.0
    %v3908 = vadd.f32 %v3907, 2.0
    %v3909 = vfloor.f32 %v3908
    %v3910 = vcvt.f32.s32.to.zero.pseudo %v3909
    %3911 = vset.pattern.permute.xlu0 0
    %3912 = vperm.xlu0 %3911, %v3910
    %v3913 = vpop.permute.xlu0 %3912
    %v3914 = vadd.s32 %v3913, %v3549
    %v3915 = vlaneseq
    %v3916 = vshrl.u32 %v3915, 7
    %v3917 = vsub.s32 0, %v3916
    %v3918 = vrot.slane %v3914, %v3917
    %3920 = vbcast.lane.b32.xlu0 %v3918, 256
    %v3921 = vpop.permute.xlu0 %3920
    %v3922 = vlaneseq
    %v3923 = vshrl.u32 %v3922, 7
    %v3924 = vsub.s32 1, %v3923
    %v3925 = vrot.slane %v3914, %v3924
    %3927 = vbcast.lane.b32.xlu0 %v3925, 256
    %v3928 = vpop.permute.xlu0 %3927
    %vm3929 = vcmp.eq.s32.totalorder %v3921, %v3548
    %vm3930 = vcmp.eq.s32.totalorder %v3928, %v3548
    %v3931 = vsel %vm3929, 1, 0
    %v3932 = vsel %vm3930, 1, 0
    %v3933 = vcvt.s32.f32 %v3931
    %v3934 = vcvt.s32.f32 %v3932
    %3937 = vrot.lane.b32.xlu0 %v3503, 96
    %v3938 = vpop.permute.xlu0 %3937
    %3939 = vrot.lane.b32.xlu0 %v3517, 96
    %v3940 = vpop.permute.xlu0 %3939
    %vm3943 = vcmask 130048
    %v3945 = vsel %vm3943, %v3933, 0
    %3947 = vmatprep.subr.mxu0 0.0
    %3948 = vmatpush1.msra.mxu0 %v3938
    %3949 = vmatprep.subr.mxu0 0.0
    %3950 = vmatpush1.msra.mxu0 %v3940
    %3951 = vmatprep.subr.mxu0 0.0
    %3952 = vmatpush1.msra.mxu0 0.0
    %3953 = vmatprep.subr.mxu0 0.0
    %3954 = vmatpush1.msra.mxu0 0.0
    %3955 = vmatprep.subr.mxu0 0.0
    %3956 = vmatpush1.msra.mxu0 0.0
    %3957 = vmatprep.subr.mxu0 0.0
    %3958 = vmatpush1.msra.mxu0 0.0
    %3959 = vmatprep.subr.mxu0 0.0
    %3960 = vmatpush1.msra.mxu0 0.0
    %3961 = vmatprep.subr.mxu0 0.0
    %3962 = vmatpush1.msra.mxu0 0.0
    %3963 = vmatprep.subr.mxu0 0.0
    %3964 = vmatpush1.msra.mxu0 0.0
    %3965 = vmatprep.subr.mxu0 0.0
    %3966 = vmatpush1.msra.mxu0 0.0
    %3967 = vmatprep.subr.mxu0 0.0
    %3968 = vmatpush1.msra.mxu0 0.0
    %3969 = vmatprep.subr.mxu0 0.0
    %3970 = vmatpush1.msra.mxu0 0.0
    %3971 = vmatprep.subr.mxu0 0.0
    %3972 = vmatpush1.msra.mxu0 0.0
    %3973 = vmatprep.subr.mxu0 0.0
    %3974 = vmatpush1.msra.mxu0 0.0
    %3975 = vmatprep.subr.mxu0 0.0
    %3976 = vmatpush1.msra.mxu0 0.0
    %3977 = vmatprep.subr.mxu0 0.0
    %3978 = vmatpush1.msra.mxu0 0.0
    %3979 = vmatprep.subr.mxu0 0.0
    %3980 = vmatpush1.msra.mxu0 0.0
    %3981 = vmatprep.subr.mxu0 0.0
    %3982 = vmatpush1.msra.mxu0 0.0
    %3983 = vmatprep.subr.mxu0 0.0
    %3984 = vmatpush1.msra.mxu0 0.0
    %3985 = vmatprep.subr.mxu0 0.0
    %3986 = vmatpush1.msra.mxu0 0.0
    %3987 = vmatprep.subr.mxu0 0.0
    %3988 = vmatpush1.msra.mxu0 0.0
    %3989 = vmatprep.subr.mxu0 0.0
    %3990 = vmatpush1.msra.mxu0 0.0
    %3991 = vmatprep.subr.mxu0 0.0
    %3992 = vmatpush1.msra.mxu0 0.0
    %3993 = vmatprep.subr.mxu0 0.0
    %3994 = vmatpush1.msra.mxu0 0.0
    %3995 = vmatprep.subr.mxu0 0.0
    %3996 = vmatpush1.msra.mxu0 0.0
    %3997 = vmatprep.subr.mxu0 0.0
    %3998 = vmatpush1.msra.mxu0 0.0
    %3999 = vmatprep.subr.mxu0 0.0
    %4000 = vmatpush1.msra.mxu0 0.0
    %4001 = vmatprep.subr.mxu0 0.0
    %4002 = vmatpush1.msra.mxu0 0.0
    %4003 = vmatprep.subr.mxu0 0.0
    %4004 = vmatpush1.msra.mxu0 0.0
    %4005 = vmatprep.subr.mxu0 0.0
    %4006 = vmatpush1.msra.mxu0 0.0
    %4007 = vmatprep.subr.mxu0 0.0
    %4008 = vmatpush1.msra.mxu0 0.0
    %4009 = vmatprep.subr.mxu0 0.0
    %4010 = vmatpush1.msra.mxu0 0.0
    %4011 = vmatprep.mubr.f32.mxu0 0.0
    %4012 = vmatmul.mubr.f32.gmra.mrb[0].mxu0 %v3945
    %v4013 = vpop.f32.mrb[0].mxu0
    %v4014 = vadd.f32 0.0, %v4013
    %v4015 = vpop.f32.mrb[0].mxu0
    %4016 = vdwg.mxu0
    %4019 = vrot.lane.b32.xlu0 %v3504, 96
    %v4020 = vpop.permute.xlu0 %4019
    %4021 = vrot.lane.b32.xlu0 %v3518, 96
    %v4022 = vpop.permute.xlu0 %4021
    %v4026 = vsel %vm3943, %v3934, 0
    %4028 = vmatprep.subr.mxu0 0.0
    %4029 = vmatpush1.msra.mxu0 %v4020
    %4030 = vmatprep.subr.mxu0 0.0
    %4031 = vmatpush1.msra.mxu0 %v4022
    %4032 = vmatprep.subr.mxu0 0.0
    %4033 = vmatpush1.msra.mxu0 0.0
    %4034 = vmatprep.subr.mxu0 0.0
    %4035 = vmatpush1.msra.mxu0 0.0
    %4036 = vmatprep.subr.mxu0 0.0
    %4037 = vmatpush1.msra.mxu0 0.0
    %4038 = vmatprep.subr.mxu0 0.0
    %4039 = vmatpush1.msra.mxu0 0.0
    %4040 = vmatprep.subr.mxu0 0.0
    %4041 = vmatpush1.msra.mxu0 0.0
    %4042 = vmatprep.subr.mxu0 0.0
    %4043 = vmatpush1.msra.mxu0 0.0
    %4044 = vmatprep.subr.mxu0 0.0
    %4045 = vmatpush1.msra.mxu0 0.0
    %4046 = vmatprep.subr.mxu0 0.0
    %4047 = vmatpush1.msra.mxu0 0.0
    %4048 = vmatprep.subr.mxu0 0.0
    %4049 = vmatpush1.msra.mxu0 0.0
    %4050 = vmatprep.subr.mxu0 0.0
    %4051 = vmatpush1.msra.mxu0 0.0
    %4052 = vmatprep.subr.mxu0 0.0
    %4053 = vmatpush1.msra.mxu0 0.0
    %4054 = vmatprep.subr.mxu0 0.0
    %4055 = vmatpush1.msra.mxu0 0.0
    %4056 = vmatprep.subr.mxu0 0.0
    %4057 = vmatpush1.msra.mxu0 0.0
    %4058 = vmatprep.subr.mxu0 0.0
    %4059 = vmatpush1.msra.mxu0 0.0
    %4060 = vmatprep.subr.mxu0 0.0
    %4061 = vmatpush1.msra.mxu0 0.0
    %4062 = vmatprep.subr.mxu0 0.0
    %4063 = vmatpush1.msra.mxu0 0.0
    %4064 = vmatprep.subr.mxu0 0.0
    %4065 = vmatpush1.msra.mxu0 0.0
    %4066 = vmatprep.subr.mxu0 0.0
    %4067 = vmatpush1.msra.mxu0 0.0
    %4068 = vmatprep.subr.mxu0 0.0
    %4069 = vmatpush1.msra.mxu0 0.0
    %4070 = vmatprep.subr.mxu0 0.0
    %4071 = vmatpush1.msra.mxu0 0.0
    %4072 = vmatprep.subr.mxu0 0.0
    %4073 = vmatpush1.msra.mxu0 0.0
    %4074 = vmatprep.subr.mxu0 0.0
    %4075 = vmatpush1.msra.mxu0 0.0
    %4076 = vmatprep.subr.mxu0 0.0
    %4077 = vmatpush1.msra.mxu0 0.0
    %4078 = vmatprep.subr.mxu0 0.0
    %4079 = vmatpush1.msra.mxu0 0.0
    %4080 = vmatprep.subr.mxu0 0.0
    %4081 = vmatpush1.msra.mxu0 0.0
    %4082 = vmatprep.subr.mxu0 0.0
    %4083 = vmatpush1.msra.mxu0 0.0
    %4084 = vmatprep.subr.mxu0 0.0
    %4085 = vmatpush1.msra.mxu0 0.0
    %4086 = vmatprep.subr.mxu0 0.0
    %4087 = vmatpush1.msra.mxu0 0.0
    %4088 = vmatprep.subr.mxu0 0.0
    %4089 = vmatpush1.msra.mxu0 0.0
    %4090 = vmatprep.subr.mxu0 0.0
    %4091 = vmatpush1.msra.mxu0 0.0
    %4092 = vmatprep.mubr.f32.mxu0 0.0
    %4093 = vmatmul.mubr.f32.gmra.mrb[0].mxu0 %v4026
    %v4094 = vpop.f32.mrb[0].mxu0
    %v4095 = vadd.f32 0.0, %v4094
    %v4096 = vpop.f32.mrb[0].mxu0
    %4097 = vdwg.mxu0
    %v4099 = vlaneseq
    %v4100 = vshrl.u32 %v4099, 7
    %v4101 = vsub.s32 0, %v4100
    %v4102 = vrot.slane %v3544, %v4101
    %v4105 = vcombine.high %v4014, %v4014
    %v4107 = vunpack.c.l.s4 1966171168
    %v4108 = vunpack.c.0.s8 %v4107
    %v4109 = vlaneseq
    %v4110 = vshrl.u32 %v4109, 7
    %v4111 = vsub.s32 %v4108, %v4110
    %v4112 = vrot.slane %v4014, %v4111
    %v4114 = vunpack.c.l.s4 1966171168
    %v4115 = vunpack.c.0.s8 %v4114
    %v4116 = vlaneseq
    %v4117 = vshrl.u32 %v4116, 7
    %v4118 = vsub.s32 %v4115, %v4117
    %v4119 = vrot.slane %v4105, %v4118
    %v4120 = vcombine.high %v4112, %v4112
    %v4122 = vunpack.c.l.s4 1966171168
    %v4123 = vunpack.c.0.s8 %v4122
    %v4124 = vlaneseq
    %v4125 = vshrl.u32 %v4124, 7
    %v4126 = vsub.s32 %v4123, %v4125
    %v4127 = vrot.slane %v4112, %v4126
    %v4129 = vunpack.c.l.s4 1966171168
    %v4130 = vunpack.c.0.s8 %v4129
    %v4131 = vlaneseq
    %v4132 = vshrl.u32 %v4131, 7
    %v4133 = vsub.s32 %v4130, %v4132
    %v4134 = vrot.slane %v4119, %v4133
    %v4136 = vunpack.c.l.s4 1966171168
    %v4137 = vunpack.c.0.s8 %v4136
    %v4138 = vlaneseq
    %v4139 = vshrl.u32 %v4138, 7
    %v4140 = vsub.s32 %v4137, %v4139
    %v4141 = vrot.slane %v4120, %v4140
    %v4142 = vcombine.high %v4127, %v4127
    %v4143 = vcombine.high %v4141, %v4141
    %v4144 = vcombine.high %v4095, %v4095
    %v4146 = vunpack.c.l.s4 1966171168
    %v4147 = vunpack.c.0.s8 %v4146
    %v4148 = vlaneseq
    %v4149 = vshrl.u32 %v4148, 7
    %v4150 = vsub.s32 %v4147, %v4149
    %v4151 = vrot.slane %v4095, %v4150
    %v4153 = vunpack.c.l.s4 1966171168
    %v4154 = vunpack.c.0.s8 %v4153
    %v4155 = vlaneseq
    %v4156 = vshrl.u32 %v4155, 7
    %v4157 = vsub.s32 %v4154, %v4156
    %v4158 = vrot.slane %v4144, %v4157
    %v4159 = vcombine.high %v4151, %v4151
    %v4161 = vunpack.c.l.s4 1966171168
    %v4162 = vunpack.c.0.s8 %v4161
    %v4163 = vlaneseq
    %v4164 = vshrl.u32 %v4163, 7
    %v4165 = vsub.s32 %v4162, %v4164
    %v4166 = vrot.slane %v4151, %v4165
    %v4168 = vunpack.c.l.s4 1966171168
    %v4169 = vunpack.c.0.s8 %v4168
    %v4170 = vlaneseq
    %v4171 = vshrl.u32 %v4170, 7
    %v4172 = vsub.s32 %v4169, %v4171
    %v4173 = vrot.slane %v4158, %v4172
    %v4175 = vunpack.c.l.s4 1966171168
    %v4176 = vunpack.c.0.s8 %v4175
    %v4177 = vlaneseq
    %v4178 = vshrl.u32 %v4177, 7
    %v4179 = vsub.s32 %v4176, %v4178
    %v4180 = vrot.slane %v4159, %v4179
    %v4181 = vcombine.high %v4166, %v4166
    %v4182 = vcombine.high %v4180, %v4180
    %v4183 = vcombine.high %v4102, %v4102
    %v4185 = vunpack.c.l.s4 1966171168
    %v4186 = vunpack.c.0.s8 %v4185
    %v4187 = vlaneseq
    %v4188 = vshrl.u32 %v4187, 7
    %v4189 = vsub.s32 %v4186, %v4188
    %v4190 = vrot.slane %v4102, %v4189
    %v4192 = vunpack.c.l.s4 1966171168
    %v4193 = vunpack.c.0.s8 %v4192
    %v4194 = vlaneseq
    %v4195 = vshrl.u32 %v4194, 7
    %v4196 = vsub.s32 %v4193, %v4195
    %v4197 = vrot.slane %v4183, %v4196
    %v4198 = vcombine.high %v4190, %v4190
    %v4200 = vunpack.c.l.s4 1966171168
    %v4201 = vunpack.c.0.s8 %v4200
    %v4202 = vlaneseq
    %v4203 = vshrl.u32 %v4202, 7
    %v4204 = vsub.s32 %v4201, %v4203
    %v4205 = vrot.slane %v4190, %v4204
    %v4207 = vunpack.c.l.s4 1966171168
    %v4208 = vunpack.c.0.s8 %v4207
    %v4209 = vlaneseq
    %v4210 = vshrl.u32 %v4209, 7
    %v4211 = vsub.s32 %v4208, %v4210
    %v4212 = vrot.slane %v4197, %v4211
    %v4214 = vunpack.c.l.s4 1966171168
    %v4215 = vunpack.c.0.s8 %v4214
    %v4216 = vlaneseq
    %v4217 = vshrl.u32 %v4216, 7
    %v4218 = vsub.s32 %v4215, %v4217
    %v4219 = vrot.slane %v4198, %v4218
    %v4220 = vcombine.high %v4205, %v4205
    %v4221 = vcombine.high %v4219, %v4219
    %v4222 = vcombine.low %v4127, %v4141
    %v4223 = vcombine.low %v4142, %v4143
    %v4224 = vcombine.low %v4134, %v4166
    %v4225 = vcombine.low %v4180, %v4181
    %v4227 = vunpack.c.l.s4 1966171168
    %v4228 = vunpack.c.0.s8 %v4227
    %v4229 = vlaneseq
    %v4230 = vshrl.u32 %v4229, 7
    %v4231 = vsub.s32 %v4228, %v4230
    %v4232 = vrot.slane %v4222, %v4231
    %v4234 = vunpack.c.l.s4 1966171168
    %v4235 = vunpack.c.0.s8 %v4234
    %v4236 = vlaneseq
    %v4237 = vshrl.u32 %v4236, 7
    %v4238 = vsub.s32 %v4235, %v4237
    %v4239 = vrot.slane %v4223, %v4238
    %v4241 = vunpack.c.l.s4 1966171168
    %v4242 = vunpack.c.0.s8 %v4241
    %v4243 = vlaneseq
    %v4244 = vshrl.u32 %v4243, 7
    %v4245 = vsub.s32 %v4242, %v4244
    %v4246 = vrot.slane %v4224, %v4245
    %v4248 = vunpack.c.l.s4 1966171168
    %v4249 = vunpack.c.0.s8 %v4248
    %v4250 = vlaneseq
    %v4251 = vshrl.u32 %v4250, 7
    %v4252 = vsub.s32 %v4249, %v4251
    %v4253 = vrot.slane %v4225, %v4252
    %v4254 = vcombine.low %v4232, %v4239
    %v4255 = vcombine.low %v4246, %v4253
    %v4257 = vunpack.c.l.s4 1966171168
    %v4258 = vunpack.c.0.s8 %v4257
    %v4259 = vlaneseq
    %v4260 = vshrl.u32 %v4259, 7
    %v4261 = vsub.s32 %v4258, %v4260
    %v4262 = vrot.slane %v4254, %v4261
    %v4264 = vunpack.c.l.s4 1966171168
    %v4265 = vunpack.c.0.s8 %v4264
    %v4266 = vlaneseq
    %v4267 = vshrl.u32 %v4266, 7
    %v4268 = vsub.s32 %v4265, %v4267
    %v4269 = vrot.slane %v4255, %v4268
    %v4270 = vcombine.low %v4262, %v4269
    %v4271 = vcombine.low %v4182, %v4173
    %v4273 = vunpack.c.l.s4 1966171168
    %v4274 = vunpack.c.0.s8 %v4273
    %v4275 = vlaneseq
    %v4276 = vshrl.u32 %v4275, 7
    %v4277 = vsub.s32 %v4274, %v4276
    %v4278 = vrot.slane %v4271, %v4277
    %v4280 = vunpack.c.l.s4 1966171168
    %v4281 = vunpack.c.0.s8 %v4280
    %v4282 = vlaneseq
    %v4283 = vshrl.u32 %v4282, 7
    %v4284 = vsub.s32 %v4281, %v4283
    %v4285 = vrot.slane %v4278, %v4284
    %v4286 = vcombine.low %v4205, %v4219
    %v4287 = vcombine.low %v4220, %v4221
    %v4288 = vcombine.low %v4212, %v4205
    %v4289 = vcombine.low %v4219, %v4220
    %v4291 = vunpack.c.l.s4 1966171168
    %v4292 = vunpack.c.0.s8 %v4291
    %v4293 = vlaneseq
    %v4294 = vshrl.u32 %v4293, 7
    %v4295 = vsub.s32 %v4292, %v4294
    %v4296 = vrot.slane %v4286, %v4295
    %v4298 = vunpack.c.l.s4 1966171168
    %v4299 = vunpack.c.0.s8 %v4298
    %v4300 = vlaneseq
    %v4301 = vshrl.u32 %v4300, 7
    %v4302 = vsub.s32 %v4299, %v4301
    %v4303 = vrot.slane %v4287, %v4302
    %v4305 = vunpack.c.l.s4 1966171168
    %v4306 = vunpack.c.0.s8 %v4305
    %v4307 = vlaneseq
    %v4308 = vshrl.u32 %v4307, 7
    %v4309 = vsub.s32 %v4306, %v4308
    %v4310 = vrot.slane %v4288, %v4309
    %v4312 = vunpack.c.l.s4 1966171168
    %v4313 = vunpack.c.0.s8 %v4312
    %v4314 = vlaneseq
    %v4315 = vshrl.u32 %v4314, 7
    %v4316 = vsub.s32 %v4313, %v4315
    %v4317 = vrot.slane %v4289, %v4316
    %v4318 = vcombine.low %v4296, %v4303
    %v4319 = vcombine.low %v4310, %v4317
    %v4321 = vunpack.c.l.s4 1966171168
    %v4322 = vunpack.c.0.s8 %v4321
    %v4323 = vlaneseq
    %v4324 = vshrl.u32 %v4323, 7
    %v4325 = vsub.s32 %v4322, %v4324
    %v4326 = vrot.slane %v4318, %v4325
    %v4328 = vunpack.c.l.s4 1966171168
    %v4329 = vunpack.c.0.s8 %v4328
    %v4330 = vlaneseq
    %v4331 = vshrl.u32 %v4330, 7
    %v4332 = vsub.s32 %v4329, %v4331
    %v4333 = vrot.slane %v4319, %v4332
    %v4334 = vcombine.low %v4326, %v4333
    %v4335 = vcombine.low %v4221, %v4212
    %v4337 = vunpack.c.l.s4 1966171168
    %v4338 = vunpack.c.0.s8 %v4337
    %v4339 = vlaneseq
    %v4340 = vshrl.u32 %v4339, 7
    %v4341 = vsub.s32 %v4338, %v4340
    %v4342 = vrot.slane %v4335, %v4341
    %v4344 = vunpack.c.l.s4 1966171168
    %v4345 = vunpack.c.0.s8 %v4344
    %v4346 = vlaneseq
    %v4347 = vshrl.u32 %v4346, 7
    %v4348 = vsub.s32 %v4345, %v4347
    %v4349 = vrot.slane %v4342, %v4348
    %v4352 = vsel %vm186, %v4270, 0
    %v4354 = vsel %vm186, %v4285, 0
    %4356 = vmatprep.subr.mxu0 0.0
    %4357 = vmatpush1.msra.mxu0 %v3540
    %4358 = vmatprep.subr.mxu0 0.0
    %4359 = vmatpush1.msra.mxu0 %v3541
    %4360 = vmatprep.subr.mxu0 0.0
    %4361 = vmatpush1.msra.mxu0 %v3542
    %4362 = vmatprep.subr.mxu0 0.0
    %4363 = vmatpush1.msra.mxu0 %v3543
    %4364 = vmatprep.subr.mxu0 0.0
    %4365 = vmatpush1.msra.mxu0 0.0
    %4366 = vmatprep.subr.mxu0 0.0
    %4367 = vmatpush1.msra.mxu0 0.0
    %4368 = vmatprep.subr.mxu0 0.0
    %4369 = vmatpush1.msra.mxu0 0.0
    %4370 = vmatprep.subr.mxu0 0.0
    %4371 = vmatpush1.msra.mxu0 0.0
    %4372 = vmatprep.subr.mxu0 0.0
    %4373 = vmatpush1.msra.mxu0 0.0
    %4374 = vmatprep.subr.mxu0 0.0
    %4375 = vmatpush1.msra.mxu0 0.0
    %4376 = vmatprep.subr.mxu0 0.0
    %4377 = vmatpush1.msra.mxu0 0.0
    %4378 = vmatprep.subr.mxu0 0.0
    %4379 = vmatpush1.msra.mxu0 0.0
    %4380 = vmatprep.subr.mxu0 0.0
    %4381 = vmatpush1.msra.mxu0 0.0
    %4382 = vmatprep.subr.mxu0 0.0
    %4383 = vmatpush1.msra.mxu0 0.0
    %4384 = vmatprep.subr.mxu0 0.0
    %4385 = vmatpush1.msra.mxu0 0.0
    %4386 = vmatprep.subr.mxu0 0.0
    %4387 = vmatpush1.msra.mxu0 0.0
    %4388 = vmatprep.subr.mxu0 0.0
    %4389 = vmatpush1.msra.mxu0 0.0
    %4390 = vmatprep.subr.mxu0 0.0
    %4391 = vmatpush1.msra.mxu0 0.0
    %4392 = vmatprep.subr.mxu0 0.0
    %4393 = vmatpush1.msra.mxu0 0.0
    %4394 = vmatprep.subr.mxu0 0.0
    %4395 = vmatpush1.msra.mxu0 0.0
    %4396 = vmatprep.subr.mxu0 0.0
    %4397 = vmatpush1.msra.mxu0 0.0
    %4398 = vmatprep.subr.mxu0 0.0
    %4399 = vmatpush1.msra.mxu0 0.0
    %4400 = vmatprep.subr.mxu0 0.0
    %4401 = vmatpush1.msra.mxu0 0.0
    %4402 = vmatprep.subr.mxu0 0.0
    %4403 = vmatpush1.msra.mxu0 0.0
    %4404 = vmatprep.subr.mxu0 0.0
    %4405 = vmatpush1.msra.mxu0 0.0
    %4406 = vmatprep.subr.mxu0 0.0
    %4407 = vmatpush1.msra.mxu0 0.0
    %4408 = vmatprep.subr.mxu0 0.0
    %4409 = vmatpush1.msra.mxu0 0.0
    %4410 = vmatprep.subr.mxu0 0.0
    %4411 = vmatpush1.msra.mxu0 0.0
    %4412 = vmatprep.subr.mxu0 0.0
    %4413 = vmatpush1.msra.mxu0 0.0
    %4414 = vmatprep.subr.mxu0 0.0
    %4415 = vmatpush1.msra.mxu0 0.0
    %4416 = vmatprep.subr.mxu0 0.0
    %4417 = vmatpush1.msra.mxu0 0.0
    %4418 = vmatprep.subr.mxu0 0.0
    %4419 = vmatpush1.msra.mxu0 0.0
    %4420 = vmatprep.mubr.f32.mxu0 0.0
    %4421 = vmatmul.mubr.f32.gmra.mrb[0].mxu0 %v4352
    %v4422 = vpop.f32.mrb[0].mxu0
    %v4423 = vadd.f32 %v4334, %v4422
    %v4424 = vpop.f32.mrb[0].mxu0
    %4425 = vmatprep.mubr.f32.mxu0 0.0
    %4426 = vmatmul.mubr.f32.gmra.mrb[0].mxu0 %v4354
    %v4427 = vpop.f32.mrb[0].mxu0
    %v4428 = vadd.f32 %v4349, %v4427
    %v4429 = vpop.f32.mrb[0].mxu0
    %4430 = vdwg.mxu0
    %v4433 = vcombine.high %v4423, %v4423
    %v4435 = vunpack.c.l.s4 1966171168
    %v4436 = vunpack.c.0.s8 %v4435
    %v4437 = vlaneseq
    %v4438 = vshrl.u32 %v4437, 7
    %v4439 = vsub.s32 %v4436, %v4438
    %v4440 = vrot.slane %v4423, %v4439
    %v4442 = vunpack.c.l.s4 1966171168
    %v4443 = vunpack.c.0.s8 %v4442
    %v4444 = vlaneseq
    %v4445 = vshrl.u32 %v4444, 7
    %v4446 = vsub.s32 %v4443, %v4445
    %v4447 = vrot.slane %v4433, %v4446
    %v4448 = vcombine.high %v4440, %v4440
    %v4449 = vcombine.high %v4447, %v4447
    %v4451 = vunpack.c.l.s4 1966171168
    %v4452 = vunpack.c.0.s8 %v4451
    %v4453 = vlaneseq
    %v4454 = vshrl.u32 %v4453, 7
    %v4455 = vsub.s32 %v4452, %v4454
    %v4456 = vrot.slane %v4440, %v4455
    %v4458 = vunpack.c.l.s4 1966171168
    %v4459 = vunpack.c.0.s8 %v4458
    %v4460 = vlaneseq
    %v4461 = vshrl.u32 %v4460, 7
    %v4462 = vsub.s32 %v4459, %v4461
    %v4463 = vrot.slane %v4447, %v4462
    %v4465 = vunpack.c.l.s4 1966171168
    %v4466 = vunpack.c.0.s8 %v4465
    %v4467 = vlaneseq
    %v4468 = vshrl.u32 %v4467, 7
    %v4469 = vsub.s32 %v4466, %v4468
    %v4470 = vrot.slane %v4448, %v4469
    %v4472 = vunpack.c.l.s4 1966171168
    %v4473 = vunpack.c.0.s8 %v4472
    %v4474 = vlaneseq
    %v4475 = vshrl.u32 %v4474, 7
    %v4476 = vsub.s32 %v4473, %v4475
    %v4477 = vrot.slane %v4449, %v4476
    %v4478 = vcombine.high %v4456, %v4456
    %v4479 = vcombine.high %v4463, %v4463
    %v4480 = vcombine.high %v4470, %v4470
    %v4481 = vcombine.high %v4477, %v4477
    %v4483 = vunpack.c.l.s4 1966171168
    %v4484 = vunpack.c.0.s8 %v4483
    %v4485 = vlaneseq
    %v4486 = vshrl.u32 %v4485, 7
    %v4487 = vsub.s32 %v4484, %v4486
    %v4488 = vrot.slane %v4428, %v4487
    %v4489 = vcombine.high %v4488, %v4488
    %v4491 = vunpack.c.l.s4 1966171168
    %v4492 = vunpack.c.0.s8 %v4491
    %v4493 = vlaneseq
    %v4494 = vshrl.u32 %v4493, 7
    %v4495 = vsub.s32 %v4492, %v4494
    %v4496 = vrot.slane %v4488, %v4495
    %v4498 = vunpack.c.l.s4 1966171168
    %v4499 = vunpack.c.0.s8 %v4498
    %v4500 = vlaneseq
    %v4501 = vshrl.u32 %v4500, 7
    %v4502 = vsub.s32 %v4499, %v4501
    %v4503 = vrot.slane %v4489, %v4502
    %v4515 = vunpack.c.l.s4 1966171168
    %v4516 = vunpack.c.0.s8 %v4515
    %v4517 = vlaneseq
    %v4518 = vshrl.u32 %v4517, 7
    %v4519 = vsub.s32 %v4516, %v4518
    %v4520 = vrot.slane %v3739, %v4519
    %v4521 = vcombine.high %v4520, %v4520
    %v4523 = vunpack.c.l.s4 1966171168
    %v4524 = vunpack.c.0.s8 %v4523
    %v4525 = vlaneseq
    %v4526 = vshrl.u32 %v4525, 7
    %v4527 = vsub.s32 %v4524, %v4526
    %v4528 = vrot.slane %v4520, %v4527
    %v4530 = vunpack.c.l.s4 1966171168
    %v4531 = vunpack.c.0.s8 %v4530
    %v4532 = vlaneseq
    %v4533 = vshrl.u32 %v4532, 7
    %v4534 = vsub.s32 %v4531, %v4533
    %v4535 = vrot.slane %v4521, %v4534
    %v4536 = vlaneseq
    %v4537 = vshrl.u32 %v4536, 7
    %v4538 = vsub.s32 0, %v4537
    %v4539 = vrot.slane %v4528, %v4538
    %v4540 = vlaneseq
    %v4541 = vshrl.u32 %v4540, 7
    %v4542 = vsub.s32 0, %v4541
    %v4543 = vrot.slane %v4535, %v4542
    %v4544 = vcombine.high %v4539, %v4539
    %v4546 = vunpack.c.l.s4 1966171168
    %v4547 = vunpack.c.0.s8 %v4546
    %v4548 = vlaneseq
    %v4549 = vshrl.u32 %v4548, 7
    %v4550 = vsub.s32 %v4547, %v4549
    %v4551 = vrot.slane %v4539, %v4550
    %v4553 = vunpack.c.l.s4 1966171168
    %v4554 = vunpack.c.0.s8 %v4553
    %v4555 = vlaneseq
    %v4556 = vshrl.u32 %v4555, 7
    %v4557 = vsub.s32 %v4554, %v4556
    %v4558 = vrot.slane %v4544, %v4557
    %v4559 = vcombine.high %v4551, %v4551
    %v4561 = vunpack.c.l.s4 1966171168
    %v4562 = vunpack.c.0.s8 %v4561
    %v4563 = vlaneseq
    %v4564 = vshrl.u32 %v4563, 7
    %v4565 = vsub.s32 %v4562, %v4564
    %v4566 = vrot.slane %v4551, %v4565
    %v4568 = vunpack.c.l.s4 1966171168
    %v4569 = vunpack.c.0.s8 %v4568
    %v4570 = vlaneseq
    %v4571 = vshrl.u32 %v4570, 7
    %v4572 = vsub.s32 %v4569, %v4571
    %v4573 = vrot.slane %v4558, %v4572
    %v4575 = vunpack.c.l.s4 1966171168
    %v4576 = vunpack.c.0.s8 %v4575
    %v4577 = vlaneseq
    %v4578 = vshrl.u32 %v4577, 7
    %v4579 = vsub.s32 %v4576, %v4578
    %v4580 = vrot.slane %v4559, %v4579
    %v4581 = vcombine.high %v4566, %v4566
    %v4582 = vcombine.high %v4580, %v4580
    %v4583 = vcombine.high %v4543, %v4543
    %v4585 = vunpack.c.l.s4 1966171168
    %v4586 = vunpack.c.0.s8 %v4585
    %v4587 = vlaneseq
    %v4588 = vshrl.u32 %v4587, 7
    %v4589 = vsub.s32 %v4586, %v4588
    %v4590 = vrot.slane %v4543, %v4589
    %v4592 = vunpack.c.l.s4 1966171168
    %v4593 = vunpack.c.0.s8 %v4592
    %v4594 = vlaneseq
    %v4595 = vshrl.u32 %v4594, 7
    %v4596 = vsub.s32 %v4593, %v4595
    %v4597 = vrot.slane %v4583, %v4596
    %v4598 = vcombine.high %v4590, %v4590
    %v4600 = vunpack.c.l.s4 1966171168
    %v4601 = vunpack.c.0.s8 %v4600
    %v4602 = vlaneseq
    %v4603 = vshrl.u32 %v4602, 7
    %v4604 = vsub.s32 %v4601, %v4603
    %v4605 = vrot.slane %v4590, %v4604
    %v4607 = vunpack.c.l.s4 1966171168
    %v4608 = vunpack.c.0.s8 %v4607
    %v4609 = vlaneseq
    %v4610 = vshrl.u32 %v4609, 7
    %v4611 = vsub.s32 %v4608, %v4610
    %v4612 = vrot.slane %v4597, %v4611
    %v4614 = vunpack.c.l.s4 1966171168
    %v4615 = vunpack.c.0.s8 %v4614
    %v4616 = vlaneseq
    %v4617 = vshrl.u32 %v4616, 7
    %v4618 = vsub.s32 %v4615, %v4617
    %v4619 = vrot.slane %v4598, %v4618
    %v4620 = vcombine.high %v4605, %v4605
    %v4621 = vcombine.high %v4619, %v4619
    %4622 = vrot.lane.b32.xlu0 %v4566, 96
    %v4623 = vpop.permute.xlu0 %4622
    %4624 = vrot.lane.b32.xlu0 %v4580, 96
    %v4625 = vpop.permute.xlu0 %4624
    %4626 = vrot.lane.b32.xlu0 %v4581, 96
    %v4627 = vpop.permute.xlu0 %4626
    %4628 = vrot.lane.b32.xlu0 %v4582, 96
    %v4629 = vpop.permute.xlu0 %4628
    %4630 = vrot.lane.b32.xlu0 %v4573, 96
    %v4631 = vpop.permute.xlu0 %4630
    %4632 = vrot.lane.b32.xlu0 %v4605, 96
    %v4633 = vpop.permute.xlu0 %4632
    %4634 = vrot.lane.b32.xlu0 %v4619, 96
    %v4635 = vpop.permute.xlu0 %4634
    %4636 = vrot.lane.b32.xlu0 %v4620, 96
    %v4637 = vpop.permute.xlu0 %4636
    %4638 = vrot.lane.b32.xlu0 %v4621, 96
    %v4639 = vpop.permute.xlu0 %4638
    %4640 = vrot.lane.b32.xlu0 %v4612, 96
    %v4641 = vpop.permute.xlu0 %4640
    %v4652 = vmul.f32 %v4456, %v4623
    %v4653 = vmul.f32 %v4470, %v4625
    %v4654 = vmul.f32 %v4478, %v4627
    %v4655 = vmul.f32 %v4480, %v4629
    %v4656 = vmul.f32 %v4463, %v4631
    %v4657 = vmul.f32 %v4477, %v4633
    %v4658 = vmul.f32 %v4479, %v4635
    %v4659 = vmul.f32 %v4481, %v4637
    %v4660 = vmul.f32 %v4496, %v4639
    %v4661 = vmul.f32 %v4503, %v4641
    %v4672 = vcombine.low %v4652, %v4653
    %v4673 = vcombine.low %v4654, %v4655
    %v4675 = vunpack.c.l.s4 1966171168
    %v4676 = vunpack.c.0.s8 %v4675
    %v4677 = vlaneseq
    %v4678 = vshrl.u32 %v4677, 7
    %v4679 = vsub.s32 %v4676, %v4678
    %v4680 = vrot.slane %v4672, %v4679
    %v4682 = vunpack.c.l.s4 1966171168
    %v4683 = vunpack.c.0.s8 %v4682
    %v4684 = vlaneseq
    %v4685 = vshrl.u32 %v4684, 7
    %v4686 = vsub.s32 %v4683, %v4685
    %v4687 = vrot.slane %v4673, %v4686
    %v4689 = vunpack.c.l.s4 1966171168
    %v4690 = vunpack.c.0.s8 %v4689
    %v4691 = vlaneseq
    %v4692 = vshrl.u32 %v4691, 7
    %v4693 = vsub.s32 %v4690, %v4692
    %v4694 = vrot.slane %v4656, %v4693
    %v4695 = vcombine.low %v4680, %v4687
    %v4697 = vunpack.c.l.s4 1966171168
    %v4698 = vunpack.c.0.s8 %v4697
    %v4699 = vlaneseq
    %v4700 = vshrl.u32 %v4699, 7
    %v4701 = vsub.s32 %v4698, %v4700
    %v4702 = vrot.slane %v4695, %v4701
    %v4704 = vunpack.c.l.s4 1966171168
    %v4705 = vunpack.c.0.s8 %v4704
    %v4706 = vlaneseq
    %v4707 = vshrl.u32 %v4706, 7
    %v4708 = vsub.s32 %v4705, %v4707
    %v4709 = vrot.slane %v4694, %v4708
    %v4710 = vcombine.low %v4702, %v4709
    %v4711 = vcombine.low %v4657, %v4658
    %v4712 = vcombine.low %v4659, %v4660
    %v4714 = vunpack.c.l.s4 1966171168
    %v4715 = vunpack.c.0.s8 %v4714
    %v4716 = vlaneseq
    %v4717 = vshrl.u32 %v4716, 7
    %v4718 = vsub.s32 %v4715, %v4717
    %v4719 = vrot.slane %v4711, %v4718
    %v4721 = vunpack.c.l.s4 1966171168
    %v4722 = vunpack.c.0.s8 %v4721
    %v4723 = vlaneseq
    %v4724 = vshrl.u32 %v4723, 7
    %v4725 = vsub.s32 %v4722, %v4724
    %v4726 = vrot.slane %v4712, %v4725
    %v4728 = vunpack.c.l.s4 1966171168
    %v4729 = vunpack.c.0.s8 %v4728
    %v4730 = vlaneseq
    %v4731 = vshrl.u32 %v4730, 7
    %v4732 = vsub.s32 %v4729, %v4731
    %v4733 = vrot.slane %v4661, %v4732
    %v4734 = vcombine.low %v4719, %v4726
    %v4736 = vunpack.c.l.s4 1966171168
    %v4737 = vunpack.c.0.s8 %v4736
    %v4738 = vlaneseq
    %v4739 = vshrl.u32 %v4738, 7
    %v4740 = vsub.s32 %v4737, %v4739
    %v4741 = vrot.slane %v4734, %v4740
    %v4743 = vunpack.c.l.s4 1966171168
    %v4744 = vunpack.c.0.s8 %v4743
    %v4745 = vlaneseq
    %v4746 = vshrl.u32 %v4745, 7
    %v4747 = vsub.s32 %v4744, %v4746
    %v4748 = vrot.slane %v4733, %v4747
    %v4749 = vcombine.low %v4741, %v4748
    %vm4752 = vcmask 258048
    %v4753 = vsel %vm4752, %v4710, 0.0
    %4754 = vadd.xlane.f32.xlu0 %v4753
    %v4755 = vpop.xlane.xlu0 %4754
    %v4756 = vsel %vm4752, %v4749, 0.0
    %4757 = vadd.xlane.f32.xlu0 %v4756
    %v4758 = vpop.xlane.xlu0 %4757
    %v4759 = vcvt.s32.f32 %v3914
    %4761 = vset.pattern.permute.xlu0 0
    %4762 = vperm.xlu0 %4761, %v3908
    %v4763 = vpop.permute.xlu0 %4762
    %v4765 = vsub.f32 %v4759, %v4763
    %v4766 = vmul.f32 %v4765, %v4765
    %v4767 = vmul.f32 %v4766, -0.5
    %v4768 = vmul.f32 %v4767, 1.442695
    %v4769 = vpow.pop %v4768
    %v4771 = vlaneseq
    %v4772 = vshrl.u32 %v4771, 7
    %v4773 = vsub.s32 0, %v4772
    %v4774 = vrot.slane %v4769, %v4773
    %4776 = vbcast.lane.b32.xlu0 %v4774, 256
    %v4777 = vpop.permute.xlu0 %4776
    %v4778 = vlaneseq
    %v4779 = vshrl.u32 %v4778, 7
    %v4780 = vsub.s32 1, %v4779
    %v4781 = vrot.slane %v4769, %v4780
    %4783 = vbcast.lane.b32.xlu0 %v4781, 256
    %v4784 = vpop.permute.xlu0 %4783
    %v4787 = vmul.f32 %v4755, %v4777
    %v4788 = vmul.f32 %v4758, %v4784
    %4791 = vset.pattern.permute.xlu0 0
    %4792 = vperm.xlu0 %4791, %v4787
    %v4793 = vpop.permute.xlu0 %4792
    %4794 = vset.pattern.permute.xlu0 0
    %4795 = vperm.xlu0 %4794, %v4788
    %v4796 = vpop.permute.xlu0 %4795
    %v4797 = vlaneseq
    %v4798 = vshrl.u32 %v4797, 7
    %v4799 = vsub.s32 %v3548, %v4798
    %v4800 = vrot.slane %v4793, %v4799
    %v4801 = vlaneseq
    %v4802 = vshrl.u32 %v4801, 7
    %v4803 = vsub.s32 %v3548, %v4802
    %v4804 = vrot.slane %v4796, %v4803
    %v4805 = vsel %vm111, %v4804, %v4800
    %vm4807 = vcmask 33792
    %v4808 = vsel %vm4807, %v4805, -inf
    %4809 = vmax.xlane.f32.xlu0 %v4808
    %v4810 = vpop.xlane.xlu0 %4809
    %v4812 = vlaneseq
    %v4813 = vshrl.u32 %v4812, 7
    %v4814 = vsub.s32 0, %v4813
    %v4815 = vrot.slane %v4810, %v4814
    %v4816 = vlaneseq
    %v4817 = vshrl.u32 %v4816, 7
    %v4818 = vsub.s32 1, %v4817
    %v4819 = vrot.slane %v4810, %v4818
    %v4822 = vsub.f32 %v4787, %v4815
    %v4823 = vsub.f32 %v4788, %v4819
    %v4824 = vmul.f32 %v4822, 1.442695
    %v4825 = vpow.pop %v4824
    %v4826 = vmul.f32 %v4823, 1.442695
    %v4827 = vpow.pop %v4826
    %4830 = vset.pattern.permute.xlu0 0
    %4831 = vperm.xlu0 %4830, %v4825
    %v4832 = vpop.permute.xlu0 %4831
    %4833 = vset.pattern.permute.xlu0 0
    %4834 = vperm.xlu0 %4833, %v4827
    %v4835 = vpop.permute.xlu0 %4834
    %v4836 = vlaneseq
    %v4837 = vshrl.u32 %v4836, 7
    %v4838 = vsub.s32 %v3548, %v4837
    %v4839 = vrot.slane %v4832, %v4838
    %v4840 = vlaneseq
    %v4841 = vshrl.u32 %v4840, 7
    %v4842 = vsub.s32 %v3548, %v4841
    %v4843 = vrot.slane %v4835, %v4842
    %v4844 = vsel %vm111, %v4843, %v4839
    %v4846 = vsel %vm4807, %v4844, 0.0
    %4847 = vadd.xlane.f32.xlu0 %v4846
    %v4848 = vpop.xlane.xlu0 %4847
    %v4850 = vlaneseq
    %v4851 = vshrl.u32 %v4850, 7
    %v4852 = vsub.s32 0, %v4851
    %v4853 = vrot.slane %v4848, %v4852
    %v4854 = vlaneseq
    %v4855 = vshrl.u32 %v4854, 7
    %v4856 = vsub.s32 1, %v4855
    %v4857 = vrot.slane %v4848, %v4856
    %v4860 = vrcp.pop %v4853
    %v4861 = vmul.f32 %v4825, %v4860
    %v4862 = vrcp.pop %v4857
    %v4863 = vmul.f32 %v4827, %v4862
    %4865 = vset.pattern.permute.xlu0 0
    %4866 = vperm.xlu0 %4865, %v4861
    %v4867 = vpop.permute.xlu0 %4866
    %4870 = vset.pattern.permute.xlu0 0
    %4871 = vperm.xlu0 %4870, %v4863
    %v4872 = vpop.permute.xlu0 %4871
    %v4874 = vcombine.low %v4456, %v4470
    %v4875 = vcombine.low %v4478, %v4480
    %v4877 = vunpack.c.l.s4 1966171168
    %v4878 = vunpack.c.0.s8 %v4877
    %v4879 = vlaneseq
    %v4880 = vshrl.u32 %v4879, 7
    %v4881 = vsub.s32 %v4878, %v4880
    %v4882 = vrot.slane %v4874, %v4881
    %v4884 = vunpack.c.l.s4 1966171168
    %v4885 = vunpack.c.0.s8 %v4884
    %v4886 = vlaneseq
    %v4887 = vshrl.u32 %v4886, 7
    %v4888 = vsub.s32 %v4885, %v4887
    %v4889 = vrot.slane %v4875, %v4888
    %v4891 = vunpack.c.l.s4 1966171168
    %v4892 = vunpack.c.0.s8 %v4891
    %v4893 = vlaneseq
    %v4894 = vshrl.u32 %v4893, 7
    %v4895 = vsub.s32 %v4892, %v4894
    %v4896 = vrot.slane %v4463, %v4895
    %v4897 = vcombine.low %v4882, %v4889
    %v4899 = vunpack.c.l.s4 1966171168
    %v4900 = vunpack.c.0.s8 %v4899
    %v4901 = vlaneseq
    %v4902 = vshrl.u32 %v4901, 7
    %v4903 = vsub.s32 %v4900, %v4902
    %v4904 = vrot.slane %v4897, %v4903
    %v4906 = vunpack.c.l.s4 1966171168
    %v4907 = vunpack.c.0.s8 %v4906
    %v4908 = vlaneseq
    %v4909 = vshrl.u32 %v4908, 7
    %v4910 = vsub.s32 %v4907, %v4909
    %v4911 = vrot.slane %v4896, %v4910
    %v4912 = vcombine.low %v4904, %v4911
    %v4913 = vcombine.low %v4477, %v4479
    %v4914 = vcombine.low %v4481, %v4496
    %v4916 = vunpack.c.l.s4 1966171168
    %v4917 = vunpack.c.0.s8 %v4916
    %v4918 = vlaneseq
    %v4919 = vshrl.u32 %v4918, 7
    %v4920 = vsub.s32 %v4917, %v4919
    %v4921 = vrot.slane %v4913, %v4920
    %v4923 = vunpack.c.l.s4 1966171168
    %v4924 = vunpack.c.0.s8 %v4923
    %v4925 = vlaneseq
    %v4926 = vshrl.u32 %v4925, 7
    %v4927 = vsub.s32 %v4924, %v4926
    %v4928 = vrot.slane %v4914, %v4927
    %v4930 = vunpack.c.l.s4 1966171168
    %v4931 = vunpack.c.0.s8 %v4930
    %v4932 = vlaneseq
    %v4933 = vshrl.u32 %v4932, 7
    %v4934 = vsub.s32 %v4931, %v4933
    %v4935 = vrot.slane %v4503, %v4934
    %v4936 = vcombine.low %v4921, %v4928
    %v4938 = vunpack.c.l.s4 1966171168
    %v4939 = vunpack.c.0.s8 %v4938
    %v4940 = vlaneseq
    %v4941 = vshrl.u32 %v4940, 7
    %v4942 = vsub.s32 %v4939, %v4941
    %v4943 = vrot.slane %v4936, %v4942
    %v4945 = vunpack.c.l.s4 1966171168
    %v4946 = vunpack.c.0.s8 %v4945
    %v4947 = vlaneseq
    %v4948 = vshrl.u32 %v4947, 7
    %v4949 = vsub.s32 %v4946, %v4948
    %v4950 = vrot.slane %v4935, %v4949
    %v4951 = vcombine.low %v4943, %v4950
    %v4954 = vmul.f32 %v4867, %v4912
    %v4955 = vmul.f32 %v4872, %v4951
    %v4956 = vsel %vm4752, %v4954, 0.0
    %v4957 = vrot.slane %v4956, 4
    %v4958 = vadd.f32 %v4956, %v4957
    %v4959 = vrot.slane %v4958, 2
    %v4960 = vadd.f32 %v4958, %v4959
    %v4961 = vrot.slane %v4960, 1
    %v4962 = vadd.f32 %v4960, %v4961
    %v4963 = vsel %vm4752, %v4955, 0.0
    %v4964 = vrot.slane %v4963, 4
    %v4965 = vadd.f32 %v4963, %v4964
    %v4966 = vrot.slane %v4965, 2
    %v4967 = vadd.f32 %v4965, %v4966
    %v4968 = vrot.slane %v4967, 1
    %v4969 = vadd.f32 %v4967, %v4968
    %v4972 = vunpack.c.l.s4 1966171168
    %v4973 = vunpack.c.0.s8 %v4972
    %v4974 = vlaneseq
    %v4975 = vshrl.u32 %v4974, 7
    %v4976 = vsub.s32 %v4973, %v4975
    %v4977 = vrot.slane %v3818, %v4976
    %v4978 = vcombine.high %v4977, %v4977
    %v4980 = vunpack.c.l.s4 1966171168
    %v4981 = vunpack.c.0.s8 %v4980
    %v4982 = vlaneseq
    %v4983 = vshrl.u32 %v4982, 7
    %v4984 = vsub.s32 %v4981, %v4983
    %v4985 = vrot.slane %v4977, %v4984
    %v4987 = vunpack.c.l.s4 1966171168
    %v4988 = vunpack.c.0.s8 %v4987
    %v4989 = vlaneseq
    %v4990 = vshrl.u32 %v4989, 7
    %v4991 = vsub.s32 %v4988, %v4990
    %v4992 = vrot.slane %v4978, %v4991
    %s4995 = sld [smem:[#allocation3]]
    %p4996 = scmp.gt.s32.totalorder %s4995, 0
    %s4997 = scalar_select %p4996, 1, 0
    %v4998 = vstv %s4997
    %vm4999 = vcmp.eq.s32.totalorder %v4998, 1
    %v5000 = vrot.slane %v3818, 1
    %5001 = vrot.lane.b32.xlu0 %v3818, 96
    %v5002 = vpop.permute.xlu0 %5001
    %5003 = vrot.lane.b32.xlu0 %v5000, 96
    %v5004 = vpop.permute.xlu0 %5003
    %v5007 = vsel %vm4999, %v3545, %v5002
    %v5008 = vsel %vm4999, %v3546, %v5004
    %v5011 = vrot.slane %v5008, 7
    %v5012 = vsel %vm111, %v5011, %v5007
    %v5016 = vsel %vm111, %v4969, %v4962
    %5017 = vrot.lane.b32.xlu0 %v5016, 8
    %v5018 = vpop.permute.xlu0 %5017
    %v5020 = vsel %vm113, %v5012, %v5018
    %v5022 = vsel %vm3550, %v5020, 0
    %5024 = vmatprep.subr.mxu0 0.0
    %5025 = vmatpush1.msra.mxu0 %v3519
    %5026 = vmatprep.subr.mxu0 0.0
    %5027 = vmatpush1.msra.mxu0 %v3520
    %5028 = vmatprep.subr.mxu0 0.0
    %5029 = vmatpush1.msra.mxu0 %v3521
    %5030 = vmatprep.subr.mxu0 0.0
    %5031 = vmatpush1.msra.mxu0 %v3522
    %5032 = vmatprep.subr.mxu0 0.0
    %5033 = vmatpush1.msra.mxu0 %v3523
    %5034 = vmatprep.subr.mxu0 0.0
    %5035 = vmatpush1.msra.mxu0 0.0
    %5036 = vmatprep.subr.mxu0 0.0
    %5037 = vmatpush1.msra.mxu0 0.0
    %5038 = vmatprep.subr.mxu0 0.0
    %5039 = vmatpush1.msra.mxu0 0.0
    %5040 = vmatprep.subr.mxu0 0.0
    %5041 = vmatpush1.msra.mxu0 0.0
    %5042 = vmatprep.subr.mxu0 0.0
    %5043 = vmatpush1.msra.mxu0 0.0
    %5044 = vmatprep.subr.mxu0 0.0
    %5045 = vmatpush1.msra.mxu0 0.0
    %5046 = vmatprep.subr.mxu0 0.0
    %5047 = vmatpush1.msra.mxu0 0.0
    %5048 = vmatprep.subr.mxu0 0.0
    %5049 = vmatpush1.msra.mxu0 0.0
    %5050 = vmatprep.subr.mxu0 0.0
    %5051 = vmatpush1.msra.mxu0 0.0
    %5052 = vmatprep.subr.mxu0 0.0
    %5053 = vmatpush1.msra.mxu0 0.0
    %5054 = vmatprep.subr.mxu0 0.0
    %5055 = vmatpush1.msra.mxu0 0.0
    %5056 = vmatprep.subr.mxu0 0.0
    %5057 = vmatpush1.msra.mxu0 0.0
    %5058 = vmatprep.subr.mxu0 0.0
    %5059 = vmatpush1.msra.mxu0 0.0
    %5060 = vmatprep.subr.mxu0 0.0
    %5061 = vmatpush1.msra.mxu0 0.0
    %5062 = vmatprep.subr.mxu0 0.0
    %5063 = vmatpush1.msra.mxu0 0.0
    %5064 = vmatprep.subr.mxu0 0.0
    %5065 = vmatpush1.msra.mxu0 0.0
    %5066 = vmatprep.subr.mxu0 0.0
    %5067 = vmatpush1.msra.mxu0 0.0
    %5068 = vmatprep.subr.mxu0 0.0
    %5069 = vmatpush1.msra.mxu0 0.0
    %5070 = vmatprep.subr.mxu0 0.0
    %5071 = vmatpush1.msra.mxu0 0.0
    %5072 = vmatprep.subr.mxu0 0.0
    %5073 = vmatpush1.msra.mxu0 0.0
    %5074 = vmatprep.subr.mxu0 0.0
    %5075 = vmatpush1.msra.mxu0 0.0
    %5076 = vmatprep.subr.mxu0 0.0
    %5077 = vmatpush1.msra.mxu0 0.0
    %5078 = vmatprep.subr.mxu0 0.0
    %5079 = vmatpush1.msra.mxu0 0.0
    %5080 = vmatprep.subr.mxu0 0.0
    %5081 = vmatpush1.msra.mxu0 0.0
    %5082 = vmatprep.subr.mxu0 0.0
    %5083 = vmatpush1.msra.mxu0 0.0
    %5084 = vmatprep.subr.mxu0 0.0
    %5085 = vmatpush1.msra.mxu0 0.0
    %5086 = vmatprep.subr.mxu0 0.0
    %5087 = vmatpush1.msra.mxu0 0.0
    %5088 = vmatprep.mubr.f32.mxu0 0.0
    %5089 = vmatmul.mubr.f32.gmra.mrb[0].mxu0 %v5022
    %v5090 = vpop.f32.mrb[0].mxu0
    %v5091 = vadd.f32 0.0, %v5090
    %v5092 = vpop.f32.mrb[0].mxu0
    %5093 = vdwg.mxu0
    %5094 = vmatprep.subr.mxu0 0.0
    %5095 = vmatpush1.msra.mxu0 %v3524
    %5096 = vmatprep.subr.mxu0 0.0
    %5097 = vmatpush1.msra.mxu0 %v3525
    %5098 = vmatprep.subr.mxu0 0.0
    %5099 = vmatpush1.msra.mxu0 %v3526
    %5100 = vmatprep.subr.mxu0 0.0
    %5101 = vmatpush1.msra.mxu0 %v3527
    %5102 = vmatprep.subr.mxu0 0.0
    %5103 = vmatpush1.msra.mxu0 0.0
    %5104 = vmatprep.subr.mxu0 0.0
    %5105 = vmatpush1.msra.mxu0 0.0
    %5106 = vmatprep.subr.mxu0 0.0
    %5107 = vmatpush1.msra.mxu0 0.0
    %5108 = vmatprep.subr.mxu0 0.0
    %5109 = vmatpush1.msra.mxu0 0.0
    %5110 = vmatprep.subr.mxu0 0.0
    %5111 = vmatpush1.msra.mxu0 0.0
    %5112 = vmatprep.subr.mxu0 0.0
    %5113 = vmatpush1.msra.mxu0 0.0
    %5114 = vmatprep.subr.mxu0 0.0
    %5115 = vmatpush1.msra.mxu0 0.0
    %5116 = vmatprep.subr.mxu0 0.0
    %5117 = vmatpush1.msra.mxu0 0.0
    %5118 = vmatprep.subr.mxu0 0.0
    %5119 = vmatpush1.msra.mxu0 0.0
    %5120 = vmatprep.subr.mxu0 0.0
    %5121 = vmatpush1.msra.mxu0 0.0
    %5122 = vmatprep.subr.mxu0 0.0
    %5123 = vmatpush1.msra.mxu0 0.0
    %5124 = vmatprep.subr.mxu0 0.0
    %5125 = vmatpush1.msra.mxu0 0.0
    %5126 = vmatprep.subr.mxu0 0.0
    %5127 = vmatpush1.msra.mxu0 0.0
    %5128 = vmatprep.subr.mxu0 0.0
    %5129 = vmatpush1.msra.mxu0 0.0
    %5130 = vmatprep.subr.mxu0 0.0
    %5131 = vmatpush1.msra.mxu0 0.0
    %5132 = vmatprep.subr.mxu0 0.0
    %5133 = vmatpush1.msra.mxu0 0.0
    %5134 = vmatprep.subr.mxu0 0.0
    %5135 = vmatpush1.msra.mxu0 0.0
    %5136 = vmatprep.subr.mxu0 0.0
    %5137 = vmatpush1.msra.mxu0 0.0
    %5138 = vmatprep.subr.mxu0 0.0
    %5139 = vmatpush1.msra.mxu0 0.0
    %5140 = vmatprep.subr.mxu0 0.0
    %5141 = vmatpush1.msra.mxu0 0.0
    %5142 = vmatprep.subr.mxu0 0.0
    %5143 = vmatpush1.msra.mxu0 0.0
    %5144 = vmatprep.subr.mxu0 0.0
    %5145 = vmatpush1.msra.mxu0 0.0
    %5146 = vmatprep.subr.mxu0 0.0
    %5147 = vmatpush1.msra.mxu0 0.0
    %5148 = vmatprep.subr.mxu0 0.0
    %5149 = vmatpush1.msra.mxu0 0.0
    %5150 = vmatprep.subr.mxu0 0.0
    %5151 = vmatpush1.msra.mxu0 0.0
    %5152 = vmatprep.subr.mxu0 0.0
    %5153 = vmatpush1.msra.mxu0 0.0
    %5154 = vmatprep.subr.mxu0 0.0
    %5155 = vmatpush1.msra.mxu0 0.0
    %5156 = vmatprep.subr.mxu0 0.0
    %5157 = vmatpush1.msra.mxu0 0.0
    %5158 = vmatprep.mubr.f32.mxu0 0.0
    %5159 = vmatmul.mubr.f32.gmra.mrb[0].mxu0 %v3749
    %v5160 = vpop.f32.mrb[0].mxu0
    %v5161 = vadd.f32 0.0, %v5160
    %v5162 = vpop.f32.mrb[0].mxu0
    %5163 = vdwg.mxu0
    %v5164 = vadd.f32 %v5091, %v5161
    %v5165 = vadd.f32 %v5164, %v3702
    %v5166 = vxor.u32 %v5165, 2147483648
    %v5167 = vmul.f32 %v5166, 1.442695
    %v5168 = vpow.pop %v5167
    %v5169 = vadd.f32 %v5168, 1.0
    %v5170 = vrcp.pop %v5169
    %v5171 = vmul.f32 1.0, %v5170
    %v5172 = vadd.f32 %v5091, %v3702
    %v5173 = vadd.f32 %v5161, %v3718
    %5175 = vrot.lane.b32.xlu0 %v5173, 64
    %v5176 = vpop.permute.xlu0 %5175
    %v5178 = vmul.f32 %v5171, %v5176
    %5180 = vrot.lane.b32.xlu0 %v5178, 64
    %v5181 = vpop.permute.xlu0 %5180
    %v5183 = vadd.f32 %v5172, %v5181
    %v5184 = vtanh.pop %v5183
    %v5185 = vsub.f32 1.0, %v5171
    %5187 = vrot.lane.b32.xlu0 %v5184, 96
    %v5188 = vpop.permute.xlu0 %5187
    %v5190 = vmul.f32 %v5185, %v5188
    %v5191 = vmul.f32 %v5171, %v3739
    %v5192 = vadd.f32 %v5190, %v5191
    %5194 = vrot.lane.b32.xlu0 %v5192, 96
    %v5195 = vpop.permute.xlu0 %5194
    %v5196 = vsel %vm186, %v5195, 0
    %5198 = vmatprep.subr.mxu0 0.0
    %5199 = vmatpush1.msra.mxu0 %v3530
    %5200 = vmatprep.subr.mxu0 0.0
    %5201 = vmatpush1.msra.mxu0 %v3531
    %5202 = vmatprep.subr.mxu0 0.0
    %5203 = vmatpush1.msra.mxu0 %v3532
    %5204 = vmatprep.subr.mxu0 0.0
    %5205 = vmatpush1.msra.mxu0 %v3533
    %5206 = vmatprep.subr.mxu0 0.0
    %5207 = vmatpush1.msra.mxu0 0.0
    %5208 = vmatprep.subr.mxu0 0.0
    %5209 = vmatpush1.msra.mxu0 0.0
    %5210 = vmatprep.subr.mxu0 0.0
    %5211 = vmatpush1.msra.mxu0 0.0
    %5212 = vmatprep.subr.mxu0 0.0
    %5213 = vmatpush1.msra.mxu0 0.0
    %5214 = vmatprep.subr.mxu0 0.0
    %5215 = vmatpush1.msra.mxu0 0.0
    %5216 = vmatprep.subr.mxu0 0.0
    %5217 = vmatpush1.msra.mxu0 0.0
    %5218 = vmatprep.subr.mxu0 0.0
    %5219 = vmatpush1.msra.mxu0 0.0
    %5220 = vmatprep.subr.mxu0 0.0
    %5221 = vmatpush1.msra.mxu0 0.0
    %5222 = vmatprep.subr.mxu0 0.0
    %5223 = vmatpush1.msra.mxu0 0.0
    %5224 = vmatprep.subr.mxu0 0.0
    %5225 = vmatpush1.msra.mxu0 0.0
    %5226 = vmatprep.subr.mxu0 0.0
    %5227 = vmatpush1.msra.mxu0 0.0
    %5228 = vmatprep.subr.mxu0 0.0
    %5229 = vmatpush1.msra.mxu0 0.0
    %5230 = vmatprep.subr.mxu0 0.0
    %5231 = vmatpush1.msra.mxu0 0.0
    %5232 = vmatprep.subr.mxu0 0.0
    %5233 = vmatpush1.msra.mxu0 0.0
    %5234 = vmatprep.subr.mxu0 0.0
    %5235 = vmatpush1.msra.mxu0 0.0
    %5236 = vmatprep.subr.mxu0 0.0
    %5237 = vmatpush1.msra.mxu0 0.0
    %5238 = vmatprep.subr.mxu0 0.0
    %5239 = vmatpush1.msra.mxu0 0.0
    %5240 = vmatprep.subr.mxu0 0.0
    %5241 = vmatpush1.msra.mxu0 0.0
    %5242 = vmatprep.subr.mxu0 0.0
    %5243 = vmatpush1.msra.mxu0 0.0
    %5244 = vmatprep.subr.mxu0 0.0
    %5245 = vmatpush1.msra.mxu0 0.0
    %5246 = vmatprep.subr.mxu0 0.0
    %5247 = vmatpush1.msra.mxu0 0.0
    %5248 = vmatprep.subr.mxu0 0.0
    %5249 = vmatpush1.msra.mxu0 0.0
    %5250 = vmatprep.subr.mxu0 0.0
    %5251 = vmatpush1.msra.mxu0 0.0
    %5252 = vmatprep.subr.mxu0 0.0
    %5253 = vmatpush1.msra.mxu0 0.0
    %5254 = vmatprep.subr.mxu0 0.0
    %5255 = vmatpush1.msra.mxu0 0.0
    %5256 = vmatprep.subr.mxu0 0.0
    %5257 = vmatpush1.msra.mxu0 0.0
    %5258 = vmatprep.subr.mxu0 0.0
    %5259 = vmatpush1.msra.mxu0 0.0
    %5260 = vmatprep.subr.mxu0 0.0
    %5261 = vmatpush1.msra.mxu0 0.0
    %5262 = vmatprep.mubr.f32.mxu0 0.0
    %5263 = vmatmul.mubr.f32.gmra.mrb[0].mxu0 %v5196
    %v5264 = vpop.f32.mrb[0].mxu0
    %v5265 = vadd.f32 %v3744, %v5264
    %v5266 = vpop.f32.mrb[0].mxu0
    %5267 = vdwg.mxu0
    %v5268 = vtanh.pop %v5265
    %v5270 = vsel %vm186, %v5268, 0
    %5272 = vmatprep.subr.mxu0 0.0
    %5273 = vmatpush1.msra.mxu0 %v3535
    %5274 = vmatprep.subr.mxu0 0.0
    %5275 = vmatpush1.msra.mxu0 %v3536
    %5276 = vmatprep.subr.mxu0 0.0
    %5277 = vmatpush1.msra.mxu0 %v3537
    %5278 = vmatprep.subr.mxu0 0.0
    %5279 = vmatpush1.msra.mxu0 %v3538
    %5280 = vmatprep.subr.mxu0 0.0
    %5281 = vmatpush1.msra.mxu0 0.0
    %5282 = vmatprep.subr.mxu0 0.0
    %5283 = vmatpush1.msra.mxu0 0.0
    %5284 = vmatprep.subr.mxu0 0.0
    %5285 = vmatpush1.msra.mxu0 0.0
    %5286 = vmatprep.subr.mxu0 0.0
    %5287 = vmatpush1.msra.mxu0 0.0
    %5288 = vmatprep.subr.mxu0 0.0
    %5289 = vmatpush1.msra.mxu0 0.0
    %5290 = vmatprep.subr.mxu0 0.0
    %5291 = vmatpush1.msra.mxu0 0.0
    %5292 = vmatprep.subr.mxu0 0.0
    %5293 = vmatpush1.msra.mxu0 0.0
    %5294 = vmatprep.subr.mxu0 0.0
    %5295 = vmatpush1.msra.mxu0 0.0
    %5296 = vmatprep.subr.mxu0 0.0
    %5297 = vmatpush1.msra.mxu0 0.0
    %5298 = vmatprep.subr.mxu0 0.0
    %5299 = vmatpush1.msra.mxu0 0.0
    %5300 = vmatprep.subr.mxu0 0.0
    %5301 = vmatpush1.msra.mxu0 0.0
    %5302 = vmatprep.subr.mxu0 0.0
    %5303 = vmatpush1.msra.mxu0 0.0
    %5304 = vmatprep.subr.mxu0 0.0
    %5305 = vmatpush1.msra.mxu0 0.0
    %5306 = vmatprep.subr.mxu0 0.0
    %5307 = vmatpush1.msra.mxu0 0.0
    %5308 = vmatprep.subr.mxu0 0.0
    %5309 = vmatpush1.msra.mxu0 0.0
    %5310 = vmatprep.subr.mxu0 0.0
    %5311 = vmatpush1.msra.mxu0 0.0
    %5312 = vmatprep.subr.mxu0 0.0
    %5313 = vmatpush1.msra.mxu0 0.0
    %5314 = vmatprep.subr.mxu0 0.0
    %5315 = vmatpush1.msra.mxu0 0.0
    %5316 = vmatprep.subr.mxu0 0.0
    %5317 = vmatpush1.msra.mxu0 0.0
    %5318 = vmatprep.subr.mxu0 0.0
    %5319 = vmatpush1.msra.mxu0 0.0
    %5320 = vmatprep.subr.mxu0 0.0
    %5321 = vmatpush1.msra.mxu0 0.0
    %5322 = vmatprep.subr.mxu0 0.0
    %5323 = vmatpush1.msra.mxu0 0.0
    %5324 = vmatprep.subr.mxu0 0.0
    %5325 = vmatpush1.msra.mxu0 0.0
    %5326 = vmatprep.subr.mxu0 0.0
    %5327 = vmatpush1.msra.mxu0 0.0
    %5328 = vmatprep.subr.mxu0 0.0
    %5329 = vmatpush1.msra.mxu0 0.0
    %5330 = vmatprep.subr.mxu0 0.0
    %5331 = vmatpush1.msra.mxu0 0.0
    %5332 = vmatprep.subr.mxu0 0.0
    %5333 = vmatpush1.msra.mxu0 0.0
    %5334 = vmatprep.subr.mxu0 0.0
    %5335 = vmatpush1.msra.mxu0 0.0
    %5336 = vmatprep.mubr.f32.mxu0 0.0
    %5337 = vmatmul.mubr.f32.gmra.mrb[0].mxu0 %v5270
    %v5338 = vpop.f32.mrb[0].mxu0
    %v5339 = vadd.f32 %v3826, %v5338
    %v5340 = vpop.f32.mrb[0].mxu0
    %5341 = vdwg.mxu0
    %v5342 = vxor.u32 %v5339, 2147483648
    %v5343 = vmul.f32 %v5342, 1.442695
    %v5344 = vpow.pop %v5343
    %v5345 = vadd.f32 %v5344, 1.0
    %v5346 = vrcp.pop %v5345
    %v5347 = vmul.f32 1.0, %v5346
    %v5348 = vmul.f32 %v5347, 11.0
    %v5349 = vadd.f32 %v5348, 2.0
    %v5350 = vfloor.f32 %v5349
    %v5351 = vcvt.f32.s32.to.zero.pseudo %v5350
    %5352 = vset.pattern.permute.xlu0 0
    %5353 = vperm.xlu0 %5352, %v5351
    %v5354 = vpop.permute.xlu0 %5353
    %v5355 = vadd.s32 %v5354, %v3549
    %v5356 = vlaneseq
    %v5357 = vshrl.u32 %v5356, 7
    %v5358 = vsub.s32 0, %v5357
    %v5359 = vrot.slane %v5355, %v5358
    %5361 = vbcast.lane.b32.xlu0 %v5359, 256
    %v5362 = vpop.permute.xlu0 %5361
    %v5363 = vlaneseq
    %v5364 = vshrl.u32 %v5363, 7
    %v5365 = vsub.s32 1, %v5364
    %v5366 = vrot.slane %v5355, %v5365
    %5368 = vbcast.lane.b32.xlu0 %v5366, 256
    %v5369 = vpop.permute.xlu0 %5368
    %vm5370 = vcmp.eq.s32.totalorder %v5362, %v3548
    %vm5371 = vcmp.eq.s32.totalorder %v5369, %v3548
    %v5372 = vsel %vm5370, 1, 0
    %v5373 = vsel %vm5371, 1, 0
    %v5374 = vcvt.s32.f32 %v5372
    %v5375 = vcvt.s32.f32 %v5373
    %v5377 = vsel %vm3943, %v5374, 0
    %5379 = vmatprep.subr.mxu0 0.0
    %5380 = vmatpush1.msra.mxu0 %v3938
    %5381 = vmatprep.subr.mxu0 0.0
    %5382 = vmatpush1.msra.mxu0 %v3940
    %5383 = vmatprep.subr.mxu0 0.0
    %5384 = vmatpush1.msra.mxu0 0.0
    %5385 = vmatprep.subr.mxu0 0.0
    %5386 = vmatpush1.msra.mxu0 0.0
    %5387 = vmatprep.subr.mxu0 0.0
    %5388 = vmatpush1.msra.mxu0 0.0
    %5389 = vmatprep.subr.mxu0 0.0
    %5390 = vmatpush1.msra.mxu0 0.0
    %5391 = vmatprep.subr.mxu0 0.0
    %5392 = vmatpush1.msra.mxu0 0.0
    %5393 = vmatprep.subr.mxu0 0.0
    %5394 = vmatpush1.msra.mxu0 0.0
    %5395 = vmatprep.subr.mxu0 0.0
    %5396 = vmatpush1.msra.mxu0 0.0
    %5397 = vmatprep.subr.mxu0 0.0
    %5398 = vmatpush1.msra.mxu0 0.0
    %5399 = vmatprep.subr.mxu0 0.0
    %5400 = vmatpush1.msra.mxu0 0.0
    %5401 = vmatprep.subr.mxu0 0.0
    %5402 = vmatpush1.msra.mxu0 0.0
    %5403 = vmatprep.subr.mxu0 0.0
    %5404 = vmatpush1.msra.mxu0 0.0
    %5405 = vmatprep.subr.mxu0 0.0
    %5406 = vmatpush1.msra.mxu0 0.0
    %5407 = vmatprep.subr.mxu0 0.0
    %5408 = vmatpush1.msra.mxu0 0.0
    %5409 = vmatprep.subr.mxu0 0.0
    %5410 = vmatpush1.msra.mxu0 0.0
    %5411 = vmatprep.subr.mxu0 0.0
    %5412 = vmatpush1.msra.mxu0 0.0
    %5413 = vmatprep.subr.mxu0 0.0
    %5414 = vmatpush1.msra.mxu0 0.0
    %5415 = vmatprep.subr.mxu0 0.0
    %5416 = vmatpush1.msra.mxu0 0.0
    %5417 = vmatprep.subr.mxu0 0.0
    %5418 = vmatpush1.msra.mxu0 0.0
    %5419 = vmatprep.subr.mxu0 0.0
    %5420 = vmatpush1.msra.mxu0 0.0
    %5421 = vmatprep.subr.mxu0 0.0
    %5422 = vmatpush1.msra.mxu0 0.0
    %5423 = vmatprep.subr.mxu0 0.0
    %5424 = vmatpush1.msra.mxu0 0.0
    %5425 = vmatprep.subr.mxu0 0.0
    %5426 = vmatpush1.msra.mxu0 0.0
    %5427 = vmatprep.subr.mxu0 0.0
    %5428 = vmatpush1.msra.mxu0 0.0
    %5429 = vmatprep.subr.mxu0 0.0
    %5430 = vmatpush1.msra.mxu0 0.0
    %5431 = vmatprep.subr.mxu0 0.0
    %5432 = vmatpush1.msra.mxu0 0.0
    %5433 = vmatprep.subr.mxu0 0.0
    %5434 = vmatpush1.msra.mxu0 0.0
    %5435 = vmatprep.subr.mxu0 0.0
    %5436 = vmatpush1.msra.mxu0 0.0
    %5437 = vmatprep.subr.mxu0 0.0
    %5438 = vmatpush1.msra.mxu0 0.0
    %5439 = vmatprep.subr.mxu0 0.0
    %5440 = vmatpush1.msra.mxu0 0.0
    %5441 = vmatprep.subr.mxu0 0.0
    %5442 = vmatpush1.msra.mxu0 0.0
    %5443 = vmatprep.mubr.f32.mxu0 0.0
    %5444 = vmatmul.mubr.f32.gmra.mrb[0].mxu0 %v5377
    %v5445 = vpop.f32.mrb[0].mxu0
    %v5446 = vadd.f32 0.0, %v5445
    %v5447 = vpop.f32.mrb[0].mxu0
    %5448 = vdwg.mxu0
    %v5450 = vsel %vm3943, %v5375, 0
    %5452 = vmatprep.subr.mxu0 0.0
    %5453 = vmatpush1.msra.mxu0 %v4020
    %5454 = vmatprep.subr.mxu0 0.0
    %5455 = vmatpush1.msra.mxu0 %v4022
    %5456 = vmatprep.subr.mxu0 0.0
    %5457 = vmatpush1.msra.mxu0 0.0
    %5458 = vmatprep.subr.mxu0 0.0
    %5459 = vmatpush1.msra.mxu0 0.0
    %5460 = vmatprep.subr.mxu0 0.0
    %5461 = vmatpush1.msra.mxu0 0.0
    %5462 = vmatprep.subr.mxu0 0.0
    %5463 = vmatpush1.msra.mxu0 0.0
    %5464 = vmatprep.subr.mxu0 0.0
    %5465 = vmatpush1.msra.mxu0 0.0
    %5466 = vmatprep.subr.mxu0 0.0
    %5467 = vmatpush1.msra.mxu0 0.0
    %5468 = vmatprep.subr.mxu0 0.0
    %5469 = vmatpush1.msra.mxu0 0.0
    %5470 = vmatprep.subr.mxu0 0.0
    %5471 = vmatpush1.msra.mxu0 0.0
    %5472 = vmatprep.subr.mxu0 0.0
    %5473 = vmatpush1.msra.mxu0 0.0
    %5474 = vmatprep.subr.mxu0 0.0
    %5475 = vmatpush1.msra.mxu0 0.0
    %5476 = vmatprep.subr.mxu0 0.0
    %5477 = vmatpush1.msra.mxu0 0.0
    %5478 = vmatprep.subr.mxu0 0.0
    %5479 = vmatpush1.msra.mxu0 0.0
    %5480 = vmatprep.subr.mxu0 0.0
    %5481 = vmatpush1.msra.mxu0 0.0
    %5482 = vmatprep.subr.mxu0 0.0
    %5483 = vmatpush1.msra.mxu0 0.0
    %5484 = vmatprep.subr.mxu0 0.0
    %5485 = vmatpush1.msra.mxu0 0.0
    %5486 = vmatprep.subr.mxu0 0.0
    %5487 = vmatpush1.msra.mxu0 0.0
    %5488 = vmatprep.subr.mxu0 0.0
    %5489 = vmatpush1.msra.mxu0 0.0
    %5490 = vmatprep.subr.mxu0 0.0
    %5491 = vmatpush1.msra.mxu0 0.0
    %5492 = vmatprep.subr.mxu0 0.0
    %5493 = vmatpush1.msra.mxu0 0.0
    %5494 = vmatprep.subr.mxu0 0.0
    %5495 = vmatpush1.msra.mxu0 0.0
    %5496 = vmatprep.subr.mxu0 0.0
    %5497 = vmatpush1.msra.mxu0 0.0
    %5498 = vmatprep.subr.mxu0 0.0
    %5499 = vmatpush1.msra.mxu0 0.0
    %5500 = vmatprep.subr.mxu0 0.0
    %5501 = vmatpush1.msra.mxu0 0.0
    %5502 = vmatprep.subr.mxu0 0.0
    %5503 = vmatpush1.msra.mxu0 0.0
    %5504 = vmatprep.subr.mxu0 0.0
    %5505 = vmatpush1.msra.mxu0 0.0
    %5506 = vmatprep.subr.mxu0 0.0
    %5507 = vmatpush1.msra.mxu0 0.0
    %5508 = vmatprep.subr.mxu0 0.0
    %5509 = vmatpush1.msra.mxu0 0.0
    %5510 = vmatprep.subr.mxu0 0.0
    %5511 = vmatpush1.msra.mxu0 0.0
    %5512 = vmatprep.subr.mxu0 0.0
    %5513 = vmatpush1.msra.mxu0 0.0
    %5514 = vmatprep.subr.mxu0 0.0
    %5515 = vmatpush1.msra.mxu0 0.0
    %5516 = vmatprep.mubr.f32.mxu0 0.0
    %5517 = vmatmul.mubr.f32.gmra.mrb[0].mxu0 %v5450
    %v5518 = vpop.f32.mrb[0].mxu0
    %v5519 = vadd.f32 0.0, %v5518
    %v5520 = vpop.f32.mrb[0].mxu0
    %5521 = vdwg.mxu0
    %v5524 = vcombine.high %v5446, %v5446
    %v5526 = vunpack.c.l.s4 1966171168
    %v5527 = vunpack.c.0.s8 %v5526
    %v5528 = vlaneseq
    %v5529 = vshrl.u32 %v5528, 7
    %v5530 = vsub.s32 %v5527, %v5529
    %v5531 = vrot.slane %v5446, %v5530
    %v5533 = vunpack.c.l.s4 1966171168
    %v5534 = vunpack.c.0.s8 %v5533
    %v5535 = vlaneseq
    %v5536 = vshrl.u32 %v5535, 7
    %v5537 = vsub.s32 %v5534, %v5536
    %v5538 = vrot.slane %v5524, %v5537
    %v5539 = vcombine.high %v5531, %v5531
    %v5541 = vunpack.c.l.s4 1966171168
    %v5542 = vunpack.c.0.s8 %v5541
    %v5543 = vlaneseq
    %v5544 = vshrl.u32 %v5543, 7
    %v5545 = vsub.s32 %v5542, %v5544
    %v5546 = vrot.slane %v5531, %v5545
    %v5548 = vunpack.c.l.s4 1966171168
    %v5549 = vunpack.c.0.s8 %v5548
    %v5550 = vlaneseq
    %v5551 = vshrl.u32 %v5550, 7
    %v5552 = vsub.s32 %v5549, %v5551
    %v5553 = vrot.slane %v5538, %v5552
    %v5555 = vunpack.c.l.s4 1966171168
    %v5556 = vunpack.c.0.s8 %v5555
    %v5557 = vlaneseq
    %v5558 = vshrl.u32 %v5557, 7
    %v5559 = vsub.s32 %v5556, %v5558
    %v5560 = vrot.slane %v5539, %v5559
    %v5561 = vcombine.high %v5546, %v5546
    %v5562 = vcombine.high %v5560, %v5560
    %v5563 = vcombine.high %v5519, %v5519
    %v5565 = vunpack.c.l.s4 1966171168
    %v5566 = vunpack.c.0.s8 %v5565
    %v5567 = vlaneseq
    %v5568 = vshrl.u32 %v5567, 7
    %v5569 = vsub.s32 %v5566, %v5568
    %v5570 = vrot.slane %v5519, %v5569
    %v5572 = vunpack.c.l.s4 1966171168
    %v5573 = vunpack.c.0.s8 %v5572
    %v5574 = vlaneseq
    %v5575 = vshrl.u32 %v5574, 7
    %v5576 = vsub.s32 %v5573, %v5575
    %v5577 = vrot.slane %v5563, %v5576
    %v5578 = vcombine.high %v5570, %v5570
    %v5580 = vunpack.c.l.s4 1966171168
    %v5581 = vunpack.c.0.s8 %v5580
    %v5582 = vlaneseq
    %v5583 = vshrl.u32 %v5582, 7
    %v5584 = vsub.s32 %v5581, %v5583
    %v5585 = vrot.slane %v5570, %v5584
    %v5587 = vunpack.c.l.s4 1966171168
    %v5588 = vunpack.c.0.s8 %v5587
    %v5589 = vlaneseq
    %v5590 = vshrl.u32 %v5589, 7
    %v5591 = vsub.s32 %v5588, %v5590
    %v5592 = vrot.slane %v5577, %v5591
    %v5594 = vunpack.c.l.s4 1966171168
    %v5595 = vunpack.c.0.s8 %v5594
    %v5596 = vlaneseq
    %v5597 = vshrl.u32 %v5596, 7
    %v5598 = vsub.s32 %v5595, %v5597
    %v5599 = vrot.slane %v5578, %v5598
    %v5600 = vcombine.high %v5585, %v5585
    %v5601 = vcombine.high %v5599, %v5599
    %v5602 = vcombine.low %v5546, %v5560
    %v5603 = vcombine.low %v5561, %v5562
    %v5604 = vcombine.low %v5553, %v5585
    %v5605 = vcombine.low %v5599, %v5600
    %v5607 = vunpack.c.l.s4 1966171168
    %v5608 = vunpack.c.0.s8 %v5607
    %v5609 = vlaneseq
    %v5610 = vshrl.u32 %v5609, 7
    %v5611 = vsub.s32 %v5608, %v5610
    %v5612 = vrot.slane %v5602, %v5611
    %v5614 = vunpack.c.l.s4 1966171168
    %v5615 = vunpack.c.0.s8 %v5614
    %v5616 = vlaneseq
    %v5617 = vshrl.u32 %v5616, 7
    %v5618 = vsub.s32 %v5615, %v5617
    %v5619 = vrot.slane %v5603, %v5618
    %v5621 = vunpack.c.l.s4 1966171168
    %v5622 = vunpack.c.0.s8 %v5621
    %v5623 = vlaneseq
    %v5624 = vshrl.u32 %v5623, 7
    %v5625 = vsub.s32 %v5622, %v5624
    %v5626 = vrot.slane %v5604, %v5625
    %v5628 = vunpack.c.l.s4 1966171168
    %v5629 = vunpack.c.0.s8 %v5628
    %v5630 = vlaneseq
    %v5631 = vshrl.u32 %v5630, 7
    %v5632 = vsub.s32 %v5629, %v5631
    %v5633 = vrot.slane %v5605, %v5632
    %v5634 = vcombine.low %v5612, %v5619
    %v5635 = vcombine.low %v5626, %v5633
    %v5637 = vunpack.c.l.s4 1966171168
    %v5638 = vunpack.c.0.s8 %v5637
    %v5639 = vlaneseq
    %v5640 = vshrl.u32 %v5639, 7
    %v5641 = vsub.s32 %v5638, %v5640
    %v5642 = vrot.slane %v5634, %v5641
    %v5644 = vunpack.c.l.s4 1966171168
    %v5645 = vunpack.c.0.s8 %v5644
    %v5646 = vlaneseq
    %v5647 = vshrl.u32 %v5646, 7
    %v5648 = vsub.s32 %v5645, %v5647
    %v5649 = vrot.slane %v5635, %v5648
    %v5650 = vcombine.low %v5642, %v5649
    %v5651 = vcombine.low %v5601, %v5592
    %v5653 = vunpack.c.l.s4 1966171168
    %v5654 = vunpack.c.0.s8 %v5653
    %v5655 = vlaneseq
    %v5656 = vshrl.u32 %v5655, 7
    %v5657 = vsub.s32 %v5654, %v5656
    %v5658 = vrot.slane %v5651, %v5657
    %v5660 = vunpack.c.l.s4 1966171168
    %v5661 = vunpack.c.0.s8 %v5660
    %v5662 = vlaneseq
    %v5663 = vshrl.u32 %v5662, 7
    %v5664 = vsub.s32 %v5661, %v5663
    %v5665 = vrot.slane %v5658, %v5664
    %v5666 = vsel %vm186, %v5650, 0
    %v5668 = vsel %vm186, %v5665, 0
    %5670 = vmatprep.subr.mxu0 0.0
    %5671 = vmatpush1.msra.mxu0 %v3540
    %5672 = vmatprep.subr.mxu0 0.0
    %5673 = vmatpush1.msra.mxu0 %v3541
    %5674 = vmatprep.subr.mxu0 0.0
    %5675 = vmatpush1.msra.mxu0 %v3542
    %5676 = vmatprep.subr.mxu0 0.0
    %5677 = vmatpush1.msra.mxu0 %v3543
    %5678 = vmatprep.subr.mxu0 0.0
    %5679 = vmatpush1.msra.mxu0 0.0
    %5680 = vmatprep.subr.mxu0 0.0
    %5681 = vmatpush1.msra.mxu0 0.0
    %5682 = vmatprep.subr.mxu0 0.0
    %5683 = vmatpush1.msra.mxu0 0.0
    %5684 = vmatprep.subr.mxu0 0.0
    %5685 = vmatpush1.msra.mxu0 0.0
    %5686 = vmatprep.subr.mxu0 0.0
    %5687 = vmatpush1.msra.mxu0 0.0
    %5688 = vmatprep.subr.mxu0 0.0
    %5689 = vmatpush1.msra.mxu0 0.0
    %5690 = vmatprep.subr.mxu0 0.0
    %5691 = vmatpush1.msra.mxu0 0.0
    %5692 = vmatprep.subr.mxu0 0.0
    %5693 = vmatpush1.msra.mxu0 0.0
    %5694 = vmatprep.subr.mxu0 0.0
    %5695 = vmatpush1.msra.mxu0 0.0
    %5696 = vmatprep.subr.mxu0 0.0
    %5697 = vmatpush1.msra.mxu0 0.0
    %5698 = vmatprep.subr.mxu0 0.0
    %5699 = vmatpush1.msra.mxu0 0.0
    %5700 = vmatprep.subr.mxu0 0.0
    %5701 = vmatpush1.msra.mxu0 0.0
    %5702 = vmatprep.subr.mxu0 0.0
    %5703 = vmatpush1.msra.mxu0 0.0
    %5704 = vmatprep.subr.mxu0 0.0
    %5705 = vmatpush1.msra.mxu0 0.0
    %5706 = vmatprep.subr.mxu0 0.0
    %5707 = vmatpush1.msra.mxu0 0.0
    %5708 = vmatprep.subr.mxu0 0.0
    %5709 = vmatpush1.msra.mxu0 0.0
    %5710 = vmatprep.subr.mxu0 0.0
    %5711 = vmatpush1.msra.mxu0 0.0
    %5712 = vmatprep.subr.mxu0 0.0
    %5713 = vmatpush1.msra.mxu0 0.0
    %5714 = vmatprep.subr.mxu0 0.0
    %5715 = vmatpush1.msra.mxu0 0.0
    %5716 = vmatprep.subr.mxu0 0.0
    %5717 = vmatpush1.msra.mxu0 0.0
    %5718 = vmatprep.subr.mxu0 0.0
    %5719 = vmatpush1.msra.mxu0 0.0
    %5720 = vmatprep.subr.mxu0 0.0
    %5721 = vmatpush1.msra.mxu0 0.0
    %5722 = vmatprep.subr.mxu0 0.0
    %5723 = vmatpush1.msra.mxu0 0.0
    %5724 = vmatprep.subr.mxu0 0.0
    %5725 = vmatpush1.msra.mxu0 0.0
    %5726 = vmatprep.subr.mxu0 0.0
    %5727 = vmatpush1.msra.mxu0 0.0
    %5728 = vmatprep.subr.mxu0 0.0
    %5729 = vmatpush1.msra.mxu0 0.0
    %5730 = vmatprep.subr.mxu0 0.0
    %5731 = vmatpush1.msra.mxu0 0.0
    %5732 = vmatprep.subr.mxu0 0.0
    %5733 = vmatpush1.msra.mxu0 0.0
    %5734 = vmatprep.mubr.f32.mxu0 0.0
    %5735 = vmatmul.mubr.f32.gmra.mrb[0].mxu0 %v5666
    %v5736 = vpop.f32.mrb[0].mxu0
    %v5737 = vadd.f32 %v4334, %v5736
    %v5738 = vpop.f32.mrb[0].mxu0
    %5739 = vmatprep.mubr.f32.mxu0 0.0
    %5740 = vmatmul.mubr.f32.gmra.mrb[0].mxu0 %v5668
    %v5741 = vpop.f32.mrb[0].mxu0
    %v5742 = vadd.f32 %v4349, %v5741
    %v5743 = vpop.f32.mrb[0].mxu0
    %5744 = vdwg.mxu0
    %v5747 = vcombine.high %v5737, %v5737
    %v5749 = vunpack.c.l.s4 1966171168
    %v5750 = vunpack.c.0.s8 %v5749
    %v5751 = vlaneseq
    %v5752 = vshrl.u32 %v5751, 7
    %v5753 = vsub.s32 %v5750, %v5752
    %v5754 = vrot.slane %v5737, %v5753
    %v5756 = vunpack.c.l.s4 1966171168
    %v5757 = vunpack.c.0.s8 %v5756
    %v5758 = vlaneseq
    %v5759 = vshrl.u32 %v5758, 7
    %v5760 = vsub.s32 %v5757, %v5759
    %v5761 = vrot.slane %v5747, %v5760
    %v5762 = vcombine.high %v5754, %v5754
    %v5763 = vcombine.high %v5761, %v5761
    %v5765 = vunpack.c.l.s4 1966171168
    %v5766 = vunpack.c.0.s8 %v5765
    %v5767 = vlaneseq
    %v5768 = vshrl.u32 %v5767, 7
    %v5769 = vsub.s32 %v5766, %v5768
    %v5770 = vrot.slane %v5754, %v5769
    %v5772 = vunpack.c.l.s4 1966171168
    %v5773 = vunpack.c.0.s8 %v5772
    %v5774 = vlaneseq
    %v5775 = vshrl.u32 %v5774, 7
    %v5776 = vsub.s32 %v5773, %v5775
    %v5777 = vrot.slane %v5761, %v5776
    %v5779 = vunpack.c.l.s4 1966171168
    %v5780 = vunpack.c.0.s8 %v5779
    %v5781 = vlaneseq
    %v5782 = vshrl.u32 %v5781, 7
    %v5783 = vsub.s32 %v5780, %v5782
    %v5784 = vrot.slane %v5762, %v5783
    %v5786 = vunpack.c.l.s4 1966171168
    %v5787 = vunpack.c.0.s8 %v5786
    %v5788 = vlaneseq
    %v5789 = vshrl.u32 %v5788, 7
    %v5790 = vsub.s32 %v5787, %v5789
    %v5791 = vrot.slane %v5763, %v5790
    %v5792 = vcombine.high %v5770, %v5770
    %v5793 = vcombine.high %v5777, %v5777
    %v5794 = vcombine.high %v5784, %v5784
    %v5795 = vcombine.high %v5791, %v5791
    %v5797 = vunpack.c.l.s4 1966171168
    %v5798 = vunpack.c.0.s8 %v5797
    %v5799 = vlaneseq
    %v5800 = vshrl.u32 %v5799, 7
    %v5801 = vsub.s32 %v5798, %v5800
    %v5802 = vrot.slane %v5742, %v5801
    %v5803 = vcombine.high %v5802, %v5802
    %v5805 = vunpack.c.l.s4 1966171168
    %v5806 = vunpack.c.0.s8 %v5805
    %v5807 = vlaneseq
    %v5808 = vshrl.u32 %v5807, 7
    %v5809 = vsub.s32 %v5806, %v5808
    %v5810 = vrot.slane %v5802, %v5809
    %v5812 = vunpack.c.l.s4 1966171168
    %v5813 = vunpack.c.0.s8 %v5812
    %v5814 = vlaneseq
    %v5815 = vshrl.u32 %v5814, 7
    %v5816 = vsub.s32 %v5813, %v5815
    %v5817 = vrot.slane %v5803, %v5816
    %v5829 = vunpack.c.l.s4 1966171168
    %v5830 = vunpack.c.0.s8 %v5829
    %v5831 = vlaneseq
    %v5832 = vshrl.u32 %v5831, 7
    %v5833 = vsub.s32 %v5830, %v5832
    %v5834 = vrot.slane %v5192, %v5833
    %v5835 = vcombine.high %v5834, %v5834
    %v5837 = vunpack.c.l.s4 1966171168
    %v5838 = vunpack.c.0.s8 %v5837
    %v5839 = vlaneseq
    %v5840 = vshrl.u32 %v5839, 7
    %v5841 = vsub.s32 %v5838, %v5840
    %v5842 = vrot.slane %v5834, %v5841
    %v5844 = vunpack.c.l.s4 1966171168
    %v5845 = vunpack.c.0.s8 %v5844
    %v5846 = vlaneseq
    %v5847 = vshrl.u32 %v5846, 7
    %v5848 = vsub.s32 %v5845, %v5847
    %v5849 = vrot.slane %v5835, %v5848
    %v5850 = vlaneseq
    %v5851 = vshrl.u32 %v5850, 7
    %v5852 = vsub.s32 0, %v5851
    %v5853 = vrot.slane %v5842, %v5852
    %v5854 = vlaneseq
    %v5855 = vshrl.u32 %v5854, 7
    %v5856 = vsub.s32 0, %v5855
    %v5857 = vrot.slane %v5849, %v5856
    %v5858 = vcombine.high %v5853, %v5853
    %v5860 = vunpack.c.l.s4 1966171168
    %v5861 = vunpack.c.0.s8 %v5860
    %v5862 = vlaneseq
    %v5863 = vshrl.u32 %v5862, 7
    %v5864 = vsub.s32 %v5861, %v5863
    %v5865 = vrot.slane %v5853, %v5864
    %v5867 = vunpack.c.l.s4 1966171168
    %v5868 = vunpack.c.0.s8 %v5867
    %v5869 = vlaneseq
    %v5870 = vshrl.u32 %v5869, 7
    %v5871 = vsub.s32 %v5868, %v5870
    %v5872 = vrot.slane %v5858, %v5871
    %v5873 = vcombine.high %v5865, %v5865
    %v5875 = vunpack.c.l.s4 1966171168
    %v5876 = vunpack.c.0.s8 %v5875
    %v5877 = vlaneseq
    %v5878 = vshrl.u32 %v5877, 7
    %v5879 = vsub.s32 %v5876, %v5878
    %v5880 = vrot.slane %v5865, %v5879
    %v5882 = vunpack.c.l.s4 1966171168
    %v5883 = vunpack.c.0.s8 %v5882
    %v5884 = vlaneseq
    %v5885 = vshrl.u32 %v5884, 7
    %v5886 = vsub.s32 %v5883, %v5885
    %v5887 = vrot.slane %v5872, %v5886
    %v5889 = vunpack.c.l.s4 1966171168
    %v5890 = vunpack.c.0.s8 %v5889
    %v5891 = vlaneseq
    %v5892 = vshrl.u32 %v5891, 7
    %v5893 = vsub.s32 %v5890, %v5892
    %v5894 = vrot.slane %v5873, %v5893
    %v5895 = vcombine.high %v5880, %v5880
    %v5896 = vcombine.high %v5894, %v5894
    %v5897 = vcombine.high %v5857, %v5857
    %v5899 = vunpack.c.l.s4 1966171168
    %v5900 = vunpack.c.0.s8 %v5899
    %v5901 = vlaneseq
    %v5902 = vshrl.u32 %v5901, 7
    %v5903 = vsub.s32 %v5900, %v5902
    %v5904 = vrot.slane %v5857, %v5903
    %v5906 = vunpack.c.l.s4 1966171168
    %v5907 = vunpack.c.0.s8 %v5906
    %v5908 = vlaneseq
    %v5909 = vshrl.u32 %v5908, 7
    %v5910 = vsub.s32 %v5907, %v5909
    %v5911 = vrot.slane %v5897, %v5910
    %v5912 = vcombine.high %v5904, %v5904
    %v5914 = vunpack.c.l.s4 1966171168
    %v5915 = vunpack.c.0.s8 %v5914
    %v5916 = vlaneseq
    %v5917 = vshrl.u32 %v5916, 7
    %v5918 = vsub.s32 %v5915, %v5917
    %v5919 = vrot.slane %v5904, %v5918
    %v5921 = vunpack.c.l.s4 1966171168
    %v5922 = vunpack.c.0.s8 %v5921
    %v5923 = vlaneseq
    %v5924 = vshrl.u32 %v5923, 7
    %v5925 = vsub.s32 %v5922, %v5924
    %v5926 = vrot.slane %v5911, %v5925
    %v5928 = vunpack.c.l.s4 1966171168
    %v5929 = vunpack.c.0.s8 %v5928
    %v5930 = vlaneseq
    %v5931 = vshrl.u32 %v5930, 7
    %v5932 = vsub.s32 %v5929, %v5931
    %v5933 = vrot.slane %v5912, %v5932
    %v5934 = vcombine.high %v5919, %v5919
    %v5935 = vcombine.high %v5933, %v5933
    %5936 = vrot.lane.b32.xlu0 %v5880, 96
    %v5937 = vpop.permute.xlu0 %5936
    %5938 = vrot.lane.b32.xlu0 %v5894, 96
    %v5939 = vpop.permute.xlu0 %5938
    %5940 = vrot.lane.b32.xlu0 %v5895, 96
    %v5941 = vpop.permute.xlu0 %5940
    %5942 = vrot.lane.b32.xlu0 %v5896, 96
    %v5943 = vpop.permute.xlu0 %5942
    %5944 = vrot.lane.b32.xlu0 %v5887, 96
    %v5945 = vpop.permute.xlu0 %5944
    %5946 = vrot.lane.b32.xlu0 %v5919, 96
    %v5947 = vpop.permute.xlu0 %5946
    %5948 = vrot.lane.b32.xlu0 %v5933, 96
    %v5949 = vpop.permute.xlu0 %5948
    %5950 = vrot.lane.b32.xlu0 %v5934, 96
    %v5951 = vpop.permute.xlu0 %5950
    %5952 = vrot.lane.b32.xlu0 %v5935, 96
    %v5953 = vpop.permute.xlu0 %5952
    %5954 = vrot.lane.b32.xlu0 %v5926, 96
    %v5955 = vpop.permute.xlu0 %5954
    %v5966 = vmul.f32 %v5770, %v5937
    %v5967 = vmul.f32 %v5784, %v5939
    %v5968 = vmul.f32 %v5792, %v5941
    %v5969 = vmul.f32 %v5794, %v5943
    %v5970 = vmul.f32 %v5777, %v5945
    %v5971 = vmul.f32 %v5791, %v5947
    %v5972 = vmul.f32 %v5793, %v5949
    %v5973 = vmul.f32 %v5795, %v5951
    %v5974 = vmul.f32 %v5810, %v5953
    %v5975 = vmul.f32 %v5817, %v5955
    %v5986 = vcombine.low %v5966, %v5967
    %v5987 = vcombine.low %v5968, %v5969
    %v5989 = vunpack.c.l.s4 1966171168
    %v5990 = vunpack.c.0.s8 %v5989
    %v5991 = vlaneseq
    %v5992 = vshrl.u32 %v5991, 7
    %v5993 = vsub.s32 %v5990, %v5992
    %v5994 = vrot.slane %v5986, %v5993
    %v5996 = vunpack.c.l.s4 1966171168
    %v5997 = vunpack.c.0.s8 %v5996
    %v5998 = vlaneseq
    %v5999 = vshrl.u32 %v5998, 7
    %v6000 = vsub.s32 %v5997, %v5999
    %v6001 = vrot.slane %v5987, %v6000
    %v6003 = vunpack.c.l.s4 1966171168
    %v6004 = vunpack.c.0.s8 %v6003
    %v6005 = vlaneseq
    %v6006 = vshrl.u32 %v6005, 7
    %v6007 = vsub.s32 %v6004, %v6006
    %v6008 = vrot.slane %v5970, %v6007
    %v6009 = vcombine.low %v5994, %v6001
    %v6011 = vunpack.c.l.s4 1966171168
    %v6012 = vunpack.c.0.s8 %v6011
    %v6013 = vlaneseq
    %v6014 = vshrl.u32 %v6013, 7
    %v6015 = vsub.s32 %v6012, %v6014
    %v6016 = vrot.slane %v6009, %v6015
    %v6018 = vunpack.c.l.s4 1966171168
    %v6019 = vunpack.c.0.s8 %v6018
    %v6020 = vlaneseq
    %v6021 = vshrl.u32 %v6020, 7
    %v6022 = vsub.s32 %v6019, %v6021
    %v6023 = vrot.slane %v6008, %v6022
    %v6024 = vcombine.low %v6016, %v6023
    %v6025 = vcombine.low %v5971, %v5972
    %v6026 = vcombine.low %v5973, %v5974
    %v6028 = vunpack.c.l.s4 1966171168
    %v6029 = vunpack.c.0.s8 %v6028
    %v6030 = vlaneseq
    %v6031 = vshrl.u32 %v6030, 7
    %v6032 = vsub.s32 %v6029, %v6031
    %v6033 = vrot.slane %v6025, %v6032
    %v6035 = vunpack.c.l.s4 1966171168
    %v6036 = vunpack.c.0.s8 %v6035
    %v6037 = vlaneseq
    %v6038 = vshrl.u32 %v6037, 7
    %v6039 = vsub.s32 %v6036, %v6038
    %v6040 = vrot.slane %v6026, %v6039
    %v6042 = vunpack.c.l.s4 1966171168
    %v6043 = vunpack.c.0.s8 %v6042
    %v6044 = vlaneseq
    %v6045 = vshrl.u32 %v6044, 7
    %v6046 = vsub.s32 %v6043, %v6045
    %v6047 = vrot.slane %v5975, %v6046
    %v6048 = vcombine.low %v6033, %v6040
    %v6050 = vunpack.c.l.s4 1966171168
    %v6051 = vunpack.c.0.s8 %v6050
    %v6052 = vlaneseq
    %v6053 = vshrl.u32 %v6052, 7
    %v6054 = vsub.s32 %v6051, %v6053
    %v6055 = vrot.slane %v6048, %v6054
    %v6057 = vunpack.c.l.s4 1966171168
    %v6058 = vunpack.c.0.s8 %v6057
    %v6059 = vlaneseq
    %v6060 = vshrl.u32 %v6059, 7
    %v6061 = vsub.s32 %v6058, %v6060
    %v6062 = vrot.slane %v6047, %v6061
    %v6063 = vcombine.low %v6055, %v6062
    %v6066 = vsel %vm4752, %v6024, 0.0
    %6067 = vadd.xlane.f32.xlu0 %v6066
    %v6068 = vpop.xlane.xlu0 %6067
    %v6069 = vsel %vm4752, %v6063, 0.0
    %6070 = vadd.xlane.f32.xlu0 %v6069
    %v6071 = vpop.xlane.xlu0 %6070
    %v6072 = vcvt.s32.f32 %v5355
    %6074 = vset.pattern.permute.xlu0 0
    %6075 = vperm.xlu0 %6074, %v5349
    %v6076 = vpop.permute.xlu0 %6075
    %v6078 = vsub.f32 %v6072, %v6076
    %v6079 = vmul.f32 %v6078, %v6078
    %v6080 = vmul.f32 %v6079, -0.5
    %v6081 = vmul.f32 %v6080, 1.442695
    %v6082 = vpow.pop %v6081
    %v6084 = vlaneseq
    %v6085 = vshrl.u32 %v6084, 7
    %v6086 = vsub.s32 0, %v6085
    %v6087 = vrot.slane %v6082, %v6086
    %6089 = vbcast.lane.b32.xlu0 %v6087, 256
    %v6090 = vpop.permute.xlu0 %6089
    %v6091 = vlaneseq
    %v6092 = vshrl.u32 %v6091, 7
    %v6093 = vsub.s32 1, %v6092
    %v6094 = vrot.slane %v6082, %v6093
    %6096 = vbcast.lane.b32.xlu0 %v6094, 256
    %v6097 = vpop.permute.xlu0 %6096
    %v6100 = vmul.f32 %v6068, %v6090
    %v6101 = vmul.f32 %v6071, %v6097
    %6104 = vset.pattern.permute.xlu0 0
    %6105 = vperm.xlu0 %6104, %v6100
    %v6106 = vpop.permute.xlu0 %6105
    %6107 = vset.pattern.permute.xlu0 0
    %6108 = vperm.xlu0 %6107, %v6101
    %v6109 = vpop.permute.xlu0 %6108
    %v6110 = vlaneseq
    %v6111 = vshrl.u32 %v6110, 7
    %v6112 = vsub.s32 %v3548, %v6111
    %v6113 = vrot.slane %v6106, %v6112
    %v6114 = vlaneseq
    %v6115 = vshrl.u32 %v6114, 7
    %v6116 = vsub.s32 %v3548, %v6115
    %v6117 = vrot.slane %v6109, %v6116
    %v6118 = vsel %vm111, %v6117, %v6113
    %v6120 = vsel %vm4807, %v6118, -inf
    %6121 = vmax.xlane.f32.xlu0 %v6120
    %v6122 = vpop.xlane.xlu0 %6121
    %v6124 = vlaneseq
    %v6125 = vshrl.u32 %v6124, 7
    %v6126 = vsub.s32 0, %v6125
    %v6127 = vrot.slane %v6122, %v6126
    %v6128 = vlaneseq
    %v6129 = vshrl.u32 %v6128, 7
    %v6130 = vsub.s32 1, %v6129
    %v6131 = vrot.slane %v6122, %v6130
    %v6134 = vsub.f32 %v6100, %v6127
    %v6135 = vsub.f32 %v6101, %v6131
    %v6136 = vmul.f32 %v6134, 1.442695
    %v6137 = vpow.pop %v6136
    %v6138 = vmul.f32 %v6135, 1.442695
    %v6139 = vpow.pop %v6138
    %6142 = vset.pattern.permute.xlu0 0
    %6143 = vperm.xlu0 %6142, %v6137
    %v6144 = vpop.permute.xlu0 %6143
    %6145 = vset.pattern.permute.xlu0 0
    %6146 = vperm.xlu0 %6145, %v6139
    %v6147 = vpop.permute.xlu0 %6146
    %v6148 = vlaneseq
    %v6149 = vshrl.u32 %v6148, 7
    %v6150 = vsub.s32 %v3548, %v6149
    %v6151 = vrot.slane %v6144, %v6150
    %v6152 = vlaneseq
    %v6153 = vshrl.u32 %v6152, 7
    %v6154 = vsub.s32 %v3548, %v6153
    %v6155 = vrot.slane %v6147, %v6154
    %v6156 = vsel %vm111, %v6155, %v6151
    %v6158 = vsel %vm4807, %v6156, 0.0
    %6159 = vadd.xlane.f32.xlu0 %v6158
    %v6160 = vpop.xlane.xlu0 %6159
    %v6162 = vlaneseq
    %v6163 = vshrl.u32 %v6162, 7
    %v6164 = vsub.s32 0, %v6163
    %v6165 = vrot.slane %v6160, %v6164
    %v6166 = vlaneseq
    %v6167 = vshrl.u32 %v6166, 7
    %v6168 = vsub.s32 1, %v6167
    %v6169 = vrot.slane %v6160, %v6168
    %v6172 = vrcp.pop %v6165
    %v6173 = vmul.f32 %v6137, %v6172
    %v6174 = vrcp.pop %v6169
    %v6175 = vmul.f32 %v6139, %v6174
    %6177 = vset.pattern.permute.xlu0 0
    %6178 = vperm.xlu0 %6177, %v6173
    %v6179 = vpop.permute.xlu0 %6178
    %6182 = vset.pattern.permute.xlu0 0
    %6183 = vperm.xlu0 %6182, %v6175
    %v6184 = vpop.permute.xlu0 %6183
    %v6186 = vcombine.low %v5770, %v5784
    %v6187 = vcombine.low %v5792, %v5794
    %v6189 = vunpack.c.l.s4 1966171168
    %v6190 = vunpack.c.0.s8 %v6189
    %v6191 = vlaneseq
    %v6192 = vshrl.u32 %v6191, 7
    %v6193 = vsub.s32 %v6190, %v6192
    %v6194 = vrot.slane %v6186, %v6193
    %v6196 = vunpack.c.l.s4 1966171168
    %v6197 = vunpack.c.0.s8 %v6196
    %v6198 = vlaneseq
    %v6199 = vshrl.u32 %v6198, 7
    %v6200 = vsub.s32 %v6197, %v6199
    %v6201 = vrot.slane %v6187, %v6200
    %v6203 = vunpack.c.l.s4 1966171168
    %v6204 = vunpack.c.0.s8 %v6203
    %v6205 = vlaneseq
    %v6206 = vshrl.u32 %v6205, 7
    %v6207 = vsub.s32 %v6204, %v6206
    %v6208 = vrot.slane %v5777, %v6207
    %v6209 = vcombine.low %v6194, %v6201
    %v6211 = vunpack.c.l.s4 1966171168
    %v6212 = vunpack.c.0.s8 %v6211
    %v6213 = vlaneseq
    %v6214 = vshrl.u32 %v6213, 7
    %v6215 = vsub.s32 %v6212, %v6214
    %v6216 = vrot.slane %v6209, %v6215
    %v6218 = vunpack.c.l.s4 1966171168
    %v6219 = vunpack.c.0.s8 %v6218
    %v6220 = vlaneseq
    %v6221 = vshrl.u32 %v6220, 7
    %v6222 = vsub.s32 %v6219, %v6221
    %v6223 = vrot.slane %v6208, %v6222
    %v6224 = vcombine.low %v6216, %v6223
    %v6225 = vcombine.low %v5791, %v5793
    %v6226 = vcombine.low %v5795, %v5810
    %v6228 = vunpack.c.l.s4 1966171168
    %v6229 = vunpack.c.0.s8 %v6228
    %v6230 = vlaneseq
    %v6231 = vshrl.u32 %v6230, 7
    %v6232 = vsub.s32 %v6229, %v6231
    %v6233 = vrot.slane %v6225, %v6232
    %v6235 = vunpack.c.l.s4 1966171168
    %v6236 = vunpack.c.0.s8 %v6235
    %v6237 = vlaneseq
    %v6238 = vshrl.u32 %v6237, 7
    %v6239 = vsub.s32 %v6236, %v6238
    %v6240 = vrot.slane %v6226, %v6239
    %v6242 = vunpack.c.l.s4 1966171168
    %v6243 = vunpack.c.0.s8 %v6242
    %v6244 = vlaneseq
    %v6245 = vshrl.u32 %v6244, 7
    %v6246 = vsub.s32 %v6243, %v6245
    %v6247 = vrot.slane %v5817, %v6246
    %v6248 = vcombine.low %v6233, %v6240
    %v6250 = vunpack.c.l.s4 1966171168
    %v6251 = vunpack.c.0.s8 %v6250
    %v6252 = vlaneseq
    %v6253 = vshrl.u32 %v6252, 7
    %v6254 = vsub.s32 %v6251, %v6253
    %v6255 = vrot.slane %v6248, %v6254
    %v6257 = vunpack.c.l.s4 1966171168
    %v6258 = vunpack.c.0.s8 %v6257
    %v6259 = vlaneseq
    %v6260 = vshrl.u32 %v6259, 7
    %v6261 = vsub.s32 %v6258, %v6260
    %v6262 = vrot.slane %v6247, %v6261
    %v6263 = vcombine.low %v6255, %v6262
    %v6266 = vmul.f32 %v6179, %v6224
    %v6267 = vmul.f32 %v6184, %v6263
    %v6268 = vsel %vm4752, %v6266, 0.0
    %v6269 = vrot.slane %v6268, 4
    %v6270 = vadd.f32 %v6268, %v6269
    %v6271 = vrot.slane %v6270, 2
    %v6272 = vadd.f32 %v6270, %v6271
    %v6273 = vrot.slane %v6272, 1
    %v6274 = vadd.f32 %v6272, %v6273
    %v6275 = vsel %vm4752, %v6267, 0.0
    %v6276 = vrot.slane %v6275, 4
    %v6277 = vadd.f32 %v6275, %v6276
    %v6278 = vrot.slane %v6277, 2
    %v6279 = vadd.f32 %v6277, %v6278
    %v6280 = vrot.slane %v6279, 1
    %v6281 = vadd.f32 %v6279, %v6280
    %v6284 = vunpack.c.l.s4 1966171168
    %v6285 = vunpack.c.0.s8 %v6284
    %v6286 = vlaneseq
    %v6287 = vshrl.u32 %v6286, 7
    %v6288 = vsub.s32 %v6285, %v6287
    %v6289 = vrot.slane %v5265, %v6288
    %v6290 = vcombine.high %v6289, %v6289
    %v6292 = vunpack.c.l.s4 1966171168
    %v6293 = vunpack.c.0.s8 %v6292
    %v6294 = vlaneseq
    %v6295 = vshrl.u32 %v6294, 7
    %v6296 = vsub.s32 %v6293, %v6295
    %v6297 = vrot.slane %v6289, %v6296
    %v6299 = vunpack.c.l.s4 1966171168
    %v6300 = vunpack.c.0.s8 %v6299
    %v6301 = vlaneseq
    %v6302 = vshrl.u32 %v6301, 7
    %v6303 = vsub.s32 %v6300, %v6302
    %v6304 = vrot.slane %v6290, %v6303
    %s6305 = sld [smem:[#allocation3 + $0x1]]
    %p6306 = scmp.gt.s32.totalorder %s6305, 0
    %s6307 = scalar_select %p6306, 1, 0
    %v6308 = vstv %s6307
    %vm6309 = vcmp.eq.s32.totalorder %v6308, 1
    %v6310 = vrot.slane %v5265, 7
    %6311 = vrot.lane.b32.xlu0 %v6310, 96
    %v6312 = vpop.permute.xlu0 %6311
    %6313 = vrot.lane.b32.xlu0 %v5265, 96
    %v6314 = vpop.permute.xlu0 %6313
    %v6317 = vsel %vm6309, %v3545, %v6312
    %v6318 = vsel %vm6309, %v3546, %v6314
    %v6321 = vrot.slane %v6318, 7
    %vm6322 = vcmask 1042434
    %v6323 = vsel %vm6322, %v6321, %v6317
    %v6327 = vsel %vm6322, %v6281, %v6274
    %6328 = vrot.lane.b32.xlu0 %v6327, 8
    %v6329 = vpop.permute.xlu0 %6328
    %v6331 = vsel %vm113, %v6323, %v6329
    %v6333 = vrot.slane %v6331, 1
    %v6334 = vsel %vm3550, %v6333, 0
    %6336 = vmatprep.subr.mxu0 0.0
    %6337 = vmatpush1.msra.mxu0 %v3519
    %6338 = vmatprep.subr.mxu0 0.0
    %6339 = vmatpush1.msra.mxu0 %v3520
    %6340 = vmatprep.subr.mxu0 0.0
    %6341 = vmatpush1.msra.mxu0 %v3521
    %6342 = vmatprep.subr.mxu0 0.0
    %6343 = vmatpush1.msra.mxu0 %v3522
    %6344 = vmatprep.subr.mxu0 0.0
    %6345 = vmatpush1.msra.mxu0 %v3523
    %6346 = vmatprep.subr.mxu0 0.0
    %6347 = vmatpush1.msra.mxu0 0.0
    %6348 = vmatprep.subr.mxu0 0.0
    %6349 = vmatpush1.msra.mxu0 0.0
    %6350 = vmatprep.subr.mxu0 0.0
    %6351 = vmatpush1.msra.mxu0 0.0
    %6352 = vmatprep.subr.mxu0 0.0
    %6353 = vmatpush1.msra.mxu0 0.0
    %6354 = vmatprep.subr.mxu0 0.0
    %6355 = vmatpush1.msra.mxu0 0.0
    %6356 = vmatprep.subr.mxu0 0.0
    %6357 = vmatpush1.msra.mxu0 0.0
    %6358 = vmatprep.subr.mxu0 0.0
    %6359 = vmatpush1.msra.mxu0 0.0
    %6360 = vmatprep.subr.mxu0 0.0
    %6361 = vmatpush1.msra.mxu0 0.0
    %6362 = vmatprep.subr.mxu0 0.0
    %6363 = vmatpush1.msra.mxu0 0.0
    %6364 = vmatprep.subr.mxu0 0.0
    %6365 = vmatpush1.msra.mxu0 0.0
    %6366 = vmatprep.subr.mxu0 0.0
    %6367 = vmatpush1.msra.mxu0 0.0
    %6368 = vmatprep.subr.mxu0 0.0
    %6369 = vmatpush1.msra.mxu0 0.0
    %6370 = vmatprep.subr.mxu0 0.0
    %6371 = vmatpush1.msra.mxu0 0.0
    %6372 = vmatprep.subr.mxu0 0.0
    %6373 = vmatpush1.msra.mxu0 0.0
    %6374 = vmatprep.subr.mxu0 0.0
    %6375 = vmatpush1.msra.mxu0 0.0
    %6376 = vmatprep.subr.mxu0 0.0
    %6377 = vmatpush1.msra.mxu0 0.0
    %6378 = vmatprep.subr.mxu0 0.0
    %6379 = vmatpush1.msra.mxu0 0.0
    %6380 = vmatprep.subr.mxu0 0.0
    %6381 = vmatpush1.msra.mxu0 0.0
    %6382 = vmatprep.subr.mxu0 0.0
    %6383 = vmatpush1.msra.mxu0 0.0
    %6384 = vmatprep.subr.mxu0 0.0
    %6385 = vmatpush1.msra.mxu0 0.0
    %6386 = vmatprep.subr.mxu0 0.0
    %6387 = vmatpush1.msra.mxu0 0.0
    %6388 = vmatprep.subr.mxu0 0.0
    %6389 = vmatpush1.msra.mxu0 0.0
    %6390 = vmatprep.subr.mxu0 0.0
    %6391 = vmatpush1.msra.mxu0 0.0
    %6392 = vmatprep.subr.mxu0 0.0
    %6393 = vmatpush1.msra.mxu0 0.0
    %6394 = vmatprep.subr.mxu0 0.0
    %6395 = vmatpush1.msra.mxu0 0.0
    %6396 = vmatprep.subr.mxu0 0.0
    %6397 = vmatpush1.msra.mxu0 0.0
    %6398 = vmatprep.subr.mxu0 0.0
    %6399 = vmatpush1.msra.mxu0 0.0
    %6400 = vmatprep.mubr.f32.mxu0 0.0
    %6401 = vmatmul.mubr.f32.gmra.mrb[0].mxu0 %v6334
    %v6402 = vpop.f32.mrb[0].mxu0
    %v6403 = vadd.f32 0.0, %v6402
    %v6404 = vpop.f32.mrb[0].mxu0
    %6405 = vdwg.mxu0
    %6406 = vmatprep.subr.mxu0 0.0
    %6407 = vmatpush1.msra.mxu0 %v3524
    %6408 = vmatprep.subr.mxu0 0.0
    %6409 = vmatpush1.msra.mxu0 %v3525
    %6410 = vmatprep.subr.mxu0 0.0
    %6411 = vmatpush1.msra.mxu0 %v3526
    %6412 = vmatprep.subr.mxu0 0.0
    %6413 = vmatpush1.msra.mxu0 %v3527
    %6414 = vmatprep.subr.mxu0 0.0
    %6415 = vmatpush1.msra.mxu0 0.0
    %6416 = vmatprep.subr.mxu0 0.0
    %6417 = vmatpush1.msra.mxu0 0.0
    %6418 = vmatprep.subr.mxu0 0.0
    %6419 = vmatpush1.msra.mxu0 0.0
    %6420 = vmatprep.subr.mxu0 0.0
    %6421 = vmatpush1.msra.mxu0 0.0
    %6422 = vmatprep.subr.mxu0 0.0
    %6423 = vmatpush1.msra.mxu0 0.0
    %6424 = vmatprep.subr.mxu0 0.0
    %6425 = vmatpush1.msra.mxu0 0.0
    %6426 = vmatprep.subr.mxu0 0.0
    %6427 = vmatpush1.msra.mxu0 0.0
    %6428 = vmatprep.subr.mxu0 0.0
    %6429 = vmatpush1.msra.mxu0 0.0
    %6430 = vmatprep.subr.mxu0 0.0
    %6431 = vmatpush1.msra.mxu0 0.0
    %6432 = vmatprep.subr.mxu0 0.0
    %6433 = vmatpush1.msra.mxu0 0.0
    %6434 = vmatprep.subr.mxu0 0.0
    %6435 = vmatpush1.msra.mxu0 0.0
    %6436 = vmatprep.subr.mxu0 0.0
    %6437 = vmatpush1.msra.mxu0 0.0
    %6438 = vmatprep.subr.mxu0 0.0
    %6439 = vmatpush1.msra.mxu0 0.0
    %6440 = vmatprep.subr.mxu0 0.0
    %6441 = vmatpush1.msra.mxu0 0.0
    %6442 = vmatprep.subr.mxu0 0.0
    %6443 = vmatpush1.msra.mxu0 0.0
    %6444 = vmatprep.subr.mxu0 0.0
    %6445 = vmatpush1.msra.mxu0 0.0
    %6446 = vmatprep.subr.mxu0 0.0
    %6447 = vmatpush1.msra.mxu0 0.0
    %6448 = vmatprep.subr.mxu0 0.0
    %6449 = vmatpush1.msra.mxu0 0.0
    %6450 = vmatprep.subr.mxu0 0.0
    %6451 = vmatpush1.msra.mxu0 0.0
    %6452 = vmatprep.subr.mxu0 0.0
    %6453 = vmatpush1.msra.mxu0 0.0
    %6454 = vmatprep.subr.mxu0 0.0
    %6455 = vmatpush1.msra.mxu0 0.0
    %6456 = vmatprep.subr.mxu0 0.0
    %6457 = vmatpush1.msra.mxu0 0.0
    %6458 = vmatprep.subr.mxu0 0.0
    %6459 = vmatpush1.msra.mxu0 0.0
    %6460 = vmatprep.subr.mxu0 0.0
    %6461 = vmatpush1.msra.mxu0 0.0
    %6462 = vmatprep.subr.mxu0 0.0
    %6463 = vmatpush1.msra.mxu0 0.0
    %6464 = vmatprep.subr.mxu0 0.0
    %6465 = vmatpush1.msra.mxu0 0.0
    %6466 = vmatprep.subr.mxu0 0.0
    %6467 = vmatpush1.msra.mxu0 0.0
    %6468 = vmatprep.subr.mxu0 0.0
    %6469 = vmatpush1.msra.mxu0 0.0
    %6470 = vmatprep.mubr.f32.mxu0 0.0
    %6471 = vmatmul.mubr.f32.gmra.mrb[0].mxu0 %v5196
    %v6472 = vpop.f32.mrb[0].mxu0
    %v6473 = vadd.f32 0.0, %v6472
    %v6474 = vpop.f32.mrb[0].mxu0
    %6475 = vdwg.mxu0
    %v6476 = vadd.f32 %v6403, %v6473
    %v6477 = vadd.f32 %v6476, %v3702
    %v6478 = vxor.u32 %v6477, 2147483648
    %v6479 = vmul.f32 %v6478, 1.442695
    %v6480 = vpow.pop %v6479
    %v6481 = vadd.f32 %v6480, 1.0
    %v6482 = vrcp.pop %v6481
    %v6483 = vmul.f32 1.0, %v6482
    %v6484 = vadd.f32 %v6403, %v3702
    %v6485 = vadd.f32 %v6473, %v3718
    %6487 = vrot.lane.b32.xlu0 %v6485, 64
    %v6488 = vpop.permute.xlu0 %6487
    %v6490 = vmul.f32 %v6483, %v6488
    %6492 = vrot.lane.b32.xlu0 %v6490, 64
    %v6493 = vpop.permute.xlu0 %6492
    %v6495 = vadd.f32 %v6484, %v6493
    %v6496 = vtanh.pop %v6495
    %v6497 = vsub.f32 1.0, %v6483
    %6499 = vrot.lane.b32.xlu0 %v6496, 96
    %v6500 = vpop.permute.xlu0 %6499
    %v6502 = vmul.f32 %v6497, %v6500
    %v6503 = vmul.f32 %v6483, %v5192
    %v6504 = vadd.f32 %v6502, %v6503
    %6506 = vrot.lane.b32.xlu0 %v6504, 96
    %v6507 = vpop.permute.xlu0 %6506
    %v6508 = vsel %vm186, %v6507, 0
    %6510 = vmatprep.subr.mxu0 0.0
    %6511 = vmatpush1.msra.mxu0 %v3530
    %6512 = vmatprep.subr.mxu0 0.0
    %6513 = vmatpush1.msra.mxu0 %v3531
    %6514 = vmatprep.subr.mxu0 0.0
    %6515 = vmatpush1.msra.mxu0 %v3532
    %6516 = vmatprep.subr.mxu0 0.0
    %6517 = vmatpush1.msra.mxu0 %v3533
    %6518 = vmatprep.subr.mxu0 0.0
    %6519 = vmatpush1.msra.mxu0 0.0
    %6520 = vmatprep.subr.mxu0 0.0
    %6521 = vmatpush1.msra.mxu0 0.0
    %6522 = vmatprep.subr.mxu0 0.0
    %6523 = vmatpush1.msra.mxu0 0.0
    %6524 = vmatprep.subr.mxu0 0.0
    %6525 = vmatpush1.msra.mxu0 0.0
    %6526 = vmatprep.subr.mxu0 0.0
    %6527 = vmatpush1.msra.mxu0 0.0
    %6528 = vmatprep.subr.mxu0 0.0
    %6529 = vmatpush1.msra.mxu0 0.0
    %6530 = vmatprep.subr.mxu0 0.0
    %6531 = vmatpush1.msra.mxu0 0.0
    %6532 = vmatprep.subr.mxu0 0.0
    %6533 = vmatpush1.msra.mxu0 0.0
    %6534 = vmatprep.subr.mxu0 0.0
    %6535 = vmatpush1.msra.mxu0 0.0
    %6536 = vmatprep.subr.mxu0 0.0
    %6537 = vmatpush1.msra.mxu0 0.0
    %6538 = vmatprep.subr.mxu0 0.0
    %6539 = vmatpush1.msra.mxu0 0.0
    %6540 = vmatprep.subr.mxu0 0.0
    %6541 = vmatpush1.msra.mxu0 0.0
    %6542 = vmatprep.subr.mxu0 0.0
    %6543 = vmatpush1.msra.mxu0 0.0
    %6544 = vmatprep.subr.mxu0 0.0
    %6545 = vmatpush1.msra.mxu0 0.0
    %6546 = vmatprep.subr.mxu0 0.0
    %6547 = vmatpush1.msra.mxu0 0.0
    %6548 = vmatprep.subr.mxu0 0.0
    %6549 = vmatpush1.msra.mxu0 0.0
    %6550 = vmatprep.subr.mxu0 0.0
    %6551 = vmatpush1.msra.mxu0 0.0
    %6552 = vmatprep.subr.mxu0 0.0
    %6553 = vmatpush1.msra.mxu0 0.0
    %6554 = vmatprep.subr.mxu0 0.0
    %6555 = vmatpush1.msra.mxu0 0.0
    %6556 = vmatprep.subr.mxu0 0.0
    %6557 = vmatpush1.msra.mxu0 0.0
    %6558 = vmatprep.subr.mxu0 0.0
    %6559 = vmatpush1.msra.mxu0 0.0
    %6560 = vmatprep.subr.mxu0 0.0
    %6561 = vmatpush1.msra.mxu0 0.0
    %6562 = vmatprep.subr.mxu0 0.0
    %6563 = vmatpush1.msra.mxu0 0.0
    %6564 = vmatprep.subr.mxu0 0.0
    %6565 = vmatpush1.msra.mxu0 0.0
    %6566 = vmatprep.subr.mxu0 0.0
    %6567 = vmatpush1.msra.mxu0 0.0
    %6568 = vmatprep.subr.mxu0 0.0
    %6569 = vmatpush1.msra.mxu0 0.0
    %6570 = vmatprep.subr.mxu0 0.0
    %6571 = vmatpush1.msra.mxu0 0.0
    %6572 = vmatprep.subr.mxu0 0.0
    %6573 = vmatpush1.msra.mxu0 0.0
    %6574 = vmatprep.mubr.f32.mxu0 0.0
    %6575 = vmatmul.mubr.f32.gmra.mrb[0].mxu0 %v6508
    %v6576 = vpop.f32.mrb[0].mxu0
    %v6577 = vadd.f32 %v3744, %v6576
    %v6578 = vpop.f32.mrb[0].mxu0
    %6579 = vdwg.mxu0
    %v6580 = vtanh.pop %v6577
    %v6582 = vsel %vm186, %v6580, 0
    %6584 = vmatprep.subr.mxu0 0.0
    %6585 = vmatpush1.msra.mxu0 %v3535
    %6586 = vmatprep.subr.mxu0 0.0
    %6587 = vmatpush1.msra.mxu0 %v3536
    %6588 = vmatprep.subr.mxu0 0.0
    %6589 = vmatpush1.msra.mxu0 %v3537
    %6590 = vmatprep.subr.mxu0 0.0
    %6591 = vmatpush1.msra.mxu0 %v3538
    %6592 = vmatprep.subr.mxu0 0.0
    %6593 = vmatpush1.msra.mxu0 0.0
    %6594 = vmatprep.subr.mxu0 0.0
    %6595 = vmatpush1.msra.mxu0 0.0
    %6596 = vmatprep.subr.mxu0 0.0
    %6597 = vmatpush1.msra.mxu0 0.0
    %6598 = vmatprep.subr.mxu0 0.0
    %6599 = vmatpush1.msra.mxu0 0.0
    %6600 = vmatprep.subr.mxu0 0.0
    %6601 = vmatpush1.msra.mxu0 0.0
    %6602 = vmatprep.subr.mxu0 0.0
    %6603 = vmatpush1.msra.mxu0 0.0
    %6604 = vmatprep.subr.mxu0 0.0
    %6605 = vmatpush1.msra.mxu0 0.0
    %6606 = vmatprep.subr.mxu0 0.0
    %6607 = vmatpush1.msra.mxu0 0.0
    %6608 = vmatprep.subr.mxu0 0.0
    %6609 = vmatpush1.msra.mxu0 0.0
    %6610 = vmatprep.subr.mxu0 0.0
    %6611 = vmatpush1.msra.mxu0 0.0
    %6612 = vmatprep.subr.mxu0 0.0
    %6613 = vmatpush1.msra.mxu0 0.0
    %6614 = vmatprep.subr.mxu0 0.0
    %6615 = vmatpush1.msra.mxu0 0.0
    %6616 = vmatprep.subr.mxu0 0.0
    %6617 = vmatpush1.msra.mxu0 0.0
    %6618 = vmatprep.subr.mxu0 0.0
    %6619 = vmatpush1.msra.mxu0 0.0
    %6620 = vmatprep.subr.mxu0 0.0
    %6621 = vmatpush1.msra.mxu0 0.0
    %6622 = vmatprep.subr.mxu0 0.0
    %6623 = vmatpush1.msra.mxu0 0.0
    %6624 = vmatprep.subr.mxu0 0.0
    %6625 = vmatpush1.msra.mxu0 0.0
    %6626 = vmatprep.subr.mxu0 0.0
    %6627 = vmatpush1.msra.mxu0 0.0
    %6628 = vmatprep.subr.mxu0 0.0
    %6629 = vmatpush1.msra.mxu0 0.0
    %6630 = vmatprep.subr.mxu0 0.0
    %6631 = vmatpush1.msra.mxu0 0.0
    %6632 = vmatprep.subr.mxu0 0.0
    %6633 = vmatpush1.msra.mxu0 0.0
    %6634 = vmatprep.subr.mxu0 0.0
    %6635 = vmatpush1.msra.mxu0 0.0
    %6636 = vmatprep.subr.mxu0 0.0
    %6637 = vmatpush1.msra.mxu0 0.0
    %6638 = vmatprep.subr.mxu0 0.0
    %6639 = vmatpush1.msra.mxu0 0.0
    %6640 = vmatprep.subr.mxu0 0.0
    %6641 = vmatpush1.msra.mxu0 0.0
    %6642 = vmatprep.subr.mxu0 0.0
    %6643 = vmatpush1.msra.mxu0 0.0
    %6644 = vmatprep.subr.mxu0 0.0
    %6645 = vmatpush1.msra.mxu0 0.0
    %6646 = vmatprep.subr.mxu0 0.0
    %6647 = vmatpush1.msra.mxu0 0.0
    %6648 = vmatprep.mubr.f32.mxu0 0.0
    %6649 = vmatmul.mubr.f32.gmra.mrb[0].mxu0 %v6582
    %v6650 = vpop.f32.mrb[0].mxu0
    %v6651 = vadd.f32 %v3826, %v6650
    %v6652 = vpop.f32.mrb[0].mxu0
    %6653 = vdwg.mxu0
    %v6654 = vxor.u32 %v6651, 2147483648
    %v6655 = vmul.f32 %v6654, 1.442695
    %v6656 = vpow.pop %v6655
    %v6657 = vadd.f32 %v6656, 1.0
    %v6658 = vrcp.pop %v6657
    %v6659 = vmul.f32 1.0, %v6658
    %v6660 = vmul.f32 %v6659, 11.0
    %v6661 = vadd.f32 %v6660, 2.0
    %v6662 = vfloor.f32 %v6661
    %v6663 = vcvt.f32.s32.to.zero.pseudo %v6662
    %6664 = vset.pattern.permute.xlu0 0
    %6665 = vperm.xlu0 %6664, %v6663
    %v6666 = vpop.permute.xlu0 %6665
    %v6667 = vadd.s32 %v6666, %v3549
    %v6668 = vlaneseq
    %v6669 = vshrl.u32 %v6668, 7
    %v6670 = vsub.s32 0, %v6669
    %v6671 = vrot.slane %v6667, %v6670
    %6673 = vbcast.lane.b32.xlu0 %v6671, 256
    %v6674 = vpop.permute.xlu0 %6673
    %v6675 = vlaneseq
    %v6676 = vshrl.u32 %v6675, 7
    %v6677 = vsub.s32 1, %v6676
    %v6678 = vrot.slane %v6667, %v6677
    %6680 = vbcast.lane.b32.xlu0 %v6678, 256
    %v6681 = vpop.permute.xlu0 %6680
    %vm6682 = vcmp.eq.s32.totalorder %v6674, %v3548
    %vm6683 = vcmp.eq.s32.totalorder %v6681, %v3548
    %v6684 = vsel %vm6682, 1, 0
    %v6685 = vsel %vm6683, 1, 0
    %v6686 = vcvt.s32.f32 %v6684
    %v6687 = vcvt.s32.f32 %v6685
    %v6689 = vsel %vm3943, %v6686, 0
    %6691 = vmatprep.subr.mxu0 0.0
    %6692 = vmatpush1.msra.mxu0 %v3938
    %6693 = vmatprep.subr.mxu0 0.0
    %6694 = vmatpush1.msra.mxu0 %v3940
    %6695 = vmatprep.subr.mxu0 0.0
    %6696 = vmatpush1.msra.mxu0 0.0
    %6697 = vmatprep.subr.mxu0 0.0
    %6698 = vmatpush1.msra.mxu0 0.0
    %6699 = vmatprep.subr.mxu0 0.0
    %6700 = vmatpush1.msra.mxu0 0.0
    %6701 = vmatprep.subr.mxu0 0.0
    %6702 = vmatpush1.msra.mxu0 0.0
    %6703 = vmatprep.subr.mxu0 0.0
    %6704 = vmatpush1.msra.mxu0 0.0
    %6705 = vmatprep.subr.mxu0 0.0
    %6706 = vmatpush1.msra.mxu0 0.0
    %6707 = vmatprep.subr.mxu0 0.0
    %6708 = vmatpush1.msra.mxu0 0.0
    %6709 = vmatprep.subr.mxu0 0.0
    %6710 = vmatpush1.msra.mxu0 0.0
    %6711 = vmatprep.subr.mxu0 0.0
    %6712 = vmatpush1.msra.mxu0 0.0
    %6713 = vmatprep.subr.mxu0 0.0
    %6714 = vmatpush1.msra.mxu0 0.0
    %6715 = vmatprep.subr.mxu0 0.0
    %6716 = vmatpush1.msra.mxu0 0.0
    %6717 = vmatprep.subr.mxu0 0.0
    %6718 = vmatpush1.msra.mxu0 0.0
    %6719 = vmatprep.subr.mxu0 0.0
    %6720 = vmatpush1.msra.mxu0 0.0
    %6721 = vmatprep.subr.mxu0 0.0
    %6722 = vmatpush1.msra.mxu0 0.0
    %6723 = vmatprep.subr.mxu0 0.0
    %6724 = vmatpush1.msra.mxu0 0.0
    %6725 = vmatprep.subr.mxu0 0.0
    %6726 = vmatpush1.msra.mxu0 0.0
    %6727 = vmatprep.subr.mxu0 0.0
    %6728 = vmatpush1.msra.mxu0 0.0
    %6729 = vmatprep.subr.mxu0 0.0
    %6730 = vmatpush1.msra.mxu0 0.0
    %6731 = vmatprep.subr.mxu0 0.0
    %6732 = vmatpush1.msra.mxu0 0.0
    %6733 = vmatprep.subr.mxu0 0.0
    %6734 = vmatpush1.msra.mxu0 0.0
    %6735 = vmatprep.subr.mxu0 0.0
    %6736 = vmatpush1.msra.mxu0 0.0
    %6737 = vmatprep.subr.mxu0 0.0
    %6738 = vmatpush1.msra.mxu0 0.0
    %6739 = vmatprep.subr.mxu0 0.0
    %6740 = vmatpush1.msra.mxu0 0.0
    %6741 = vmatprep.subr.mxu0 0.0
    %6742 = vmatpush1.msra.mxu0 0.0
    %6743 = vmatprep.subr.mxu0 0.0
    %6744 = vmatpush1.msra.mxu0 0.0
    %6745 = vmatprep.subr.mxu0 0.0
    %6746 = vmatpush1.msra.mxu0 0.0
    %6747 = vmatprep.subr.mxu0 0.0
    %6748 = vmatpush1.msra.mxu0 0.0
    %6749 = vmatprep.subr.mxu0 0.0
    %6750 = vmatpush1.msra.mxu0 0.0
    %6751 = vmatprep.subr.mxu0 0.0
    %6752 = vmatpush1.msra.mxu0 0.0
    %6753 = vmatprep.subr.mxu0 0.0
    %6754 = vmatpush1.msra.mxu0 0.0
    %6755 = vmatprep.mubr.f32.mxu0 0.0
    %6756 = vmatmul.mubr.f32.gmra.mrb[0].mxu0 %v6689
    %v6757 = vpop.f32.mrb[0].mxu0
    %v6758 = vadd.f32 0.0, %v6757
    %v6759 = vpop.f32.mrb[0].mxu0
    %6760 = vdwg.mxu0
    %v6762 = vsel %vm3943, %v6687, 0
    %6764 = vmatprep.subr.mxu0 0.0
    %6765 = vmatpush1.msra.mxu0 %v4020
    %6766 = vmatprep.subr.mxu0 0.0
    %6767 = vmatpush1.msra.mxu0 %v4022
    %6768 = vmatprep.subr.mxu0 0.0
    %6769 = vmatpush1.msra.mxu0 0.0
    %6770 = vmatprep.subr.mxu0 0.0
    %6771 = vmatpush1.msra.mxu0 0.0
    %6772 = vmatprep.subr.mxu0 0.0
    %6773 = vmatpush1.msra.mxu0 0.0
    %6774 = vmatprep.subr.mxu0 0.0
    %6775 = vmatpush1.msra.mxu0 0.0
    %6776 = vmatprep.subr.mxu0 0.0
    %6777 = vmatpush1.msra.mxu0 0.0
    %6778 = vmatprep.subr.mxu0 0.0
    %6779 = vmatpush1.msra.mxu0 0.0
    %6780 = vmatprep.subr.mxu0 0.0
    %6781 = vmatpush1.msra.mxu0 0.0
    %6782 = vmatprep.subr.mxu0 0.0
    %6783 = vmatpush1.msra.mxu0 0.0
    %6784 = vmatprep.subr.mxu0 0.0
    %6785 = vmatpush1.msra.mxu0 0.0
    %6786 = vmatprep.subr.mxu0 0.0
    %6787 = vmatpush1.msra.mxu0 0.0
    %6788 = vmatprep.subr.mxu0 0.0
    %6789 = vmatpush1.msra.mxu0 0.0
    %6790 = vmatprep.subr.mxu0 0.0
    %6791 = vmatpush1.msra.mxu0 0.0
    %6792 = vmatprep.subr.mxu0 0.0
    %6793 = vmatpush1.msra.mxu0 0.0
    %6794 = vmatprep.subr.mxu0 0.0
    %6795 = vmatpush1.msra.mxu0 0.0
    %6796 = vmatprep.subr.mxu0 0.0
    %6797 = vmatpush1.msra.mxu0 0.0
    %6798 = vmatprep.subr.mxu0 0.0
    %6799 = vmatpush1.msra.mxu0 0.0
    %6800 = vmatprep.subr.mxu0 0.0
    %6801 = vmatpush1.msra.mxu0 0.0
    %6802 = vmatprep.subr.mxu0 0.0
    %6803 = vmatpush1.msra.mxu0 0.0
    %6804 = vmatprep.subr.mxu0 0.0
    %6805 = vmatpush1.msra.mxu0 0.0
    %6806 = vmatprep.subr.mxu0 0.0
    %6807 = vmatpush1.msra.mxu0 0.0
    %6808 = vmatprep.subr.mxu0 0.0
    %6809 = vmatpush1.msra.mxu0 0.0
    %6810 = vmatprep.subr.mxu0 0.0
    %6811 = vmatpush1.msra.mxu0 0.0
    %6812 = vmatprep.subr.mxu0 0.0
    %6813 = vmatpush1.msra.mxu0 0.0
    %6814 = vmatprep.subr.mxu0 0.0
    %6815 = vmatpush1.msra.mxu0 0.0
    %6816 = vmatprep.subr.mxu0 0.0
    %6817 = vmatpush1.msra.mxu0 0.0
    %6818 = vmatprep.subr.mxu0 0.0
    %6819 = vmatpush1.msra.mxu0 0.0
    %6820 = vmatprep.subr.mxu0 0.0
    %6821 = vmatpush1.msra.mxu0 0.0
    %6822 = vmatprep.subr.mxu0 0.0
    %6823 = vmatpush1.msra.mxu0 0.0
    %6824 = vmatprep.subr.mxu0 0.0
    %6825 = vmatpush1.msra.mxu0 0.0
    %6826 = vmatprep.subr.mxu0 0.0
    %6827 = vmatpush1.msra.mxu0 0.0
    %6828 = vmatprep.mubr.f32.mxu0 0.0
    %6829 = vmatmul.mubr.f32.gmra.mrb[0].mxu0 %v6762
    %v6830 = vpop.f32.mrb[0].mxu0
    %v6831 = vadd.f32 0.0, %v6830
    %v6832 = vpop.f32.mrb[0].mxu0
    %6833 = vdwg.mxu0
    %v6836 = vcombine.high %v6758, %v6758
    %v6838 = vunpack.c.l.s4 1966171168
    %v6839 = vunpack.c.0.s8 %v6838
    %v6840 = vlaneseq
    %v6841 = vshrl.u32 %v6840, 7
    %v6842 = vsub.s32 %v6839, %v6841
    %v6843 = vrot.slane %v6758, %v6842
    %v6845 = vunpack.c.l.s4 1966171168
    %v6846 = vunpack.c.0.s8 %v6845
    %v6847 = vlaneseq
    %v6848 = vshrl.u32 %v6847, 7
    %v6849 = vsub.s32 %v6846, %v6848
    %v6850 = vrot.slane %v6836, %v6849
    %v6851 = vcombine.high %v6843, %v6843
    %v6853 = vunpack.c.l.s4 1966171168
    %v6854 = vunpack.c.0.s8 %v6853
    %v6855 = vlaneseq
    %v6856 = vshrl.u32 %v6855, 7
    %v6857 = vsub.s32 %v6854, %v6856
    %v6858 = vrot.slane %v6843, %v6857
    %v6860 = vunpack.c.l.s4 1966171168
    %v6861 = vunpack.c.0.s8 %v6860
    %v6862 = vlaneseq
    %v6863 = vshrl.u32 %v6862, 7
    %v6864 = vsub.s32 %v6861, %v6863
    %v6865 = vrot.slane %v6850, %v6864
    %v6867 = vunpack.c.l.s4 1966171168
    %v6868 = vunpack.c.0.s8 %v6867
    %v6869 = vlaneseq
    %v6870 = vshrl.u32 %v6869, 7
    %v6871 = vsub.s32 %v6868, %v6870
    %v6872 = vrot.slane %v6851, %v6871
    %v6873 = vcombine.high %v6858, %v6858
    %v6874 = vcombine.high %v6872, %v6872
    %v6875 = vcombine.high %v6831, %v6831
    %v6877 = vunpack.c.l.s4 1966171168
    %v6878 = vunpack.c.0.s8 %v6877
    %v6879 = vlaneseq
    %v6880 = vshrl.u32 %v6879, 7
    %v6881 = vsub.s32 %v6878, %v6880
    %v6882 = vrot.slane %v6831, %v6881
    %v6884 = vunpack.c.l.s4 1966171168
    %v6885 = vunpack.c.0.s8 %v6884
    %v6886 = vlaneseq
    %v6887 = vshrl.u32 %v6886, 7
    %v6888 = vsub.s32 %v6885, %v6887
    %v6889 = vrot.slane %v6875, %v6888
    %v6890 = vcombine.high %v6882, %v6882
    %v6892 = vunpack.c.l.s4 1966171168
    %v6893 = vunpack.c.0.s8 %v6892
    %v6894 = vlaneseq
    %v6895 = vshrl.u32 %v6894, 7
    %v6896 = vsub.s32 %v6893, %v6895
    %v6897 = vrot.slane %v6882, %v6896
    %v6899 = vunpack.c.l.s4 1966171168
    %v6900 = vunpack.c.0.s8 %v6899
    %v6901 = vlaneseq
    %v6902 = vshrl.u32 %v6901, 7
    %v6903 = vsub.s32 %v6900, %v6902
    %v6904 = vrot.slane %v6889, %v6903
    %v6906 = vunpack.c.l.s4 1966171168
    %v6907 = vunpack.c.0.s8 %v6906
    %v6908 = vlaneseq
    %v6909 = vshrl.u32 %v6908, 7
    %v6910 = vsub.s32 %v6907, %v6909
    %v6911 = vrot.slane %v6890, %v6910
    %v6912 = vcombine.high %v6897, %v6897
    %v6913 = vcombine.high %v6911, %v6911
    %v6914 = vcombine.low %v6858, %v6872
    %v6915 = vcombine.low %v6873, %v6874
    %v6916 = vcombine.low %v6865, %v6897
    %v6917 = vcombine.low %v6911, %v6912
    %v6919 = vunpack.c.l.s4 1966171168
    %v6920 = vunpack.c.0.s8 %v6919
    %v6921 = vlaneseq
    %v6922 = vshrl.u32 %v6921, 7
    %v6923 = vsub.s32 %v6920, %v6922
    %v6924 = vrot.slane %v6914, %v6923
    %v6926 = vunpack.c.l.s4 1966171168
    %v6927 = vunpack.c.0.s8 %v6926
    %v6928 = vlaneseq
    %v6929 = vshrl.u32 %v6928, 7
    %v6930 = vsub.s32 %v6927, %v6929
    %v6931 = vrot.slane %v6915, %v6930
    %v6933 = vunpack.c.l.s4 1966171168
    %v6934 = vunpack.c.0.s8 %v6933
    %v6935 = vlaneseq
    %v6936 = vshrl.u32 %v6935, 7
    %v6937 = vsub.s32 %v6934, %v6936
    %v6938 = vrot.slane %v6916, %v6937
    %v6940 = vunpack.c.l.s4 1966171168
    %v6941 = vunpack.c.0.s8 %v6940
    %v6942 = vlaneseq
    %v6943 = vshrl.u32 %v6942, 7
    %v6944 = vsub.s32 %v6941, %v6943
    %v6945 = vrot.slane %v6917, %v6944
    %v6946 = vcombine.low %v6924, %v6931
    %v6947 = vcombine.low %v6938, %v6945
    %v6949 = vunpack.c.l.s4 1966171168
    %v6950 = vunpack.c.0.s8 %v6949
    %v6951 = vlaneseq
    %v6952 = vshrl.u32 %v6951, 7
    %v6953 = vsub.s32 %v6950, %v6952
    %v6954 = vrot.slane %v6946, %v6953
    %v6956 = vunpack.c.l.s4 1966171168
    %v6957 = vunpack.c.0.s8 %v6956
    %v6958 = vlaneseq
    %v6959 = vshrl.u32 %v6958, 7
    %v6960 = vsub.s32 %v6957, %v6959
    %v6961 = vrot.slane %v6947, %v6960
    %v6962 = vcombine.low %v6954, %v6961
    %v6963 = vcombine.low %v6913, %v6904
    %v6965 = vunpack.c.l.s4 1966171168
    %v6966 = vunpack.c.0.s8 %v6965
    %v6967 = vlaneseq
    %v6968 = vshrl.u32 %v6967, 7
    %v6969 = vsub.s32 %v6966, %v6968
    %v6970 = vrot.slane %v6963, %v6969
    %v6972 = vunpack.c.l.s4 1966171168
    %v6973 = vunpack.c.0.s8 %v6972
    %v6974 = vlaneseq
    %v6975 = vshrl.u32 %v6974, 7
    %v6976 = vsub.s32 %v6973, %v6975
    %v6977 = vrot.slane %v6970, %v6976
    %v6978 = vsel %vm186, %v6962, 0
    %v6980 = vsel %vm186, %v6977, 0
    %6982 = vmatprep.subr.mxu0 0.0
    %6983 = vmatpush1.msra.mxu0 %v3540
    %6984 = vmatprep.subr.mxu0 0.0
    %6985 = vmatpush1.msra.mxu0 %v3541
    %6986 = vmatprep.subr.mxu0 0.0
    %6987 = vmatpush1.msra.mxu0 %v3542
    %6988 = vmatprep.subr.mxu0 0.0
    %6989 = vmatpush1.msra.mxu0 %v3543
    %6990 = vmatprep.subr.mxu0 0.0
    %6991 = vmatpush1.msra.mxu0 0.0
    %6992 = vmatprep.subr.mxu0 0.0
    %6993 = vmatpush1.msra.mxu0 0.0
    %6994 = vmatprep.subr.mxu0 0.0
    %6995 = vmatpush1.msra.mxu0 0.0
    %6996 = vmatprep.subr.mxu0 0.0
    %6997 = vmatpush1.msra.mxu0 0.0
    %6998 = vmatprep.subr.mxu0 0.0
    %6999 = vmatpush1.msra.mxu0 0.0
    %7000 = vmatprep.subr.mxu0 0.0
    %7001 = vmatpush1.msra.mxu0 0.0
    %7002 = vmatprep.subr.mxu0 0.0
    %7003 = vmatpush1.msra.mxu0 0.0
    %7004 = vmatprep.subr.mxu0 0.0
    %7005 = vmatpush1.msra.mxu0 0.0
    %7006 = vmatprep.subr.mxu0 0.0
    %7007 = vmatpush1.msra.mxu0 0.0
    %7008 = vmatprep.subr.mxu0 0.0
    %7009 = vmatpush1.msra.mxu0 0.0
    %7010 = vmatprep.subr.mxu0 0.0
    %7011 = vmatpush1.msra.mxu0 0.0
    %7012 = vmatprep.subr.mxu0 0.0
    %7013 = vmatpush1.msra.mxu0 0.0
    %7014 = vmatprep.subr.mxu0 0.0
    %7015 = vmatpush1.msra.mxu0 0.0
    %7016 = vmatprep.subr.mxu0 0.0
    %7017 = vmatpush1.msra.mxu0 0.0
    %7018 = vmatprep.subr.mxu0 0.0
    %7019 = vmatpush1.msra.mxu0 0.0
    %7020 = vmatprep.subr.mxu0 0.0
    %7021 = vmatpush1.msra.mxu0 0.0
    %7022 = vmatprep.subr.mxu0 0.0
    %7023 = vmatpush1.msra.mxu0 0.0
    %7024 = vmatprep.subr.mxu0 0.0
    %7025 = vmatpush1.msra.mxu0 0.0
    %7026 = vmatprep.subr.mxu0 0.0
    %7027 = vmatpush1.msra.mxu0 0.0
    %7028 = vmatprep.subr.mxu0 0.0
    %7029 = vmatpush1.msra.mxu0 0.0
    %7030 = vmatprep.subr.mxu0 0.0
    %7031 = vmatpush1.msra.mxu0 0.0
    %7032 = vmatprep.subr.mxu0 0.0
    %7033 = vmatpush1.msra.mxu0 0.0
    %7034 = vmatprep.subr.mxu0 0.0
    %7035 = vmatpush1.msra.mxu0 0.0
    %7036 = vmatprep.subr.mxu0 0.0
    %7037 = vmatpush1.msra.mxu0 0.0
    %7038 = vmatprep.subr.mxu0 0.0
    %7039 = vmatpush1.msra.mxu0 0.0
    %7040 = vmatprep.subr.mxu0 0.0
    %7041 = vmatpush1.msra.mxu0 0.0
    %7042 = vmatprep.subr.mxu0 0.0
    %7043 = vmatpush1.msra.mxu0 0.0
    %7044 = vmatprep.subr.mxu0 0.0
    %7045 = vmatpush1.msra.mxu0 0.0
    %7046 = vmatprep.mubr.f32.mxu0 0.0
    %7047 = vmatmul.mubr.f32.gmra.mrb[0].mxu0 %v6978
    %v7048 = vpop.f32.mrb[0].mxu0
    %v7049 = vadd.f32 %v4334, %v7048
    %v7050 = vpop.f32.mrb[0].mxu0
    %7051 = vmatprep.mubr.f32.mxu0 0.0
    %7052 = vmatmul.mubr.f32.gmra.mrb[0].mxu0 %v6980
    %v7053 = vpop.f32.mrb[0].mxu0
    %v7054 = vadd.f32 %v4349, %v7053
    %v7055 = vpop.f32.mrb[0].mxu0
    %7056 = vdwg.mxu0
    %v7059 = vcombine.high %v7049, %v7049
    %v7061 = vunpack.c.l.s4 1966171168
    %v7062 = vunpack.c.0.s8 %v7061
    %v7063 = vlaneseq
    %v7064 = vshrl.u32 %v7063, 7
    %v7065 = vsub.s32 %v7062, %v7064
    %v7066 = vrot.slane %v7049, %v7065
    %v7068 = vunpack.c.l.s4 1966171168
    %v7069 = vunpack.c.0.s8 %v7068
    %v7070 = vlaneseq
    %v7071 = vshrl.u32 %v7070, 7
    %v7072 = vsub.s32 %v7069, %v7071
    %v7073 = vrot.slane %v7059, %v7072
    %v7074 = vcombine.high %v7066, %v7066
    %v7075 = vcombine.high %v7073, %v7073
    %v7077 = vunpack.c.l.s4 1966171168
    %v7078 = vunpack.c.0.s8 %v7077
    %v7079 = vlaneseq
    %v7080 = vshrl.u32 %v7079, 7
    %v7081 = vsub.s32 %v7078, %v7080
    %v7082 = vrot.slane %v7066, %v7081
    %v7084 = vunpack.c.l.s4 1966171168
    %v7085 = vunpack.c.0.s8 %v7084
    %v7086 = vlaneseq
    %v7087 = vshrl.u32 %v7086, 7
    %v7088 = vsub.s32 %v7085, %v7087
    %v7089 = vrot.slane %v7073, %v7088
    %v7091 = vunpack.c.l.s4 1966171168
    %v7092 = vunpack.c.0.s8 %v7091
    %v7093 = vlaneseq
    %v7094 = vshrl.u32 %v7093, 7
    %v7095 = vsub.s32 %v7092, %v7094
    %v7096 = vrot.slane %v7074, %v7095
    %v7098 = vunpack.c.l.s4 1966171168
    %v7099 = vunpack.c.0.s8 %v7098
    %v7100 = vlaneseq
    %v7101 = vshrl.u32 %v7100, 7
    %v7102 = vsub.s32 %v7099, %v7101
    %v7103 = vrot.slane %v7075, %v7102
    %v7104 = vcombine.high %v7082, %v7082
    %v7105 = vcombine.high %v7089, %v7089
    %v7106 = vcombine.high %v7096, %v7096
    %v7107 = vcombine.high %v7103, %v7103
    %v7109 = vunpack.c.l.s4 1966171168
    %v7110 = vunpack.c.0.s8 %v7109
    %v7111 = vlaneseq
    %v7112 = vshrl.u32 %v7111, 7
    %v7113 = vsub.s32 %v7110, %v7112
    %v7114 = vrot.slane %v7054, %v7113
    %v7115 = vcombine.high %v7114, %v7114
    %v7117 = vunpack.c.l.s4 1966171168
    %v7118 = vunpack.c.0.s8 %v7117
    %v7119 = vlaneseq
    %v7120 = vshrl.u32 %v7119, 7
    %v7121 = vsub.s32 %v7118, %v7120
    %v7122 = vrot.slane %v7114, %v7121
    %v7124 = vunpack.c.l.s4 1966171168
    %v7125 = vunpack.c.0.s8 %v7124
    %v7126 = vlaneseq
    %v7127 = vshrl.u32 %v7126, 7
    %v7128 = vsub.s32 %v7125, %v7127
    %v7129 = vrot.slane %v7115, %v7128
    %v7141 = vunpack.c.l.s4 1966171168
    %v7142 = vunpack.c.0.s8 %v7141
    %v7143 = vlaneseq
    %v7144 = vshrl.u32 %v7143, 7
    %v7145 = vsub.s32 %v7142, %v7144
    %v7146 = vrot.slane %v6504, %v7145
    %v7147 = vcombine.high %v7146, %v7146
    %v7149 = vunpack.c.l.s4 1966171168
    %v7150 = vunpack.c.0.s8 %v7149
    %v7151 = vlaneseq
    %v7152 = vshrl.u32 %v7151, 7
    %v7153 = vsub.s32 %v7150, %v7152
    %v7154 = vrot.slane %v7146, %v7153
    %v7156 = vunpack.c.l.s4 1966171168
    %v7157 = vunpack.c.0.s8 %v7156
    %v7158 = vlaneseq
    %v7159 = vshrl.u32 %v7158, 7
    %v7160 = vsub.s32 %v7157, %v7159
    %v7161 = vrot.slane %v7147, %v7160
    %v7162 = vlaneseq
    %v7163 = vshrl.u32 %v7162, 7
    %v7164 = vsub.s32 0, %v7163
    %v7165 = vrot.slane %v7154, %v7164
    %v7166 = vlaneseq
    %v7167 = vshrl.u32 %v7166, 7
    %v7168 = vsub.s32 0, %v7167
    %v7169 = vrot.slane %v7161, %v7168
    %v7170 = vcombine.high %v7165, %v7165
    %v7172 = vunpack.c.l.s4 1966171168
    %v7173 = vunpack.c.0.s8 %v7172
    %v7174 = vlaneseq
    %v7175 = vshrl.u32 %v7174, 7
    %v7176 = vsub.s32 %v7173, %v7175
    %v7177 = vrot.slane %v7165, %v7176
    %v7179 = vunpack.c.l.s4 1966171168
    %v7180 = vunpack.c.0.s8 %v7179
    %v7181 = vlaneseq
    %v7182 = vshrl.u32 %v7181, 7
    %v7183 = vsub.s32 %v7180, %v7182
    %v7184 = vrot.slane %v7170, %v7183
    %v7185 = vcombine.high %v7177, %v7177
    %v7187 = vunpack.c.l.s4 1966171168
    %v7188 = vunpack.c.0.s8 %v7187
    %v7189 = vlaneseq
    %v7190 = vshrl.u32 %v7189, 7
    %v7191 = vsub.s32 %v7188, %v7190
    %v7192 = vrot.slane %v7177, %v7191
    %v7194 = vunpack.c.l.s4 1966171168
    %v7195 = vunpack.c.0.s8 %v7194
    %v7196 = vlaneseq
    %v7197 = vshrl.u32 %v7196, 7
    %v7198 = vsub.s32 %v7195, %v7197
    %v7199 = vrot.slane %v7184, %v7198
    %v7201 = vunpack.c.l.s4 1966171168
    %v7202 = vunpack.c.0.s8 %v7201
    %v7203 = vlaneseq
    %v7204 = vshrl.u32 %v7203, 7
    %v7205 = vsub.s32 %v7202, %v7204
    %v7206 = vrot.slane %v7185, %v7205
    %v7207 = vcombine.high %v7192, %v7192
    %v7208 = vcombine.high %v7206, %v7206
    %v7209 = vcombine.high %v7169, %v7169
    %v7211 = vunpack.c.l.s4 1966171168
    %v7212 = vunpack.c.0.s8 %v7211
    %v7213 = vlaneseq
    %v7214 = vshrl.u32 %v7213, 7
    %v7215 = vsub.s32 %v7212, %v7214
    %v7216 = vrot.slane %v7169, %v7215
    %v7218 = vunpack.c.l.s4 1966171168
    %v7219 = vunpack.c.0.s8 %v7218
    %v7220 = vlaneseq
    %v7221 = vshrl.u32 %v7220, 7
    %v7222 = vsub.s32 %v7219, %v7221
    %v7223 = vrot.slane %v7209, %v7222
    %v7224 = vcombine.high %v7216, %v7216
    %v7226 = vunpack.c.l.s4 1966171168
    %v7227 = vunpack.c.0.s8 %v7226
    %v7228 = vlaneseq
    %v7229 = vshrl.u32 %v7228, 7
    %v7230 = vsub.s32 %v7227, %v7229
    %v7231 = vrot.slane %v7216, %v7230
    %v7233 = vunpack.c.l.s4 1966171168
    %v7234 = vunpack.c.0.s8 %v7233
    %v7235 = vlaneseq
    %v7236 = vshrl.u32 %v7235, 7
    %v7237 = vsub.s32 %v7234, %v7236
    %v7238 = vrot.slane %v7223, %v7237
    %v7240 = vunpack.c.l.s4 1966171168
    %v7241 = vunpack.c.0.s8 %v7240
    %v7242 = vlaneseq
    %v7243 = vshrl.u32 %v7242, 7
    %v7244 = vsub.s32 %v7241, %v7243
    %v7245 = vrot.slane %v7224, %v7244
    %v7246 = vcombine.high %v7231, %v7231
    %v7247 = vcombine.high %v7245, %v7245
    %7248 = vrot.lane.b32.xlu0 %v7192, 96
    %v7249 = vpop.permute.xlu0 %7248
    %7250 = vrot.lane.b32.xlu0 %v7206, 96
    %v7251 = vpop.permute.xlu0 %7250
    %7252 = vrot.lane.b32.xlu0 %v7207, 96
    %v7253 = vpop.permute.xlu0 %7252
    %7254 = vrot.lane.b32.xlu0 %v7208, 96
    %v7255 = vpop.permute.xlu0 %7254
    %7256 = vrot.lane.b32.xlu0 %v7199, 96
    %v7257 = vpop.permute.xlu0 %7256
    %7258 = vrot.lane.b32.xlu0 %v7231, 96
    %v7259 = vpop.permute.xlu0 %7258
    %7260 = vrot.lane.b32.xlu0 %v7245, 96
    %v7261 = vpop.permute.xlu0 %7260
    %7262 = vrot.lane.b32.xlu0 %v7246, 96
    %v7263 = vpop.permute.xlu0 %7262
    %7264 = vrot.lane.b32.xlu0 %v7247, 96
    %v7265 = vpop.permute.xlu0 %7264
    %7266 = vrot.lane.b32.xlu0 %v7238, 96
    %v7267 = vpop.permute.xlu0 %7266
    %v7278 = vmul.f32 %v7082, %v7249
    %v7279 = vmul.f32 %v7096, %v7251
    %v7280 = vmul.f32 %v7104, %v7253
    %v7281 = vmul.f32 %v7106, %v7255
    %v7282 = vmul.f32 %v7089, %v7257
    %v7283 = vmul.f32 %v7103, %v7259
    %v7284 = vmul.f32 %v7105, %v7261
    %v7285 = vmul.f32 %v7107, %v7263
    %v7286 = vmul.f32 %v7122, %v7265
    %v7287 = vmul.f32 %v7129, %v7267
    %v7298 = vcombine.low %v7278, %v7279
    %v7299 = vcombine.low %v7280, %v7281
    %v7301 = vunpack.c.l.s4 1966171168
    %v7302 = vunpack.c.0.s8 %v7301
    %v7303 = vlaneseq
    %v7304 = vshrl.u32 %v7303, 7
    %v7305 = vsub.s32 %v7302, %v7304
    %v7306 = vrot.slane %v7298, %v7305
    %v7308 = vunpack.c.l.s4 1966171168
    %v7309 = vunpack.c.0.s8 %v7308
    %v7310 = vlaneseq
    %v7311 = vshrl.u32 %v7310, 7
    %v7312 = vsub.s32 %v7309, %v7311
    %v7313 = vrot.slane %v7299, %v7312
    %v7315 = vunpack.c.l.s4 1966171168
    %v7316 = vunpack.c.0.s8 %v7315
    %v7317 = vlaneseq
    %v7318 = vshrl.u32 %v7317, 7
    %v7319 = vsub.s32 %v7316, %v7318
    %v7320 = vrot.slane %v7282, %v7319
    %v7321 = vcombine.low %v7306, %v7313
    %v7323 = vunpack.c.l.s4 1966171168
    %v7324 = vunpack.c.0.s8 %v7323
    %v7325 = vlaneseq
    %v7326 = vshrl.u32 %v7325, 7
    %v7327 = vsub.s32 %v7324, %v7326
    %v7328 = vrot.slane %v7321, %v7327
    %v7330 = vunpack.c.l.s4 1966171168
    %v7331 = vunpack.c.0.s8 %v7330
    %v7332 = vlaneseq
    %v7333 = vshrl.u32 %v7332, 7
    %v7334 = vsub.s32 %v7331, %v7333
    %v7335 = vrot.slane %v7320, %v7334
    %v7336 = vcombine.low %v7328, %v7335
    %v7337 = vcombine.low %v7283, %v7284
    %v7338 = vcombine.low %v7285, %v7286
    %v7340 = vunpack.c.l.s4 1966171168
    %v7341 = vunpack.c.0.s8 %v7340
    %v7342 = vlaneseq
    %v7343 = vshrl.u32 %v7342, 7
    %v7344 = vsub.s32 %v7341, %v7343
    %v7345 = vrot.slane %v7337, %v7344
    %v7347 = vunpack.c.l.s4 1966171168
    %v7348 = vunpack.c.0.s8 %v7347
    %v7349 = vlaneseq
    %v7350 = vshrl.u32 %v7349, 7
    %v7351 = vsub.s32 %v7348, %v7350
    %v7352 = vrot.slane %v7338, %v7351
    %v7354 = vunpack.c.l.s4 1966171168
    %v7355 = vunpack.c.0.s8 %v7354
    %v7356 = vlaneseq
    %v7357 = vshrl.u32 %v7356, 7
    %v7358 = vsub.s32 %v7355, %v7357
    %v7359 = vrot.slane %v7287, %v7358
    %v7360 = vcombine.low %v7345, %v7352
    %v7362 = vunpack.c.l.s4 1966171168
    %v7363 = vunpack.c.0.s8 %v7362
    %v7364 = vlaneseq
    %v7365 = vshrl.u32 %v7364, 7
    %v7366 = vsub.s32 %v7363, %v7365
    %v7367 = vrot.slane %v7360, %v7366
    %v7369 = vunpack.c.l.s4 1966171168
    %v7370 = vunpack.c.0.s8 %v7369
    %v7371 = vlaneseq
    %v7372 = vshrl.u32 %v7371, 7
    %v7373 = vsub.s32 %v7370, %v7372
    %v7374 = vrot.slane %v7359, %v7373
    %v7375 = vcombine.low %v7367, %v7374
    %v7378 = vsel %vm4752, %v7336, 0.0
    %7379 = vadd.xlane.f32.xlu0 %v7378
    %v7380 = vpop.xlane.xlu0 %7379
    %v7381 = vsel %vm4752, %v7375, 0.0
    %7382 = vadd.xlane.f32.xlu0 %v7381
    %v7383 = vpop.xlane.xlu0 %7382
    %v7384 = vcvt.s32.f32 %v6667
    %7386 = vset.pattern.permute.xlu0 0
    %7387 = vperm.xlu0 %7386, %v6661
    %v7388 = vpop.permute.xlu0 %7387
    %v7390 = vsub.f32 %v7384, %v7388
    %v7391 = vmul.f32 %v7390, %v7390
    %v7392 = vmul.f32 %v7391, -0.5
    %v7393 = vmul.f32 %v7392, 1.442695
    %v7394 = vpow.pop %v7393
    %v7396 = vlaneseq
    %v7397 = vshrl.u32 %v7396, 7
    %v7398 = vsub.s32 0, %v7397
    %v7399 = vrot.slane %v7394, %v7398
    %7401 = vbcast.lane.b32.xlu0 %v7399, 256
    %v7402 = vpop.permute.xlu0 %7401
    %v7403 = vlaneseq
    %v7404 = vshrl.u32 %v7403, 7
    %v7405 = vsub.s32 1, %v7404
    %v7406 = vrot.slane %v7394, %v7405
    %7408 = vbcast.lane.b32.xlu0 %v7406, 256
    %v7409 = vpop.permute.xlu0 %7408
    %v7412 = vmul.f32 %v7380, %v7402
    %v7413 = vmul.f32 %v7383, %v7409
    %7416 = vset.pattern.permute.xlu0 0
    %7417 = vperm.xlu0 %7416, %v7412
    %v7418 = vpop.permute.xlu0 %7417
    %7419 = vset.pattern.permute.xlu0 0
    %7420 = vperm.xlu0 %7419, %v7413
    %v7421 = vpop.permute.xlu0 %7420
    %v7422 = vlaneseq
    %v7423 = vshrl.u32 %v7422, 7
    %v7424 = vsub.s32 %v3548, %v7423
    %v7425 = vrot.slane %v7418, %v7424
    %v7426 = vlaneseq
    %v7427 = vshrl.u32 %v7426, 7
    %v7428 = vsub.s32 %v3548, %v7427
    %v7429 = vrot.slane %v7421, %v7428
    %v7430 = vsel %vm111, %v7429, %v7425
    %v7432 = vsel %vm4807, %v7430, -inf
    %7433 = vmax.xlane.f32.xlu0 %v7432
    %v7434 = vpop.xlane.xlu0 %7433
    %v7436 = vlaneseq
    %v7437 = vshrl.u32 %v7436, 7
    %v7438 = vsub.s32 0, %v7437
    %v7439 = vrot.slane %v7434, %v7438
    %v7440 = vlaneseq
    %v7441 = vshrl.u32 %v7440, 7
    %v7442 = vsub.s32 1, %v7441
    %v7443 = vrot.slane %v7434, %v7442
    %v7446 = vsub.f32 %v7412, %v7439
    %v7447 = vsub.f32 %v7413, %v7443
    %v7448 = vmul.f32 %v7446, 1.442695
    %v7449 = vpow.pop %v7448
    %v7450 = vmul.f32 %v7447, 1.442695
    %v7451 = vpow.pop %v7450
    %7454 = vset.pattern.permute.xlu0 0
    %7455 = vperm.xlu0 %7454, %v7449
    %v7456 = vpop.permute.xlu0 %7455
    %7457 = vset.pattern.permute.xlu0 0
    %7458 = vperm.xlu0 %7457, %v7451
    %v7459 = vpop.permute.xlu0 %7458
    %v7460 = vlaneseq
    %v7461 = vshrl.u32 %v7460, 7
    %v7462 = vsub.s32 %v3548, %v7461
    %v7463 = vrot.slane %v7456, %v7462
    %v7464 = vlaneseq
    %v7465 = vshrl.u32 %v7464, 7
    %v7466 = vsub.s32 %v3548, %v7465
    %v7467 = vrot.slane %v7459, %v7466
    %v7468 = vsel %vm111, %v7467, %v7463
    %v7470 = vsel %vm4807, %v7468, 0.0
    %7471 = vadd.xlane.f32.xlu0 %v7470
    %v7472 = vpop.xlane.xlu0 %7471
    %v7474 = vlaneseq
    %v7475 = vshrl.u32 %v7474, 7
    %v7476 = vsub.s32 0, %v7475
    %v7477 = vrot.slane %v7472, %v7476
    %v7478 = vlaneseq
    %v7479 = vshrl.u32 %v7478, 7
    %v7480 = vsub.s32 1, %v7479
    %v7481 = vrot.slane %v7472, %v7480
    %v7484 = vrcp.pop %v7477
    %v7485 = vmul.f32 %v7449, %v7484
    %v7486 = vrcp.pop %v7481
    %v7487 = vmul.f32 %v7451, %v7486
    %7489 = vset.pattern.permute.xlu0 0
    %7490 = vperm.xlu0 %7489, %v7485
    %v7491 = vpop.permute.xlu0 %7490
    %7494 = vset.pattern.permute.xlu0 0
    %7495 = vperm.xlu0 %7494, %v7487
    %v7496 = vpop.permute.xlu0 %7495
    %v7498 = vcombine.low %v7082, %v7096
    %v7499 = vcombine.low %v7104, %v7106
    %v7501 = vunpack.c.l.s4 1966171168
    %v7502 = vunpack.c.0.s8 %v7501
    %v7503 = vlaneseq
    %v7504 = vshrl.u32 %v7503, 7
    %v7505 = vsub.s32 %v7502, %v7504
    %v7506 = vrot.slane %v7498, %v7505
    %v7508 = vunpack.c.l.s4 1966171168
    %v7509 = vunpack.c.0.s8 %v7508
    %v7510 = vlaneseq
    %v7511 = vshrl.u32 %v7510, 7
    %v7512 = vsub.s32 %v7509, %v7511
    %v7513 = vrot.slane %v7499, %v7512
    %v7515 = vunpack.c.l.s4 1966171168
    %v7516 = vunpack.c.0.s8 %v7515
    %v7517 = vlaneseq
    %v7518 = vshrl.u32 %v7517, 7
    %v7519 = vsub.s32 %v7516, %v7518
    %v7520 = vrot.slane %v7089, %v7519
    %v7521 = vcombine.low %v7506, %v7513
    %v7523 = vunpack.c.l.s4 1966171168
    %v7524 = vunpack.c.0.s8 %v7523
    %v7525 = vlaneseq
    %v7526 = vshrl.u32 %v7525, 7
    %v7527 = vsub.s32 %v7524, %v7526
    %v7528 = vrot.slane %v7521, %v7527
    %v7530 = vunpack.c.l.s4 1966171168
    %v7531 = vunpack.c.0.s8 %v7530
    %v7532 = vlaneseq
    %v7533 = vshrl.u32 %v7532, 7
    %v7534 = vsub.s32 %v7531, %v7533
    %v7535 = vrot.slane %v7520, %v7534
    %v7536 = vcombine.low %v7528, %v7535
    %v7537 = vcombine.low %v7103, %v7105
    %v7538 = vcombine.low %v7107, %v7122
    %v7540 = vunpack.c.l.s4 1966171168
    %v7541 = vunpack.c.0.s8 %v7540
    %v7542 = vlaneseq
    %v7543 = vshrl.u32 %v7542, 7
    %v7544 = vsub.s32 %v7541, %v7543
    %v7545 = vrot.slane %v7537, %v7544
    %v7547 = vunpack.c.l.s4 1966171168
    %v7548 = vunpack.c.0.s8 %v7547
    %v7549 = vlaneseq
    %v7550 = vshrl.u32 %v7549, 7
    %v7551 = vsub.s32 %v7548, %v7550
    %v7552 = vrot.slane %v7538, %v7551
    %v7554 = vunpack.c.l.s4 1966171168
    %v7555 = vunpack.c.0.s8 %v7554
    %v7556 = vlaneseq
    %v7557 = vshrl.u32 %v7556, 7
    %v7558 = vsub.s32 %v7555, %v7557
    %v7559 = vrot.slane %v7129, %v7558
    %v7560 = vcombine.low %v7545, %v7552
    %v7562 = vunpack.c.l.s4 1966171168
    %v7563 = vunpack.c.0.s8 %v7562
    %v7564 = vlaneseq
    %v7565 = vshrl.u32 %v7564, 7
    %v7566 = vsub.s32 %v7563, %v7565
    %v7567 = vrot.slane %v7560, %v7566
    %v7569 = vunpack.c.l.s4 1966171168
    %v7570 = vunpack.c.0.s8 %v7569
    %v7571 = vlaneseq
    %v7572 = vshrl.u32 %v7571, 7
    %v7573 = vsub.s32 %v7570, %v7572
    %v7574 = vrot.slane %v7559, %v7573
    %v7575 = vcombine.low %v7567, %v7574
    %v7578 = vmul.f32 %v7491, %v7536
    %v7579 = vmul.f32 %v7496, %v7575
    %v7580 = vsel %vm4752, %v7578, 0.0
    %v7581 = vrot.slane %v7580, 4
    %v7582 = vadd.f32 %v7580, %v7581
    %v7583 = vrot.slane %v7582, 2
    %v7584 = vadd.f32 %v7582, %v7583
    %v7585 = vrot.slane %v7584, 1
    %v7586 = vadd.f32 %v7584, %v7585
    %v7587 = vsel %vm4752, %v7579, 0.0
    %v7588 = vrot.slane %v7587, 4
    %v7589 = vadd.f32 %v7587, %v7588
    %v7590 = vrot.slane %v7589, 2
    %v7591 = vadd.f32 %v7589, %v7590
    %v7592 = vrot.slane %v7591, 1
    %v7593 = vadd.f32 %v7591, %v7592
    %v7596 = vunpack.c.l.s4 1966171168
    %v7597 = vunpack.c.0.s8 %v7596
    %v7598 = vlaneseq
    %v7599 = vshrl.u32 %v7598, 7
    %v7600 = vsub.s32 %v7597, %v7599
    %v7601 = vrot.slane %v6577, %v7600
    %v7602 = vcombine.high %v7601, %v7601
    %v7604 = vunpack.c.l.s4 1966171168
    %v7605 = vunpack.c.0.s8 %v7604
    %v7606 = vlaneseq
    %v7607 = vshrl.u32 %v7606, 7
    %v7608 = vsub.s32 %v7605, %v7607
    %v7609 = vrot.slane %v7601, %v7608
    %v7611 = vunpack.c.l.s4 1966171168
    %v7612 = vunpack.c.0.s8 %v7611
    %v7613 = vlaneseq
    %v7614 = vshrl.u32 %v7613, 7
    %v7615 = vsub.s32 %v7612, %v7614
    %v7616 = vrot.slane %v7602, %v7615
    %s7617 = sld [smem:[#allocation3 + $0x2]]
    %p7618 = scmp.gt.s32.totalorder %s7617, 0
    %s7619 = scalar_select %p7618, 1, 0
    %v7620 = vstv %s7619
    %vm7621 = vcmp.eq.s32.totalorder %v7620, 1
    %v7622 = vrot.slane %v6577, 6
    %v7623 = vrot.slane %v6577, 7
    %7624 = vrot.lane.b32.xlu0 %v7622, 96
    %v7625 = vpop.permute.xlu0 %7624
    %7626 = vrot.lane.b32.xlu0 %v7623, 96
    %v7627 = vpop.permute.xlu0 %7626
    %v7630 = vsel %vm7621, %v3545, %v7625
    %v7631 = vsel %vm7621, %v3546, %v7627
    %v7634 = vrot.slane %v7631, 7
    %vm7635 = vcmask 1043459
    %v7636 = vsel %vm7635, %v7634, %v7630
    %v7640 = vsel %vm7635, %v7593, %v7586
    %7641 = vrot.lane.b32.xlu0 %v7640, 8
    %v7642 = vpop.permute.xlu0 %7641
    %v7644 = vsel %vm113, %v7636, %v7642
    %v7646 = vrot.slane %v7644, 2
    %v7647 = vsel %vm3550, %v7646, 0
    %7649 = vmatprep.subr.mxu0 0.0
    %7650 = vmatpush1.msra.mxu0 %v3519
    %7651 = vmatprep.subr.mxu0 0.0
    %7652 = vmatpush1.msra.mxu0 %v3520
    %7653 = vmatprep.subr.mxu0 0.0
    %7654 = vmatpush1.msra.mxu0 %v3521
    %7655 = vmatprep.subr.mxu0 0.0
    %7656 = vmatpush1.msra.mxu0 %v3522
    %7657 = vmatprep.subr.mxu0 0.0
    %7658 = vmatpush1.msra.mxu0 %v3523
    %7659 = vmatprep.subr.mxu0 0.0
    %7660 = vmatpush1.msra.mxu0 0.0
    %7661 = vmatprep.subr.mxu0 0.0
    %7662 = vmatpush1.msra.mxu0 0.0
    %7663 = vmatprep.subr.mxu0 0.0
    %7664 = vmatpush1.msra.mxu0 0.0
    %7665 = vmatprep.subr.mxu0 0.0
    %7666 = vmatpush1.msra.mxu0 0.0
    %7667 = vmatprep.subr.mxu0 0.0
    %7668 = vmatpush1.msra.mxu0 0.0
    %7669 = vmatprep.subr.mxu0 0.0
    %7670 = vmatpush1.msra.mxu0 0.0
    %7671 = vmatprep.subr.mxu0 0.0
    %7672 = vmatpush1.msra.mxu0 0.0
    %7673 = vmatprep.subr.mxu0 0.0
    %7674 = vmatpush1.msra.mxu0 0.0
    %7675 = vmatprep.subr.mxu0 0.0
    %7676 = vmatpush1.msra.mxu0 0.0
    %7677 = vmatprep.subr.mxu0 0.0
    %7678 = vmatpush1.msra.mxu0 0.0
    %7679 = vmatprep.subr.mxu0 0.0
    %7680 = vmatpush1.msra.mxu0 0.0
    %7681 = vmatprep.subr.mxu0 0.0
    %7682 = vmatpush1.msra.mxu0 0.0
    %7683 = vmatprep.subr.mxu0 0.0
    %7684 = vmatpush1.msra.mxu0 0.0
    %7685 = vmatprep.subr.mxu0 0.0
    %7686 = vmatpush1.msra.mxu0 0.0
    %7687 = vmatprep.subr.mxu0 0.0
    %7688 = vmatpush1.msra.mxu0 0.0
    %7689 = vmatprep.subr.mxu0 0.0
    %7690 = vmatpush1.msra.mxu0 0.0
    %7691 = vmatprep.subr.mxu0 0.0
    %7692 = vmatpush1.msra.mxu0 0.0
    %7693 = vmatprep.subr.mxu0 0.0
    %7694 = vmatpush1.msra.mxu0 0.0
    %7695 = vmatprep.subr.mxu0 0.0
    %7696 = vmatpush1.msra.mxu0 0.0
    %7697 = vmatprep.subr.mxu0 0.0
    %7698 = vmatpush1.msra.mxu0 0.0
    %7699 = vmatprep.subr.mxu0 0.0
    %7700 = vmatpush1.msra.mxu0 0.0
    %7701 = vmatprep.subr.mxu0 0.0
    %7702 = vmatpush1.msra.mxu0 0.0
    %7703 = vmatprep.subr.mxu0 0.0
    %7704 = vmatpush1.msra.mxu0 0.0
    %7705 = vmatprep.subr.mxu0 0.0
    %7706 = vmatpush1.msra.mxu0 0.0
    %7707 = vmatprep.subr.mxu0 0.0
    %7708 = vmatpush1.msra.mxu0 0.0
    %7709 = vmatprep.subr.mxu0 0.0
    %7710 = vmatpush1.msra.mxu0 0.0
    %7711 = vmatprep.subr.mxu0 0.0
    %7712 = vmatpush1.msra.mxu0 0.0
    %7713 = vmatprep.mubr.f32.mxu0 0.0
    %7714 = vmatmul.mubr.f32.gmra.mrb[0].mxu0 %v7647
    %v7715 = vpop.f32.mrb[0].mxu0
    %v7716 = vadd.f32 0.0, %v7715
    %v7717 = vpop.f32.mrb[0].mxu0
    %7718 = vdwg.mxu0
    %7719 = vmatprep.subr.mxu0 0.0
    %7720 = vmatpush1.msra.mxu0 %v3524
    %7721 = vmatprep.subr.mxu0 0.0
    %7722 = vmatpush1.msra.mxu0 %v3525
    %7723 = vmatprep.subr.mxu0 0.0
    %7724 = vmatpush1.msra.mxu0 %v3526
    %7725 = vmatprep.subr.mxu0 0.0
    %7726 = vmatpush1.msra.mxu0 %v3527
    %7727 = vmatprep.subr.mxu0 0.0
    %7728 = vmatpush1.msra.mxu0 0.0
    %7729 = vmatprep.subr.mxu0 0.0
    %7730 = vmatpush1.msra.mxu0 0.0
    %7731 = vmatprep.subr.mxu0 0.0
    %7732 = vmatpush1.msra.mxu0 0.0
    %7733 = vmatprep.subr.mxu0 0.0
    %7734 = vmatpush1.msra.mxu0 0.0
    %7735 = vmatprep.subr.mxu0 0.0
    %7736 = vmatpush1.msra.mxu0 0.0
    %7737 = vmatprep.subr.mxu0 0.0
    %7738 = vmatpush1.msra.mxu0 0.0
    %7739 = vmatprep.subr.mxu0 0.0
    %7740 = vmatpush1.msra.mxu0 0.0
    %7741 = vmatprep.subr.mxu0 0.0
    %7742 = vmatpush1.msra.mxu0 0.0
    %7743 = vmatprep.subr.mxu0 0.0
    %7744 = vmatpush1.msra.mxu0 0.0
    %7745 = vmatprep.subr.mxu0 0.0
    %7746 = vmatpush1.msra.mxu0 0.0
    %7747 = vmatprep.subr.mxu0 0.0
    %7748 = vmatpush1.msra.mxu0 0.0
    %7749 = vmatprep.subr.mxu0 0.0
    %7750 = vmatpush1.msra.mxu0 0.0
    %7751 = vmatprep.subr.mxu0 0.0
    %7752 = vmatpush1.msra.mxu0 0.0
    %7753 = vmatprep.subr.mxu0 0.0
    %7754 = vmatpush1.msra.mxu0 0.0
    %7755 = vmatprep.subr.mxu0 0.0
    %7756 = vmatpush1.msra.mxu0 0.0
    %7757 = vmatprep.subr.mxu0 0.0
    %7758 = vmatpush1.msra.mxu0 0.0
    %7759 = vmatprep.subr.mxu0 0.0
    %7760 = vmatpush1.msra.mxu0 0.0
    %7761 = vmatprep.subr.mxu0 0.0
    %7762 = vmatpush1.msra.mxu0 0.0
    %7763 = vmatprep.subr.mxu0 0.0
    %7764 = vmatpush1.msra.mxu0 0.0
    %7765 = vmatprep.subr.mxu0 0.0
    %7766 = vmatpush1.msra.mxu0 0.0
    %7767 = vmatprep.subr.mxu0 0.0
    %7768 = vmatpush1.msra.mxu0 0.0
    %7769 = vmatprep.subr.mxu0 0.0
    %7770 = vmatpush1.msra.mxu0 0.0
    %7771 = vmatprep.subr.mxu0 0.0
    %7772 = vmatpush1.msra.mxu0 0.0
    %7773 = vmatprep.subr.mxu0 0.0
    %7774 = vmatpush1.msra.mxu0 0.0
    %7775 = vmatprep.subr.mxu0 0.0
    %7776 = vmatpush1.msra.mxu0 0.0
    %7777 = vmatprep.subr.mxu0 0.0
    %7778 = vmatpush1.msra.mxu0 0.0
    %7779 = vmatprep.subr.mxu0 0.0
    %7780 = vmatpush1.msra.mxu0 0.0
    %7781 = vmatprep.subr.mxu0 0.0
    %7782 = vmatpush1.msra.mxu0 0.0
    %7783 = vmatprep.mubr.f32.mxu0 0.0
    %7784 = vmatmul.mubr.f32.gmra.mrb[0].mxu0 %v6508
    %v7785 = vpop.f32.mrb[0].mxu0
    %v7786 = vadd.f32 0.0, %v7785
    %v7787 = vpop.f32.mrb[0].mxu0
    %7788 = vdwg.mxu0
    %v7789 = vadd.f32 %v7716, %v7786
    %v7790 = vadd.f32 %v7789, %v3702
    %v7791 = vxor.u32 %v7790, 2147483648
    %v7792 = vmul.f32 %v7791, 1.442695
    %v7793 = vpow.pop %v7792
    %v7794 = vadd.f32 %v7793, 1.0
    %v7795 = vrcp.pop %v7794
    %v7796 = vmul.f32 1.0, %v7795
    %v7797 = vadd.f32 %v7716, %v3702
    %v7798 = vadd.f32 %v7786, %v3718
    %7800 = vrot.lane.b32.xlu0 %v7798, 64
    %v7801 = vpop.permute.xlu0 %7800
    %v7803 = vmul.f32 %v7796, %v7801
    %7805 = vrot.lane.b32.xlu0 %v7803, 64
    %v7806 = vpop.permute.xlu0 %7805
    %v7808 = vadd.f32 %v7797, %v7806
    %v7809 = vtanh.pop %v7808
    %v7810 = vsub.f32 1.0, %v7796
    %7812 = vrot.lane.b32.xlu0 %v7809, 96
    %v7813 = vpop.permute.xlu0 %7812
    %v7815 = vmul.f32 %v7810, %v7813
    %v7816 = vmul.f32 %v7796, %v6504
    %v7817 = vadd.f32 %v7815, %v7816
    %7819 = vrot.lane.b32.xlu0 %v7817, 96
    %v7820 = vpop.permute.xlu0 %7819
    %v7821 = vsel %vm186, %v7820, 0
    %7823 = vmatprep.subr.mxu0 0.0
    %7824 = vmatpush1.msra.mxu0 %v3530
    %7825 = vmatprep.subr.mxu0 0.0
    %7826 = vmatpush1.msra.mxu0 %v3531
    %7827 = vmatprep.subr.mxu0 0.0
    %7828 = vmatpush1.msra.mxu0 %v3532
    %7829 = vmatprep.subr.mxu0 0.0
    %7830 = vmatpush1.msra.mxu0 %v3533
    %7831 = vmatprep.subr.mxu0 0.0
    %7832 = vmatpush1.msra.mxu0 0.0
    %7833 = vmatprep.subr.mxu0 0.0
    %7834 = vmatpush1.msra.mxu0 0.0
    %7835 = vmatprep.subr.mxu0 0.0
    %7836 = vmatpush1.msra.mxu0 0.0
    %7837 = vmatprep.subr.mxu0 0.0
    %7838 = vmatpush1.msra.mxu0 0.0
    %7839 = vmatprep.subr.mxu0 0.0
    %7840 = vmatpush1.msra.mxu0 0.0
    %7841 = vmatprep.subr.mxu0 0.0
    %7842 = vmatpush1.msra.mxu0 0.0
    %7843 = vmatprep.subr.mxu0 0.0
    %7844 = vmatpush1.msra.mxu0 0.0
    %7845 = vmatprep.subr.mxu0 0.0
    %7846 = vmatpush1.msra.mxu0 0.0
    %7847 = vmatprep.subr.mxu0 0.0
    %7848 = vmatpush1.msra.mxu0 0.0
    %7849 = vmatprep.subr.mxu0 0.0
    %7850 = vmatpush1.msra.mxu0 0.0
    %7851 = vmatprep.subr.mxu0 0.0
    %7852 = vmatpush1.msra.mxu0 0.0
    %7853 = vmatprep.subr.mxu0 0.0
    %7854 = vmatpush1.msra.mxu0 0.0
    %7855 = vmatprep.subr.mxu0 0.0
    %7856 = vmatpush1.msra.mxu0 0.0
    %7857 = vmatprep.subr.mxu0 0.0
    %7858 = vmatpush1.msra.mxu0 0.0
    %7859 = vmatprep.subr.mxu0 0.0
    %7860 = vmatpush1.msra.mxu0 0.0
    %7861 = vmatprep.subr.mxu0 0.0
    %7862 = vmatpush1.msra.mxu0 0.0
    %7863 = vmatprep.subr.mxu0 0.0
    %7864 = vmatpush1.msra.mxu0 0.0
    %7865 = vmatprep.subr.mxu0 0.0
    %7866 = vmatpush1.msra.mxu0 0.0
    %7867 = vmatprep.subr.mxu0 0.0
    %7868 = vmatpush1.msra.mxu0 0.0
    %7869 = vmatprep.subr.mxu0 0.0
    %7870 = vmatpush1.msra.mxu0 0.0
    %7871 = vmatprep.subr.mxu0 0.0
    %7872 = vmatpush1.msra.mxu0 0.0
    %7873 = vmatprep.subr.mxu0 0.0
    %7874 = vmatpush1.msra.mxu0 0.0
    %7875 = vmatprep.subr.mxu0 0.0
    %7876 = vmatpush1.msra.mxu0 0.0
    %7877 = vmatprep.subr.mxu0 0.0
    %7878 = vmatpush1.msra.mxu0 0.0
    %7879 = vmatprep.subr.mxu0 0.0
    %7880 = vmatpush1.msra.mxu0 0.0
    %7881 = vmatprep.subr.mxu0 0.0
    %7882 = vmatpush1.msra.mxu0 0.0
    %7883 = vmatprep.subr.mxu0 0.0
    %7884 = vmatpush1.msra.mxu0 0.0
    %7885 = vmatprep.subr.mxu0 0.0
    %7886 = vmatpush1.msra.mxu0 0.0
    %7887 = vmatprep.mubr.f32.mxu0 0.0
    %7888 = vmatmul.mubr.f32.gmra.mrb[0].mxu0 %v7821
    %v7889 = vpop.f32.mrb[0].mxu0
    %v7890 = vadd.f32 %v3744, %v7889
    %v7891 = vpop.f32.mrb[0].mxu0
    %7892 = vdwg.mxu0
    %v7893 = vtanh.pop %v7890
    %v7895 = vsel %vm186, %v7893, 0
    %7897 = vmatprep.subr.mxu0 0.0
    %7898 = vmatpush1.msra.mxu0 %v3535
    %7899 = vmatprep.subr.mxu0 0.0
    %7900 = vmatpush1.msra.mxu0 %v3536
    %7901 = vmatprep.subr.mxu0 0.0
    %7902 = vmatpush1.msra.mxu0 %v3537
    %7903 = vmatprep.subr.mxu0 0.0
    %7904 = vmatpush1.msra.mxu0 %v3538
    %7905 = vmatprep.subr.mxu0 0.0
    %7906 = vmatpush1.msra.mxu0 0.0
    %7907 = vmatprep.subr.mxu0 0.0
    %7908 = vmatpush1.msra.mxu0 0.0
    %7909 = vmatprep.subr.mxu0 0.0
    %7910 = vmatpush1.msra.mxu0 0.0
    %7911 = vmatprep.subr.mxu0 0.0
    %7912 = vmatpush1.msra.mxu0 0.0
    %7913 = vmatprep.subr.mxu0 0.0
    %7914 = vmatpush1.msra.mxu0 0.0
    %7915 = vmatprep.subr.mxu0 0.0
    %7916 = vmatpush1.msra.mxu0 0.0
    %7917 = vmatprep.subr.mxu0 0.0
    %7918 = vmatpush1.msra.mxu0 0.0
    %7919 = vmatprep.subr.mxu0 0.0
    %7920 = vmatpush1.msra.mxu0 0.0
    %7921 = vmatprep.subr.mxu0 0.0
    %7922 = vmatpush1.msra.mxu0 0.0
    %7923 = vmatprep.subr.mxu0 0.0
    %7924 = vmatpush1.msra.mxu0 0.0
    %7925 = vmatprep.subr.mxu0 0.0
    %7926 = vmatpush1.msra.mxu0 0.0
    %7927 = vmatprep.subr.mxu0 0.0
    %7928 = vmatpush1.msra.mxu0 0.0
    %7929 = vmatprep.subr.mxu0 0.0
    %7930 = vmatpush1.msra.mxu0 0.0
    %7931 = vmatprep.subr.mxu0 0.0
    %7932 = vmatpush1.msra.mxu0 0.0
    %7933 = vmatprep.subr.mxu0 0.0
    %7934 = vmatpush1.msra.mxu0 0.0
    %7935 = vmatprep.subr.mxu0 0.0
    %7936 = vmatpush1.msra.mxu0 0.0
    %7937 = vmatprep.subr.mxu0 0.0
    %7938 = vmatpush1.msra.mxu0 0.0
    %7939 = vmatprep.subr.mxu0 0.0
    %7940 = vmatpush1.msra.mxu0 0.0
    %7941 = vmatprep.subr.mxu0 0.0
    %7942 = vmatpush1.msra.mxu0 0.0
    %7943 = vmatprep.subr.mxu0 0.0
    %7944 = vmatpush1.msra.mxu0 0.0
    %7945 = vmatprep.subr.mxu0 0.0
    %7946 = vmatpush1.msra.mxu0 0.0
    %7947 = vmatprep.subr.mxu0 0.0
    %7948 = vmatpush1.msra.mxu0 0.0
    %7949 = vmatprep.subr.mxu0 0.0
    %7950 = vmatpush1.msra.mxu0 0.0
    %7951 = vmatprep.subr.mxu0 0.0
    %7952 = vmatpush1.msra.mxu0 0.0
    %7953 = vmatprep.subr.mxu0 0.0
    %7954 = vmatpush1.msra.mxu0 0.0
    %7955 = vmatprep.subr.mxu0 0.0
    %7956 = vmatpush1.msra.mxu0 0.0
    %7957 = vmatprep.subr.mxu0 0.0
    %7958 = vmatpush1.msra.mxu0 0.0
    %7959 = vmatprep.subr.mxu0 0.0
    %7960 = vmatpush1.msra.mxu0 0.0
    %7961 = vmatprep.mubr.f32.mxu0 0.0
    %7962 = vmatmul.mubr.f32.gmra.mrb[0].mxu0 %v7895
    %v7963 = vpop.f32.mrb[0].mxu0
    %v7964 = vadd.f32 %v3826, %v7963
    %v7965 = vpop.f32.mrb[0].mxu0
    %7966 = vdwg.mxu0
    %v7967 = vxor.u32 %v7964, 2147483648
    %v7968 = vmul.f32 %v7967, 1.442695
    %v7969 = vpow.pop %v7968
    %v7970 = vadd.f32 %v7969, 1.0
    %v7971 = vrcp.pop %v7970
    %v7972 = vmul.f32 1.0, %v7971
    %v7973 = vmul.f32 %v7972, 11.0
    %v7974 = vadd.f32 %v7973, 2.0
    %v7975 = vfloor.f32 %v7974
    %v7976 = vcvt.f32.s32.to.zero.pseudo %v7975
    %7977 = vset.pattern.permute.xlu0 0
    %7978 = vperm.xlu0 %7977, %v7976
    %v7979 = vpop.permute.xlu0 %7978
    %v7980 = vadd.s32 %v7979, %v3549
    %v7981 = vlaneseq
    %v7982 = vshrl.u32 %v7981, 7
    %v7983 = vsub.s32 0, %v7982
    %v7984 = vrot.slane %v7980, %v7983
    %7986 = vbcast.lane.b32.xlu0 %v7984, 256
    %v7987 = vpop.permute.xlu0 %7986
    %v7988 = vlaneseq
    %v7989 = vshrl.u32 %v7988, 7
    %v7990 = vsub.s32 1, %v7989
    %v7991 = vrot.slane %v7980, %v7990
    %7993 = vbcast.lane.b32.xlu0 %v7991, 256
    %v7994 = vpop.permute.xlu0 %7993
    %vm7995 = vcmp.eq.s32.totalorder %v7987, %v3548
    %vm7996 = vcmp.eq.s32.totalorder %v7994, %v3548
    %v7997 = vsel %vm7995, 1, 0
    %v7998 = vsel %vm7996, 1, 0
    %v7999 = vcvt.s32.f32 %v7997
    %v8000 = vcvt.s32.f32 %v7998
    %v8002 = vsel %vm3943, %v7999, 0
    %8004 = vmatprep.subr.mxu0 0.0
    %8005 = vmatpush1.msra.mxu0 %v3938
    %8006 = vmatprep.subr.mxu0 0.0
    %8007 = vmatpush1.msra.mxu0 %v3940
    %8008 = vmatprep.subr.mxu0 0.0
    %8009 = vmatpush1.msra.mxu0 0.0
    %8010 = vmatprep.subr.mxu0 0.0
    %8011 = vmatpush1.msra.mxu0 0.0
    %8012 = vmatprep.subr.mxu0 0.0
    %8013 = vmatpush1.msra.mxu0 0.0
    %8014 = vmatprep.subr.mxu0 0.0
    %8015 = vmatpush1.msra.mxu0 0.0
    %8016 = vmatprep.subr.mxu0 0.0
    %8017 = vmatpush1.msra.mxu0 0.0
    %8018 = vmatprep.subr.mxu0 0.0
    %8019 = vmatpush1.msra.mxu0 0.0
    %8020 = vmatprep.subr.mxu0 0.0
    %8021 = vmatpush1.msra.mxu0 0.0
    %8022 = vmatprep.subr.mxu0 0.0
    %8023 = vmatpush1.msra.mxu0 0.0
    %8024 = vmatprep.subr.mxu0 0.0
    %8025 = vmatpush1.msra.mxu0 0.0
    %8026 = vmatprep.subr.mxu0 0.0
    %8027 = vmatpush1.msra.mxu0 0.0
    %8028 = vmatprep.subr.mxu0 0.0
    %8029 = vmatpush1.msra.mxu0 0.0
    %8030 = vmatprep.subr.mxu0 0.0
    %8031 = vmatpush1.msra.mxu0 0.0
    %8032 = vmatprep.subr.mxu0 0.0
    %8033 = vmatpush1.msra.mxu0 0.0
    %8034 = vmatprep.subr.mxu0 0.0
    %8035 = vmatpush1.msra.mxu0 0.0
    %8036 = vmatprep.subr.mxu0 0.0
    %8037 = vmatpush1.msra.mxu0 0.0
    %8038 = vmatprep.subr.mxu0 0.0
    %8039 = vmatpush1.msra.mxu0 0.0
    %8040 = vmatprep.subr.mxu0 0.0
    %8041 = vmatpush1.msra.mxu0 0.0
    %8042 = vmatprep.subr.mxu0 0.0
    %8043 = vmatpush1.msra.mxu0 0.0
    %8044 = vmatprep.subr.mxu0 0.0
    %8045 = vmatpush1.msra.mxu0 0.0
    %8046 = vmatprep.subr.mxu0 0.0
    %8047 = vmatpush1.msra.mxu0 0.0
    %8048 = vmatprep.subr.mxu0 0.0
    %8049 = vmatpush1.msra.mxu0 0.0
    %8050 = vmatprep.subr.mxu0 0.0
    %8051 = vmatpush1.msra.mxu0 0.0
    %8052 = vmatprep.subr.mxu0 0.0
    %8053 = vmatpush1.msra.mxu0 0.0
    %8054 = vmatprep.subr.mxu0 0.0
    %8055 = vmatpush1.msra.mxu0 0.0
    %8056 = vmatprep.subr.mxu0 0.0
    %8057 = vmatpush1.msra.mxu0 0.0
    %8058 = vmatprep.subr.mxu0 0.0
    %8059 = vmatpush1.msra.mxu0 0.0
    %8060 = vmatprep.subr.mxu0 0.0
    %8061 = vmatpush1.msra.mxu0 0.0
    %8062 = vmatprep.subr.mxu0 0.0
    %8063 = vmatpush1.msra.mxu0 0.0
    %8064 = vmatprep.subr.mxu0 0.0
    %8065 = vmatpush1.msra.mxu0 0.0
    %8066 = vmatprep.subr.mxu0 0.0
    %8067 = vmatpush1.msra.mxu0 0.0
    %8068 = vmatprep.mubr.f32.mxu0 0.0
    %8069 = vmatmul.mubr.f32.gmra.mrb[0].mxu0 %v8002
    %v8070 = vpop.f32.mrb[0].mxu0
    %v8071 = vadd.f32 0.0, %v8070
    %v8072 = vpop.f32.mrb[0].mxu0
    %8073 = vdwg.mxu0
    %v8075 = vsel %vm3943, %v8000, 0
    %8077 = vmatprep.subr.mxu0 0.0
    %8078 = vmatpush1.msra.mxu0 %v4020
    %8079 = vmatprep.subr.mxu0 0.0
    %8080 = vmatpush1.msra.mxu0 %v4022
    %8081 = vmatprep.subr.mxu0 0.0
    %8082 = vmatpush1.msra.mxu0 0.0
    %8083 = vmatprep.subr.mxu0 0.0
    %8084 = vmatpush1.msra.mxu0 0.0
    %8085 = vmatprep.subr.mxu0 0.0
    %8086 = vmatpush1.msra.mxu0 0.0
    %8087 = vmatprep.subr.mxu0 0.0
    %8088 = vmatpush1.msra.mxu0 0.0
    %8089 = vmatprep.subr.mxu0 0.0
    %8090 = vmatpush1.msra.mxu0 0.0
    %8091 = vmatprep.subr.mxu0 0.0
    %8092 = vmatpush1.msra.mxu0 0.0
    %8093 = vmatprep.subr.mxu0 0.0
    %8094 = vmatpush1.msra.mxu0 0.0
    %8095 = vmatprep.subr.mxu0 0.0
    %8096 = vmatpush1.msra.mxu0 0.0
    %8097 = vmatprep.subr.mxu0 0.0
    %8098 = vmatpush1.msra.mxu0 0.0
    %8099 = vmatprep.subr.mxu0 0.0
    %8100 = vmatpush1.msra.mxu0 0.0
    %8101 = vmatprep.subr.mxu0 0.0
    %8102 = vmatpush1.msra.mxu0 0.0
    %8103 = vmatprep.subr.mxu0 0.0
    %8104 = vmatpush1.msra.mxu0 0.0
    %8105 = vmatprep.subr.mxu0 0.0
    %8106 = vmatpush1.msra.mxu0 0.0
    %8107 = vmatprep.subr.mxu0 0.0
    %8108 = vmatpush1.msra.mxu0 0.0
    %8109 = vmatprep.subr.mxu0 0.0
    %8110 = vmatpush1.msra.mxu0 0.0
    %8111 = vmatprep.subr.mxu0 0.0
    %8112 = vmatpush1.msra.mxu0 0.0
    %8113 = vmatprep.subr.mxu0 0.0
    %8114 = vmatpush1.msra.mxu0 0.0
    %8115 = vmatprep.subr.mxu0 0.0
    %8116 = vmatpush1.msra.mxu0 0.0
    %8117 = vmatprep.subr.mxu0 0.0
    %8118 = vmatpush1.msra.mxu0 0.0
    %8119 = vmatprep.subr.mxu0 0.0
    %8120 = vmatpush1.msra.mxu0 0.0
    %8121 = vmatprep.subr.mxu0 0.0
    %8122 = vmatpush1.msra.mxu0 0.0
    %8123 = vmatprep.subr.mxu0 0.0
    %8124 = vmatpush1.msra.mxu0 0.0
    %8125 = vmatprep.subr.mxu0 0.0
    %8126 = vmatpush1.msra.mxu0 0.0
    %8127 = vmatprep.subr.mxu0 0.0
    %8128 = vmatpush1.msra.mxu0 0.0
    %8129 = vmatprep.subr.mxu0 0.0
    %8130 = vmatpush1.msra.mxu0 0.0
    %8131 = vmatprep.subr.mxu0 0.0
    %8132 = vmatpush1.msra.mxu0 0.0
    %8133 = vmatprep.subr.mxu0 0.0
    %8134 = vmatpush1.msra.mxu0 0.0
    %8135 = vmatprep.subr.mxu0 0.0
    %8136 = vmatpush1.msra.mxu0 0.0
    %8137 = vmatprep.subr.mxu0 0.0
    %8138 = vmatpush1.msra.mxu0 0.0
    %8139 = vmatprep.subr.mxu0 0.0
    %8140 = vmatpush1.msra.mxu0 0.0
    %8141 = vmatprep.mubr.f32.mxu0 0.0
    %8142 = vmatmul.mubr.f32.gmra.mrb[0].mxu0 %v8075
    %v8143 = vpop.f32.mrb[0].mxu0
    %v8144 = vadd.f32 0.0, %v8143
    %v8145 = vpop.f32.mrb[0].mxu0
    %8146 = vdwg.mxu0
    %v8149 = vcombine.high %v8071, %v8071
    %v8151 = vunpack.c.l.s4 1966171168
    %v8152 = vunpack.c.0.s8 %v8151
    %v8153 = vlaneseq
    %v8154 = vshrl.u32 %v8153, 7
    %v8155 = vsub.s32 %v8152, %v8154
    %v8156 = vrot.slane %v8071, %v8155
    %v8158 = vunpack.c.l.s4 1966171168
    %v8159 = vunpack.c.0.s8 %v8158
    %v8160 = vlaneseq
    %v8161 = vshrl.u32 %v8160, 7
    %v8162 = vsub.s32 %v8159, %v8161
    %v8163 = vrot.slane %v8149, %v8162
    %v8164 = vcombine.high %v8156, %v8156
    %v8166 = vunpack.c.l.s4 1966171168
    %v8167 = vunpack.c.0.s8 %v8166
    %v8168 = vlaneseq
    %v8169 = vshrl.u32 %v8168, 7
    %v8170 = vsub.s32 %v8167, %v8169
    %v8171 = vrot.slane %v8156, %v8170
    %v8173 = vunpack.c.l.s4 1966171168
    %v8174 = vunpack.c.0.s8 %v8173
    %v8175 = vlaneseq
    %v8176 = vshrl.u32 %v8175, 7
    %v8177 = vsub.s32 %v8174, %v8176
    %v8178 = vrot.slane %v8163, %v8177
    %v8180 = vunpack.c.l.s4 1966171168
    %v8181 = vunpack.c.0.s8 %v8180
    %v8182 = vlaneseq
    %v8183 = vshrl.u32 %v8182, 7
    %v8184 = vsub.s32 %v8181, %v8183
    %v8185 = vrot.slane %v8164, %v8184
    %v8186 = vcombine.high %v8171, %v8171
    %v8187 = vcombine.high %v8185, %v8185
    %v8188 = vcombine.high %v8144, %v8144
    %v8190 = vunpack.c.l.s4 1966171168
    %v8191 = vunpack.c.0.s8 %v8190
    %v8192 = vlaneseq
    %v8193 = vshrl.u32 %v8192, 7
    %v8194 = vsub.s32 %v8191, %v8193
    %v8195 = vrot.slane %v8144, %v8194
    %v8197 = vunpack.c.l.s4 1966171168
    %v8198 = vunpack.c.0.s8 %v8197
    %v8199 = vlaneseq
    %v8200 = vshrl.u32 %v8199, 7
    %v8201 = vsub.s32 %v8198, %v8200
    %v8202 = vrot.slane %v8188, %v8201
    %v8203 = vcombine.high %v8195, %v8195
    %v8205 = vunpack.c.l.s4 1966171168
    %v8206 = vunpack.c.0.s8 %v8205
    %v8207 = vlaneseq
    %v8208 = vshrl.u32 %v8207, 7
    %v8209 = vsub.s32 %v8206, %v8208
    %v8210 = vrot.slane %v8195, %v8209
    %v8212 = vunpack.c.l.s4 1966171168
    %v8213 = vunpack.c.0.s8 %v8212
    %v8214 = vlaneseq
    %v8215 = vshrl.u32 %v8214, 7
    %v8216 = vsub.s32 %v8213, %v8215
    %v8217 = vrot.slane %v8202, %v8216
    %v8219 = vunpack.c.l.s4 1966171168
    %v8220 = vunpack.c.0.s8 %v8219
    %v8221 = vlaneseq
    %v8222 = vshrl.u32 %v8221, 7
    %v8223 = vsub.s32 %v8220, %v8222
    %v8224 = vrot.slane %v8203, %v8223
    %v8225 = vcombine.high %v8210, %v8210
    %v8226 = vcombine.high %v8224, %v8224
    %v8227 = vcombine.low %v8171, %v8185
    %v8228 = vcombine.low %v8186, %v8187
    %v8229 = vcombine.low %v8178, %v8210
    %v8230 = vcombine.low %v8224, %v8225
    %v8232 = vunpack.c.l.s4 1966171168
    %v8233 = vunpack.c.0.s8 %v8232
    %v8234 = vlaneseq
    %v8235 = vshrl.u32 %v8234, 7
    %v8236 = vsub.s32 %v8233, %v8235
    %v8237 = vrot.slane %v8227, %v8236
    %v8239 = vunpack.c.l.s4 1966171168
    %v8240 = vunpack.c.0.s8 %v8239
    %v8241 = vlaneseq
    %v8242 = vshrl.u32 %v8241, 7
    %v8243 = vsub.s32 %v8240, %v8242
    %v8244 = vrot.slane %v8228, %v8243
    %v8246 = vunpack.c.l.s4 1966171168
    %v8247 = vunpack.c.0.s8 %v8246
    %v8248 = vlaneseq
    %v8249 = vshrl.u32 %v8248, 7
    %v8250 = vsub.s32 %v8247, %v8249
    %v8251 = vrot.slane %v8229, %v8250
    %v8253 = vunpack.c.l.s4 1966171168
    %v8254 = vunpack.c.0.s8 %v8253
    %v8255 = vlaneseq
    %v8256 = vshrl.u32 %v8255, 7
    %v8257 = vsub.s32 %v8254, %v8256
    %v8258 = vrot.slane %v8230, %v8257
    %v8259 = vcombine.low %v8237, %v8244
    %v8260 = vcombine.low %v8251, %v8258
    %v8262 = vunpack.c.l.s4 1966171168
    %v8263 = vunpack.c.0.s8 %v8262
    %v8264 = vlaneseq
    %v8265 = vshrl.u32 %v8264, 7
    %v8266 = vsub.s32 %v8263, %v8265
    %v8267 = vrot.slane %v8259, %v8266
    %v8269 = vunpack.c.l.s4 1966171168
    %v8270 = vunpack.c.0.s8 %v8269
    %v8271 = vlaneseq
    %v8272 = vshrl.u32 %v8271, 7
    %v8273 = vsub.s32 %v8270, %v8272
    %v8274 = vrot.slane %v8260, %v8273
    %v8275 = vcombine.low %v8267, %v8274
    %v8276 = vcombine.low %v8226, %v8217
    %v8278 = vunpack.c.l.s4 1966171168
    %v8279 = vunpack.c.0.s8 %v8278
    %v8280 = vlaneseq
    %v8281 = vshrl.u32 %v8280, 7
    %v8282 = vsub.s32 %v8279, %v8281
    %v8283 = vrot.slane %v8276, %v8282
    %v8285 = vunpack.c.l.s4 1966171168
    %v8286 = vunpack.c.0.s8 %v8285
    %v8287 = vlaneseq
    %v8288 = vshrl.u32 %v8287, 7
    %v8289 = vsub.s32 %v8286, %v8288
    %v8290 = vrot.slane %v8283, %v8289
    %v8291 = vsel %vm186, %v8275, 0
    %v8293 = vsel %vm186, %v8290, 0
    %8295 = vmatprep.subr.mxu0 0.0
    %8296 = vmatpush1.msra.mxu0 %v3540
    %8297 = vmatprep.subr.mxu0 0.0
    %8298 = vmatpush1.msra.mxu0 %v3541
    %8299 = vmatprep.subr.mxu0 0.0
    %8300 = vmatpush1.msra.mxu0 %v3542
    %8301 = vmatprep.subr.mxu0 0.0
    %8302 = vmatpush1.msra.mxu0 %v3543
    %8303 = vmatprep.subr.mxu0 0.0
    %8304 = vmatpush1.msra.mxu0 0.0
    %8305 = vmatprep.subr.mxu0 0.0
    %8306 = vmatpush1.msra.mxu0 0.0
    %8307 = vmatprep.subr.mxu0 0.0
    %8308 = vmatpush1.msra.mxu0 0.0
    %8309 = vmatprep.subr.mxu0 0.0
    %8310 = vmatpush1.msra.mxu0 0.0
    %8311 = vmatprep.subr.mxu0 0.0
    %8312 = vmatpush1.msra.mxu0 0.0
    %8313 = vmatprep.subr.mxu0 0.0
    %8314 = vmatpush1.msra.mxu0 0.0
    %8315 = vmatprep.subr.mxu0 0.0
    %8316 = vmatpush1.msra.mxu0 0.0
    %8317 = vmatprep.subr.mxu0 0.0
    %8318 = vmatpush1.msra.mxu0 0.0
    %8319 = vmatprep.subr.mxu0 0.0
    %8320 = vmatpush1.msra.mxu0 0.0
    %8321 = vmatprep.subr.mxu0 0.0
    %8322 = vmatpush1.msra.mxu0 0.0
    %8323 = vmatprep.subr.mxu0 0.0
    %8324 = vmatpush1.msra.mxu0 0.0
    %8325 = vmatprep.subr.mxu0 0.0
    %8326 = vmatpush1.msra.mxu0 0.0
    %8327 = vmatprep.subr.mxu0 0.0
    %8328 = vmatpush1.msra.mxu0 0.0
    %8329 = vmatprep.subr.mxu0 0.0
    %8330 = vmatpush1.msra.mxu0 0.0
    %8331 = vmatprep.subr.mxu0 0.0
    %8332 = vmatpush1.msra.mxu0 0.0
    %8333 = vmatprep.subr.mxu0 0.0
    %8334 = vmatpush1.msra.mxu0 0.0
    %8335 = vmatprep.subr.mxu0 0.0
    %8336 = vmatpush1.msra.mxu0 0.0
    %8337 = vmatprep.subr.mxu0 0.0
    %8338 = vmatpush1.msra.mxu0 0.0
    %8339 = vmatprep.subr.mxu0 0.0
    %8340 = vmatpush1.msra.mxu0 0.0
    %8341 = vmatprep.subr.mxu0 0.0
    %8342 = vmatpush1.msra.mxu0 0.0
    %8343 = vmatprep.subr.mxu0 0.0
    %8344 = vmatpush1.msra.mxu0 0.0
    %8345 = vmatprep.subr.mxu0 0.0
    %8346 = vmatpush1.msra.mxu0 0.0
    %8347 = vmatprep.subr.mxu0 0.0
    %8348 = vmatpush1.msra.mxu0 0.0
    %8349 = vmatprep.subr.mxu0 0.0
    %8350 = vmatpush1.msra.mxu0 0.0
    %8351 = vmatprep.subr.mxu0 0.0
    %8352 = vmatpush1.msra.mxu0 0.0
    %8353 = vmatprep.subr.mxu0 0.0
    %8354 = vmatpush1.msra.mxu0 0.0
    %8355 = vmatprep.subr.mxu0 0.0
    %8356 = vmatpush1.msra.mxu0 0.0
    %8357 = vmatprep.subr.mxu0 0.0
    %8358 = vmatpush1.msra.mxu0 0.0
    %8359 = vmatprep.mubr.f32.mxu0 0.0
    %8360 = vmatmul.mubr.f32.gmra.mrb[0].mxu0 %v8291
    %v8361 = vpop.f32.mrb[0].mxu0
    %v8362 = vadd.f32 %v4334, %v8361
    %v8363 = vpop.f32.mrb[0].mxu0
    %8364 = vmatprep.mubr.f32.mxu0 0.0
    %8365 = vmatmul.mubr.f32.gmra.mrb[0].mxu0 %v8293
    %v8366 = vpop.f32.mrb[0].mxu0
    %v8367 = vadd.f32 %v4349, %v8366
    %v8368 = vpop.f32.mrb[0].mxu0
    %8369 = vdwg.mxu0
    %v8372 = vcombine.high %v8362, %v8362
    %v8374 = vunpack.c.l.s4 1966171168
    %v8375 = vunpack.c.0.s8 %v8374
    %v8376 = vlaneseq
    %v8377 = vshrl.u32 %v8376, 7
    %v8378 = vsub.s32 %v8375, %v8377
    %v8379 = vrot.slane %v8362, %v8378
    %v8381 = vunpack.c.l.s4 1966171168
    %v8382 = vunpack.c.0.s8 %v8381
    %v8383 = vlaneseq
    %v8384 = vshrl.u32 %v8383, 7
    %v8385 = vsub.s32 %v8382, %v8384
    %v8386 = vrot.slane %v8372, %v8385
    %v8387 = vcombine.high %v8379, %v8379
    %v8388 = vcombine.high %v8386, %v8386
    %v8390 = vunpack.c.l.s4 1966171168
    %v8391 = vunpack.c.0.s8 %v8390
    %v8392 = vlaneseq
    %v8393 = vshrl.u32 %v8392, 7
    %v8394 = vsub.s32 %v8391, %v8393
    %v8395 = vrot.slane %v8379, %v8394
    %v8397 = vunpack.c.l.s4 1966171168
    %v8398 = vunpack.c.0.s8 %v8397
    %v8399 = vlaneseq
    %v8400 = vshrl.u32 %v8399, 7
    %v8401 = vsub.s32 %v8398, %v8400
    %v8402 = vrot.slane %v8386, %v8401
    %v8404 = vunpack.c.l.s4 1966171168
    %v8405 = vunpack.c.0.s8 %v8404
    %v8406 = vlaneseq
    %v8407 = vshrl.u32 %v8406, 7
    %v8408 = vsub.s32 %v8405, %v8407
    %v8409 = vrot.slane %v8387, %v8408
    %v8411 = vunpack.c.l.s4 1966171168
    %v8412 = vunpack.c.0.s8 %v8411
    %v8413 = vlaneseq
    %v8414 = vshrl.u32 %v8413, 7
    %v8415 = vsub.s32 %v8412, %v8414
    %v8416 = vrot.slane %v8388, %v8415
    %v8417 = vcombine.high %v8395, %v8395
    %v8418 = vcombine.high %v8402, %v8402
    %v8419 = vcombine.high %v8409, %v8409
    %v8420 = vcombine.high %v8416, %v8416
    %v8422 = vunpack.c.l.s4 1966171168
    %v8423 = vunpack.c.0.s8 %v8422
    %v8424 = vlaneseq
    %v8425 = vshrl.u32 %v8424, 7
    %v8426 = vsub.s32 %v8423, %v8425
    %v8427 = vrot.slane %v8367, %v8426
    %v8428 = vcombine.high %v8427, %v8427
    %v8430 = vunpack.c.l.s4 1966171168
    %v8431 = vunpack.c.0.s8 %v8430
    %v8432 = vlaneseq
    %v8433 = vshrl.u32 %v8432, 7
    %v8434 = vsub.s32 %v8431, %v8433
    %v8435 = vrot.slane %v8427, %v8434
    %v8437 = vunpack.c.l.s4 1966171168
    %v8438 = vunpack.c.0.s8 %v8437
    %v8439 = vlaneseq
    %v8440 = vshrl.u32 %v8439, 7
    %v8441 = vsub.s32 %v8438, %v8440
    %v8442 = vrot.slane %v8428, %v8441
    %v8454 = vunpack.c.l.s4 1966171168
    %v8455 = vunpack.c.0.s8 %v8454
    %v8456 = vlaneseq
    %v8457 = vshrl.u32 %v8456, 7
    %v8458 = vsub.s32 %v8455, %v8457
    %v8459 = vrot.slane %v7817, %v8458
    %v8460 = vcombine.high %v8459, %v8459
    %v8462 = vunpack.c.l.s4 1966171168
    %v8463 = vunpack.c.0.s8 %v8462
    %v8464 = vlaneseq
    %v8465 = vshrl.u32 %v8464, 7
    %v8466 = vsub.s32 %v8463, %v8465
    %v8467 = vrot.slane %v8459, %v8466
    %v8469 = vunpack.c.l.s4 1966171168
    %v8470 = vunpack.c.0.s8 %v8469
    %v8471 = vlaneseq
    %v8472 = vshrl.u32 %v8471, 7
    %v8473 = vsub.s32 %v8470, %v8472
    %v8474 = vrot.slane %v8460, %v8473
    %v8475 = vlaneseq
    %v8476 = vshrl.u32 %v8475, 7
    %v8477 = vsub.s32 0, %v8476
    %v8478 = vrot.slane %v8467, %v8477
    %v8479 = vlaneseq
    %v8480 = vshrl.u32 %v8479, 7
    %v8481 = vsub.s32 0, %v8480
    %v8482 = vrot.slane %v8474, %v8481
    %v8483 = vcombine.high %v8478, %v8478
    %v8485 = vunpack.c.l.s4 1966171168
    %v8486 = vunpack.c.0.s8 %v8485
    %v8487 = vlaneseq
    %v8488 = vshrl.u32 %v8487, 7
    %v8489 = vsub.s32 %v8486, %v8488
    %v8490 = vrot.slane %v8478, %v8489
    %v8492 = vunpack.c.l.s4 1966171168
    %v8493 = vunpack.c.0.s8 %v8492
    %v8494 = vlaneseq
    %v8495 = vshrl.u32 %v8494, 7
    %v8496 = vsub.s32 %v8493, %v8495
    %v8497 = vrot.slane %v8483, %v8496
    %v8498 = vcombine.high %v8490, %v8490
    %v8500 = vunpack.c.l.s4 1966171168
    %v8501 = vunpack.c.0.s8 %v8500
    %v8502 = vlaneseq
    %v8503 = vshrl.u32 %v8502, 7
    %v8504 = vsub.s32 %v8501, %v8503
    %v8505 = vrot.slane %v8490, %v8504
    %v8507 = vunpack.c.l.s4 1966171168
    %v8508 = vunpack.c.0.s8 %v8507
    %v8509 = vlaneseq
    %v8510 = vshrl.u32 %v8509, 7
    %v8511 = vsub.s32 %v8508, %v8510
    %v8512 = vrot.slane %v8497, %v8511
    %v8514 = vunpack.c.l.s4 1966171168
    %v8515 = vunpack.c.0.s8 %v8514
    %v8516 = vlaneseq
    %v8517 = vshrl.u32 %v8516, 7
    %v8518 = vsub.s32 %v8515, %v8517
    %v8519 = vrot.slane %v8498, %v8518
    %v8520 = vcombine.high %v8505, %v8505
    %v8521 = vcombine.high %v8519, %v8519
    %v8522 = vcombine.high %v8482, %v8482
    %v8524 = vunpack.c.l.s4 1966171168
    %v8525 = vunpack.c.0.s8 %v8524
    %v8526 = vlaneseq
    %v8527 = vshrl.u32 %v8526, 7
    %v8528 = vsub.s32 %v8525, %v8527
    %v8529 = vrot.slane %v8482, %v8528
    %v8531 = vunpack.c.l.s4 1966171168
    %v8532 = vunpack.c.0.s8 %v8531
    %v8533 = vlaneseq
    %v8534 = vshrl.u32 %v8533, 7
    %v8535 = vsub.s32 %v8532, %v8534
    %v8536 = vrot.slane %v8522, %v8535
    %v8537 = vcombine.high %v8529, %v8529
    %v8539 = vunpack.c.l.s4 1966171168
    %v8540 = vunpack.c.0.s8 %v8539
    %v8541 = vlaneseq
    %v8542 = vshrl.u32 %v8541, 7
    %v8543 = vsub.s32 %v8540, %v8542
    %v8544 = vrot.slane %v8529, %v8543
    %v8546 = vunpack.c.l.s4 1966171168
    %v8547 = vunpack.c.0.s8 %v8546
    %v8548 = vlaneseq
    %v8549 = vshrl.u32 %v8548, 7
    %v8550 = vsub.s32 %v8547, %v8549
    %v8551 = vrot.slane %v8536, %v8550
    %v8553 = vunpack.c.l.s4 1966171168
    %v8554 = vunpack.c.0.s8 %v8553
    %v8555 = vlaneseq
    %v8556 = vshrl.u32 %v8555, 7
    %v8557 = vsub.s32 %v8554, %v8556
    %v8558 = vrot.slane %v8537, %v8557
    %v8559 = vcombine.high %v8544, %v8544
    %v8560 = vcombine.high %v8558, %v8558
    %8561 = vrot.lane.b32.xlu0 %v8505, 96
    %v8562 = vpop.permute.xlu0 %8561
    %8563 = vrot.lane.b32.xlu0 %v8519, 96
    %v8564 = vpop.permute.xlu0 %8563
    %8565 = vrot.lane.b32.xlu0 %v8520, 96
    %v8566 = vpop.permute.xlu0 %8565
    %8567 = vrot.lane.b32.xlu0 %v8521, 96
    %v8568 = vpop.permute.xlu0 %8567
    %8569 = vrot.lane.b32.xlu0 %v8512, 96
    %v8570 = vpop.permute.xlu0 %8569
    %8571 = vrot.lane.b32.xlu0 %v8544, 96
    %v8572 = vpop.permute.xlu0 %8571
    %8573 = vrot.lane.b32.xlu0 %v8558, 96
    %v8574 = vpop.permute.xlu0 %8573
    %8575 = vrot.lane.b32.xlu0 %v8559, 96
    %v8576 = vpop.permute.xlu0 %8575
    %8577 = vrot.lane.b32.xlu0 %v8560, 96
    %v8578 = vpop.permute.xlu0 %8577
    %8579 = vrot.lane.b32.xlu0 %v8551, 96
    %v8580 = vpop.permute.xlu0 %8579
    %v8591 = vmul.f32 %v8395, %v8562
    %v8592 = vmul.f32 %v8409, %v8564
    %v8593 = vmul.f32 %v8417, %v8566
    %v8594 = vmul.f32 %v8419, %v8568
    %v8595 = vmul.f32 %v8402, %v8570
    %v8596 = vmul.f32 %v8416, %v8572
    %v8597 = vmul.f32 %v8418, %v8574
    %v8598 = vmul.f32 %v8420, %v8576
    %v8599 = vmul.f32 %v8435, %v8578
    %v8600 = vmul.f32 %v8442, %v8580
    %v8611 = vcombine.low %v8591, %v8592
    %v8612 = vcombine.low %v8593, %v8594
    %v8614 = vunpack.c.l.s4 1966171168
    %v8615 = vunpack.c.0.s8 %v8614
    %v8616 = vlaneseq
    %v8617 = vshrl.u32 %v8616, 7
    %v8618 = vsub.s32 %v8615, %v8617
    %v8619 = vrot.slane %v8611, %v8618
    %v8621 = vunpack.c.l.s4 1966171168
    %v8622 = vunpack.c.0.s8 %v8621
    %v8623 = vlaneseq
    %v8624 = vshrl.u32 %v8623, 7
    %v8625 = vsub.s32 %v8622, %v8624
    %v8626 = vrot.slane %v8612, %v8625
    %v8628 = vunpack.c.l.s4 1966171168
    %v8629 = vunpack.c.0.s8 %v8628
    %v8630 = vlaneseq
    %v8631 = vshrl.u32 %v8630, 7
    %v8632 = vsub.s32 %v8629, %v8631
    %v8633 = vrot.slane %v8595, %v8632
    %v8634 = vcombine.low %v8619, %v8626
    %v8636 = vunpack.c.l.s4 1966171168
    %v8637 = vunpack.c.0.s8 %v8636
    %v8638 = vlaneseq
    %v8639 = vshrl.u32 %v8638, 7
    %v8640 = vsub.s32 %v8637, %v8639
    %v8641 = vrot.slane %v8634, %v8640
    %v8643 = vunpack.c.l.s4 1966171168
    %v8644 = vunpack.c.0.s8 %v8643
    %v8645 = vlaneseq
    %v8646 = vshrl.u32 %v8645, 7
    %v8647 = vsub.s32 %v8644, %v8646
    %v8648 = vrot.slane %v8633, %v8647
    %v8649 = vcombine.low %v8641, %v8648
    %v8650 = vcombine.low %v8596, %v8597
    %v8651 = vcombine.low %v8598, %v8599
    %v8653 = vunpack.c.l.s4 1966171168
    %v8654 = vunpack.c.0.s8 %v8653
    %v8655 = vlaneseq
    %v8656 = vshrl.u32 %v8655, 7
    %v8657 = vsub.s32 %v8654, %v8656
    %v8658 = vrot.slane %v8650, %v8657
    %v8660 = vunpack.c.l.s4 1966171168
    %v8661 = vunpack.c.0.s8 %v8660
    %v8662 = vlaneseq
    %v8663 = vshrl.u32 %v8662, 7
    %v8664 = vsub.s32 %v8661, %v8663
    %v8665 = vrot.slane %v8651, %v8664
    %v8667 = vunpack.c.l.s4 1966171168
    %v8668 = vunpack.c.0.s8 %v8667
    %v8669 = vlaneseq
    %v8670 = vshrl.u32 %v8669, 7
    %v8671 = vsub.s32 %v8668, %v8670
    %v8672 = vrot.slane %v8600, %v8671
    %v8673 = vcombine.low %v8658, %v8665
    %v8675 = vunpack.c.l.s4 1966171168
    %v8676 = vunpack.c.0.s8 %v8675
    %v8677 = vlaneseq
    %v8678 = vshrl.u32 %v8677, 7
    %v8679 = vsub.s32 %v8676, %v8678
    %v8680 = vrot.slane %v8673, %v8679
    %v8682 = vunpack.c.l.s4 1966171168
    %v8683 = vunpack.c.0.s8 %v8682
    %v8684 = vlaneseq
    %v8685 = vshrl.u32 %v8684, 7
    %v8686 = vsub.s32 %v8683, %v8685
    %v8687 = vrot.slane %v8672, %v8686
    %v8688 = vcombine.low %v8680, %v8687
    %v8691 = vsel %vm4752, %v8649, 0.0
    %8692 = vadd.xlane.f32.xlu0 %v8691
    %v8693 = vpop.xlane.xlu0 %8692
    %v8694 = vsel %vm4752, %v8688, 0.0
    %8695 = vadd.xlane.f32.xlu0 %v8694
    %v8696 = vpop.xlane.xlu0 %8695
    %v8697 = vcvt.s32.f32 %v7980
    %8699 = vset.pattern.permute.xlu0 0
    %8700 = vperm.xlu0 %8699, %v7974
    %v8701 = vpop.permute.xlu0 %8700
    %v8703 = vsub.f32 %v8697, %v8701
    %v8704 = vmul.f32 %v8703, %v8703
    %v8705 = vmul.f32 %v8704, -0.5
    %v8706 = vmul.f32 %v8705, 1.442695
    %v8707 = vpow.pop %v8706
    %v8709 = vlaneseq
    %v8710 = vshrl.u32 %v8709, 7
    %v8711 = vsub.s32 0, %v8710
    %v8712 = vrot.slane %v8707, %v8711
    %8714 = vbcast.lane.b32.xlu0 %v8712, 256
    %v8715 = vpop.permute.xlu0 %8714
    %v8716 = vlaneseq
    %v8717 = vshrl.u32 %v8716, 7
    %v8718 = vsub.s32 1, %v8717
    %v8719 = vrot.slane %v8707, %v8718
    %8721 = vbcast.lane.b32.xlu0 %v8719, 256
    %v8722 = vpop.permute.xlu0 %8721
    %v8725 = vmul.f32 %v8693, %v8715
    %v8726 = vmul.f32 %v8696, %v8722
    %8729 = vset.pattern.permute.xlu0 0
    %8730 = vperm.xlu0 %8729, %v8725
    %v8731 = vpop.permute.xlu0 %8730
    %8732 = vset.pattern.permute.xlu0 0
    %8733 = vperm.xlu0 %8732, %v8726
    %v8734 = vpop.permute.xlu0 %8733
    %v8735 = vlaneseq
    %v8736 = vshrl.u32 %v8735, 7
    %v8737 = vsub.s32 %v3548, %v8736
    %v8738 = vrot.slane %v8731, %v8737
    %v8739 = vlaneseq
    %v8740 = vshrl.u32 %v8739, 7
    %v8741 = vsub.s32 %v3548, %v8740
    %v8742 = vrot.slane %v8734, %v8741
    %v8743 = vsel %vm111, %v8742, %v8738
    %v8745 = vsel %vm4807, %v8743, -inf
    %8746 = vmax.xlane.f32.xlu0 %v8745
    %v8747 = vpop.xlane.xlu0 %8746
    %v8749 = vlaneseq
    %v8750 = vshrl.u32 %v8749, 7
    %v8751 = vsub.s32 0, %v8750
    %v8752 = vrot.slane %v8747, %v8751
    %v8753 = vlaneseq
    %v8754 = vshrl.u32 %v8753, 7
    %v8755 = vsub.s32 1, %v8754
    %v8756 = vrot.slane %v8747, %v8755
    %v8759 = vsub.f32 %v8725, %v8752
    %v8760 = vsub.f32 %v8726, %v8756
    %v8761 = vmul.f32 %v8759, 1.442695
    %v8762 = vpow.pop %v8761
    %v8763 = vmul.f32 %v8760, 1.442695
    %v8764 = vpow.pop %v8763
    %8767 = vset.pattern.permute.xlu0 0
    %8768 = vperm.xlu0 %8767, %v8762
    %v8769 = vpop.permute.xlu0 %8768
    %8770 = vset.pattern.permute.xlu0 0
    %8771 = vperm.xlu0 %8770, %v8764
    %v8772 = vpop.permute.xlu0 %8771
    %v8773 = vlaneseq
    %v8774 = vshrl.u32 %v8773, 7
    %v8775 = vsub.s32 %v3548, %v8774
    %v8776 = vrot.slane %v8769, %v8775
    %v8777 = vlaneseq
    %v8778 = vshrl.u32 %v8777, 7
    %v8779 = vsub.s32 %v3548, %v8778
    %v8780 = vrot.slane %v8772, %v8779
    %v8781 = vsel %vm111, %v8780, %v8776
    %v8783 = vsel %vm4807, %v8781, 0.0
    %8784 = vadd.xlane.f32.xlu0 %v8783
    %v8785 = vpop.xlane.xlu0 %8784
    %v8787 = vlaneseq
    %v8788 = vshrl.u32 %v8787, 7
    %v8789 = vsub.s32 0, %v8788
    %v8790 = vrot.slane %v8785, %v8789
    %v8791 = vlaneseq
    %v8792 = vshrl.u32 %v8791, 7
    %v8793 = vsub.s32 1, %v8792
    %v8794 = vrot.slane %v8785, %v8793
    %v8797 = vrcp.pop %v8790
    %v8798 = vmul.f32 %v8762, %v8797
    %v8799 = vrcp.pop %v8794
    %v8800 = vmul.f32 %v8764, %v8799
    %8802 = vset.pattern.permute.xlu0 0
    %8803 = vperm.xlu0 %8802, %v8798
    %v8804 = vpop.permute.xlu0 %8803
    %8807 = vset.pattern.permute.xlu0 0
    %8808 = vperm.xlu0 %8807, %v8800
    %v8809 = vpop.permute.xlu0 %8808
    %v8811 = vcombine.low %v8395, %v8409
    %v8812 = vcombine.low %v8417, %v8419
    %v8814 = vunpack.c.l.s4 1966171168
    %v8815 = vunpack.c.0.s8 %v8814
    %v8816 = vlaneseq
    %v8817 = vshrl.u32 %v8816, 7
    %v8818 = vsub.s32 %v8815, %v8817
    %v8819 = vrot.slane %v8811, %v8818
    %v8821 = vunpack.c.l.s4 1966171168
    %v8822 = vunpack.c.0.s8 %v8821
    %v8823 = vlaneseq
    %v8824 = vshrl.u32 %v8823, 7
    %v8825 = vsub.s32 %v8822, %v8824
    %v8826 = vrot.slane %v8812, %v8825
    %v8828 = vunpack.c.l.s4 1966171168
    %v8829 = vunpack.c.0.s8 %v8828
    %v8830 = vlaneseq
    %v8831 = vshrl.u32 %v8830, 7
    %v8832 = vsub.s32 %v8829, %v8831
    %v8833 = vrot.slane %v8402, %v8832
    %v8834 = vcombine.low %v8819, %v8826
    %v8836 = vunpack.c.l.s4 1966171168
    %v8837 = vunpack.c.0.s8 %v8836
    %v8838 = vlaneseq
    %v8839 = vshrl.u32 %v8838, 7
    %v8840 = vsub.s32 %v8837, %v8839
    %v8841 = vrot.slane %v8834, %v8840
    %v8843 = vunpack.c.l.s4 1966171168
    %v8844 = vunpack.c.0.s8 %v8843
    %v8845 = vlaneseq
    %v8846 = vshrl.u32 %v8845, 7
    %v8847 = vsub.s32 %v8844, %v8846
    %v8848 = vrot.slane %v8833, %v8847
    %v8849 = vcombine.low %v8841, %v8848
    %v8850 = vcombine.low %v8416, %v8418
    %v8851 = vcombine.low %v8420, %v8435
    %v8853 = vunpack.c.l.s4 1966171168
    %v8854 = vunpack.c.0.s8 %v8853
    %v8855 = vlaneseq
    %v8856 = vshrl.u32 %v8855, 7
    %v8857 = vsub.s32 %v8854, %v8856
    %v8858 = vrot.slane %v8850, %v8857
    %v8860 = vunpack.c.l.s4 1966171168
    %v8861 = vunpack.c.0.s8 %v8860
    %v8862 = vlaneseq
    %v8863 = vshrl.u32 %v8862, 7
    %v8864 = vsub.s32 %v8861, %v8863
    %v8865 = vrot.slane %v8851, %v8864
    %v8867 = vunpack.c.l.s4 1966171168
    %v8868 = vunpack.c.0.s8 %v8867
    %v8869 = vlaneseq
    %v8870 = vshrl.u32 %v8869, 7
    %v8871 = vsub.s32 %v8868, %v8870
    %v8872 = vrot.slane %v8442, %v8871
    %v8873 = vcombine.low %v8858, %v8865
    %v8875 = vunpack.c.l.s4 1966171168
    %v8876 = vunpack.c.0.s8 %v8875
    %v8877 = vlaneseq
    %v8878 = vshrl.u32 %v8877, 7
    %v8879 = vsub.s32 %v8876, %v8878
    %v8880 = vrot.slane %v8873, %v8879
    %v8882 = vunpack.c.l.s4 1966171168
    %v8883 = vunpack.c.0.s8 %v8882
    %v8884 = vlaneseq
    %v8885 = vshrl.u32 %v8884, 7
    %v8886 = vsub.s32 %v8883, %v8885
    %v8887 = vrot.slane %v8872, %v8886
    %v8888 = vcombine.low %v8880, %v8887
    %v8891 = vmul.f32 %v8804, %v8849
    %v8892 = vmul.f32 %v8809, %v8888
    %v8893 = vsel %vm4752, %v8891, 0.0
    %v8894 = vrot.slane %v8893, 4
    %v8895 = vadd.f32 %v8893, %v8894
    %v8896 = vrot.slane %v8895, 2
    %v8897 = vadd.f32 %v8895, %v8896
    %v8898 = vrot.slane %v8897, 1
    %v8899 = vadd.f32 %v8897, %v8898
    %v8900 = vsel %vm4752, %v8892, 0.0
    %v8901 = vrot.slane %v8900, 4
    %v8902 = vadd.f32 %v8900, %v8901
    %v8903 = vrot.slane %v8902, 2
    %v8904 = vadd.f32 %v8902, %v8903
    %v8905 = vrot.slane %v8904, 1
    %v8906 = vadd.f32 %v8904, %v8905
    %v8909 = vunpack.c.l.s4 1966171168
    %v8910 = vunpack.c.0.s8 %v8909
    %v8911 = vlaneseq
    %v8912 = vshrl.u32 %v8911, 7
    %v8913 = vsub.s32 %v8910, %v8912
    %v8914 = vrot.slane %v7890, %v8913
    %v8915 = vcombine.high %v8914, %v8914
    %v8917 = vunpack.c.l.s4 1966171168
    %v8918 = vunpack.c.0.s8 %v8917
    %v8919 = vlaneseq
    %v8920 = vshrl.u32 %v8919, 7
    %v8921 = vsub.s32 %v8918, %v8920
    %v8922 = vrot.slane %v8914, %v8921
    %v8924 = vunpack.c.l.s4 1966171168
    %v8925 = vunpack.c.0.s8 %v8924
    %v8926 = vlaneseq
    %v8927 = vshrl.u32 %v8926, 7
    %v8928 = vsub.s32 %v8925, %v8927
    %v8929 = vrot.slane %v8915, %v8928
    %s8930 = sld [smem:[#allocation3 + $0x3]]
    %p8931 = scmp.gt.s32.totalorder %s8930, 0
    %s8932 = scalar_select %p8931, 1, 0
    %v8933 = vstv %s8932
    %vm8934 = vcmp.eq.s32.totalorder %v8933, 1
    %v8935 = vrot.slane %v7890, 5
    %v8936 = vrot.slane %v7890, 6
    %8937 = vrot.lane.b32.xlu0 %v8935, 96
    %v8938 = vpop.permute.xlu0 %8937
    %8939 = vrot.lane.b32.xlu0 %v8936, 96
    %v8940 = vpop.permute.xlu0 %8939
    %v8943 = vsel %vm8934, %v3545, %v8938
    %v8944 = vsel %vm8934, %v3546, %v8940
    %v8947 = vrot.slane %v8944, 7
    %vm8948 = vcmask 1044484
    %v8949 = vsel %vm8948, %v8947, %v8943
    %v8953 = vsel %vm8948, %v8906, %v8899
    %8954 = vrot.lane.b32.xlu0 %v8953, 8
    %v8955 = vpop.permute.xlu0 %8954
    %v8957 = vsel %vm113, %v8949, %v8955
    %v8959 = vrot.slane %v8957, 3
    %v8960 = vsel %vm3550, %v8959, 0
    %8962 = vmatprep.subr.mxu0 0.0
    %8963 = vmatpush1.msra.mxu0 %v3519
    %8964 = vmatprep.subr.mxu0 0.0
    %8965 = vmatpush1.msra.mxu0 %v3520
    %8966 = vmatprep.subr.mxu0 0.0
    %8967 = vmatpush1.msra.mxu0 %v3521
    %8968 = vmatprep.subr.mxu0 0.0
    %8969 = vmatpush1.msra.mxu0 %v3522
    %8970 = vmatprep.subr.mxu0 0.0
    %8971 = vmatpush1.msra.mxu0 %v3523
    %8972 = vmatprep.subr.mxu0 0.0
    %8973 = vmatpush1.msra.mxu0 0.0
    %8974 = vmatprep.subr.mxu0 0.0
    %8975 = vmatpush1.msra.mxu0 0.0
    %8976 = vmatprep.subr.mxu0 0.0
    %8977 = vmatpush1.msra.mxu0 0.0
    %8978 = vmatprep.subr.mxu0 0.0
    %8979 = vmatpush1.msra.mxu0 0.0
    %8980 = vmatprep.subr.mxu0 0.0
    %8981 = vmatpush1.msra.mxu0 0.0
    %8982 = vmatprep.subr.mxu0 0.0
    %8983 = vmatpush1.msra.mxu0 0.0
    %8984 = vmatprep.subr.mxu0 0.0
    %8985 = vmatpush1.msra.mxu0 0.0
    %8986 = vmatprep.subr.mxu0 0.0
    %8987 = vmatpush1.msra.mxu0 0.0
    %8988 = vmatprep.subr.mxu0 0.0
    %8989 = vmatpush1.msra.mxu0 0.0
    %8990 = vmatprep.subr.mxu0 0.0
    %8991 = vmatpush1.msra.mxu0 0.0
    %8992 = vmatprep.subr.mxu0 0.0
    %8993 = vmatpush1.msra.mxu0 0.0
    %8994 = vmatprep.subr.mxu0 0.0
    %8995 = vmatpush1.msra.mxu0 0.0
    %8996 = vmatprep.subr.mxu0 0.0
    %8997 = vmatpush1.msra.mxu0 0.0
    %8998 = vmatprep.subr.mxu0 0.0
    %8999 = vmatpush1.msra.mxu0 0.0
    %9000 = vmatprep.subr.mxu0 0.0
    %9001 = vmatpush1.msra.mxu0 0.0
    %9002 = vmatprep.subr.mxu0 0.0
    %9003 = vmatpush1.msra.mxu0 0.0
    %9004 = vmatprep.subr.mxu0 0.0
    %9005 = vmatpush1.msra.mxu0 0.0
    %9006 = vmatprep.subr.mxu0 0.0
    %9007 = vmatpush1.msra.mxu0 0.0
    %9008 = vmatprep.subr.mxu0 0.0
    %9009 = vmatpush1.msra.mxu0 0.0
    %9010 = vmatprep.subr.mxu0 0.0
    %9011 = vmatpush1.msra.mxu0 0.0
    %9012 = vmatprep.subr.mxu0 0.0
    %9013 = vmatpush1.msra.mxu0 0.0
    %9014 = vmatprep.subr.mxu0 0.0
    %9015 = vmatpush1.msra.mxu0 0.0
    %9016 = vmatprep.subr.mxu0 0.0
    %9017 = vmatpush1.msra.mxu0 0.0
    %9018 = vmatprep.subr.mxu0 0.0
    %9019 = vmatpush1.msra.mxu0 0.0
    %9020 = vmatprep.subr.mxu0 0.0
    %9021 = vmatpush1.msra.mxu0 0.0
    %9022 = vmatprep.subr.mxu0 0.0
    %9023 = vmatpush1.msra.mxu0 0.0
    %9024 = vmatprep.subr.mxu0 0.0
    %9025 = vmatpush1.msra.mxu0 0.0
    %9026 = vmatprep.mubr.f32.mxu0 0.0
    %9027 = vmatmul.mubr.f32.gmra.mrb[0].mxu0 %v8960
    %v9028 = vpop.f32.mrb[0].mxu0
    %v9029 = vadd.f32 0.0, %v9028
    %v9030 = vpop.f32.mrb[0].mxu0
    %9031 = vdwg.mxu0
    %9032 = vmatprep.subr.mxu0 0.0
    %9033 = vmatpush1.msra.mxu0 %v3524
    %9034 = vmatprep.subr.mxu0 0.0
    %9035 = vmatpush1.msra.mxu0 %v3525
    %9036 = vmatprep.subr.mxu0 0.0
    %9037 = vmatpush1.msra.mxu0 %v3526
    %9038 = vmatprep.subr.mxu0 0.0
    %9039 = vmatpush1.msra.mxu0 %v3527
    %9040 = vmatprep.subr.mxu0 0.0
    %9041 = vmatpush1.msra.mxu0 0.0
    %9042 = vmatprep.subr.mxu0 0.0
    %9043 = vmatpush1.msra.mxu0 0.0
    %9044 = vmatprep.subr.mxu0 0.0
    %9045 = vmatpush1.msra.mxu0 0.0
    %9046 = vmatprep.subr.mxu0 0.0
    %9047 = vmatpush1.msra.mxu0 0.0
    %9048 = vmatprep.subr.mxu0 0.0
    %9049 = vmatpush1.msra.mxu0 0.0
    %9050 = vmatprep.subr.mxu0 0.0
    %9051 = vmatpush1.msra.mxu0 0.0
    %9052 = vmatprep.subr.mxu0 0.0
    %9053 = vmatpush1.msra.mxu0 0.0
    %9054 = vmatprep.subr.mxu0 0.0
    %9055 = vmatpush1.msra.mxu0 0.0
    %9056 = vmatprep.subr.mxu0 0.0
    %9057 = vmatpush1.msra.mxu0 0.0
    %9058 = vmatprep.subr.mxu0 0.0
    %9059 = vmatpush1.msra.mxu0 0.0
    %9060 = vmatprep.subr.mxu0 0.0
    %9061 = vmatpush1.msra.mxu0 0.0
    %9062 = vmatprep.subr.mxu0 0.0
    %9063 = vmatpush1.msra.mxu0 0.0
    %9064 = vmatprep.subr.mxu0 0.0
    %9065 = vmatpush1.msra.mxu0 0.0
    %9066 = vmatprep.subr.mxu0 0.0
    %9067 = vmatpush1.msra.mxu0 0.0
    %9068 = vmatprep.subr.mxu0 0.0
    %9069 = vmatpush1.msra.mxu0 0.0
    %9070 = vmatprep.subr.mxu0 0.0
    %9071 = vmatpush1.msra.mxu0 0.0
    %9072 = vmatprep.subr.mxu0 0.0
    %9073 = vmatpush1.msra.mxu0 0.0
    %9074 = vmatprep.subr.mxu0 0.0
    %9075 = vmatpush1.msra.mxu0 0.0
    %9076 = vmatprep.subr.mxu0 0.0
    %9077 = vmatpush1.msra.mxu0 0.0
    %9078 = vmatprep.subr.mxu0 0.0
    %9079 = vmatpush1.msra.mxu0 0.0
    %9080 = vmatprep.subr.mxu0 0.0
    %9081 = vmatpush1.msra.mxu0 0.0
    %9082 = vmatprep.subr.mxu0 0.0
    %9083 = vmatpush1.msra.mxu0 0.0
    %9084 = vmatprep.subr.mxu0 0.0
    %9085 = vmatpush1.msra.mxu0 0.0
    %9086 = vmatprep.subr.mxu0 0.0
    %9087 = vmatpush1.msra.mxu0 0.0
    %9088 = vmatprep.subr.mxu0 0.0
    %9089 = vmatpush1.msra.mxu0 0.0
    %9090 = vmatprep.subr.mxu0 0.0
    %9091 = vmatpush1.msra.mxu0 0.0
    %9092 = vmatprep.subr.mxu0 0.0
    %9093 = vmatpush1.msra.mxu0 0.0
    %9094 = vmatprep.subr.mxu0 0.0
    %9095 = vmatpush1.msra.mxu0 0.0
    %9096 = vmatprep.mubr.f32.mxu0 0.0
    %9097 = vmatmul.mubr.f32.gmra.mrb[0].mxu0 %v7821
    %v9098 = vpop.f32.mrb[0].mxu0
    %v9099 = vadd.f32 0.0, %v9098
    %v9100 = vpop.f32.mrb[0].mxu0
    %9101 = vdwg.mxu0
    %v9102 = vadd.f32 %v9029, %v9099
    %v9103 = vadd.f32 %v9102, %v3702
    %v9104 = vxor.u32 %v9103, 2147483648
    %v9105 = vmul.f32 %v9104, 1.442695
    %v9106 = vpow.pop %v9105
    %v9107 = vadd.f32 %v9106, 1.0
    %v9108 = vrcp.pop %v9107
    %v9109 = vmul.f32 1.0, %v9108
    %v9110 = vadd.f32 %v9029, %v3702
    %v9111 = vadd.f32 %v9099, %v3718
    %9113 = vrot.lane.b32.xlu0 %v9111, 64
    %v9114 = vpop.permute.xlu0 %9113
    %v9116 = vmul.f32 %v9109, %v9114
    %9118 = vrot.lane.b32.xlu0 %v9116, 64
    %v9119 = vpop.permute.xlu0 %9118
    %v9121 = vadd.f32 %v9110, %v9119
    %v9122 = vtanh.pop %v9121
    %v9123 = vsub.f32 1.0, %v9109
    %9125 = vrot.lane.b32.xlu0 %v9122, 96
    %v9126 = vpop.permute.xlu0 %9125
    %v9128 = vmul.f32 %v9123, %v9126
    %v9129 = vmul.f32 %v9109, %v7817
    %v9130 = vadd.f32 %v9128, %v9129
    %9132 = vrot.lane.b32.xlu0 %v9130, 96
    %v9133 = vpop.permute.xlu0 %9132
    %v9134 = vsel %vm186, %v9133, 0
    %9136 = vmatprep.subr.mxu0 0.0
    %9137 = vmatpush1.msra.mxu0 %v3530
    %9138 = vmatprep.subr.mxu0 0.0
    %9139 = vmatpush1.msra.mxu0 %v3531
    %9140 = vmatprep.subr.mxu0 0.0
    %9141 = vmatpush1.msra.mxu0 %v3532
    %9142 = vmatprep.subr.mxu0 0.0
    %9143 = vmatpush1.msra.mxu0 %v3533
    %9144 = vmatprep.subr.mxu0 0.0
    %9145 = vmatpush1.msra.mxu0 0.0
    %9146 = vmatprep.subr.mxu0 0.0
    %9147 = vmatpush1.msra.mxu0 0.0
    %9148 = vmatprep.subr.mxu0 0.0
    %9149 = vmatpush1.msra.mxu0 0.0
    %9150 = vmatprep.subr.mxu0 0.0
    %9151 = vmatpush1.msra.mxu0 0.0
    %9152 = vmatprep.subr.mxu0 0.0
    %9153 = vmatpush1.msra.mxu0 0.0
    %9154 = vmatprep.subr.mxu0 0.0
    %9155 = vmatpush1.msra.mxu0 0.0
    %9156 = vmatprep.subr.mxu0 0.0
    %9157 = vmatpush1.msra.mxu0 0.0
    %9158 = vmatprep.subr.mxu0 0.0
    %9159 = vmatpush1.msra.mxu0 0.0
    %9160 = vmatprep.subr.mxu0 0.0
    %9161 = vmatpush1.msra.mxu0 0.0
    %9162 = vmatprep.subr.mxu0 0.0
    %9163 = vmatpush1.msra.mxu0 0.0
    %9164 = vmatprep.subr.mxu0 0.0
    %9165 = vmatpush1.msra.mxu0 0.0
    %9166 = vmatprep.subr.mxu0 0.0
    %9167 = vmatpush1.msra.mxu0 0.0
    %9168 = vmatprep.subr.mxu0 0.0
    %9169 = vmatpush1.msra.mxu0 0.0
    %9170 = vmatprep.subr.mxu0 0.0
    %9171 = vmatpush1.msra.mxu0 0.0
    %9172 = vmatprep.subr.mxu0 0.0
    %9173 = vmatpush1.msra.mxu0 0.0
    %9174 = vmatprep.subr.mxu0 0.0
    %9175 = vmatpush1.msra.mxu0 0.0
    %9176 = vmatprep.subr.mxu0 0.0
    %9177 = vmatpush1.msra.mxu0 0.0
    %9178 = vmatprep.subr.mxu0 0.0
    %9179 = vmatpush1.msra.mxu0 0.0
    %9180 = vmatprep.subr.mxu0 0.0
    %9181 = vmatpush1.msra.mxu0 0.0
    %9182 = vmatprep.subr.mxu0 0.0
    %9183 = vmatpush1.msra.mxu0 0.0
    %9184 = vmatprep.subr.mxu0 0.0
    %9185 = vmatpush1.msra.mxu0 0.0
    %9186 = vmatprep.subr.mxu0 0.0
    %9187 = vmatpush1.msra.mxu0 0.0
    %9188 = vmatprep.subr.mxu0 0.0
    %9189 = vmatpush1.msra.mxu0 0.0
    %9190 = vmatprep.subr.mxu0 0.0
    %9191 = vmatpush1.msra.mxu0 0.0
    %9192 = vmatprep.subr.mxu0 0.0
    %9193 = vmatpush1.msra.mxu0 0.0
    %9194 = vmatprep.subr.mxu0 0.0
    %9195 = vmatpush1.msra.mxu0 0.0
    %9196 = vmatprep.subr.mxu0 0.0
    %9197 = vmatpush1.msra.mxu0 0.0
    %9198 = vmatprep.subr.mxu0 0.0
    %9199 = vmatpush1.msra.mxu0 0.0
    %9200 = vmatprep.mubr.f32.mxu0 0.0
    %9201 = vmatmul.mubr.f32.gmra.mrb[0].mxu0 %v9134
    %v9202 = vpop.f32.mrb[0].mxu0
    %v9203 = vadd.f32 %v3744, %v9202
    %v9204 = vpop.f32.mrb[0].mxu0
    %9205 = vdwg.mxu0
    %v9206 = vtanh.pop %v9203
    %v9208 = vsel %vm186, %v9206, 0
    %9210 = vmatprep.subr.mxu0 0.0
    %9211 = vmatpush1.msra.mxu0 %v3535
    %9212 = vmatprep.subr.mxu0 0.0
    %9213 = vmatpush1.msra.mxu0 %v3536
    %9214 = vmatprep.subr.mxu0 0.0
    %9215 = vmatpush1.msra.mxu0 %v3537
    %9216 = vmatprep.subr.mxu0 0.0
    %9217 = vmatpush1.msra.mxu0 %v3538
    %9218 = vmatprep.subr.mxu0 0.0
    %9219 = vmatpush1.msra.mxu0 0.0
    %9220 = vmatprep.subr.mxu0 0.0
    %9221 = vmatpush1.msra.mxu0 0.0
    %9222 = vmatprep.subr.mxu0 0.0
    %9223 = vmatpush1.msra.mxu0 0.0
    %9224 = vmatprep.subr.mxu0 0.0
    %9225 = vmatpush1.msra.mxu0 0.0
    %9226 = vmatprep.subr.mxu0 0.0
    %9227 = vmatpush1.msra.mxu0 0.0
    %9228 = vmatprep.subr.mxu0 0.0
    %9229 = vmatpush1.msra.mxu0 0.0
    %9230 = vmatprep.subr.mxu0 0.0
    %9231 = vmatpush1.msra.mxu0 0.0
    %9232 = vmatprep.subr.mxu0 0.0
    %9233 = vmatpush1.msra.mxu0 0.0
    %9234 = vmatprep.subr.mxu0 0.0
    %9235 = vmatpush1.msra.mxu0 0.0
    %9236 = vmatprep.subr.mxu0 0.0
    %9237 = vmatpush1.msra.mxu0 0.0
    %9238 = vmatprep.subr.mxu0 0.0
    %9239 = vmatpush1.msra.mxu0 0.0
    %9240 = vmatprep.subr.mxu0 0.0
    %9241 = vmatpush1.msra.mxu0 0.0
    %9242 = vmatprep.subr.mxu0 0.0
    %9243 = vmatpush1.msra.mxu0 0.0
    %9244 = vmatprep.subr.mxu0 0.0
    %9245 = vmatpush1.msra.mxu0 0.0
    %9246 = vmatprep.subr.mxu0 0.0
    %9247 = vmatpush1.msra.mxu0 0.0
    %9248 = vmatprep.subr.mxu0 0.0
    %9249 = vmatpush1.msra.mxu0 0.0
    %9250 = vmatprep.subr.mxu0 0.0
    %9251 = vmatpush1.msra.mxu0 0.0
    %9252 = vmatprep.subr.mxu0 0.0
    %9253 = vmatpush1.msra.mxu0 0.0
    %9254 = vmatprep.subr.mxu0 0.0
    %9255 = vmatpush1.msra.mxu0 0.0
    %9256 = vmatprep.subr.mxu0 0.0
    %9257 = vmatpush1.msra.mxu0 0.0
    %9258 = vmatprep.subr.mxu0 0.0
    %9259 = vmatpush1.msra.mxu0 0.0
    %9260 = vmatprep.subr.mxu0 0.0
    %9261 = vmatpush1.msra.mxu0 0.0
    %9262 = vmatprep.subr.mxu0 0.0
    %9263 = vmatpush1.msra.mxu0 0.0
    %9264 = vmatprep.subr.mxu0 0.0
    %9265 = vmatpush1.msra.mxu0 0.0
    %9266 = vmatprep.subr.mxu0 0.0
    %9267 = vmatpush1.msra.mxu0 0.0
    %9268 = vmatprep.subr.mxu0 0.0
    %9269 = vmatpush1.msra.mxu0 0.0
    %9270 = vmatprep.subr.mxu0 0.0
    %9271 = vmatpush1.msra.mxu0 0.0
    %9272 = vmatprep.subr.mxu0 0.0
    %9273 = vmatpush1.msra.mxu0 0.0
    %9274 = vmatprep.mubr.f32.mxu0 0.0
    %9275 = vmatmul.mubr.f32.gmra.mrb[0].mxu0 %v9208
    %v9276 = vpop.f32.mrb[0].mxu0
    %v9277 = vadd.f32 %v3826, %v9276
    %v9278 = vpop.f32.mrb[0].mxu0
    %9279 = vdwg.mxu0
    %v9280 = vxor.u32 %v9277, 2147483648
    %v9281 = vmul.f32 %v9280, 1.442695
    %v9282 = vpow.pop %v9281
    %v9283 = vadd.f32 %v9282, 1.0
    %v9284 = vrcp.pop %v9283
    %v9285 = vmul.f32 1.0, %v9284
    %v9286 = vmul.f32 %v9285, 11.0
    %v9287 = vadd.f32 %v9286, 2.0
    %v9288 = vfloor.f32 %v9287
    %v9289 = vcvt.f32.s32.to.zero.pseudo %v9288
    %9290 = vset.pattern.permute.xlu0 0
    %9291 = vperm.xlu0 %9290, %v9289
    %v9292 = vpop.permute.xlu0 %9291
    %v9293 = vadd.s32 %v9292, %v3549
    %v9294 = vlaneseq
    %v9295 = vshrl.u32 %v9294, 7
    %v9296 = vsub.s32 0, %v9295
    %v9297 = vrot.slane %v9293, %v9296
    %9299 = vbcast.lane.b32.xlu0 %v9297, 256
    %v9300 = vpop.permute.xlu0 %9299
    %v9301 = vlaneseq
    %v9302 = vshrl.u32 %v9301, 7
    %v9303 = vsub.s32 1, %v9302
    %v9304 = vrot.slane %v9293, %v9303
    %9306 = vbcast.lane.b32.xlu0 %v9304, 256
    %v9307 = vpop.permute.xlu0 %9306
    %vm9308 = vcmp.eq.s32.totalorder %v9300, %v3548
    %vm9309 = vcmp.eq.s32.totalorder %v9307, %v3548
    %v9310 = vsel %vm9308, 1, 0
    %v9311 = vsel %vm9309, 1, 0
    %v9312 = vcvt.s32.f32 %v9310
    %v9313 = vcvt.s32.f32 %v9311
    %v9315 = vsel %vm3943, %v9312, 0
    %9317 = vmatprep.subr.mxu0 0.0
    %9318 = vmatpush1.msra.mxu0 %v3938
    %9319 = vmatprep.subr.mxu0 0.0
    %9320 = vmatpush1.msra.mxu0 %v3940
    %9321 = vmatprep.subr.mxu0 0.0
    %9322 = vmatpush1.msra.mxu0 0.0
    %9323 = vmatprep.subr.mxu0 0.0
    %9324 = vmatpush1.msra.mxu0 0.0
    %9325 = vmatprep.subr.mxu0 0.0
    %9326 = vmatpush1.msra.mxu0 0.0
    %9327 = vmatprep.subr.mxu0 0.0
    %9328 = vmatpush1.msra.mxu0 0.0
    %9329 = vmatprep.subr.mxu0 0.0
    %9330 = vmatpush1.msra.mxu0 0.0
    %9331 = vmatprep.subr.mxu0 0.0
    %9332 = vmatpush1.msra.mxu0 0.0
    %9333 = vmatprep.subr.mxu0 0.0
    %9334 = vmatpush1.msra.mxu0 0.0
    %9335 = vmatprep.subr.mxu0 0.0
    %9336 = vmatpush1.msra.mxu0 0.0
    %9337 = vmatprep.subr.mxu0 0.0
    %9338 = vmatpush1.msra.mxu0 0.0
    %9339 = vmatprep.subr.mxu0 0.0
    %9340 = vmatpush1.msra.mxu0 0.0
    %9341 = vmatprep.subr.mxu0 0.0
    %9342 = vmatpush1.msra.mxu0 0.0
    %9343 = vmatprep.subr.mxu0 0.0
    %9344 = vmatpush1.msra.mxu0 0.0
    %9345 = vmatprep.subr.mxu0 0.0
    %9346 = vmatpush1.msra.mxu0 0.0
    %9347 = vmatprep.subr.mxu0 0.0
    %9348 = vmatpush1.msra.mxu0 0.0
    %9349 = vmatprep.subr.mxu0 0.0
    %9350 = vmatpush1.msra.mxu0 0.0
    %9351 = vmatprep.subr.mxu0 0.0
    %9352 = vmatpush1.msra.mxu0 0.0
    %9353 = vmatprep.subr.mxu0 0.0
    %9354 = vmatpush1.msra.mxu0 0.0
    %9355 = vmatprep.subr.mxu0 0.0
    %9356 = vmatpush1.msra.mxu0 0.0
    %9357 = vmatprep.subr.mxu0 0.0
    %9358 = vmatpush1.msra.mxu0 0.0
    %9359 = vmatprep.subr.mxu0 0.0
    %9360 = vmatpush1.msra.mxu0 0.0
    %9361 = vmatprep.subr.mxu0 0.0
    %9362 = vmatpush1.msra.mxu0 0.0
    %9363 = vmatprep.subr.mxu0 0.0
    %9364 = vmatpush1.msra.mxu0 0.0
    %9365 = vmatprep.subr.mxu0 0.0
    %9366 = vmatpush1.msra.mxu0 0.0
    %9367 = vmatprep.subr.mxu0 0.0
    %9368 = vmatpush1.msra.mxu0 0.0
    %9369 = vmatprep.subr.mxu0 0.0
    %9370 = vmatpush1.msra.mxu0 0.0
    %9371 = vmatprep.subr.mxu0 0.0
    %9372 = vmatpush1.msra.mxu0 0.0
    %9373 = vmatprep.subr.mxu0 0.0
    %9374 = vmatpush1.msra.mxu0 0.0
    %9375 = vmatprep.subr.mxu0 0.0
    %9376 = vmatpush1.msra.mxu0 0.0
    %9377 = vmatprep.subr.mxu0 0.0
    %9378 = vmatpush1.msra.mxu0 0.0
    %9379 = vmatprep.subr.mxu0 0.0
    %9380 = vmatpush1.msra.mxu0 0.0
    %9381 = vmatprep.mubr.f32.mxu0 0.0
    %9382 = vmatmul.mubr.f32.gmra.mrb[0].mxu0 %v9315
    %v9383 = vpop.f32.mrb[0].mxu0
    %v9384 = vadd.f32 0.0, %v9383
    %v9385 = vpop.f32.mrb[0].mxu0
    %9386 = vdwg.mxu0
    %v9388 = vsel %vm3943, %v9313, 0
    %9390 = vmatprep.subr.mxu0 0.0
    %9391 = vmatpush1.msra.mxu0 %v4020
    %9392 = vmatprep.subr.mxu0 0.0
    %9393 = vmatpush1.msra.mxu0 %v4022
    %9394 = vmatprep.subr.mxu0 0.0
    %9395 = vmatpush1.msra.mxu0 0.0
    %9396 = vmatprep.subr.mxu0 0.0
    %9397 = vmatpush1.msra.mxu0 0.0
    %9398 = vmatprep.subr.mxu0 0.0
    %9399 = vmatpush1.msra.mxu0 0.0
    %9400 = vmatprep.subr.mxu0 0.0
    %9401 = vmatpush1.msra.mxu0 0.0
    %9402 = vmatprep.subr.mxu0 0.0
    %9403 = vmatpush1.msra.mxu0 0.0
    %9404 = vmatprep.subr.mxu0 0.0
    %9405 = vmatpush1.msra.mxu0 0.0
    %9406 = vmatprep.subr.mxu0 0.0
    %9407 = vmatpush1.msra.mxu0 0.0
    %9408 = vmatprep.subr.mxu0 0.0
    %9409 = vmatpush1.msra.mxu0 0.0
    %9410 = vmatprep.subr.mxu0 0.0
    %9411 = vmatpush1.msra.mxu0 0.0
    %9412 = vmatprep.subr.mxu0 0.0
    %9413 = vmatpush1.msra.mxu0 0.0
    %9414 = vmatprep.subr.mxu0 0.0
    %9415 = vmatpush1.msra.mxu0 0.0
    %9416 = vmatprep.subr.mxu0 0.0
    %9417 = vmatpush1.msra.mxu0 0.0
    %9418 = vmatprep.subr.mxu0 0.0
    %9419 = vmatpush1.msra.mxu0 0.0
    %9420 = vmatprep.subr.mxu0 0.0
    %9421 = vmatpush1.msra.mxu0 0.0
    %9422 = vmatprep.subr.mxu0 0.0
    %9423 = vmatpush1.msra.mxu0 0.0
    %9424 = vmatprep.subr.mxu0 0.0
    %9425 = vmatpush1.msra.mxu0 0.0
    %9426 = vmatprep.subr.mxu0 0.0
    %9427 = vmatpush1.msra.mxu0 0.0
    %9428 = vmatprep.subr.mxu0 0.0
    %9429 = vmatpush1.msra.mxu0 0.0
    %9430 = vmatprep.subr.mxu0 0.0
    %9431 = vmatpush1.msra.mxu0 0.0
    %9432 = vmatprep.subr.mxu0 0.0
    %9433 = vmatpush1.msra.mxu0 0.0
    %9434 = vmatprep.subr.mxu0 0.0
    %9435 = vmatpush1.msra.mxu0 0.0
    %9436 = vmatprep.subr.mxu0 0.0
    %9437 = vmatpush1.msra.mxu0 0.0
    %9438 = vmatprep.subr.mxu0 0.0
    %9439 = vmatpush1.msra.mxu0 0.0
    %9440 = vmatprep.subr.mxu0 0.0
    %9441 = vmatpush1.msra.mxu0 0.0
    %9442 = vmatprep.subr.mxu0 0.0
    %9443 = vmatpush1.msra.mxu0 0.0
    %9444 = vmatprep.subr.mxu0 0.0
    %9445 = vmatpush1.msra.mxu0 0.0
    %9446 = vmatprep.subr.mxu0 0.0
    %9447 = vmatpush1.msra.mxu0 0.0
    %9448 = vmatprep.subr.mxu0 0.0
    %9449 = vmatpush1.msra.mxu0 0.0
    %9450 = vmatprep.subr.mxu0 0.0
    %9451 = vmatpush1.msra.mxu0 0.0
    %9452 = vmatprep.subr.mxu0 0.0
    %9453 = vmatpush1.msra.mxu0 0.0
    %9454 = vmatprep.mubr.f32.mxu0 0.0
    %9455 = vmatmul.mubr.f32.gmra.mrb[0].mxu0 %v9388
    %v9456 = vpop.f32.mrb[0].mxu0
    %v9457 = vadd.f32 0.0, %v9456
    %v9458 = vpop.f32.mrb[0].mxu0
    %9459 = vdwg.mxu0
    %v9462 = vcombine.high %v9384, %v9384
    %v9464 = vunpack.c.l.s4 1966171168
    %v9465 = vunpack.c.0.s8 %v9464
    %v9466 = vlaneseq
    %v9467 = vshrl.u32 %v9466, 7
    %v9468 = vsub.s32 %v9465, %v9467
    %v9469 = vrot.slane %v9384, %v9468
    %v9471 = vunpack.c.l.s4 1966171168
    %v9472 = vunpack.c.0.s8 %v9471
    %v9473 = vlaneseq
    %v9474 = vshrl.u32 %v9473, 7
    %v9475 = vsub.s32 %v9472, %v9474
    %v9476 = vrot.slane %v9462, %v9475
    %v9477 = vcombine.high %v9469, %v9469
    %v9479 = vunpack.c.l.s4 1966171168
    %v9480 = vunpack.c.0.s8 %v9479
    %v9481 = vlaneseq
    %v9482 = vshrl.u32 %v9481, 7
    %v9483 = vsub.s32 %v9480, %v9482
    %v9484 = vrot.slane %v9469, %v9483
    %v9486 = vunpack.c.l.s4 1966171168
    %v9487 = vunpack.c.0.s8 %v9486
    %v9488 = vlaneseq
    %v9489 = vshrl.u32 %v9488, 7
    %v9490 = vsub.s32 %v9487, %v9489
    %v9491 = vrot.slane %v9476, %v9490
    %v9493 = vunpack.c.l.s4 1966171168
    %v9494 = vunpack.c.0.s8 %v9493
    %v9495 = vlaneseq
    %v9496 = vshrl.u32 %v9495, 7
    %v9497 = vsub.s32 %v9494, %v9496
    %v9498 = vrot.slane %v9477, %v9497
    %v9499 = vcombine.high %v9484, %v9484
    %v9500 = vcombine.high %v9498, %v9498
    %v9501 = vcombine.high %v9457, %v9457
    %v9503 = vunpack.c.l.s4 1966171168
    %v9504 = vunpack.c.0.s8 %v9503
    %v9505 = vlaneseq
    %v9506 = vshrl.u32 %v9505, 7
    %v9507 = vsub.s32 %v9504, %v9506
    %v9508 = vrot.slane %v9457, %v9507
    %v9510 = vunpack.c.l.s4 1966171168
    %v9511 = vunpack.c.0.s8 %v9510
    %v9512 = vlaneseq
    %v9513 = vshrl.u32 %v9512, 7
    %v9514 = vsub.s32 %v9511, %v9513
    %v9515 = vrot.slane %v9501, %v9514
    %v9516 = vcombine.high %v9508, %v9508
    %v9518 = vunpack.c.l.s4 1966171168
    %v9519 = vunpack.c.0.s8 %v9518
    %v9520 = vlaneseq
    %v9521 = vshrl.u32 %v9520, 7
    %v9522 = vsub.s32 %v9519, %v9521
    %v9523 = vrot.slane %v9508, %v9522
    %v9525 = vunpack.c.l.s4 1966171168
    %v9526 = vunpack.c.0.s8 %v9525
    %v9527 = vlaneseq
    %v9528 = vshrl.u32 %v9527, 7
    %v9529 = vsub.s32 %v9526, %v9528
    %v9530 = vrot.slane %v9515, %v9529
    %v9532 = vunpack.c.l.s4 1966171168
    %v9533 = vunpack.c.0.s8 %v9532
    %v9534 = vlaneseq
    %v9535 = vshrl.u32 %v9534, 7
    %v9536 = vsub.s32 %v9533, %v9535
    %v9537 = vrot.slane %v9516, %v9536
    %v9538 = vcombine.high %v9523, %v9523
    %v9539 = vcombine.high %v9537, %v9537
    %v9540 = vcombine.low %v9484, %v9498
    %v9541 = vcombine.low %v9499, %v9500
    %v9542 = vcombine.low %v9491, %v9523
    %v9543 = vcombine.low %v9537, %v9538
    %v9545 = vunpack.c.l.s4 1966171168
    %v9546 = vunpack.c.0.s8 %v9545
    %v9547 = vlaneseq
    %v9548 = vshrl.u32 %v9547, 7
    %v9549 = vsub.s32 %v9546, %v9548
    %v9550 = vrot.slane %v9540, %v9549
    %v9552 = vunpack.c.l.s4 1966171168
    %v9553 = vunpack.c.0.s8 %v9552
    %v9554 = vlaneseq
    %v9555 = vshrl.u32 %v9554, 7
    %v9556 = vsub.s32 %v9553, %v9555
    %v9557 = vrot.slane %v9541, %v9556
    %v9559 = vunpack.c.l.s4 1966171168
    %v9560 = vunpack.c.0.s8 %v9559
    %v9561 = vlaneseq
    %v9562 = vshrl.u32 %v9561, 7
    %v9563 = vsub.s32 %v9560, %v9562
    %v9564 = vrot.slane %v9542, %v9563
    %v9566 = vunpack.c.l.s4 1966171168
    %v9567 = vunpack.c.0.s8 %v9566
    %v9568 = vlaneseq
    %v9569 = vshrl.u32 %v9568, 7
    %v9570 = vsub.s32 %v9567, %v9569
    %v9571 = vrot.slane %v9543, %v9570
    %v9572 = vcombine.low %v9550, %v9557
    %v9573 = vcombine.low %v9564, %v9571
    %v9575 = vunpack.c.l.s4 1966171168
    %v9576 = vunpack.c.0.s8 %v9575
    %v9577 = vlaneseq
    %v9578 = vshrl.u32 %v9577, 7
    %v9579 = vsub.s32 %v9576, %v9578
    %v9580 = vrot.slane %v9572, %v9579
    %v9582 = vunpack.c.l.s4 1966171168
    %v9583 = vunpack.c.0.s8 %v9582
    %v9584 = vlaneseq
    %v9585 = vshrl.u32 %v9584, 7
    %v9586 = vsub.s32 %v9583, %v9585
    %v9587 = vrot.slane %v9573, %v9586
    %v9588 = vcombine.low %v9580, %v9587
    %v9589 = vcombine.low %v9539, %v9530
    %v9591 = vunpack.c.l.s4 1966171168
    %v9592 = vunpack.c.0.s8 %v9591
    %v9593 = vlaneseq
    %v9594 = vshrl.u32 %v9593, 7
    %v9595 = vsub.s32 %v9592, %v9594
    %v9596 = vrot.slane %v9589, %v9595
    %v9598 = vunpack.c.l.s4 1966171168
    %v9599 = vunpack.c.0.s8 %v9598
    %v9600 = vlaneseq
    %v9601 = vshrl.u32 %v9600, 7
    %v9602 = vsub.s32 %v9599, %v9601
    %v9603 = vrot.slane %v9596, %v9602
    %v9604 = vsel %vm186, %v9588, 0
    %v9606 = vsel %vm186, %v9603, 0
    %9608 = vmatprep.subr.mxu0 0.0
    %9609 = vmatpush1.msra.mxu0 %v3540
    %9610 = vmatprep.subr.mxu0 0.0
    %9611 = vmatpush1.msra.mxu0 %v3541
    %9612 = vmatprep.subr.mxu0 0.0
    %9613 = vmatpush1.msra.mxu0 %v3542
    %9614 = vmatprep.subr.mxu0 0.0
    %9615 = vmatpush1.msra.mxu0 %v3543
    %9616 = vmatprep.subr.mxu0 0.0
    %9617 = vmatpush1.msra.mxu0 0.0
    %9618 = vmatprep.subr.mxu0 0.0
    %9619 = vmatpush1.msra.mxu0 0.0
    %9620 = vmatprep.subr.mxu0 0.0
    %9621 = vmatpush1.msra.mxu0 0.0
    %9622 = vmatprep.subr.mxu0 0.0
    %9623 = vmatpush1.msra.mxu0 0.0
    %9624 = vmatprep.subr.mxu0 0.0
    %9625 = vmatpush1.msra.mxu0 0.0
    %9626 = vmatprep.subr.mxu0 0.0
    %9627 = vmatpush1.msra.mxu0 0.0
    %9628 = vmatprep.subr.mxu0 0.0
    %9629 = vmatpush1.msra.mxu0 0.0
    %9630 = vmatprep.subr.mxu0 0.0
    %9631 = vmatpush1.msra.mxu0 0.0
    %9632 = vmatprep.subr.mxu0 0.0
    %9633 = vmatpush1.msra.mxu0 0.0
    %9634 = vmatprep.subr.mxu0 0.0
    %9635 = vmatpush1.msra.mxu0 0.0
    %9636 = vmatprep.subr.mxu0 0.0
    %9637 = vmatpush1.msra.mxu0 0.0
    %9638 = vmatprep.subr.mxu0 0.0
    %9639 = vmatpush1.msra.mxu0 0.0
    %9640 = vmatprep.subr.mxu0 0.0
    %9641 = vmatpush1.msra.mxu0 0.0
    %9642 = vmatprep.subr.mxu0 0.0
    %9643 = vmatpush1.msra.mxu0 0.0
    %9644 = vmatprep.subr.mxu0 0.0
    %9645 = vmatpush1.msra.mxu0 0.0
    %9646 = vmatprep.subr.mxu0 0.0
    %9647 = vmatpush1.msra.mxu0 0.0
    %9648 = vmatprep.subr.mxu0 0.0
    %9649 = vmatpush1.msra.mxu0 0.0
    %9650 = vmatprep.subr.mxu0 0.0
    %9651 = vmatpush1.msra.mxu0 0.0
    %9652 = vmatprep.subr.mxu0 0.0
    %9653 = vmatpush1.msra.mxu0 0.0
    %9654 = vmatprep.subr.mxu0 0.0
    %9655 = vmatpush1.msra.mxu0 0.0
    %9656 = vmatprep.subr.mxu0 0.0
    %9657 = vmatpush1.msra.mxu0 0.0
    %9658 = vmatprep.subr.mxu0 0.0
    %9659 = vmatpush1.msra.mxu0 0.0
    %9660 = vmatprep.subr.mxu0 0.0
    %9661 = vmatpush1.msra.mxu0 0.0
    %9662 = vmatprep.subr.mxu0 0.0
    %9663 = vmatpush1.msra.mxu0 0.0
    %9664 = vmatprep.subr.mxu0 0.0
    %9665 = vmatpush1.msra.mxu0 0.0
    %9666 = vmatprep.subr.mxu0 0.0
    %9667 = vmatpush1.msra.mxu0 0.0
    %9668 = vmatprep.subr.mxu0 0.0
    %9669 = vmatpush1.msra.mxu0 0.0
    %9670 = vmatprep.subr.mxu0 0.0
    %9671 = vmatpush1.msra.mxu0 0.0
    %9672 = vmatprep.mubr.f32.mxu0 0.0
    %9673 = vmatmul.mubr.f32.gmra.mrb[0].mxu0 %v9604
    %v9674 = vpop.f32.mrb[0].mxu0
    %v9675 = vadd.f32 %v4334, %v9674
    %v9676 = vpop.f32.mrb[0].mxu0
    %9677 = vmatprep.mubr.f32.mxu0 0.0
    %9678 = vmatmul.mubr.f32.gmra.mrb[0].mxu0 %v9606
    %v9679 = vpop.f32.mrb[0].mxu0
    %v9680 = vadd.f32 %v4349, %v9679
    %v9681 = vpop.f32.mrb[0].mxu0
    %9682 = vdwg.mxu0
    %v9685 = vcombine.high %v9675, %v9675
    %v9687 = vunpack.c.l.s4 1966171168
    %v9688 = vunpack.c.0.s8 %v9687
    %v9689 = vlaneseq
    %v9690 = vshrl.u32 %v9689, 7
    %v9691 = vsub.s32 %v9688, %v9690
    %v9692 = vrot.slane %v9675, %v9691
    %v9694 = vunpack.c.l.s4 1966171168
    %v9695 = vunpack.c.0.s8 %v9694
    %v9696 = vlaneseq
    %v9697 = vshrl.u32 %v9696, 7
    %v9698 = vsub.s32 %v9695, %v9697
    %v9699 = vrot.slane %v9685, %v9698
    %v9700 = vcombine.high %v9692, %v9692
    %v9701 = vcombine.high %v9699, %v9699
    %v9703 = vunpack.c.l.s4 1966171168
    %v9704 = vunpack.c.0.s8 %v9703
    %v9705 = vlaneseq
    %v9706 = vshrl.u32 %v9705, 7
    %v9707 = vsub.s32 %v9704, %v9706
    %v9708 = vrot.slane %v9692, %v9707
    %v9710 = vunpack.c.l.s4 1966171168
    %v9711 = vunpack.c.0.s8 %v9710
    %v9712 = vlaneseq
    %v9713 = vshrl.u32 %v9712, 7
    %v9714 = vsub.s32 %v9711, %v9713
    %v9715 = vrot.slane %v9699, %v9714
    %v9717 = vunpack.c.l.s4 1966171168
    %v9718 = vunpack.c.0.s8 %v9717
    %v9719 = vlaneseq
    %v9720 = vshrl.u32 %v9719, 7
    %v9721 = vsub.s32 %v9718, %v9720
    %v9722 = vrot.slane %v9700, %v9721
    %v9724 = vunpack.c.l.s4 1966171168
    %v9725 = vunpack.c.0.s8 %v9724
    %v9726 = vlaneseq
    %v9727 = vshrl.u32 %v9726, 7
    %v9728 = vsub.s32 %v9725, %v9727
    %v9729 = vrot.slane %v9701, %v9728
    %v9730 = vcombine.high %v9708, %v9708
    %v9731 = vcombine.high %v9715, %v9715
    %v9732 = vcombine.high %v9722, %v9722
    %v9733 = vcombine.high %v9729, %v9729
    %v9735 = vunpack.c.l.s4 1966171168
    %v9736 = vunpack.c.0.s8 %v9735
    %v9737 = vlaneseq
    %v9738 = vshrl.u32 %v9737, 7
    %v9739 = vsub.s32 %v9736, %v9738
    %v9740 = vrot.slane %v9680, %v9739
    %v9741 = vcombine.high %v9740, %v9740
    %v9743 = vunpack.c.l.s4 1966171168
    %v9744 = vunpack.c.0.s8 %v9743
    %v9745 = vlaneseq
    %v9746 = vshrl.u32 %v9745, 7
    %v9747 = vsub.s32 %v9744, %v9746
    %v9748 = vrot.slane %v9740, %v9747
    %v9750 = vunpack.c.l.s4 1966171168
    %v9751 = vunpack.c.0.s8 %v9750
    %v9752 = vlaneseq
    %v9753 = vshrl.u32 %v9752, 7
    %v9754 = vsub.s32 %v9751, %v9753
    %v9755 = vrot.slane %v9741, %v9754
    %v9767 = vunpack.c.l.s4 1966171168
    %v9768 = vunpack.c.0.s8 %v9767
    %v9769 = vlaneseq
    %v9770 = vshrl.u32 %v9769, 7
    %v9771 = vsub.s32 %v9768, %v9770
    %v9772 = vrot.slane %v9130, %v9771
    %v9773 = vcombine.high %v9772, %v9772
    %v9775 = vunpack.c.l.s4 1966171168
    %v9776 = vunpack.c.0.s8 %v9775
    %v9777 = vlaneseq
    %v9778 = vshrl.u32 %v9777, 7
    %v9779 = vsub.s32 %v9776, %v9778
    %v9780 = vrot.slane %v9772, %v9779
    %v9782 = vunpack.c.l.s4 1966171168
    %v9783 = vunpack.c.0.s8 %v9782
    %v9784 = vlaneseq
    %v9785 = vshrl.u32 %v9784, 7
    %v9786 = vsub.s32 %v9783, %v9785
    %v9787 = vrot.slane %v9773, %v9786
    %v9788 = vlaneseq
    %v9789 = vshrl.u32 %v9788, 7
    %v9790 = vsub.s32 0, %v9789
    %v9791 = vrot.slane %v9780, %v9790
    %v9792 = vlaneseq
    %v9793 = vshrl.u32 %v9792, 7
    %v9794 = vsub.s32 0, %v9793
    %v9795 = vrot.slane %v9787, %v9794
    %v9796 = vcombine.high %v9791, %v9791
    %v9798 = vunpack.c.l.s4 1966171168
    %v9799 = vunpack.c.0.s8 %v9798
    %v9800 = vlaneseq
    %v9801 = vshrl.u32 %v9800, 7
    %v9802 = vsub.s32 %v9799, %v9801
    %v9803 = vrot.slane %v9791, %v9802
    %v9805 = vunpack.c.l.s4 1966171168
    %v9806 = vunpack.c.0.s8 %v9805
    %v9807 = vlaneseq
    %v9808 = vshrl.u32 %v9807, 7
    %v9809 = vsub.s32 %v9806, %v9808
    %v9810 = vrot.slane %v9796, %v9809
    %v9811 = vcombine.high %v9803, %v9803
    %v9813 = vunpack.c.l.s4 1966171168
    %v9814 = vunpack.c.0.s8 %v9813
    %v9815 = vlaneseq
    %v9816 = vshrl.u32 %v9815, 7
    %v9817 = vsub.s32 %v9814, %v9816
    %v9818 = vrot.slane %v9803, %v9817
    %v9820 = vunpack.c.l.s4 1966171168
    %v9821 = vunpack.c.0.s8 %v9820
    %v9822 = vlaneseq
    %v9823 = vshrl.u32 %v9822, 7
    %v9824 = vsub.s32 %v9821, %v9823
    %v9825 = vrot.slane %v9810, %v9824
    %v9827 = vunpack.c.l.s4 1966171168
    %v9828 = vunpack.c.0.s8 %v9827
    %v9829 = vlaneseq
    %v9830 = vshrl.u32 %v9829, 7
    %v9831 = vsub.s32 %v9828, %v9830
    %v9832 = vrot.slane %v9811, %v9831
    %v9833 = vcombine.high %v9818, %v9818
    %v9834 = vcombine.high %v9832, %v9832
    %v9835 = vcombine.high %v9795, %v9795
    %v9837 = vunpack.c.l.s4 1966171168
    %v9838 = vunpack.c.0.s8 %v9837
    %v9839 = vlaneseq
    %v9840 = vshrl.u32 %v9839, 7
    %v9841 = vsub.s32 %v9838, %v9840
    %v9842 = vrot.slane %v9795, %v9841
    %v9844 = vunpack.c.l.s4 1966171168
    %v9845 = vunpack.c.0.s8 %v9844
    %v9846 = vlaneseq
    %v9847 = vshrl.u32 %v9846, 7
    %v9848 = vsub.s32 %v9845, %v9847
    %v9849 = vrot.slane %v9835, %v9848
    %v9850 = vcombine.high %v9842, %v9842
    %v9852 = vunpack.c.l.s4 1966171168
    %v9853 = vunpack.c.0.s8 %v9852
    %v9854 = vlaneseq
    %v9855 = vshrl.u32 %v9854, 7
    %v9856 = vsub.s32 %v9853, %v9855
    %v9857 = vrot.slane %v9842, %v9856
    %v9859 = vunpack.c.l.s4 1966171168
    %v9860 = vunpack.c.0.s8 %v9859
    %v9861 = vlaneseq
    %v9862 = vshrl.u32 %v9861, 7
    %v9863 = vsub.s32 %v9860, %v9862
    %v9864 = vrot.slane %v9849, %v9863
    %v9866 = vunpack.c.l.s4 1966171168
    %v9867 = vunpack.c.0.s8 %v9866
    %v9868 = vlaneseq
    %v9869 = vshrl.u32 %v9868, 7
    %v9870 = vsub.s32 %v9867, %v9869
    %v9871 = vrot.slane %v9850, %v9870
    %v9872 = vcombine.high %v9857, %v9857
    %v9873 = vcombine.high %v9871, %v9871
    %9874 = vrot.lane.b32.xlu0 %v9818, 96
    %v9875 = vpop.permute.xlu0 %9874
    %9876 = vrot.lane.b32.xlu0 %v9832, 96
    %v9877 = vpop.permute.xlu0 %9876
    %9878 = vrot.lane.b32.xlu0 %v9833, 96
    %v9879 = vpop.permute.xlu0 %9878
    %9880 = vrot.lane.b32.xlu0 %v9834, 96
    %v9881 = vpop.permute.xlu0 %9880
    %9882 = vrot.lane.b32.xlu0 %v9825, 96
    %v9883 = vpop.permute.xlu0 %9882
    %9884 = vrot.lane.b32.xlu0 %v9857, 96
    %v9885 = vpop.permute.xlu0 %9884
    %9886 = vrot.lane.b32.xlu0 %v9871, 96
    %v9887 = vpop.permute.xlu0 %9886
    %9888 = vrot.lane.b32.xlu0 %v9872, 96
    %v9889 = vpop.permute.xlu0 %9888
    %9890 = vrot.lane.b32.xlu0 %v9873, 96
    %v9891 = vpop.permute.xlu0 %9890
    %9892 = vrot.lane.b32.xlu0 %v9864, 96
    %v9893 = vpop.permute.xlu0 %9892
    %v9904 = vmul.f32 %v9708, %v9875
    %v9905 = vmul.f32 %v9722, %v9877
    %v9906 = vmul.f32 %v9730, %v9879
    %v9907 = vmul.f32 %v9732, %v9881
    %v9908 = vmul.f32 %v9715, %v9883
    %v9909 = vmul.f32 %v9729, %v9885
    %v9910 = vmul.f32 %v9731, %v9887
    %v9911 = vmul.f32 %v9733, %v9889
    %v9912 = vmul.f32 %v9748, %v9891
    %v9913 = vmul.f32 %v9755, %v9893
    %v9924 = vcombine.low %v9904, %v9905
    %v9925 = vcombine.low %v9906, %v9907
    %v9927 = vunpack.c.l.s4 1966171168
    %v9928 = vunpack.c.0.s8 %v9927
    %v9929 = vlaneseq
    %v9930 = vshrl.u32 %v9929, 7
    %v9931 = vsub.s32 %v9928, %v9930
    %v9932 = vrot.slane %v9924, %v9931
    %v9934 = vunpack.c.l.s4 1966171168
    %v9935 = vunpack.c.0.s8 %v9934
    %v9936 = vlaneseq
    %v9937 = vshrl.u32 %v9936, 7
    %v9938 = vsub.s32 %v9935, %v9937
    %v9939 = vrot.slane %v9925, %v9938
    %v9941 = vunpack.c.l.s4 1966171168
    %v9942 = vunpack.c.0.s8 %v9941
    %v9943 = vlaneseq
    %v9944 = vshrl.u32 %v9943, 7
    %v9945 = vsub.s32 %v9942, %v9944
    %v9946 = vrot.slane %v9908, %v9945
    %v9947 = vcombine.low %v9932, %v9939
    %v9949 = vunpack.c.l.s4 1966171168
    %v9950 = vunpack.c.0.s8 %v9949
    %v9951 = vlaneseq
    %v9952 = vshrl.u32 %v9951, 7
    %v9953 = vsub.s32 %v9950, %v9952
    %v9954 = vrot.slane %v9947, %v9953
    %v9956 = vunpack.c.l.s4 1966171168
    %v9957 = vunpack.c.0.s8 %v9956
    %v9958 = vlaneseq
    %v9959 = vshrl.u32 %v9958, 7
    %v9960 = vsub.s32 %v9957, %v9959
    %v9961 = vrot.slane %v9946, %v9960
    %v9962 = vcombine.low %v9954, %v9961
    %v9963 = vcombine.low %v9909, %v9910
    %v9964 = vcombine.low %v9911, %v9912
    %v9966 = vunpack.c.l.s4 1966171168
    %v9967 = vunpack.c.0.s8 %v9966
    %v9968 = vlaneseq
    %v9969 = vshrl.u32 %v9968, 7
    %v9970 = vsub.s32 %v9967, %v9969
    %v9971 = vrot.slane %v9963, %v9970
    %v9973 = vunpack.c.l.s4 1966171168
    %v9974 = vunpack.c.0.s8 %v9973
    %v9975 = vlaneseq
    %v9976 = vshrl.u32 %v9975, 7
    %v9977 = vsub.s32 %v9974, %v9976
    %v9978 = vrot.slane %v9964, %v9977
    %v9980 = vunpack.c.l.s4 1966171168
    %v9981 = vunpack.c.0.s8 %v9980
    %v9982 = vlaneseq
    %v9983 = vshrl.u32 %v9982, 7
    %v9984 = vsub.s32 %v9981, %v9983
    %v9985 = vrot.slane %v9913, %v9984
    %v9986 = vcombine.low %v9971, %v9978
    %v9988 = vunpack.c.l.s4 1966171168
    %v9989 = vunpack.c.0.s8 %v9988
    %v9990 = vlaneseq
    %v9991 = vshrl.u32 %v9990, 7
    %v9992 = vsub.s32 %v9989, %v9991
    %v9993 = vrot.slane %v9986, %v9992
    %v9995 = vunpack.c.l.s4 1966171168
    %v9996 = vunpack.c.0.s8 %v9995
    %v9997 = vlaneseq
    %v9998 = vshrl.u32 %v9997, 7
    %v9999 = vsub.s32 %v9996, %v9998
    %v10000 = vrot.slane %v9985, %v9999
    %v10001 = vcombine.low %v9993, %v10000
    %v10004 = vsel %vm4752, %v9962, 0.0
    %10005 = vadd.xlane.f32.xlu0 %v10004
    %v10006 = vpop.xlane.xlu0 %10005
    %v10007 = vsel %vm4752, %v10001, 0.0
    %10008 = vadd.xlane.f32.xlu0 %v10007
    %v10009 = vpop.xlane.xlu0 %10008
    %v10010 = vcvt.s32.f32 %v9293
    %10012 = vset.pattern.permute.xlu0 0
    %10013 = vperm.xlu0 %10012, %v9287
    %v10014 = vpop.permute.xlu0 %10013
    %v10016 = vsub.f32 %v10010, %v10014
    %v10017 = vmul.f32 %v10016, %v10016
    %v10018 = vmul.f32 %v10017, -0.5
    %v10019 = vmul.f32 %v10018, 1.442695
    %v10020 = vpow.pop %v10019
    %v10022 = vlaneseq
    %v10023 = vshrl.u32 %v10022, 7
    %v10024 = vsub.s32 0, %v10023
    %v10025 = vrot.slane %v10020, %v10024
    %10027 = vbcast.lane.b32.xlu0 %v10025, 256
    %v10028 = vpop.permute.xlu0 %10027
    %v10029 = vlaneseq
    %v10030 = vshrl.u32 %v10029, 7
    %v10031 = vsub.s32 1, %v10030
    %v10032 = vrot.slane %v10020, %v10031
    %10034 = vbcast.lane.b32.xlu0 %v10032, 256
    %v10035 = vpop.permute.xlu0 %10034
    %v10038 = vmul.f32 %v10006, %v10028
    %v10039 = vmul.f32 %v10009, %v10035
    %10042 = vset.pattern.permute.xlu0 0
    %10043 = vperm.xlu0 %10042, %v10038
    %v10044 = vpop.permute.xlu0 %10043
    %10045 = vset.pattern.permute.xlu0 0
    %10046 = vperm.xlu0 %10045, %v10039
    %v10047 = vpop.permute.xlu0 %10046
    %v10048 = vlaneseq
    %v10049 = vshrl.u32 %v10048, 7
    %v10050 = vsub.s32 %v3548, %v10049
    %v10051 = vrot.slane %v10044, %v10050
    %v10052 = vlaneseq
    %v10053 = vshrl.u32 %v10052, 7
    %v10054 = vsub.s32 %v3548, %v10053
    %v10055 = vrot.slane %v10047, %v10054
    %v10056 = vsel %vm111, %v10055, %v10051
    %v10058 = vsel %vm4807, %v10056, -inf
    %10059 = vmax.xlane.f32.xlu0 %v10058
    %v10060 = vpop.xlane.xlu0 %10059
    %v10062 = vlaneseq
    %v10063 = vshrl.u32 %v10062, 7
    %v10064 = vsub.s32 0, %v10063
    %v10065 = vrot.slane %v10060, %v10064
    %v10066 = vlaneseq
    %v10067 = vshrl.u32 %v10066, 7
    %v10068 = vsub.s32 1, %v10067
    %v10069 = vrot.slane %v10060, %v10068
    %v10072 = vsub.f32 %v10038, %v10065
    %v10073 = vsub.f32 %v10039, %v10069
    %v10074 = vmul.f32 %v10072, 1.442695
    %v10075 = vpow.pop %v10074
    %v10076 = vmul.f32 %v10073, 1.442695
    %v10077 = vpow.pop %v10076
    %10080 = vset.pattern.permute.xlu0 0
    %10081 = vperm.xlu0 %10080, %v10075
    %v10082 = vpop.permute.xlu0 %10081
    %10083 = vset.pattern.permute.xlu0 0
    %10084 = vperm.xlu0 %10083, %v10077
    %v10085 = vpop.permute.xlu0 %10084
    %v10086 = vlaneseq
    %v10087 = vshrl.u32 %v10086, 7
    %v10088 = vsub.s32 %v3548, %v10087
    %v10089 = vrot.slane %v10082, %v10088
    %v10090 = vlaneseq
    %v10091 = vshrl.u32 %v10090, 7
    %v10092 = vsub.s32 %v3548, %v10091
    %v10093 = vrot.slane %v10085, %v10092
    %v10094 = vsel %vm111, %v10093, %v10089
    %v10096 = vsel %vm4807, %v10094, 0.0
    %10097 = vadd.xlane.f32.xlu0 %v10096
    %v10098 = vpop.xlane.xlu0 %10097
    %v10100 = vlaneseq
    %v10101 = vshrl.u32 %v10100, 7
    %v10102 = vsub.s32 0, %v10101
    %v10103 = vrot.slane %v10098, %v10102
    %v10104 = vlaneseq
    %v10105 = vshrl.u32 %v10104, 7
    %v10106 = vsub.s32 1, %v10105
    %v10107 = vrot.slane %v10098, %v10106
    %v10110 = vrcp.pop %v10103
    %v10111 = vmul.f32 %v10075, %v10110
    %v10112 = vrcp.pop %v10107
    %v10113 = vmul.f32 %v10077, %v10112
    %10115 = vset.pattern.permute.xlu0 0
    %10116 = vperm.xlu0 %10115, %v10111
    %v10117 = vpop.permute.xlu0 %10116
    %10120 = vset.pattern.permute.xlu0 0
    %10121 = vperm.xlu0 %10120, %v10113
    %v10122 = vpop.permute.xlu0 %10121
    %v10124 = vcombine.low %v9708, %v9722
    %v10125 = vcombine.low %v9730, %v9732
    %v10127 = vunpack.c.l.s4 1966171168
    %v10128 = vunpack.c.0.s8 %v10127
    %v10129 = vlaneseq
    %v10130 = vshrl.u32 %v10129, 7
    %v10131 = vsub.s32 %v10128, %v10130
    %v10132 = vrot.slane %v10124, %v10131
    %v10134 = vunpack.c.l.s4 1966171168
    %v10135 = vunpack.c.0.s8 %v10134
    %v10136 = vlaneseq
    %v10137 = vshrl.u32 %v10136, 7
    %v10138 = vsub.s32 %v10135, %v10137
    %v10139 = vrot.slane %v10125, %v10138
    %v10141 = vunpack.c.l.s4 1966171168
    %v10142 = vunpack.c.0.s8 %v10141
    %v10143 = vlaneseq
    %v10144 = vshrl.u32 %v10143, 7
    %v10145 = vsub.s32 %v10142, %v10144
    %v10146 = vrot.slane %v9715, %v10145
    %v10147 = vcombine.low %v10132, %v10139
    %v10149 = vunpack.c.l.s4 1966171168
    %v10150 = vunpack.c.0.s8 %v10149
    %v10151 = vlaneseq
    %v10152 = vshrl.u32 %v10151, 7
    %v10153 = vsub.s32 %v10150, %v10152
    %v10154 = vrot.slane %v10147, %v10153
    %v10156 = vunpack.c.l.s4 1966171168
    %v10157 = vunpack.c.0.s8 %v10156
    %v10158 = vlaneseq
    %v10159 = vshrl.u32 %v10158, 7
    %v10160 = vsub.s32 %v10157, %v10159
    %v10161 = vrot.slane %v10146, %v10160
    %v10162 = vcombine.low %v10154, %v10161
    %v10163 = vcombine.low %v9729, %v9731
    %v10164 = vcombine.low %v9733, %v9748
    %v10166 = vunpack.c.l.s4 1966171168
    %v10167 = vunpack.c.0.s8 %v10166
    %v10168 = vlaneseq
    %v10169 = vshrl.u32 %v10168, 7
    %v10170 = vsub.s32 %v10167, %v10169
    %v10171 = vrot.slane %v10163, %v10170
    %v10173 = vunpack.c.l.s4 1966171168
    %v10174 = vunpack.c.0.s8 %v10173
    %v10175 = vlaneseq
    %v10176 = vshrl.u32 %v10175, 7
    %v10177 = vsub.s32 %v10174, %v10176
    %v10178 = vrot.slane %v10164, %v10177
    %v10180 = vunpack.c.l.s4 1966171168
    %v10181 = vunpack.c.0.s8 %v10180
    %v10182 = vlaneseq
    %v10183 = vshrl.u32 %v10182, 7
    %v10184 = vsub.s32 %v10181, %v10183
    %v10185 = vrot.slane %v9755, %v10184
    %v10186 = vcombine.low %v10171, %v10178
    %v10188 = vunpack.c.l.s4 1966171168
    %v10189 = vunpack.c.0.s8 %v10188
    %v10190 = vlaneseq
    %v10191 = vshrl.u32 %v10190, 7
    %v10192 = vsub.s32 %v10189, %v10191
    %v10193 = vrot.slane %v10186, %v10192
    %v10195 = vunpack.c.l.s4 1966171168
    %v10196 = vunpack.c.0.s8 %v10195
    %v10197 = vlaneseq
    %v10198 = vshrl.u32 %v10197, 7
    %v10199 = vsub.s32 %v10196, %v10198
    %v10200 = vrot.slane %v10185, %v10199
    %v10201 = vcombine.low %v10193, %v10200
    %v10204 = vmul.f32 %v10117, %v10162
    %v10205 = vmul.f32 %v10122, %v10201
    %v10206 = vsel %vm4752, %v10204, 0.0
    %v10207 = vrot.slane %v10206, 4
    %v10208 = vadd.f32 %v10206, %v10207
    %v10209 = vrot.slane %v10208, 2
    %v10210 = vadd.f32 %v10208, %v10209
    %v10211 = vrot.slane %v10210, 1
    %v10212 = vadd.f32 %v10210, %v10211
    %v10213 = vsel %vm4752, %v10205, 0.0
    %v10214 = vrot.slane %v10213, 4
    %v10215 = vadd.f32 %v10213, %v10214
    %v10216 = vrot.slane %v10215, 2
    %v10217 = vadd.f32 %v10215, %v10216
    %v10218 = vrot.slane %v10217, 1
    %v10219 = vadd.f32 %v10217, %v10218
    %v10222 = vunpack.c.l.s4 1966171168
    %v10223 = vunpack.c.0.s8 %v10222
    %v10224 = vlaneseq
    %v10225 = vshrl.u32 %v10224, 7
    %v10226 = vsub.s32 %v10223, %v10225
    %v10227 = vrot.slane %v9203, %v10226
    %v10228 = vcombine.high %v10227, %v10227
    %v10230 = vunpack.c.l.s4 1966171168
    %v10231 = vunpack.c.0.s8 %v10230
    %v10232 = vlaneseq
    %v10233 = vshrl.u32 %v10232, 7
    %v10234 = vsub.s32 %v10231, %v10233
    %v10235 = vrot.slane %v10227, %v10234
    %v10237 = vunpack.c.l.s4 1966171168
    %v10238 = vunpack.c.0.s8 %v10237
    %v10239 = vlaneseq
    %v10240 = vshrl.u32 %v10239, 7
    %v10241 = vsub.s32 %v10238, %v10240
    %v10242 = vrot.slane %v10228, %v10241
    %s10243 = sld [smem:[#allocation3 + $0x4]]
    %p10244 = scmp.gt.s32.totalorder %s10243, 0
    %s10245 = scalar_select %p10244, 1, 0
    %v10246 = vstv %s10245
    %vm10247 = vcmp.eq.s32.totalorder %v10246, 1
    %v10248 = vrot.slane %v9203, 4
    %v10249 = vrot.slane %v9203, 5
    %10250 = vrot.lane.b32.xlu0 %v10248, 96
    %v10251 = vpop.permute.xlu0 %10250
    %10252 = vrot.lane.b32.xlu0 %v10249, 96
    %v10253 = vpop.permute.xlu0 %10252
    %v10256 = vsel %vm10247, %v3545, %v10251
    %v10257 = vsel %vm10247, %v3546, %v10253
    %v10260 = vrot.slane %v10257, 7
    %vm10261 = vcmask 1045509
    %v10262 = vsel %vm10261, %v10260, %v10256
    %v10266 = vsel %vm10261, %v10219, %v10212
    %10267 = vrot.lane.b32.xlu0 %v10266, 8
    %v10268 = vpop.permute.xlu0 %10267
    %v10270 = vsel %vm113, %v10262, %v10268
    %v10272 = vrot.slane %v10270, 4
    %v10273 = vsel %vm3550, %v10272, 0
    %10275 = vmatprep.subr.mxu0 0.0
    %10276 = vmatpush1.msra.mxu0 %v3519
    %10277 = vmatprep.subr.mxu0 0.0
    %10278 = vmatpush1.msra.mxu0 %v3520
    %10279 = vmatprep.subr.mxu0 0.0
    %10280 = vmatpush1.msra.mxu0 %v3521
    %10281 = vmatprep.subr.mxu0 0.0
    %10282 = vmatpush1.msra.mxu0 %v3522
    %10283 = vmatprep.subr.mxu0 0.0
    %10284 = vmatpush1.msra.mxu0 %v3523
    %10285 = vmatprep.subr.mxu0 0.0
    %10286 = vmatpush1.msra.mxu0 0.0
    %10287 = vmatprep.subr.mxu0 0.0
    %10288 = vmatpush1.msra.mxu0 0.0
    %10289 = vmatprep.subr.mxu0 0.0
    %10290 = vmatpush1.msra.mxu0 0.0
    %10291 = vmatprep.subr.mxu0 0.0
    %10292 = vmatpush1.msra.mxu0 0.0
    %10293 = vmatprep.subr.mxu0 0.0
    %10294 = vmatpush1.msra.mxu0 0.0
    %10295 = vmatprep.subr.mxu0 0.0
    %10296 = vmatpush1.msra.mxu0 0.0
    %10297 = vmatprep.subr.mxu0 0.0
    %10298 = vmatpush1.msra.mxu0 0.0
    %10299 = vmatprep.subr.mxu0 0.0
    %10300 = vmatpush1.msra.mxu0 0.0
    %10301 = vmatprep.subr.mxu0 0.0
    %10302 = vmatpush1.msra.mxu0 0.0
    %10303 = vmatprep.subr.mxu0 0.0
    %10304 = vmatpush1.msra.mxu0 0.0
    %10305 = vmatprep.subr.mxu0 0.0
    %10306 = vmatpush1.msra.mxu0 0.0
    %10307 = vmatprep.subr.mxu0 0.0
    %10308 = vmatpush1.msra.mxu0 0.0
    %10309 = vmatprep.subr.mxu0 0.0
    %10310 = vmatpush1.msra.mxu0 0.0
    %10311 = vmatprep.subr.mxu0 0.0
    %10312 = vmatpush1.msra.mxu0 0.0
    %10313 = vmatprep.subr.mxu0 0.0
    %10314 = vmatpush1.msra.mxu0 0.0
    %10315 = vmatprep.subr.mxu0 0.0
    %10316 = vmatpush1.msra.mxu0 0.0
    %10317 = vmatprep.subr.mxu0 0.0
    %10318 = vmatpush1.msra.mxu0 0.0
    %10319 = vmatprep.subr.mxu0 0.0
    %10320 = vmatpush1.msra.mxu0 0.0
    %10321 = vmatprep.subr.mxu0 0.0
    %10322 = vmatpush1.msra.mxu0 0.0
    %10323 = vmatprep.subr.mxu0 0.0
    %10324 = vmatpush1.msra.mxu0 0.0
    %10325 = vmatprep.subr.mxu0 0.0
    %10326 = vmatpush1.msra.mxu0 0.0
    %10327 = vmatprep.subr.mxu0 0.0
    %10328 = vmatpush1.msra.mxu0 0.0
    %10329 = vmatprep.subr.mxu0 0.0
    %10330 = vmatpush1.msra.mxu0 0.0
    %10331 = vmatprep.subr.mxu0 0.0
    %10332 = vmatpush1.msra.mxu0 0.0
    %10333 = vmatprep.subr.mxu0 0.0
    %10334 = vmatpush1.msra.mxu0 0.0
    %10335 = vmatprep.subr.mxu0 0.0
    %10336 = vmatpush1.msra.mxu0 0.0
    %10337 = vmatprep.subr.mxu0 0.0
    %10338 = vmatpush1.msra.mxu0 0.0
    %10339 = vmatprep.mubr.f32.mxu0 0.0
    %10340 = vmatmul.mubr.f32.gmra.mrb[0].mxu0 %v10273
    %v10341 = vpop.f32.mrb[0].mxu0
    %v10342 = vadd.f32 0.0, %v10341
    %v10343 = vpop.f32.mrb[0].mxu0
    %10344 = vdwg.mxu0
    %10345 = vmatprep.subr.mxu0 0.0
    %10346 = vmatpush1.msra.mxu0 %v3524
    %10347 = vmatprep.subr.mxu0 0.0
    %10348 = vmatpush1.msra.mxu0 %v3525
    %10349 = vmatprep.subr.mxu0 0.0
    %10350 = vmatpush1.msra.mxu0 %v3526
    %10351 = vmatprep.subr.mxu0 0.0
    %10352 = vmatpush1.msra.mxu0 %v3527
    %10353 = vmatprep.subr.mxu0 0.0
    %10354 = vmatpush1.msra.mxu0 0.0
    %10355 = vmatprep.subr.mxu0 0.0
    %10356 = vmatpush1.msra.mxu0 0.0
    %10357 = vmatprep.subr.mxu0 0.0
    %10358 = vmatpush1.msra.mxu0 0.0
    %10359 = vmatprep.subr.mxu0 0.0
    %10360 = vmatpush1.msra.mxu0 0.0
    %10361 = vmatprep.subr.mxu0 0.0
    %10362 = vmatpush1.msra.mxu0 0.0
    %10363 = vmatprep.subr.mxu0 0.0
    %10364 = vmatpush1.msra.mxu0 0.0
    %10365 = vmatprep.subr.mxu0 0.0
    %10366 = vmatpush1.msra.mxu0 0.0
    %10367 = vmatprep.subr.mxu0 0.0
    %10368 = vmatpush1.msra.mxu0 0.0
    %10369 = vmatprep.subr.mxu0 0.0
    %10370 = vmatpush1.msra.mxu0 0.0
    %10371 = vmatprep.subr.mxu0 0.0
    %10372 = vmatpush1.msra.mxu0 0.0
    %10373 = vmatprep.subr.mxu0 0.0
    %10374 = vmatpush1.msra.mxu0 0.0
    %10375 = vmatprep.subr.mxu0 0.0
    %10376 = vmatpush1.msra.mxu0 0.0
    %10377 = vmatprep.subr.mxu0 0.0
    %10378 = vmatpush1.msra.mxu0 0.0
    %10379 = vmatprep.subr.mxu0 0.0
    %10380 = vmatpush1.msra.mxu0 0.0
    %10381 = vmatprep.subr.mxu0 0.0
    %10382 = vmatpush1.msra.mxu0 0.0
    %10383 = vmatprep.subr.mxu0 0.0
    %10384 = vmatpush1.msra.mxu0 0.0
    %10385 = vmatprep.subr.mxu0 0.0
    %10386 = vmatpush1.msra.mxu0 0.0
    %10387 = vmatprep.subr.mxu0 0.0
    %10388 = vmatpush1.msra.mxu0 0.0
    %10389 = vmatprep.subr.mxu0 0.0
    %10390 = vmatpush1.msra.mxu0 0.0
    %10391 = vmatprep.subr.mxu0 0.0
    %10392 = vmatpush1.msra.mxu0 0.0
    %10393 = vmatprep.subr.mxu0 0.0
    %10394 = vmatpush1.msra.mxu0 0.0
    %10395 = vmatprep.subr.mxu0 0.0
    %10396 = vmatpush1.msra.mxu0 0.0
    %10397 = vmatprep.subr.mxu0 0.0
    %10398 = vmatpush1.msra.mxu0 0.0
    %10399 = vmatprep.subr.mxu0 0.0
    %10400 = vmatpush1.msra.mxu0 0.0
    %10401 = vmatprep.subr.mxu0 0.0
    %10402 = vmatpush1.msra.mxu0 0.0
    %10403 = vmatprep.subr.mxu0 0.0
    %10404 = vmatpush1.msra.mxu0 0.0
    %10405 = vmatprep.subr.mxu0 0.0
    %10406 = vmatpush1.msra.mxu0 0.0
    %10407 = vmatprep.subr.mxu0 0.0
    %10408 = vmatpush1.msra.mxu0 0.0
    %10409 = vmatprep.mubr.f32.mxu0 0.0
    %10410 = vmatmul.mubr.f32.gmra.mrb[0].mxu0 %v9134
    %v10411 = vpop.f32.mrb[0].mxu0
    %v10412 = vadd.f32 0.0, %v10411
    %v10413 = vpop.f32.mrb[0].mxu0
    %10414 = vdwg.mxu0
    %v10415 = vadd.f32 %v10342, %v10412
    %v10416 = vadd.f32 %v10415, %v3702
    %v10417 = vxor.u32 %v10416, 2147483648
    %v10418 = vmul.f32 %v10417, 1.442695
    %v10419 = vpow.pop %v10418
    %v10420 = vadd.f32 %v10419, 1.0
    %v10421 = vrcp.pop %v10420
    %v10422 = vmul.f32 1.0, %v10421
    %v10423 = vadd.f32 %v10342, %v3702
    %v10424 = vadd.f32 %v10412, %v3718
    %10426 = vrot.lane.b32.xlu0 %v10424, 64
    %v10427 = vpop.permute.xlu0 %10426
    %v10429 = vmul.f32 %v10422, %v10427
    %10431 = vrot.lane.b32.xlu0 %v10429, 64
    %v10432 = vpop.permute.xlu0 %10431
    %v10434 = vadd.f32 %v10423, %v10432
    %v10435 = vtanh.pop %v10434
    %v10436 = vsub.f32 1.0, %v10422
    %10438 = vrot.lane.b32.xlu0 %v10435, 96
    %v10439 = vpop.permute.xlu0 %10438
    %v10441 = vmul.f32 %v10436, %v10439
    %v10442 = vmul.f32 %v10422, %v9130
    %v10443 = vadd.f32 %v10441, %v10442
    %10445 = vrot.lane.b32.xlu0 %v10443, 96
    %v10446 = vpop.permute.xlu0 %10445
    %v10447 = vsel %vm186, %v10446, 0
    %10449 = vmatprep.subr.mxu0 0.0
    %10450 = vmatpush1.msra.mxu0 %v3530
    %10451 = vmatprep.subr.mxu0 0.0
    %10452 = vmatpush1.msra.mxu0 %v3531
    %10453 = vmatprep.subr.mxu0 0.0
    %10454 = vmatpush1.msra.mxu0 %v3532
    %10455 = vmatprep.subr.mxu0 0.0
    %10456 = vmatpush1.msra.mxu0 %v3533
    %10457 = vmatprep.subr.mxu0 0.0
    %10458 = vmatpush1.msra.mxu0 0.0
    %10459 = vmatprep.subr.mxu0 0.0
    %10460 = vmatpush1.msra.mxu0 0.0
    %10461 = vmatprep.subr.mxu0 0.0
    %10462 = vmatpush1.msra.mxu0 0.0
    %10463 = vmatprep.subr.mxu0 0.0
    %10464 = vmatpush1.msra.mxu0 0.0
    %10465 = vmatprep.subr.mxu0 0.0
    %10466 = vmatpush1.msra.mxu0 0.0
    %10467 = vmatprep.subr.mxu0 0.0
    %10468 = vmatpush1.msra.mxu0 0.0
    %10469 = vmatprep.subr.mxu0 0.0
    %10470 = vmatpush1.msra.mxu0 0.0
    %10471 = vmatprep.subr.mxu0 0.0
    %10472 = vmatpush1.msra.mxu0 0.0
    %10473 = vmatprep.subr.mxu0 0.0
    %10474 = vmatpush1.msra.mxu0 0.0
    %10475 = vmatprep.subr.mxu0 0.0
    %10476 = vmatpush1.msra.mxu0 0.0
    %10477 = vmatprep.subr.mxu0 0.0
    %10478 = vmatpush1.msra.mxu0 0.0
    %10479 = vmatprep.subr.mxu0 0.0
    %10480 = vmatpush1.msra.mxu0 0.0
    %10481 = vmatprep.subr.mxu0 0.0
    %10482 = vmatpush1.msra.mxu0 0.0
    %10483 = vmatprep.subr.mxu0 0.0
    %10484 = vmatpush1.msra.mxu0 0.0
    %10485 = vmatprep.subr.mxu0 0.0
    %10486 = vmatpush1.msra.mxu0 0.0
    %10487 = vmatprep.subr.mxu0 0.0
    %10488 = vmatpush1.msra.mxu0 0.0
    %10489 = vmatprep.subr.mxu0 0.0
    %10490 = vmatpush1.msra.mxu0 0.0
    %10491 = vmatprep.subr.mxu0 0.0
    %10492 = vmatpush1.msra.mxu0 0.0
    %10493 = vmatprep.subr.mxu0 0.0
    %10494 = vmatpush1.msra.mxu0 0.0
    %10495 = vmatprep.subr.mxu0 0.0
    %10496 = vmatpush1.msra.mxu0 0.0
    %10497 = vmatprep.subr.mxu0 0.0
    %10498 = vmatpush1.msra.mxu0 0.0
    %10499 = vmatprep.subr.mxu0 0.0
    %10500 = vmatpush1.msra.mxu0 0.0
    %10501 = vmatprep.subr.mxu0 0.0
    %10502 = vmatpush1.msra.mxu0 0.0
    %10503 = vmatprep.subr.mxu0 0.0
    %10504 = vmatpush1.msra.mxu0 0.0
    %10505 = vmatprep.subr.mxu0 0.0
    %10506 = vmatpush1.msra.mxu0 0.0
    %10507 = vmatprep.subr.mxu0 0.0
    %10508 = vmatpush1.msra.mxu0 0.0
    %10509 = vmatprep.subr.mxu0 0.0
    %10510 = vmatpush1.msra.mxu0 0.0
    %10511 = vmatprep.subr.mxu0 0.0
    %10512 = vmatpush1.msra.mxu0 0.0
    %10513 = vmatprep.mubr.f32.mxu0 0.0
    %10514 = vmatmul.mubr.f32.gmra.mrb[0].mxu0 %v10447
    %v10515 = vpop.f32.mrb[0].mxu0
    %v10516 = vadd.f32 %v3744, %v10515
    %v10517 = vpop.f32.mrb[0].mxu0
    %10518 = vdwg.mxu0
    %v10521 = vunpack.c.l.s4 1966171168
    %v10522 = vunpack.c.0.s8 %v10521
    %v10523 = vlaneseq
    %v10524 = vshrl.u32 %v10523, 7
    %v10525 = vsub.s32 %v10522, %v10524
    %v10526 = vrot.slane %v10516, %v10525
    %v10527 = vcombine.high %v10526, %v10526
    %v10529 = vunpack.c.l.s4 1966171168
    %v10530 = vunpack.c.0.s8 %v10529
    %v10531 = vlaneseq
    %v10532 = vshrl.u32 %v10531, 7
    %v10533 = vsub.s32 %v10530, %v10532
    %v10534 = vrot.slane %v10526, %v10533
    %v10536 = vunpack.c.l.s4 1966171168
    %v10537 = vunpack.c.0.s8 %v10536
    %v10538 = vlaneseq
    %v10539 = vshrl.u32 %v10538, 7
    %v10540 = vsub.s32 %v10537, %v10539
    %v10541 = vrot.slane %v10527, %v10540
    %v10542 = vlaneseq
    %v10543 = vshrl.u32 %v10542, 7
    %v10544 = vsub.s32 0, %v10543
    %v10545 = vrot.slane %v6297, %v10544
    %v10546 = vlaneseq
    %v10547 = vshrl.u32 %v10546, 7
    %v10548 = vsub.s32 0, %v10547
    %v10549 = vrot.slane %v6304, %v10548
    %v10552 = vlaneseq
    %v10553 = vshrl.u32 %v10552, 7
    %v10554 = vsub.s32 0, %v10553
    %v10555 = vrot.slane %v7609, %v10554
    %v10556 = vlaneseq
    %v10557 = vshrl.u32 %v10556, 7
    %v10558 = vsub.s32 0, %v10557
    %v10559 = vrot.slane %v7616, %v10558
    %v10562 = vlaneseq
    %v10563 = vshrl.u32 %v10562, 7
    %v10564 = vsub.s32 0, %v10563
    %v10565 = vrot.slane %v8922, %v10564
    %v10566 = vlaneseq
    %v10567 = vshrl.u32 %v10566, 7
    %v10568 = vsub.s32 0, %v10567
    %v10569 = vrot.slane %v8929, %v10568
    %v10572 = vlaneseq
    %v10573 = vshrl.u32 %v10572, 7
    %v10574 = vsub.s32 0, %v10573
    %v10575 = vrot.slane %v10235, %v10574
    %v10576 = vlaneseq
    %v10577 = vshrl.u32 %v10576, 7
    %v10578 = vsub.s32 0, %v10577
    %v10579 = vrot.slane %v10242, %v10578
    %v10582 = vlaneseq
    %v10583 = vshrl.u32 %v10582, 7
    %v10584 = vsub.s32 0, %v10583
    %v10585 = vrot.slane %v10534, %v10584
    %v10586 = vlaneseq
    %v10587 = vshrl.u32 %v10586, 7
    %v10588 = vsub.s32 0, %v10587
    %v10589 = vrot.slane %v10541, %v10588
    %v10592 = vsel %vm3484, %v4985, %v10545
    %v10593 = vsel %vm3484, %v4992, %v10549
    %v10594 = vsel %vm3487, %v10592, %v10555
    %v10595 = vsel %vm3487, %v10593, %v10559
    %v10596 = vsel %vm3490, %v10594, %v10565
    %v10597 = vsel %vm3490, %v10595, %v10569
    %v10598 = vsel %vm3493, %v10596, %v10575
    %v10599 = vsel %vm3493, %v10597, %v10579
    %v10600 = vsel %vm3496, %v10598, %v10585
    %v10601 = vsel %vm3496, %v10599, %v10589
    %10604 = vrot.lane.b32.xlu0 %v10600, 96
    %v10605 = vpop.permute.xlu0 %10604
    %10606 = vrot.lane.b32.xlu0 %v10601, 96
    %v10607 = vpop.permute.xlu0 %10606
    %vm10610 = vcmask 62464
    %10611 = vst.msk [vmem:[%s17] sm:$0x3f] %vm10610, %v10605
    %10612 = vst.msk [vmem:[%s17 + $0x8] sm:$0x3f] %vm10610, %v10607
    // Predicated region
    $region82: #{seq2seq_forward.1} parent=1 // pred_check
      _
    $region83: #{seq2seq_forward.1} parent=1 // pred_check_branch
      %10614 = sbr.rel (0) target = $region85
    $region84: #{seq2seq_forward.1} parent=1 // pred_region
      _
    $region85: #{seq2seq_forward.1} parent=1 // pred_fallthru
      _
    // Predicated region
    $region86: #{seq2seq_forward.1} parent=1 // pred_check
      _
    $region87: #{seq2seq_forward.1} parent=1 // pred_check_branch
      %10616 = sbr.rel (0) target = $region89
    $region88: #{seq2seq_forward.1} parent=1 // pred_region
      _
    $region89: #{seq2seq_forward.1} parent=1 // pred_fallthru
      _
    %10617 = vsyncpa [#allocation4], 1
    %10618 = vsyncpa [#allocation8], 1
    %10619 = vsyncpa [#allocation5], 1

</llo_original>
